<compile_context>
chip_gen: v6e
topology: v6e:2x2x1
jax: 0.10.0
libtpu: 0.0.40
codegen_flags: <defaults>
</compile_context>

<pallas_src>
import functools

import jax
import jax.numpy as jnp
from jax.experimental import pallas as pl
from jax.experimental.pallas import tpu as pltpu


def _upsampler_kernel(x_ref, w_ref, b_ref, e_ref, osc_ref, out_ref, *, cout, tr):
    # x_ref:   (1, Cin, tr, W)      native NCHW input rows
    # w_ref:   (4*Cout, Cin)        BN-folded deconv weights, k = 2*di + dj major
    # b_ref:   (Cout, 1)            BN-folded shift
    # e_ref:   (W, 2W)              E[j, 2j]   = 1   (even-lane scatter)
    # osc_ref: (W, 2W)              O[j, 2j+1] = 1   (odd-lane scatter)
    # out_ref: (1, Cout, 2*tr, 2W)  native NCHW output rows
    w = w_ref[...]
    e = e_ref[...]
    osc = osc_ref[...]
    shift = b_ref[...]                                        # (Cout, 1)

    for i in range(tr):
        x_row = x_ref[0, :, i, :]                             # (Cin, W)
        # All four (di, dj) taps in one MXU push: (4*Cout, Cin) @ (Cin, W)
        z = jnp.dot(w, x_row, preferred_element_type=jnp.float32)   # (4*Cout, W)
        for di in range(2):
            y0 = z[(2 * di + 0) * cout:(2 * di + 1) * cout, :]      # dj = 0
            y1 = z[(2 * di + 1) * cout:(2 * di + 2) * cout, :]      # dj = 1
            # Lane interleave -> dense 2W-wide output row, via 0/1 scatter matmuls.
            row = (jnp.dot(y0, e, preferred_element_type=jnp.float32)
                   + jnp.dot(y1, osc, preferred_element_type=jnp.float32)
                   + shift)
            out_ref[0, :, 2 * i + di, :] = jnp.maximum(row, 0.0).astype(out_ref.dtype)


def _pick_tr(H, W, Cin, Cout, budget_bytes=12 * 1024 * 1024, cap=16):
    """Input rows processed per grid step, sized from a double-buffered VMEM budget."""
    valid = [t for t in range(1, H + 1)
             if H % t == 0 and (t == H or t % 8 == 0)]   # keep (8,128) tiling happy

    def fits(t):
        # x block + out block, f32, double buffered.
        return 8 * t * W * (Cin + 4 * Cout) <= budget_bytes

    for t in sorted(valid, reverse=True):
        if t <= cap and fits(t):
            return t
    for t in sorted(valid, reverse=True):
        if fits(t):
            return t
    return min(valid)


@jax.jit
def upsampler_forward(x, weight, gamma, beta, running_mean, running_var, eps=1e-5):
    # x: (N, Cin, H, W) NCHW; weight: (Cin, Cout, 2, 2) (PyTorch ConvTranspose2d layout)
    N, Cin, H, W = x.shape
    Cout = weight.shape[1]

    # Fold inference BatchNorm into the deconv weights / bias (tiny host-side op).
    scale = gamma * jax.lax.rsqrt(running_var + eps)               # (Cout,)
    shift = beta - running_mean * scale                            # (Cout,)
    wk = jnp.transpose(weight, (2, 3, 1, 0)).reshape(4, Cout, Cin)  # [k=(di,dj), co, ci]
    wstack = (wk * scale[None, :, None]).reshape(4 * Cout, Cin).astype(jnp.float32)
    bias = shift.reshape(Cout, 1).astype(jnp.float32)

    # Constant 0/1 scatter matrices for the column (dj) interleave.
    col = jnp.arange(2 * W)[None, :]
    row = jnp.arange(W)[:, None]
    e_mat = (col == 2 * row).astype(jnp.float32)                   # (W, 2W)
    o_mat = (col == 2 * row + 1).astype(jnp.float32)               # (W, 2W)

    tr = _pick_tr(H, W, Cin, Cout)
    grid = (N, H // tr)

    kernel = functools.partial(_upsampler_kernel, cout=Cout, tr=tr)
    out = pl.pallas_call(
        kernel,
        out_shape=jax.ShapeDtypeStruct((N, Cout, 2 * H, 2 * W), x.dtype),
        grid_spec=pltpu.PrefetchScalarGridSpec(
            num_scalar_prefetch=0,
            grid=grid,
            in_specs=[
                pl.BlockSpec((1, Cin, tr, W), lambda n, r: (n, 0, r, 0)),   # x (NCHW)
                pl.BlockSpec((4 * Cout, Cin), lambda n, r: (0, 0)),          # weights
                pl.BlockSpec((Cout, 1), lambda n, r: (0, 0)),                # bias
                pl.BlockSpec((W, 2 * W), lambda n, r: (0, 0)),               # E scatter
                pl.BlockSpec((W, 2 * W), lambda n, r: (0, 0)),               # O scatter
            ],
            out_specs=pl.BlockSpec((1, Cout, 2 * tr, 2 * W),
                                   lambda n, r: (n, 0, r, 0)),               # out (NCHW)
        ),
        compiler_params=pltpu.CompilerParams(
            dimension_semantics=("parallel", "parallel")),
    )(x, wstack, bias, e_mat, o_mat)
    return out


def ref_forward(x, weight, gamma, beta, mean, var, eps=1e-5):
    # Pure-JAX reference mirroring the PyTorch forward (inference-mode BN).
    N, Cin, H, W = x.shape
    Cout = weight.shape[1]
    t = jnp.einsum("ncij,codk->noidjk", x, weight,
                   precision=jax.lax.Precision.HIGHEST)            # (N,Cout,H,2,W,2)
    y = t.reshape(N, Cout, 2 * H, 2 * W)
    scale = gamma / jnp.sqrt(var + eps)
    shift = beta - mean * scale
    y = y * scale[None, :, None, None] + shift[None, :, None, None]
    return jnp.maximum(y, 0.0)


if __name__ == "__main__":
    # Small shapes consistent with the module: UpSampler(in_channels=16, out_channels=8)
    N, Cin, Cout, H, W = 2, 16, 8, 16, 16

    key = jax.random.PRNGKey(0)
    kx, kw, kg, kb, km, kv = jax.random.split(key, 6)

    x = jax.random.normal(kx, (N, Cin, H, W), dtype=jnp.float32)
    weight = jax.random.normal(kw, (Cin, Cout, 2, 2), dtype=jnp.float32) * 0.1
    gamma = 1.0 + 0.1 * jax.random.normal(kg, (Cout,), dtype=jnp.float32)
    beta = 0.1 * jax.random.normal(kb, (Cout,), dtype=jnp.float32)
    running_mean = 0.1 * jax.random.normal(km, (Cout,), dtype=jnp.float32)
    running_var = 0.5 + jnp.abs(jax.random.normal(kv, (Cout,), dtype=jnp.float32))

    out = upsampler_forward(x, weight, gamma, beta, running_mean, running_var)
    out = jax.block_until_ready(out)

    ref = ref_forward(x, weight, gamma, beta, running_mean, running_var)
    assert out.shape == (N, Cout, 2 * H, 2 * W)
    assert jnp.allclose(out, ref, rtol=1e-4, atol=1e-4), "mismatch vs reference"

    print("KERNEL_OK")
</pallas_src>

<mosaic_0001>
module attributes {stable_mosaic.version = 11 : i64} {
  func.func @_upsampler_kernel(%arg0: i32, %arg1: i32, %arg2: memref<1x16x16x16xf32, #tpu.memory_space<vmem>>, %arg3: memref<32x16xf32, #tpu.memory_space<vmem>>, %arg4: memref<8x1xf32, #tpu.memory_space<vmem>>, %arg5: memref<16x32xf32, #tpu.memory_space<vmem>>, %arg6: memref<16x32xf32, #tpu.memory_space<vmem>>, %arg7: memref<1x8x32x32xf32, #tpu.memory_space<vmem>>) attributes {dimension_semantics = [#tpu.dimension_semantics<parallel>, #tpu.dimension_semantics<parallel>], iteration_bounds = array<i64: 2, 1>, scalar_prefetch = 0 : i64, scratch_operands = 0 : i64, tpu.core_type = #tpu.core_type<tc>, window_params = [{transform_indices = @transform_0, window_bounds = array<i64: 1, 16, 16, 16>}, {pipeline_mode = #tpu.pipeline_mode<synchronous>, transform_indices = @transform_1, window_bounds = array<i64: 32, 16>}, {pipeline_mode = #tpu.pipeline_mode<synchronous>, transform_indices = @transform_2, window_bounds = array<i64: 8, 1>}, {pipeline_mode = #tpu.pipeline_mode<synchronous>, transform_indices = @transform_3, window_bounds = array<i64: 16, 32>}, {pipeline_mode = #tpu.pipeline_mode<synchronous>, transform_indices = @transform_4, window_bounds = array<i64: 16, 32>}, {transform_indices = @transform_5, window_bounds = array<i64: 1, 8, 32, 32>}]} {
    %c0 = arith.constant 0 : index
    %c0_0 = arith.constant 0 : index
    %0 = vector.load %arg3[%c0, %c0_0] : memref<32x16xf32, #tpu.memory_space<vmem>>, vector<32x16xf32>
    %c0_1 = arith.constant 0 : index
    %c0_2 = arith.constant 0 : index
    %1 = vector.load %arg5[%c0_1, %c0_2] : memref<16x32xf32, #tpu.memory_space<vmem>>, vector<16x32xf32>
    %c0_3 = arith.constant 0 : index
    %c0_4 = arith.constant 0 : index
    %2 = vector.load %arg6[%c0_3, %c0_4] : memref<16x32xf32, #tpu.memory_space<vmem>>, vector<16x32xf32>
    %c0_5 = arith.constant 0 : index
    %c0_6 = arith.constant 0 : index
    %3 = vector.load %arg4[%c0_5, %c0_6] : memref<8x1xf32, #tpu.memory_space<vmem>>, vector<8x1xf32>
    %c0_7 = arith.constant 0 : index
    %c0_8 = arith.constant 0 : index
    %c0_9 = arith.constant 0 : index
    %c0_10 = arith.constant 0 : index
    %4 = vector.load %arg2[%c0_7, %c0_8, %c0_9, %c0_10] : memref<1x16x16x16xf32, #tpu.memory_space<vmem>>, vector<1x16x1x16xf32>
    %5 = vector.shape_cast %4 : vector<1x16x1x16xf32> to vector<16x16xf32>
    %cst = arith.constant dense<0.000000e+00> : vector<32x16xf32>
    %6 = tpu.matmul %0, %5, %cst {dimension_numbers = #tpu.dot_dimension_numbers<[1], [0], [0], [1], [0, 0, 1, 1], [], []>} : vector<32x16xf32>, vector<16x16xf32>, vector<32x16xf32> -> vector<32x16xf32>
    %7 = vector.extract_strided_slice %6 {offsets = [0, 0], sizes = [8, 16], strides = [1, 1]} : vector<32x16xf32> to vector<8x16xf32>
    %8 = vector.extract_strided_slice %6 {offsets = [8, 0], sizes = [8, 16], strides = [1, 1]} : vector<32x16xf32> to vector<8x16xf32>
    %cst_11 = arith.constant dense<0.000000e+00> : vector<8x32xf32>
    %9 = tpu.matmul %7, %1, %cst_11 {dimension_numbers = #tpu.dot_dimension_numbers<[1], [0], [0], [1], [0, 0, 1, 1], [], []>} : vector<8x16xf32>, vector<16x32xf32>, vector<8x32xf32> -> vector<8x32xf32>
    %cst_12 = arith.constant dense<0.000000e+00> : vector<8x32xf32>
    %10 = tpu.matmul %8, %2, %cst_12 {dimension_numbers = #tpu.dot_dimension_numbers<[1], [0], [0], [1], [0, 0, 1, 1], [], []>} : vector<8x16xf32>, vector<16x32xf32>, vector<8x32xf32> -> vector<8x32xf32>
    %11 = arith.addf %9, %10 : vector<8x32xf32>
    %12 = vector.broadcast %3 : vector<8x1xf32> to vector<8x32xf32>
    %13 = arith.addf %11, %12 : vector<8x32xf32>
    %cst_13 = arith.constant 0.000000e+00 : f32
    %14 = vector.broadcast %cst_13 : f32 to vector<8x32xf32>
    %15 = arith.maximumf %13, %14 : vector<8x32xf32>
    %c0_14 = arith.constant 0 : index
    %c0_15 = arith.constant 0 : index
    %c0_16 = arith.constant 0 : index
    %c0_17 = arith.constant 0 : index
    %16 = vector.load %arg7[%c0_14, %c0_15, %c0_16, %c0_17] : memref<1x8x32x32xf32, #tpu.memory_space<vmem>>, vector<1x8x1x32xf32>
    %17 = vector.shape_cast %16 : vector<1x8x1x32xf32> to vector<8x32xf32>
    %18 = vector.shape_cast %15 : vector<8x32xf32> to vector<1x8x1x32xf32>
    tpu.vector_store %arg7[%c0_14, %c0_15, %c0_16, %c0_17], %18 {strides = array<i32>} : memref<1x8x32x32xf32, #tpu.memory_space<vmem>>, vector<1x8x1x32xf32>,
    %19 = vector.extract_strided_slice %6 {offsets = [16, 0], sizes = [8, 16], strides = [1, 1]} : vector<32x16xf32> to vector<8x16xf32>
    %20 = vector.extract_strided_slice %6 {offsets = [24, 0], sizes = [8, 16], strides = [1, 1]} : vector<32x16xf32> to vector<8x16xf32>
    %cst_18 = arith.constant dense<0.000000e+00> : vector<8x32xf32>
    %21 = tpu.matmul %19, %1, %cst_18 {dimension_numbers = #tpu.dot_dimension_numbers<[1], [0], [0], [1], [0, 0, 1, 1], [], []>} : vector<8x16xf32>, vector<16x32xf32>, vector<8x32xf32> -> vector<8x32xf32>
    %cst_19 = arith.constant dense<0.000000e+00> : vector<8x32xf32>
    %22 = tpu.matmul %20, %2, %cst_19 {dimension_numbers = #tpu.dot_dimension_numbers<[1], [0], [0], [1], [0, 0, 1, 1], [], []>} : vector<8x16xf32>, vector<16x32xf32>, vector<8x32xf32> -> vector<8x32xf32>
    %23 = arith.addf %21, %22 : vector<8x32xf32>
    %24 = vector.broadcast %3 : vector<8x1xf32> to vector<8x32xf32>
    %25 = arith.addf %23, %24 : vector<8x32xf32>
    %cst_20 = arith.constant 0.000000e+00 : f32
    %26 = vector.broadcast %cst_20 : f32 to vector<8x32xf32>
    %27 = arith.maximumf %25, %26 : vector<8x32xf32>
    %c0_21 = arith.constant 0 : index
    %c0_22 = arith.constant 0 : index
    %c1 = arith.constant 1 : index
    %c0_23 = arith.constant 0 : index
    %28 = vector.load %arg7[%c0_21, %c0_22, %c1, %c0_23] : memref<1x8x32x32xf32, #tpu.memory_space<vmem>>, vector<1x8x1x32xf32>
    %29 = vector.shape_cast %28 : vector<1x8x1x32xf32> to vector<8x32xf32>
    %30 = vector.shape_cast %27 : vector<8x32xf32> to vector<1x8x1x32xf32>
    tpu.vector_store %arg7[%c0_21, %c0_22, %c1, %c0_23], %30 {strides = array<i32>} : memref<1x8x32x32xf32, #tpu.memory_space<vmem>>, vector<1x8x1x32xf32>,
    %c0_24 = arith.constant 0 : index
    %c0_25 = arith.constant 0 : index
    %c1_26 = arith.constant 1 : index
    %c0_27 = arith.constant 0 : index
    %31 = vector.load %arg2[%c0_24, %c0_25, %c1_26, %c0_27] : memref<1x16x16x16xf32, #tpu.memory_space<vmem>>, vector<1x16x1x16xf32>
    %32 = vector.shape_cast %31 : vector<1x16x1x16xf32> to vector<16x16xf32>
    %cst_28 = arith.constant dense<0.000000e+00> : vector<32x16xf32>
    %33 = tpu.matmul %0, %32, %cst_28 {dimension_numbers = #tpu.dot_dimension_numbers<[1], [0], [0], [1], [0, 0, 1, 1], [], []>} : vector<32x16xf32>, vector<16x16xf32>, vector<32x16xf32> -> vector<32x16xf32>
    %34 = vector.extract_strided_slice %33 {offsets = [0, 0], sizes = [8, 16], strides = [1, 1]} : vector<32x16xf32> to vector<8x16xf32>
    %35 = vector.extract_strided_slice %33 {offsets = [8, 0], sizes = [8, 16], strides = [1, 1]} : vector<32x16xf32> to vector<8x16xf32>
    %cst_29 = arith.constant dense<0.000000e+00> : vector<8x32xf32>
    %36 = tpu.matmul %34, %1, %cst_29 {dimension_numbers = #tpu.dot_dimension_numbers<[1], [0], [0], [1], [0, 0, 1, 1], [], []>} : vector<8x16xf32>, vector<16x32xf32>, vector<8x32xf32> -> vector<8x32xf32>
    %cst_30 = arith.constant dense<0.000000e+00> : vector<8x32xf32>
    %37 = tpu.matmul %35, %2, %cst_30 {dimension_numbers = #tpu.dot_dimension_numbers<[1], [0], [0], [1], [0, 0, 1, 1], [], []>} : vector<8x16xf32>, vector<16x32xf32>, vector<8x32xf32> -> vector<8x32xf32>
    %38 = arith.addf %36, %37 : vector<8x32xf32>
    %39 = vector.broadcast %3 : vector<8x1xf32> to vector<8x32xf32>
    %40 = arith.addf %38, %39 : vector<8x32xf32>
    %cst_31 = arith.constant 0.000000e+00 : f32
    %41 = vector.broadcast %cst_31 : f32 to vector<8x32xf32>
    %42 = arith.maximumf %40, %41 : vector<8x32xf32>
    %c0_32 = arith.constant 0 : index
    %c0_33 = arith.constant 0 : index
    %c2 = arith.constant 2 : index
    %c0_34 = arith.constant 0 : index
    %43 = vector.load %arg7[%c0_32, %c0_33, %c2, %c0_34] : memref<1x8x32x32xf32, #tpu.memory_space<vmem>>, vector<1x8x1x32xf32>
    %44 = vector.shape_cast %43 : vector<1x8x1x32xf32> to vector<8x32xf32>
    %45 = vector.shape_cast %42 : vector<8x32xf32> to vector<1x8x1x32xf32>
    tpu.vector_store %arg7[%c0_32, %c0_33, %c2, %c0_34], %45 {strides = array<i32>} : memref<1x8x32x32xf32, #tpu.memory_space<vmem>>, vector<1x8x1x32xf32>,
    %46 = vector.extract_strided_slice %33 {offsets = [16, 0], sizes = [8, 16], strides = [1, 1]} : vector<32x16xf32> to vector<8x16xf32>
    %47 = vector.extract_strided_slice %33 {offsets = [24, 0], sizes = [8, 16], strides = [1, 1]} : vector<32x16xf32> to vector<8x16xf32>
    %cst_35 = arith.constant dense<0.000000e+00> : vector<8x32xf32>
    %48 = tpu.matmul %46, %1, %cst_35 {dimension_numbers = #tpu.dot_dimension_numbers<[1], [0], [0], [1], [0, 0, 1, 1], [], []>} : vector<8x16xf32>, vector<16x32xf32>, vector<8x32xf32> -> vector<8x32xf32>
    %cst_36 = arith.constant dense<0.000000e+00> : vector<8x32xf32>
    %49 = tpu.matmul %47, %2, %cst_36 {dimension_numbers = #tpu.dot_dimension_numbers<[1], [0], [0], [1], [0, 0, 1, 1], [], []>} : vector<8x16xf32>, vector<16x32xf32>, vector<8x32xf32> -> vector<8x32xf32>
    %50 = arith.addf %48, %49 : vector<8x32xf32>
    %51 = vector.broadcast %3 : vector<8x1xf32> to vector<8x32xf32>
    %52 = arith.addf %50, %51 : vector<8x32xf32>
    %cst_37 = arith.constant 0.000000e+00 : f32
    %53 = vector.broadcast %cst_37 : f32 to vector<8x32xf32>
    %54 = arith.maximumf %52, %53 : vector<8x32xf32>
    %c0_38 = arith.constant 0 : index
    %c0_39 = arith.constant 0 : index
    %c3 = arith.constant 3 : index
    %c0_40 = arith.constant 0 : index
    %55 = vector.load %arg7[%c0_38, %c0_39, %c3, %c0_40] : memref<1x8x32x32xf32, #tpu.memory_space<vmem>>, vector<1x8x1x32xf32>
    %56 = vector.shape_cast %55 : vector<1x8x1x32xf32> to vector<8x32xf32>
    %57 = vector.shape_cast %54 : vector<8x32xf32> to vector<1x8x1x32xf32>
    tpu.vector_store %arg7[%c0_38, %c0_39, %c3, %c0_40], %57 {strides = array<i32>} : memref<1x8x32x32xf32, #tpu.memory_space<vmem>>, vector<1x8x1x32xf32>,
    %c0_41 = arith.constant 0 : index
    %c0_42 = arith.constant 0 : index
    %c2_43 = arith.constant 2 : index
    %c0_44 = arith.constant 0 : index
    %58 = vector.load %arg2[%c0_41, %c0_42, %c2_43, %c0_44] : memref<1x16x16x16xf32, #tpu.memory_space<vmem>>, vector<1x16x1x16xf32>
    %59 = vector.shape_cast %58 : vector<1x16x1x16xf32> to vector<16x16xf32>
    %cst_45 = arith.constant dense<0.000000e+00> : vector<32x16xf32>
    %60 = tpu.matmul %0, %59, %cst_45 {dimension_numbers = #tpu.dot_dimension_numbers<[1], [0], [0], [1], [0, 0, 1, 1], [], []>} : vector<32x16xf32>, vector<16x16xf32>, vector<32x16xf32> -> vector<32x16xf32>
    %61 = vector.extract_strided_slice %60 {offsets = [0, 0], sizes = [8, 16], strides = [1, 1]} : vector<32x16xf32> to vector<8x16xf32>
    %62 = vector.extract_strided_slice %60 {offsets = [8, 0], sizes = [8, 16], strides = [1, 1]} : vector<32x16xf32> to vector<8x16xf32>
    %cst_46 = arith.constant dense<0.000000e+00> : vector<8x32xf32>
    %63 = tpu.matmul %61, %1, %cst_46 {dimension_numbers = #tpu.dot_dimension_numbers<[1], [0], [0], [1], [0, 0, 1, 1], [], []>} : vector<8x16xf32>, vector<16x32xf32>, vector<8x32xf32> -> vector<8x32xf32>
    %cst_47 = arith.constant dense<0.000000e+00> : vector<8x32xf32>
    %64 = tpu.matmul %62, %2, %cst_47 {dimension_numbers = #tpu.dot_dimension_numbers<[1], [0], [0], [1], [0, 0, 1, 1], [], []>} : vector<8x16xf32>, vector<16x32xf32>, vector<8x32xf32> -> vector<8x32xf32>
    %65 = arith.addf %63, %64 : vector<8x32xf32>
    %66 = vector.broadcast %3 : vector<8x1xf32> to vector<8x32xf32>
    %67 = arith.addf %65, %66 : vector<8x32xf32>
    %cst_48 = arith.constant 0.000000e+00 : f32
    %68 = vector.broadcast %cst_48 : f32 to vector<8x32xf32>
    %69 = arith.maximumf %67, %68 : vector<8x32xf32>
    %c0_49 = arith.constant 0 : index
    %c0_50 = arith.constant 0 : index
    %c4 = arith.constant 4 : index
    %c0_51 = arith.constant 0 : index
    %70 = vector.load %arg7[%c0_49, %c0_50, %c4, %c0_51] : memref<1x8x32x32xf32, #tpu.memory_space<vmem>>, vector<1x8x1x32xf32>
    %71 = vector.shape_cast %70 : vector<1x8x1x32xf32> to vector<8x32xf32>
    %72 = vector.shape_cast %69 : vector<8x32xf32> to vector<1x8x1x32xf32>
    tpu.vector_store %arg7[%c0_49, %c0_50, %c4, %c0_51], %72 {strides = array<i32>} : memref<1x8x32x32xf32, #tpu.memory_space<vmem>>, vector<1x8x1x32xf32>,
    %73 = vector.extract_strided_slice %60 {offsets = [16, 0], sizes = [8, 16], strides = [1, 1]} : vector<32x16xf32> to vector<8x16xf32>
    %74 = vector.extract_strided_slice %60 {offsets = [24, 0], sizes = [8, 16], strides = [1, 1]} : vector<32x16xf32> to vector<8x16xf32>
    %cst_52 = arith.constant dense<0.000000e+00> : vector<8x32xf32>
    %75 = tpu.matmul %73, %1, %cst_52 {dimension_numbers = #tpu.dot_dimension_numbers<[1], [0], [0], [1], [0, 0, 1, 1], [], []>} : vector<8x16xf32>, vector<16x32xf32>, vector<8x32xf32> -> vector<8x32xf32>
    %cst_53 = arith.constant dense<0.000000e+00> : vector<8x32xf32>
    %76 = tpu.matmul %74, %2, %cst_53 {dimension_numbers = #tpu.dot_dimension_numbers<[1], [0], [0], [1], [0, 0, 1, 1], [], []>} : vector<8x16xf32>, vector<16x32xf32>, vector<8x32xf32> -> vector<8x32xf32>
    %77 = arith.addf %75, %76 : vector<8x32xf32>
    %78 = vector.broadcast %3 : vector<8x1xf32> to vector<8x32xf32>
    %79 = arith.addf %77, %78 : vector<8x32xf32>
    %cst_54 = arith.constant 0.000000e+00 : f32
    %80 = vector.broadcast %cst_54 : f32 to vector<8x32xf32>
    %81 = arith.maximumf %79, %80 : vector<8x32xf32>
    %c0_55 = arith.constant 0 : index
    %c0_56 = arith.constant 0 : index
    %c5 = arith.constant 5 : index
    %c0_57 = arith.constant 0 : index
    %82 = vector.load %arg7[%c0_55, %c0_56, %c5, %c0_57] : memref<1x8x32x32xf32, #tpu.memory_space<vmem>>, vector<1x8x1x32xf32>
    %83 = vector.shape_cast %82 : vector<1x8x1x32xf32> to vector<8x32xf32>
    %84 = vector.shape_cast %81 : vector<8x32xf32> to vector<1x8x1x32xf32>
    tpu.vector_store %arg7[%c0_55, %c0_56, %c5, %c0_57], %84 {strides = array<i32>} : memref<1x8x32x32xf32, #tpu.memory_space<vmem>>, vector<1x8x1x32xf32>,
    %c0_58 = arith.constant 0 : index
    %c0_59 = arith.constant 0 : index
    %c3_60 = arith.constant 3 : index
    %c0_61 = arith.constant 0 : index
    %85 = vector.load %arg2[%c0_58, %c0_59, %c3_60, %c0_61] : memref<1x16x16x16xf32, #tpu.memory_space<vmem>>, vector<1x16x1x16xf32>
    %86 = vector.shape_cast %85 : vector<1x16x1x16xf32> to vector<16x16xf32>
    %cst_62 = arith.constant dense<0.000000e+00> : vector<32x16xf32>
    %87 = tpu.matmul %0, %86, %cst_62 {dimension_numbers = #tpu.dot_dimension_numbers<[1], [0], [0], [1], [0, 0, 1, 1], [], []>} : vector<32x16xf32>, vector<16x16xf32>, vector<32x16xf32> -> vector<32x16xf32>
    %88 = vector.extract_strided_slice %87 {offsets = [0, 0], sizes = [8, 16], strides = [1, 1]} : vector<32x16xf32> to vector<8x16xf32>
    %89 = vector.extract_strided_slice %87 {offsets = [8, 0], sizes = [8, 16], strides = [1, 1]} : vector<32x16xf32> to vector<8x16xf32>
    %cst_63 = arith.constant dense<0.000000e+00> : vector<8x32xf32>
    %90 = tpu.matmul %88, %1, %cst_63 {dimension_numbers = #tpu.dot_dimension_numbers<[1], [0], [0], [1], [0, 0, 1, 1], [], []>} : vector<8x16xf32>, vector<16x32xf32>, vector<8x32xf32> -> vector<8x32xf32>
    %cst_64 = arith.constant dense<0.000000e+00> : vector<8x32xf32>
    %91 = tpu.matmul %89, %2, %cst_64 {dimension_numbers = #tpu.dot_dimension_numbers<[1], [0], [0], [1], [0, 0, 1, 1], [], []>} : vector<8x16xf32>, vector<16x32xf32>, vector<8x32xf32> -> vector<8x32xf32>
    %92 = arith.addf %90, %91 : vector<8x32xf32>
    %93 = vector.broadcast %3 : vector<8x1xf32> to vector<8x32xf32>
    %94 = arith.addf %92, %93 : vector<8x32xf32>
    %cst_65 = arith.constant 0.000000e+00 : f32
    %95 = vector.broadcast %cst_65 : f32 to vector<8x32xf32>
    %96 = arith.maximumf %94, %95 : vector<8x32xf32>
    %c0_66 = arith.constant 0 : index
    %c0_67 = arith.constant 0 : index
    %c6 = arith.constant 6 : index
    %c0_68 = arith.constant 0 : index
    %97 = vector.load %arg7[%c0_66, %c0_67, %c6, %c0_68] : memref<1x8x32x32xf32, #tpu.memory_space<vmem>>, vector<1x8x1x32xf32>
    %98 = vector.shape_cast %97 : vector<1x8x1x32xf32> to vector<8x32xf32>
    %99 = vector.shape_cast %96 : vector<8x32xf32> to vector<1x8x1x32xf32>
    tpu.vector_store %arg7[%c0_66, %c0_67, %c6, %c0_68], %99 {strides = array<i32>} : memref<1x8x32x32xf32, #tpu.memory_space<vmem>>, vector<1x8x1x32xf32>,
    %100 = vector.extract_strided_slice %87 {offsets = [16, 0], sizes = [8, 16], strides = [1, 1]} : vector<32x16xf32> to vector<8x16xf32>
    %101 = vector.extract_strided_slice %87 {offsets = [24, 0], sizes = [8, 16], strides = [1, 1]} : vector<32x16xf32> to vector<8x16xf32>
    %cst_69 = arith.constant dense<0.000000e+00> : vector<8x32xf32>
    %102 = tpu.matmul %100, %1, %cst_69 {dimension_numbers = #tpu.dot_dimension_numbers<[1], [0], [0], [1], [0, 0, 1, 1], [], []>} : vector<8x16xf32>, vector<16x32xf32>, vector<8x32xf32> -> vector<8x32xf32>
    %cst_70 = arith.constant dense<0.000000e+00> : vector<8x32xf32>
    %103 = tpu.matmul %101, %2, %cst_70 {dimension_numbers = #tpu.dot_dimension_numbers<[1], [0], [0], [1], [0, 0, 1, 1], [], []>} : vector<8x16xf32>, vector<16x32xf32>, vector<8x32xf32> -> vector<8x32xf32>
    %104 = arith.addf %102, %103 : vector<8x32xf32>
    %105 = vector.broadcast %3 : vector<8x1xf32> to vector<8x32xf32>
    %106 = arith.addf %104, %105 : vector<8x32xf32>
    %cst_71 = arith.constant 0.000000e+00 : f32
    %107 = vector.broadcast %cst_71 : f32 to vector<8x32xf32>
    %108 = arith.maximumf %106, %107 : vector<8x32xf32>
    %c0_72 = arith.constant 0 : index
    %c0_73 = arith.constant 0 : index
    %c7 = arith.constant 7 : index
    %c0_74 = arith.constant 0 : index
    %109 = vector.load %arg7[%c0_72, %c0_73, %c7, %c0_74] : memref<1x8x32x32xf32, #tpu.memory_space<vmem>>, vector<1x8x1x32xf32>
    %110 = vector.shape_cast %109 : vector<1x8x1x32xf32> to vector<8x32xf32>
    %111 = vector.shape_cast %108 : vector<8x32xf32> to vector<1x8x1x32xf32>
    tpu.vector_store %arg7[%c0_72, %c0_73, %c7, %c0_74], %111 {strides = array<i32>} : memref<1x8x32x32xf32, #tpu.memory_space<vmem>>, vector<1x8x1x32xf32>,
    %c0_75 = arith.constant 0 : index
    %c0_76 = arith.constant 0 : index
    %c4_77 = arith.constant 4 : index
    %c0_78 = arith.constant 0 : index
    %112 = vector.load %arg2[%c0_75, %c0_76, %c4_77, %c0_78] : memref<1x16x16x16xf32, #tpu.memory_space<vmem>>, vector<1x16x1x16xf32>
    %113 = vector.shape_cast %112 : vector<1x16x1x16xf32> to vector<16x16xf32>
    %cst_79 = arith.constant dense<0.000000e+00> : vector<32x16xf32>
    %114 = tpu.matmul %0, %113, %cst_79 {dimension_numbers = #tpu.dot_dimension_numbers<[1], [0], [0], [1], [0, 0, 1, 1], [], []>} : vector<32x16xf32>, vector<16x16xf32>, vector<32x16xf32> -> vector<32x16xf32>
    %115 = vector.extract_strided_slice %114 {offsets = [0, 0], sizes = [8, 16], strides = [1, 1]} : vector<32x16xf32> to vector<8x16xf32>
    %116 = vector.extract_strided_slice %114 {offsets = [8, 0], sizes = [8, 16], strides = [1, 1]} : vector<32x16xf32> to vector<8x16xf32>
    %cst_80 = arith.constant dense<0.000000e+00> : vector<8x32xf32>
    %117 = tpu.matmul %115, %1, %cst_80 {dimension_numbers = #tpu.dot_dimension_numbers<[1], [0], [0], [1], [0, 0, 1, 1], [], []>} : vector<8x16xf32>, vector<16x32xf32>, vector<8x32xf32> -> vector<8x32xf32>
    %cst_81 = arith.constant dense<0.000000e+00> : vector<8x32xf32>
    %118 = tpu.matmul %116, %2, %cst_81 {dimension_numbers = #tpu.dot_dimension_numbers<[1], [0], [0], [1], [0, 0, 1, 1], [], []>} : vector<8x16xf32>, vector<16x32xf32>, vector<8x32xf32> -> vector<8x32xf32>
    %119 = arith.addf %117, %118 : vector<8x32xf32>
    %120 = vector.broadcast %3 : vector<8x1xf32> to vector<8x32xf32>
    %121 = arith.addf %119, %120 : vector<8x32xf32>
    %cst_82 = arith.constant 0.000000e+00 : f32
    %122 = vector.broadcast %cst_82 : f32 to vector<8x32xf32>
    %123 = arith.maximumf %121, %122 : vector<8x32xf32>
    %c0_83 = arith.constant 0 : index
    %c0_84 = arith.constant 0 : index
    %c8 = arith.constant 8 : index
    %c0_85 = arith.constant 0 : index
    %124 = vector.load %arg7[%c0_83, %c0_84, %c8, %c0_85] : memref<1x8x32x32xf32, #tpu.memory_space<vmem>>, vector<1x8x1x32xf32>
    %125 = vector.shape_cast %124 : vector<1x8x1x32xf32> to vector<8x32xf32>
    %126 = vector.shape_cast %123 : vector<8x32xf32> to vector<1x8x1x32xf32>
    tpu.vector_store %arg7[%c0_83, %c0_84, %c8, %c0_85], %126 {strides = array<i32>} : memref<1x8x32x32xf32, #tpu.memory_space<vmem>>, vector<1x8x1x32xf32>,
    %127 = vector.extract_strided_slice %114 {offsets = [16, 0], sizes = [8, 16], strides = [1, 1]} : vector<32x16xf32> to vector<8x16xf32>
    %128 = vector.extract_strided_slice %114 {offsets = [24, 0], sizes = [8, 16], strides = [1, 1]} : vector<32x16xf32> to vector<8x16xf32>
    %cst_86 = arith.constant dense<0.000000e+00> : vector<8x32xf32>
    %129 = tpu.matmul %127, %1, %cst_86 {dimension_numbers = #tpu.dot_dimension_numbers<[1], [0], [0], [1], [0, 0, 1, 1], [], []>} : vector<8x16xf32>, vector<16x32xf32>, vector<8x32xf32> -> vector<8x32xf32>
    %cst_87 = arith.constant dense<0.000000e+00> : vector<8x32xf32>
    %130 = tpu.matmul %128, %2, %cst_87 {dimension_numbers = #tpu.dot_dimension_numbers<[1], [0], [0], [1], [0, 0, 1, 1], [], []>} : vector<8x16xf32>, vector<16x32xf32>, vector<8x32xf32> -> vector<8x32xf32>
    %131 = arith.addf %129, %130 : vector<8x32xf32>
    %132 = vector.broadcast %3 : vector<8x1xf32> to vector<8x32xf32>
    %133 = arith.addf %131, %132 : vector<8x32xf32>
    %cst_88 = arith.constant 0.000000e+00 : f32
    %134 = vector.broadcast %cst_88 : f32 to vector<8x32xf32>
    %135 = arith.maximumf %133, %134 : vector<8x32xf32>
    %c0_89 = arith.constant 0 : index
    %c0_90 = arith.constant 0 : index
    %c9 = arith.constant 9 : index
    %c0_91 = arith.constant 0 : index
    %136 = vector.load %arg7[%c0_89, %c0_90, %c9, %c0_91] : memref<1x8x32x32xf32, #tpu.memory_space<vmem>>, vector<1x8x1x32xf32>
    %137 = vector.shape_cast %136 : vector<1x8x1x32xf32> to vector<8x32xf32>
    %138 = vector.shape_cast %135 : vector<8x32xf32> to vector<1x8x1x32xf32>
    tpu.vector_store %arg7[%c0_89, %c0_90, %c9, %c0_91], %138 {strides = array<i32>} : memref<1x8x32x32xf32, #tpu.memory_space<vmem>>, vector<1x8x1x32xf32>,
    %c0_92 = arith.constant 0 : index
    %c0_93 = arith.constant 0 : index
    %c5_94 = arith.constant 5 : index
    %c0_95 = arith.constant 0 : index
    %139 = vector.load %arg2[%c0_92, %c0_93, %c5_94, %c0_95] : memref<1x16x16x16xf32, #tpu.memory_space<vmem>>, vector<1x16x1x16xf32>
    %140 = vector.shape_cast %139 : vector<1x16x1x16xf32> to vector<16x16xf32>
    %cst_96 = arith.constant dense<0.000000e+00> : vector<32x16xf32>
    %141 = tpu.matmul %0, %140, %cst_96 {dimension_numbers = #tpu.dot_dimension_numbers<[1], [0], [0], [1], [0, 0, 1, 1], [], []>} : vector<32x16xf32>, vector<16x16xf32>, vector<32x16xf32> -> vector<32x16xf32>
    %142 = vector.extract_strided_slice %141 {offsets = [0, 0], sizes = [8, 16], strides = [1, 1]} : vector<32x16xf32> to vector<8x16xf32>
    %143 = vector.extract_strided_slice %141 {offsets = [8, 0], sizes = [8, 16], strides = [1, 1]} : vector<32x16xf32> to vector<8x16xf32>
    %cst_97 = arith.constant dense<0.000000e+00> : vector<8x32xf32>
    %144 = tpu.matmul %142, %1, %cst_97 {dimension_numbers = #tpu.dot_dimension_numbers<[1], [0], [0], [1], [0, 0, 1, 1], [], []>} : vector<8x16xf32>, vector<16x32xf32>, vector<8x32xf32> -> vector<8x32xf32>
    %cst_98 = arith.constant dense<0.000000e+00> : vector<8x32xf32>
    %145 = tpu.matmul %143, %2, %cst_98 {dimension_numbers = #tpu.dot_dimension_numbers<[1], [0], [0], [1], [0, 0, 1, 1], [], []>} : vector<8x16xf32>, vector<16x32xf32>, vector<8x32xf32> -> vector<8x32xf32>
    %146 = arith.addf %144, %145 : vector<8x32xf32>
    %147 = vector.broadcast %3 : vector<8x1xf32> to vector<8x32xf32>
    %148 = arith.addf %146, %147 : vector<8x32xf32>
    %cst_99 = arith.constant 0.000000e+00 : f32
    %149 = vector.broadcast %cst_99 : f32 to vector<8x32xf32>
    %150 = arith.maximumf %148, %149 : vector<8x32xf32>
    %c0_100 = arith.constant 0 : index
    %c0_101 = arith.constant 0 : index
    %c10 = arith.constant 10 : index
    %c0_102 = arith.constant 0 : index
    %151 = vector.load %arg7[%c0_100, %c0_101, %c10, %c0_102] : memref<1x8x32x32xf32, #tpu.memory_space<vmem>>, vector<1x8x1x32xf32>
    %152 = vector.shape_cast %151 : vector<1x8x1x32xf32> to vector<8x32xf32>
    %153 = vector.shape_cast %150 : vector<8x32xf32> to vector<1x8x1x32xf32>
    tpu.vector_store %arg7[%c0_100, %c0_101, %c10, %c0_102], %153 {strides = array<i32>} : memref<1x8x32x32xf32, #tpu.memory_space<vmem>>, vector<1x8x1x32xf32>,
    %154 = vector.extract_strided_slice %141 {offsets = [16, 0], sizes = [8, 16], strides = [1, 1]} : vector<32x16xf32> to vector<8x16xf32>
    %155 = vector.extract_strided_slice %141 {offsets = [24, 0], sizes = [8, 16], strides = [1, 1]} : vector<32x16xf32> to vector<8x16xf32>
    %cst_103 = arith.constant dense<0.000000e+00> : vector<8x32xf32>
    %156 = tpu.matmul %154, %1, %cst_103 {dimension_numbers = #tpu.dot_dimension_numbers<[1], [0], [0], [1], [0, 0, 1, 1], [], []>} : vector<8x16xf32>, vector<16x32xf32>, vector<8x32xf32> -> vector<8x32xf32>
    %cst_104 = arith.constant dense<0.000000e+00> : vector<8x32xf32>
    %157 = tpu.matmul %155, %2, %cst_104 {dimension_numbers = #tpu.dot_dimension_numbers<[1], [0], [0], [1], [0, 0, 1, 1], [], []>} : vector<8x16xf32>, vector<16x32xf32>, vector<8x32xf32> -> vector<8x32xf32>
    %158 = arith.addf %156, %157 : vector<8x32xf32>
    %159 = vector.broadcast %3 : vector<8x1xf32> to vector<8x32xf32>
    %160 = arith.addf %158, %159 : vector<8x32xf32>
    %cst_105 = arith.constant 0.000000e+00 : f32
    %161 = vector.broadcast %cst_105 : f32 to vector<8x32xf32>
    %162 = arith.maximumf %160, %161 : vector<8x32xf32>
    %c0_106 = arith.constant 0 : index
    %c0_107 = arith.constant 0 : index
    %c11 = arith.constant 11 : index
    %c0_108 = arith.constant 0 : index
    %163 = vector.load %arg7[%c0_106, %c0_107, %c11, %c0_108] : memref<1x8x32x32xf32, #tpu.memory_space<vmem>>, vector<1x8x1x32xf32>
    %164 = vector.shape_cast %163 : vector<1x8x1x32xf32> to vector<8x32xf32>
    %165 = vector.shape_cast %162 : vector<8x32xf32> to vector<1x8x1x32xf32>
    tpu.vector_store %arg7[%c0_106, %c0_107, %c11, %c0_108], %165 {strides = array<i32>} : memref<1x8x32x32xf32, #tpu.memory_space<vmem>>, vector<1x8x1x32xf32>,
    %c0_109 = arith.constant 0 : index
    %c0_110 = arith.constant 0 : index
    %c6_111 = arith.constant 6 : index
    %c0_112 = arith.constant 0 : index
    %166 = vector.load %arg2[%c0_109, %c0_110, %c6_111, %c0_112] : memref<1x16x16x16xf32, #tpu.memory_space<vmem>>, vector<1x16x1x16xf32>
    %167 = vector.shape_cast %166 : vector<1x16x1x16xf32> to vector<16x16xf32>
    %cst_113 = arith.constant dense<0.000000e+00> : vector<32x16xf32>
    %168 = tpu.matmul %0, %167, %cst_113 {dimension_numbers = #tpu.dot_dimension_numbers<[1], [0], [0], [1], [0, 0, 1, 1], [], []>} : vector<32x16xf32>, vector<16x16xf32>, vector<32x16xf32> -> vector<32x16xf32>
    %169 = vector.extract_strided_slice %168 {offsets = [0, 0], sizes = [8, 16], strides = [1, 1]} : vector<32x16xf32> to vector<8x16xf32>
    %170 = vector.extract_strided_slice %168 {offsets = [8, 0], sizes = [8, 16], strides = [1, 1]} : vector<32x16xf32> to vector<8x16xf32>
    %cst_114 = arith.constant dense<0.000000e+00> : vector<8x32xf32>
    %171 = tpu.matmul %169, %1, %cst_114 {dimension_numbers = #tpu.dot_dimension_numbers<[1], [0], [0], [1], [0, 0, 1, 1], [], []>} : vector<8x16xf32>, vector<16x32xf32>, vector<8x32xf32> -> vector<8x32xf32>
    %cst_115 = arith.constant dense<0.000000e+00> : vector<8x32xf32>
    %172 = tpu.matmul %170, %2, %cst_115 {dimension_numbers = #tpu.dot_dimension_numbers<[1], [0], [0], [1], [0, 0, 1, 1], [], []>} : vector<8x16xf32>, vector<16x32xf32>, vector<8x32xf32> -> vector<8x32xf32>
    %173 = arith.addf %171, %172 : vector<8x32xf32>
    %174 = vector.broadcast %3 : vector<8x1xf32> to vector<8x32xf32>
    %175 = arith.addf %173, %174 : vector<8x32xf32>
    %cst_116 = arith.constant 0.000000e+00 : f32
    %176 = vector.broadcast %cst_116 : f32 to vector<8x32xf32>
    %177 = arith.maximumf %175, %176 : vector<8x32xf32>
    %c0_117 = arith.constant 0 : index
    %c0_118 = arith.constant 0 : index
    %c12 = arith.constant 12 : index
    %c0_119 = arith.constant 0 : index
    %178 = vector.load %arg7[%c0_117, %c0_118, %c12, %c0_119] : memref<1x8x32x32xf32, #tpu.memory_space<vmem>>, vector<1x8x1x32xf32>
    %179 = vector.shape_cast %178 : vector<1x8x1x32xf32> to vector<8x32xf32>
    %180 = vector.shape_cast %177 : vector<8x32xf32> to vector<1x8x1x32xf32>
    tpu.vector_store %arg7[%c0_117, %c0_118, %c12, %c0_119], %180 {strides = array<i32>} : memref<1x8x32x32xf32, #tpu.memory_space<vmem>>, vector<1x8x1x32xf32>,
    %181 = vector.extract_strided_slice %168 {offsets = [16, 0], sizes = [8, 16], strides = [1, 1]} : vector<32x16xf32> to vector<8x16xf32>
    %182 = vector.extract_strided_slice %168 {offsets = [24, 0], sizes = [8, 16], strides = [1, 1]} : vector<32x16xf32> to vector<8x16xf32>
    %cst_120 = arith.constant dense<0.000000e+00> : vector<8x32xf32>
    %183 = tpu.matmul %181, %1, %cst_120 {dimension_numbers = #tpu.dot_dimension_numbers<[1], [0], [0], [1], [0, 0, 1, 1], [], []>} : vector<8x16xf32>, vector<16x32xf32>, vector<8x32xf32> -> vector<8x32xf32>
    %cst_121 = arith.constant dense<0.000000e+00> : vector<8x32xf32>
    %184 = tpu.matmul %182, %2, %cst_121 {dimension_numbers = #tpu.dot_dimension_numbers<[1], [0], [0], [1], [0, 0, 1, 1], [], []>} : vector<8x16xf32>, vector<16x32xf32>, vector<8x32xf32> -> vector<8x32xf32>
    %185 = arith.addf %183, %184 : vector<8x32xf32>
    %186 = vector.broadcast %3 : vector<8x1xf32> to vector<8x32xf32>
    %187 = arith.addf %185, %186 : vector<8x32xf32>
    %cst_122 = arith.constant 0.000000e+00 : f32
    %188 = vector.broadcast %cst_122 : f32 to vector<8x32xf32>
    %189 = arith.maximumf %187, %188 : vector<8x32xf32>
    %c0_123 = arith.constant 0 : index
    %c0_124 = arith.constant 0 : index
    %c13 = arith.constant 13 : index
    %c0_125 = arith.constant 0 : index
    %190 = vector.load %arg7[%c0_123, %c0_124, %c13, %c0_125] : memref<1x8x32x32xf32, #tpu.memory_space<vmem>>, vector<1x8x1x32xf32>
    %191 = vector.shape_cast %190 : vector<1x8x1x32xf32> to vector<8x32xf32>
    %192 = vector.shape_cast %189 : vector<8x32xf32> to vector<1x8x1x32xf32>
    tpu.vector_store %arg7[%c0_123, %c0_124, %c13, %c0_125], %192 {strides = array<i32>} : memref<1x8x32x32xf32, #tpu.memory_space<vmem>>, vector<1x8x1x32xf32>,
    %c0_126 = arith.constant 0 : index
    %c0_127 = arith.constant 0 : index
    %c7_128 = arith.constant 7 : index
    %c0_129 = arith.constant 0 : index
    %193 = vector.load %arg2[%c0_126, %c0_127, %c7_128, %c0_129] : memref<1x16x16x16xf32, #tpu.memory_space<vmem>>, vector<1x16x1x16xf32>
    %194 = vector.shape_cast %193 : vector<1x16x1x16xf32> to vector<16x16xf32>
    %cst_130 = arith.constant dense<0.000000e+00> : vector<32x16xf32>
    %195 = tpu.matmul %0, %194, %cst_130 {dimension_numbers = #tpu.dot_dimension_numbers<[1], [0], [0], [1], [0, 0, 1, 1], [], []>} : vector<32x16xf32>, vector<16x16xf32>, vector<32x16xf32> -> vector<32x16xf32>
    %196 = vector.extract_strided_slice %195 {offsets = [0, 0], sizes = [8, 16], strides = [1, 1]} : vector<32x16xf32> to vector<8x16xf32>
    %197 = vector.extract_strided_slice %195 {offsets = [8, 0], sizes = [8, 16], strides = [1, 1]} : vector<32x16xf32> to vector<8x16xf32>
    %cst_131 = arith.constant dense<0.000000e+00> : vector<8x32xf32>
    %198 = tpu.matmul %196, %1, %cst_131 {dimension_numbers = #tpu.dot_dimension_numbers<[1], [0], [0], [1], [0, 0, 1, 1], [], []>} : vector<8x16xf32>, vector<16x32xf32>, vector<8x32xf32> -> vector<8x32xf32>
    %cst_132 = arith.constant dense<0.000000e+00> : vector<8x32xf32>
    %199 = tpu.matmul %197, %2, %cst_132 {dimension_numbers = #tpu.dot_dimension_numbers<[1], [0], [0], [1], [0, 0, 1, 1], [], []>} : vector<8x16xf32>, vector<16x32xf32>, vector<8x32xf32> -> vector<8x32xf32>
    %200 = arith.addf %198, %199 : vector<8x32xf32>
    %201 = vector.broadcast %3 : vector<8x1xf32> to vector<8x32xf32>
    %202 = arith.addf %200, %201 : vector<8x32xf32>
    %cst_133 = arith.constant 0.000000e+00 : f32
    %203 = vector.broadcast %cst_133 : f32 to vector<8x32xf32>
    %204 = arith.maximumf %202, %203 : vector<8x32xf32>
    %c0_134 = arith.constant 0 : index
    %c0_135 = arith.constant 0 : index
    %c14 = arith.constant 14 : index
    %c0_136 = arith.constant 0 : index
    %205 = vector.load %arg7[%c0_134, %c0_135, %c14, %c0_136] : memref<1x8x32x32xf32, #tpu.memory_space<vmem>>, vector<1x8x1x32xf32>
    %206 = vector.shape_cast %205 : vector<1x8x1x32xf32> to vector<8x32xf32>
    %207 = vector.shape_cast %204 : vector<8x32xf32> to vector<1x8x1x32xf32>
    tpu.vector_store %arg7[%c0_134, %c0_135, %c14, %c0_136], %207 {strides = array<i32>} : memref<1x8x32x32xf32, #tpu.memory_space<vmem>>, vector<1x8x1x32xf32>,
    %208 = vector.extract_strided_slice %195 {offsets = [16, 0], sizes = [8, 16], strides = [1, 1]} : vector<32x16xf32> to vector<8x16xf32>
    %209 = vector.extract_strided_slice %195 {offsets = [24, 0], sizes = [8, 16], strides = [1, 1]} : vector<32x16xf32> to vector<8x16xf32>
    %cst_137 = arith.constant dense<0.000000e+00> : vector<8x32xf32>
    %210 = tpu.matmul %208, %1, %cst_137 {dimension_numbers = #tpu.dot_dimension_numbers<[1], [0], [0], [1], [0, 0, 1, 1], [], []>} : vector<8x16xf32>, vector<16x32xf32>, vector<8x32xf32> -> vector<8x32xf32>
    %cst_138 = arith.constant dense<0.000000e+00> : vector<8x32xf32>
    %211 = tpu.matmul %209, %2, %cst_138 {dimension_numbers = #tpu.dot_dimension_numbers<[1], [0], [0], [1], [0, 0, 1, 1], [], []>} : vector<8x16xf32>, vector<16x32xf32>, vector<8x32xf32> -> vector<8x32xf32>
    %212 = arith.addf %210, %211 : vector<8x32xf32>
    %213 = vector.broadcast %3 : vector<8x1xf32> to vector<8x32xf32>
    %214 = arith.addf %212, %213 : vector<8x32xf32>
    %cst_139 = arith.constant 0.000000e+00 : f32
    %215 = vector.broadcast %cst_139 : f32 to vector<8x32xf32>
    %216 = arith.maximumf %214, %215 : vector<8x32xf32>
    %c0_140 = arith.constant 0 : index
    %c0_141 = arith.constant 0 : index
    %c15 = arith.constant 15 : index
    %c0_142 = arith.constant 0 : index
    %217 = vector.load %arg7[%c0_140, %c0_141, %c15, %c0_142] : memref<1x8x32x32xf32, #tpu.memory_space<vmem>>, vector<1x8x1x32xf32>
    %218 = vector.shape_cast %217 : vector<1x8x1x32xf32> to vector<8x32xf32>
    %219 = vector.shape_cast %216 : vector<8x32xf32> to vector<1x8x1x32xf32>
    tpu.vector_store %arg7[%c0_140, %c0_141, %c15, %c0_142], %219 {strides = array<i32>} : memref<1x8x32x32xf32, #tpu.memory_space<vmem>>, vector<1x8x1x32xf32>,
    %c0_143 = arith.constant 0 : index
    %c0_144 = arith.constant 0 : index
    %c8_145 = arith.constant 8 : index
    %c0_146 = arith.constant 0 : index
    %220 = vector.load %arg2[%c0_143, %c0_144, %c8_145, %c0_146] : memref<1x16x16x16xf32, #tpu.memory_space<vmem>>, vector<1x16x1x16xf32>
    %221 = vector.shape_cast %220 : vector<1x16x1x16xf32> to vector<16x16xf32>
    %cst_147 = arith.constant dense<0.000000e+00> : vector<32x16xf32>
    %222 = tpu.matmul %0, %221, %cst_147 {dimension_numbers = #tpu.dot_dimension_numbers<[1], [0], [0], [1], [0, 0, 1, 1], [], []>} : vector<32x16xf32>, vector<16x16xf32>, vector<32x16xf32> -> vector<32x16xf32>
    %223 = vector.extract_strided_slice %222 {offsets = [0, 0], sizes = [8, 16], strides = [1, 1]} : vector<32x16xf32> to vector<8x16xf32>
    %224 = vector.extract_strided_slice %222 {offsets = [8, 0], sizes = [8, 16], strides = [1, 1]} : vector<32x16xf32> to vector<8x16xf32>
    %cst_148 = arith.constant dense<0.000000e+00> : vector<8x32xf32>
    %225 = tpu.matmul %223, %1, %cst_148 {dimension_numbers = #tpu.dot_dimension_numbers<[1], [0], [0], [1], [0, 0, 1, 1], [], []>} : vector<8x16xf32>, vector<16x32xf32>, vector<8x32xf32> -> vector<8x32xf32>
    %cst_149 = arith.constant dense<0.000000e+00> : vector<8x32xf32>
    %226 = tpu.matmul %224, %2, %cst_149 {dimension_numbers = #tpu.dot_dimension_numbers<[1], [0], [0], [1], [0, 0, 1, 1], [], []>} : vector<8x16xf32>, vector<16x32xf32>, vector<8x32xf32> -> vector<8x32xf32>
    %227 = arith.addf %225, %226 : vector<8x32xf32>
    %228 = vector.broadcast %3 : vector<8x1xf32> to vector<8x32xf32>
    %229 = arith.addf %227, %228 : vector<8x32xf32>
    %cst_150 = arith.constant 0.000000e+00 : f32
    %230 = vector.broadcast %cst_150 : f32 to vector<8x32xf32>
    %231 = arith.maximumf %229, %230 : vector<8x32xf32>
    %c0_151 = arith.constant 0 : index
    %c0_152 = arith.constant 0 : index
    %c16 = arith.constant 16 : index
    %c0_153 = arith.constant 0 : index
    %232 = vector.load %arg7[%c0_151, %c0_152, %c16, %c0_153] : memref<1x8x32x32xf32, #tpu.memory_space<vmem>>, vector<1x8x1x32xf32>
    %233 = vector.shape_cast %232 : vector<1x8x1x32xf32> to vector<8x32xf32>
    %234 = vector.shape_cast %231 : vector<8x32xf32> to vector<1x8x1x32xf32>
    tpu.vector_store %arg7[%c0_151, %c0_152, %c16, %c0_153], %234 {strides = array<i32>} : memref<1x8x32x32xf32, #tpu.memory_space<vmem>>, vector<1x8x1x32xf32>,
    %235 = vector.extract_strided_slice %222 {offsets = [16, 0], sizes = [8, 16], strides = [1, 1]} : vector<32x16xf32> to vector<8x16xf32>
    %236 = vector.extract_strided_slice %222 {offsets = [24, 0], sizes = [8, 16], strides = [1, 1]} : vector<32x16xf32> to vector<8x16xf32>
    %cst_154 = arith.constant dense<0.000000e+00> : vector<8x32xf32>
    %237 = tpu.matmul %235, %1, %cst_154 {dimension_numbers = #tpu.dot_dimension_numbers<[1], [0], [0], [1], [0, 0, 1, 1], [], []>} : vector<8x16xf32>, vector<16x32xf32>, vector<8x32xf32> -> vector<8x32xf32>
    %cst_155 = arith.constant dense<0.000000e+00> : vector<8x32xf32>
    %238 = tpu.matmul %236, %2, %cst_155 {dimension_numbers = #tpu.dot_dimension_numbers<[1], [0], [0], [1], [0, 0, 1, 1], [], []>} : vector<8x16xf32>, vector<16x32xf32>, vector<8x32xf32> -> vector<8x32xf32>
    %239 = arith.addf %237, %238 : vector<8x32xf32>
    %240 = vector.broadcast %3 : vector<8x1xf32> to vector<8x32xf32>
    %241 = arith.addf %239, %240 : vector<8x32xf32>
    %cst_156 = arith.constant 0.000000e+00 : f32
    %242 = vector.broadcast %cst_156 : f32 to vector<8x32xf32>
    %243 = arith.maximumf %241, %242 : vector<8x32xf32>
    %c0_157 = arith.constant 0 : index
    %c0_158 = arith.constant 0 : index
    %c17 = arith.constant 17 : index
    %c0_159 = arith.constant 0 : index
    %244 = vector.load %arg7[%c0_157, %c0_158, %c17, %c0_159] : memref<1x8x32x32xf32, #tpu.memory_space<vmem>>, vector<1x8x1x32xf32>
    %245 = vector.shape_cast %244 : vector<1x8x1x32xf32> to vector<8x32xf32>
    %246 = vector.shape_cast %243 : vector<8x32xf32> to vector<1x8x1x32xf32>
    tpu.vector_store %arg7[%c0_157, %c0_158, %c17, %c0_159], %246 {strides = array<i32>} : memref<1x8x32x32xf32, #tpu.memory_space<vmem>>, vector<1x8x1x32xf32>,
    %c0_160 = arith.constant 0 : index
    %c0_161 = arith.constant 0 : index
    %c9_162 = arith.constant 9 : index
    %c0_163 = arith.constant 0 : index
    %247 = vector.load %arg2[%c0_160, %c0_161, %c9_162, %c0_163] : memref<1x16x16x16xf32, #tpu.memory_space<vmem>>, vector<1x16x1x16xf32>
    %248 = vector.shape_cast %247 : vector<1x16x1x16xf32> to vector<16x16xf32>
    %cst_164 = arith.constant dense<0.000000e+00> : vector<32x16xf32>
    %249 = tpu.matmul %0, %248, %cst_164 {dimension_numbers = #tpu.dot_dimension_numbers<[1], [0], [0], [1], [0, 0, 1, 1], [], []>} : vector<32x16xf32>, vector<16x16xf32>, vector<32x16xf32> -> vector<32x16xf32>
    %250 = vector.extract_strided_slice %249 {offsets = [0, 0], sizes = [8, 16], strides = [1, 1]} : vector<32x16xf32> to vector<8x16xf32>
    %251 = vector.extract_strided_slice %249 {offsets = [8, 0], sizes = [8, 16], strides = [1, 1]} : vector<32x16xf32> to vector<8x16xf32>
    %cst_165 = arith.constant dense<0.000000e+00> : vector<8x32xf32>
    %252 = tpu.matmul %250, %1, %cst_165 {dimension_numbers = #tpu.dot_dimension_numbers<[1], [0], [0], [1], [0, 0, 1, 1], [], []>} : vector<8x16xf32>, vector<16x32xf32>, vector<8x32xf32> -> vector<8x32xf32>
    %cst_166 = arith.constant dense<0.000000e+00> : vector<8x32xf32>
    %253 = tpu.matmul %251, %2, %cst_166 {dimension_numbers = #tpu.dot_dimension_numbers<[1], [0], [0], [1], [0, 0, 1, 1], [], []>} : vector<8x16xf32>, vector<16x32xf32>, vector<8x32xf32> -> vector<8x32xf32>
    %254 = arith.addf %252, %253 : vector<8x32xf32>
    %255 = vector.broadcast %3 : vector<8x1xf32> to vector<8x32xf32>
    %256 = arith.addf %254, %255 : vector<8x32xf32>
    %cst_167 = arith.constant 0.000000e+00 : f32
    %257 = vector.broadcast %cst_167 : f32 to vector<8x32xf32>
    %258 = arith.maximumf %256, %257 : vector<8x32xf32>
    %c0_168 = arith.constant 0 : index
    %c0_169 = arith.constant 0 : index
    %c18 = arith.constant 18 : index
    %c0_170 = arith.constant 0 : index
    %259 = vector.load %arg7[%c0_168, %c0_169, %c18, %c0_170] : memref<1x8x32x32xf32, #tpu.memory_space<vmem>>, vector<1x8x1x32xf32>
    %260 = vector.shape_cast %259 : vector<1x8x1x32xf32> to vector<8x32xf32>
    %261 = vector.shape_cast %258 : vector<8x32xf32> to vector<1x8x1x32xf32>
    tpu.vector_store %arg7[%c0_168, %c0_169, %c18, %c0_170], %261 {strides = array<i32>} : memref<1x8x32x32xf32, #tpu.memory_space<vmem>>, vector<1x8x1x32xf32>,
    %262 = vector.extract_strided_slice %249 {offsets = [16, 0], sizes = [8, 16], strides = [1, 1]} : vector<32x16xf32> to vector<8x16xf32>
    %263 = vector.extract_strided_slice %249 {offsets = [24, 0], sizes = [8, 16], strides = [1, 1]} : vector<32x16xf32> to vector<8x16xf32>
    %cst_171 = arith.constant dense<0.000000e+00> : vector<8x32xf32>
    %264 = tpu.matmul %262, %1, %cst_171 {dimension_numbers = #tpu.dot_dimension_numbers<[1], [0], [0], [1], [0, 0, 1, 1], [], []>} : vector<8x16xf32>, vector<16x32xf32>, vector<8x32xf32> -> vector<8x32xf32>
    %cst_172 = arith.constant dense<0.000000e+00> : vector<8x32xf32>
    %265 = tpu.matmul %263, %2, %cst_172 {dimension_numbers = #tpu.dot_dimension_numbers<[1], [0], [0], [1], [0, 0, 1, 1], [], []>} : vector<8x16xf32>, vector<16x32xf32>, vector<8x32xf32> -> vector<8x32xf32>
    %266 = arith.addf %264, %265 : vector<8x32xf32>
    %267 = vector.broadcast %3 : vector<8x1xf32> to vector<8x32xf32>
    %268 = arith.addf %266, %267 : vector<8x32xf32>
    %cst_173 = arith.constant 0.000000e+00 : f32
    %269 = vector.broadcast %cst_173 : f32 to vector<8x32xf32>
    %270 = arith.maximumf %268, %269 : vector<8x32xf32>
    %c0_174 = arith.constant 0 : index
    %c0_175 = arith.constant 0 : index
    %c19 = arith.constant 19 : index
    %c0_176 = arith.constant 0 : index
    %271 = vector.load %arg7[%c0_174, %c0_175, %c19, %c0_176] : memref<1x8x32x32xf32, #tpu.memory_space<vmem>>, vector<1x8x1x32xf32>
    %272 = vector.shape_cast %271 : vector<1x8x1x32xf32> to vector<8x32xf32>
    %273 = vector.shape_cast %270 : vector<8x32xf32> to vector<1x8x1x32xf32>
    tpu.vector_store %arg7[%c0_174, %c0_175, %c19, %c0_176], %273 {strides = array<i32>} : memref<1x8x32x32xf32, #tpu.memory_space<vmem>>, vector<1x8x1x32xf32>,
    %c0_177 = arith.constant 0 : index
    %c0_178 = arith.constant 0 : index
    %c10_179 = arith.constant 10 : index
    %c0_180 = arith.constant 0 : index
    %274 = vector.load %arg2[%c0_177, %c0_178, %c10_179, %c0_180] : memref<1x16x16x16xf32, #tpu.memory_space<vmem>>, vector<1x16x1x16xf32>
    %275 = vector.shape_cast %274 : vector<1x16x1x16xf32> to vector<16x16xf32>
    %cst_181 = arith.constant dense<0.000000e+00> : vector<32x16xf32>
    %276 = tpu.matmul %0, %275, %cst_181 {dimension_numbers = #tpu.dot_dimension_numbers<[1], [0], [0], [1], [0, 0, 1, 1], [], []>} : vector<32x16xf32>, vector<16x16xf32>, vector<32x16xf32> -> vector<32x16xf32>
    %277 = vector.extract_strided_slice %276 {offsets = [0, 0], sizes = [8, 16], strides = [1, 1]} : vector<32x16xf32> to vector<8x16xf32>
    %278 = vector.extract_strided_slice %276 {offsets = [8, 0], sizes = [8, 16], strides = [1, 1]} : vector<32x16xf32> to vector<8x16xf32>
    %cst_182 = arith.constant dense<0.000000e+00> : vector<8x32xf32>
    %279 = tpu.matmul %277, %1, %cst_182 {dimension_numbers = #tpu.dot_dimension_numbers<[1], [0], [0], [1], [0, 0, 1, 1], [], []>} : vector<8x16xf32>, vector<16x32xf32>, vector<8x32xf32> -> vector<8x32xf32>
    %cst_183 = arith.constant dense<0.000000e+00> : vector<8x32xf32>
    %280 = tpu.matmul %278, %2, %cst_183 {dimension_numbers = #tpu.dot_dimension_numbers<[1], [0], [0], [1], [0, 0, 1, 1], [], []>} : vector<8x16xf32>, vector<16x32xf32>, vector<8x32xf32> -> vector<8x32xf32>
    %281 = arith.addf %279, %280 : vector<8x32xf32>
    %282 = vector.broadcast %3 : vector<8x1xf32> to vector<8x32xf32>
    %283 = arith.addf %281, %282 : vector<8x32xf32>
    %cst_184 = arith.constant 0.000000e+00 : f32
    %284 = vector.broadcast %cst_184 : f32 to vector<8x32xf32>
    %285 = arith.maximumf %283, %284 : vector<8x32xf32>
    %c0_185 = arith.constant 0 : index
    %c0_186 = arith.constant 0 : index
    %c20 = arith.constant 20 : index
    %c0_187 = arith.constant 0 : index
    %286 = vector.load %arg7[%c0_185, %c0_186, %c20, %c0_187] : memref<1x8x32x32xf32, #tpu.memory_space<vmem>>, vector<1x8x1x32xf32>
    %287 = vector.shape_cast %286 : vector<1x8x1x32xf32> to vector<8x32xf32>
    %288 = vector.shape_cast %285 : vector<8x32xf32> to vector<1x8x1x32xf32>
    tpu.vector_store %arg7[%c0_185, %c0_186, %c20, %c0_187], %288 {strides = array<i32>} : memref<1x8x32x32xf32, #tpu.memory_space<vmem>>, vector<1x8x1x32xf32>,
    %289 = vector.extract_strided_slice %276 {offsets = [16, 0], sizes = [8, 16], strides = [1, 1]} : vector<32x16xf32> to vector<8x16xf32>
    %290 = vector.extract_strided_slice %276 {offsets = [24, 0], sizes = [8, 16], strides = [1, 1]} : vector<32x16xf32> to vector<8x16xf32>
    %cst_188 = arith.constant dense<0.000000e+00> : vector<8x32xf32>
    %291 = tpu.matmul %289, %1, %cst_188 {dimension_numbers = #tpu.dot_dimension_numbers<[1], [0], [0], [1], [0, 0, 1, 1], [], []>} : vector<8x16xf32>, vector<16x32xf32>, vector<8x32xf32> -> vector<8x32xf32>
    %cst_189 = arith.constant dense<0.000000e+00> : vector<8x32xf32>
    %292 = tpu.matmul %290, %2, %cst_189 {dimension_numbers = #tpu.dot_dimension_numbers<[1], [0], [0], [1], [0, 0, 1, 1], [], []>} : vector<8x16xf32>, vector<16x32xf32>, vector<8x32xf32> -> vector<8x32xf32>
    %293 = arith.addf %291, %292 : vector<8x32xf32>
    %294 = vector.broadcast %3 : vector<8x1xf32> to vector<8x32xf32>
    %295 = arith.addf %293, %294 : vector<8x32xf32>
    %cst_190 = arith.constant 0.000000e+00 : f32
    %296 = vector.broadcast %cst_190 : f32 to vector<8x32xf32>
    %297 = arith.maximumf %295, %296 : vector<8x32xf32>
    %c0_191 = arith.constant 0 : index
    %c0_192 = arith.constant 0 : index
    %c21 = arith.constant 21 : index
    %c0_193 = arith.constant 0 : index
    %298 = vector.load %arg7[%c0_191, %c0_192, %c21, %c0_193] : memref<1x8x32x32xf32, #tpu.memory_space<vmem>>, vector<1x8x1x32xf32>
    %299 = vector.shape_cast %298 : vector<1x8x1x32xf32> to vector<8x32xf32>
    %300 = vector.shape_cast %297 : vector<8x32xf32> to vector<1x8x1x32xf32>
    tpu.vector_store %arg7[%c0_191, %c0_192, %c21, %c0_193], %300 {strides = array<i32>} : memref<1x8x32x32xf32, #tpu.memory_space<vmem>>, vector<1x8x1x32xf32>,
    %c0_194 = arith.constant 0 : index
    %c0_195 = arith.constant 0 : index
    %c11_196 = arith.constant 11 : index
    %c0_197 = arith.constant 0 : index
    %301 = vector.load %arg2[%c0_194, %c0_195, %c11_196, %c0_197] : memref<1x16x16x16xf32, #tpu.memory_space<vmem>>, vector<1x16x1x16xf32>
    %302 = vector.shape_cast %301 : vector<1x16x1x16xf32> to vector<16x16xf32>
    %cst_198 = arith.constant dense<0.000000e+00> : vector<32x16xf32>
    %303 = tpu.matmul %0, %302, %cst_198 {dimension_numbers = #tpu.dot_dimension_numbers<[1], [0], [0], [1], [0, 0, 1, 1], [], []>} : vector<32x16xf32>, vector<16x16xf32>, vector<32x16xf32> -> vector<32x16xf32>
    %304 = vector.extract_strided_slice %303 {offsets = [0, 0], sizes = [8, 16], strides = [1, 1]} : vector<32x16xf32> to vector<8x16xf32>
    %305 = vector.extract_strided_slice %303 {offsets = [8, 0], sizes = [8, 16], strides = [1, 1]} : vector<32x16xf32> to vector<8x16xf32>
    %cst_199 = arith.constant dense<0.000000e+00> : vector<8x32xf32>
    %306 = tpu.matmul %304, %1, %cst_199 {dimension_numbers = #tpu.dot_dimension_numbers<[1], [0], [0], [1], [0, 0, 1, 1], [], []>} : vector<8x16xf32>, vector<16x32xf32>, vector<8x32xf32> -> vector<8x32xf32>
    %cst_200 = arith.constant dense<0.000000e+00> : vector<8x32xf32>
    %307 = tpu.matmul %305, %2, %cst_200 {dimension_numbers = #tpu.dot_dimension_numbers<[1], [0], [0], [1], [0, 0, 1, 1], [], []>} : vector<8x16xf32>, vector<16x32xf32>, vector<8x32xf32> -> vector<8x32xf32>
    %308 = arith.addf %306, %307 : vector<8x32xf32>
    %309 = vector.broadcast %3 : vector<8x1xf32> to vector<8x32xf32>
    %310 = arith.addf %308, %309 : vector<8x32xf32>
    %cst_201 = arith.constant 0.000000e+00 : f32
    %311 = vector.broadcast %cst_201 : f32 to vector<8x32xf32>
    %312 = arith.maximumf %310, %311 : vector<8x32xf32>
    %c0_202 = arith.constant 0 : index
    %c0_203 = arith.constant 0 : index
    %c22 = arith.constant 22 : index
    %c0_204 = arith.constant 0 : index
    %313 = vector.load %arg7[%c0_202, %c0_203, %c22, %c0_204] : memref<1x8x32x32xf32, #tpu.memory_space<vmem>>, vector<1x8x1x32xf32>
    %314 = vector.shape_cast %313 : vector<1x8x1x32xf32> to vector<8x32xf32>
    %315 = vector.shape_cast %312 : vector<8x32xf32> to vector<1x8x1x32xf32>
    tpu.vector_store %arg7[%c0_202, %c0_203, %c22, %c0_204], %315 {strides = array<i32>} : memref<1x8x32x32xf32, #tpu.memory_space<vmem>>, vector<1x8x1x32xf32>,
    %316 = vector.extract_strided_slice %303 {offsets = [16, 0], sizes = [8, 16], strides = [1, 1]} : vector<32x16xf32> to vector<8x16xf32>
    %317 = vector.extract_strided_slice %303 {offsets = [24, 0], sizes = [8, 16], strides = [1, 1]} : vector<32x16xf32> to vector<8x16xf32>
    %cst_205 = arith.constant dense<0.000000e+00> : vector<8x32xf32>
    %318 = tpu.matmul %316, %1, %cst_205 {dimension_numbers = #tpu.dot_dimension_numbers<[1], [0], [0], [1], [0, 0, 1, 1], [], []>} : vector<8x16xf32>, vector<16x32xf32>, vector<8x32xf32> -> vector<8x32xf32>
    %cst_206 = arith.constant dense<0.000000e+00> : vector<8x32xf32>
    %319 = tpu.matmul %317, %2, %cst_206 {dimension_numbers = #tpu.dot_dimension_numbers<[1], [0], [0], [1], [0, 0, 1, 1], [], []>} : vector<8x16xf32>, vector<16x32xf32>, vector<8x32xf32> -> vector<8x32xf32>
    %320 = arith.addf %318, %319 : vector<8x32xf32>
    %321 = vector.broadcast %3 : vector<8x1xf32> to vector<8x32xf32>
    %322 = arith.addf %320, %321 : vector<8x32xf32>
    %cst_207 = arith.constant 0.000000e+00 : f32
    %323 = vector.broadcast %cst_207 : f32 to vector<8x32xf32>
    %324 = arith.maximumf %322, %323 : vector<8x32xf32>
    %c0_208 = arith.constant 0 : index
    %c0_209 = arith.constant 0 : index
    %c23 = arith.constant 23 : index
    %c0_210 = arith.constant 0 : index
    %325 = vector.load %arg7[%c0_208, %c0_209, %c23, %c0_210] : memref<1x8x32x32xf32, #tpu.memory_space<vmem>>, vector<1x8x1x32xf32>
    %326 = vector.shape_cast %325 : vector<1x8x1x32xf32> to vector<8x32xf32>
    %327 = vector.shape_cast %324 : vector<8x32xf32> to vector<1x8x1x32xf32>
    tpu.vector_store %arg7[%c0_208, %c0_209, %c23, %c0_210], %327 {strides = array<i32>} : memref<1x8x32x32xf32, #tpu.memory_space<vmem>>, vector<1x8x1x32xf32>,
    %c0_211 = arith.constant 0 : index
    %c0_212 = arith.constant 0 : index
    %c12_213 = arith.constant 12 : index
    %c0_214 = arith.constant 0 : index
    %328 = vector.load %arg2[%c0_211, %c0_212, %c12_213, %c0_214] : memref<1x16x16x16xf32, #tpu.memory_space<vmem>>, vector<1x16x1x16xf32>
    %329 = vector.shape_cast %328 : vector<1x16x1x16xf32> to vector<16x16xf32>
    %cst_215 = arith.constant dense<0.000000e+00> : vector<32x16xf32>
    %330 = tpu.matmul %0, %329, %cst_215 {dimension_numbers = #tpu.dot_dimension_numbers<[1], [0], [0], [1], [0, 0, 1, 1], [], []>} : vector<32x16xf32>, vector<16x16xf32>, vector<32x16xf32> -> vector<32x16xf32>
    %331 = vector.extract_strided_slice %330 {offsets = [0, 0], sizes = [8, 16], strides = [1, 1]} : vector<32x16xf32> to vector<8x16xf32>
    %332 = vector.extract_strided_slice %330 {offsets = [8, 0], sizes = [8, 16], strides = [1, 1]} : vector<32x16xf32> to vector<8x16xf32>
    %cst_216 = arith.constant dense<0.000000e+00> : vector<8x32xf32>
    %333 = tpu.matmul %331, %1, %cst_216 {dimension_numbers = #tpu.dot_dimension_numbers<[1], [0], [0], [1], [0, 0, 1, 1], [], []>} : vector<8x16xf32>, vector<16x32xf32>, vector<8x32xf32> -> vector<8x32xf32>
    %cst_217 = arith.constant dense<0.000000e+00> : vector<8x32xf32>
    %334 = tpu.matmul %332, %2, %cst_217 {dimension_numbers = #tpu.dot_dimension_numbers<[1], [0], [0], [1], [0, 0, 1, 1], [], []>} : vector<8x16xf32>, vector<16x32xf32>, vector<8x32xf32> -> vector<8x32xf32>
    %335 = arith.addf %333, %334 : vector<8x32xf32>
    %336 = vector.broadcast %3 : vector<8x1xf32> to vector<8x32xf32>
    %337 = arith.addf %335, %336 : vector<8x32xf32>
    %cst_218 = arith.constant 0.000000e+00 : f32
    %338 = vector.broadcast %cst_218 : f32 to vector<8x32xf32>
    %339 = arith.maximumf %337, %338 : vector<8x32xf32>
    %c0_219 = arith.constant 0 : index
    %c0_220 = arith.constant 0 : index
    %c24 = arith.constant 24 : index
    %c0_221 = arith.constant 0 : index
    %340 = vector.load %arg7[%c0_219, %c0_220, %c24, %c0_221] : memref<1x8x32x32xf32, #tpu.memory_space<vmem>>, vector<1x8x1x32xf32>
    %341 = vector.shape_cast %340 : vector<1x8x1x32xf32> to vector<8x32xf32>
    %342 = vector.shape_cast %339 : vector<8x32xf32> to vector<1x8x1x32xf32>
    tpu.vector_store %arg7[%c0_219, %c0_220, %c24, %c0_221], %342 {strides = array<i32>} : memref<1x8x32x32xf32, #tpu.memory_space<vmem>>, vector<1x8x1x32xf32>,
    %343 = vector.extract_strided_slice %330 {offsets = [16, 0], sizes = [8, 16], strides = [1, 1]} : vector<32x16xf32> to vector<8x16xf32>
    %344 = vector.extract_strided_slice %330 {offsets = [24, 0], sizes = [8, 16], strides = [1, 1]} : vector<32x16xf32> to vector<8x16xf32>
    %cst_222 = arith.constant dense<0.000000e+00> : vector<8x32xf32>
    %345 = tpu.matmul %343, %1, %cst_222 {dimension_numbers = #tpu.dot_dimension_numbers<[1], [0], [0], [1], [0, 0, 1, 1], [], []>} : vector<8x16xf32>, vector<16x32xf32>, vector<8x32xf32> -> vector<8x32xf32>
    %cst_223 = arith.constant dense<0.000000e+00> : vector<8x32xf32>
    %346 = tpu.matmul %344, %2, %cst_223 {dimension_numbers = #tpu.dot_dimension_numbers<[1], [0], [0], [1], [0, 0, 1, 1], [], []>} : vector<8x16xf32>, vector<16x32xf32>, vector<8x32xf32> -> vector<8x32xf32>
    %347 = arith.addf %345, %346 : vector<8x32xf32>
    %348 = vector.broadcast %3 : vector<8x1xf32> to vector<8x32xf32>
    %349 = arith.addf %347, %348 : vector<8x32xf32>
    %cst_224 = arith.constant 0.000000e+00 : f32
    %350 = vector.broadcast %cst_224 : f32 to vector<8x32xf32>
    %351 = arith.maximumf %349, %350 : vector<8x32xf32>
    %c0_225 = arith.constant 0 : index
    %c0_226 = arith.constant 0 : index
    %c25 = arith.constant 25 : index
    %c0_227 = arith.constant 0 : index
    %352 = vector.load %arg7[%c0_225, %c0_226, %c25, %c0_227] : memref<1x8x32x32xf32, #tpu.memory_space<vmem>>, vector<1x8x1x32xf32>
    %353 = vector.shape_cast %352 : vector<1x8x1x32xf32> to vector<8x32xf32>
    %354 = vector.shape_cast %351 : vector<8x32xf32> to vector<1x8x1x32xf32>
    tpu.vector_store %arg7[%c0_225, %c0_226, %c25, %c0_227], %354 {strides = array<i32>} : memref<1x8x32x32xf32, #tpu.memory_space<vmem>>, vector<1x8x1x32xf32>,
    %c0_228 = arith.constant 0 : index
    %c0_229 = arith.constant 0 : index
    %c13_230 = arith.constant 13 : index
    %c0_231 = arith.constant 0 : index
    %355 = vector.load %arg2[%c0_228, %c0_229, %c13_230, %c0_231] : memref<1x16x16x16xf32, #tpu.memory_space<vmem>>, vector<1x16x1x16xf32>
    %356 = vector.shape_cast %355 : vector<1x16x1x16xf32> to vector<16x16xf32>
    %cst_232 = arith.constant dense<0.000000e+00> : vector<32x16xf32>
    %357 = tpu.matmul %0, %356, %cst_232 {dimension_numbers = #tpu.dot_dimension_numbers<[1], [0], [0], [1], [0, 0, 1, 1], [], []>} : vector<32x16xf32>, vector<16x16xf32>, vector<32x16xf32> -> vector<32x16xf32>
    %358 = vector.extract_strided_slice %357 {offsets = [0, 0], sizes = [8, 16], strides = [1, 1]} : vector<32x16xf32> to vector<8x16xf32>
    %359 = vector.extract_strided_slice %357 {offsets = [8, 0], sizes = [8, 16], strides = [1, 1]} : vector<32x16xf32> to vector<8x16xf32>
    %cst_233 = arith.constant dense<0.000000e+00> : vector<8x32xf32>
    %360 = tpu.matmul %358, %1, %cst_233 {dimension_numbers = #tpu.dot_dimension_numbers<[1], [0], [0], [1], [0, 0, 1, 1], [], []>} : vector<8x16xf32>, vector<16x32xf32>, vector<8x32xf32> -> vector<8x32xf32>
    %cst_234 = arith.constant dense<0.000000e+00> : vector<8x32xf32>
    %361 = tpu.matmul %359, %2, %cst_234 {dimension_numbers = #tpu.dot_dimension_numbers<[1], [0], [0], [1], [0, 0, 1, 1], [], []>} : vector<8x16xf32>, vector<16x32xf32>, vector<8x32xf32> -> vector<8x32xf32>
    %362 = arith.addf %360, %361 : vector<8x32xf32>
    %363 = vector.broadcast %3 : vector<8x1xf32> to vector<8x32xf32>
    %364 = arith.addf %362, %363 : vector<8x32xf32>
    %cst_235 = arith.constant 0.000000e+00 : f32
    %365 = vector.broadcast %cst_235 : f32 to vector<8x32xf32>
    %366 = arith.maximumf %364, %365 : vector<8x32xf32>
    %c0_236 = arith.constant 0 : index
    %c0_237 = arith.constant 0 : index
    %c26 = arith.constant 26 : index
    %c0_238 = arith.constant 0 : index
    %367 = vector.load %arg7[%c0_236, %c0_237, %c26, %c0_238] : memref<1x8x32x32xf32, #tpu.memory_space<vmem>>, vector<1x8x1x32xf32>
    %368 = vector.shape_cast %367 : vector<1x8x1x32xf32> to vector<8x32xf32>
    %369 = vector.shape_cast %366 : vector<8x32xf32> to vector<1x8x1x32xf32>
    tpu.vector_store %arg7[%c0_236, %c0_237, %c26, %c0_238], %369 {strides = array<i32>} : memref<1x8x32x32xf32, #tpu.memory_space<vmem>>, vector<1x8x1x32xf32>,
    %370 = vector.extract_strided_slice %357 {offsets = [16, 0], sizes = [8, 16], strides = [1, 1]} : vector<32x16xf32> to vector<8x16xf32>
    %371 = vector.extract_strided_slice %357 {offsets = [24, 0], sizes = [8, 16], strides = [1, 1]} : vector<32x16xf32> to vector<8x16xf32>
    %cst_239 = arith.constant dense<0.000000e+00> : vector<8x32xf32>
    %372 = tpu.matmul %370, %1, %cst_239 {dimension_numbers = #tpu.dot_dimension_numbers<[1], [0], [0], [1], [0, 0, 1, 1], [], []>} : vector<8x16xf32>, vector<16x32xf32>, vector<8x32xf32> -> vector<8x32xf32>
    %cst_240 = arith.constant dense<0.000000e+00> : vector<8x32xf32>
    %373 = tpu.matmul %371, %2, %cst_240 {dimension_numbers = #tpu.dot_dimension_numbers<[1], [0], [0], [1], [0, 0, 1, 1], [], []>} : vector<8x16xf32>, vector<16x32xf32>, vector<8x32xf32> -> vector<8x32xf32>
    %374 = arith.addf %372, %373 : vector<8x32xf32>
    %375 = vector.broadcast %3 : vector<8x1xf32> to vector<8x32xf32>
    %376 = arith.addf %374, %375 : vector<8x32xf32>
    %cst_241 = arith.constant 0.000000e+00 : f32
    %377 = vector.broadcast %cst_241 : f32 to vector<8x32xf32>
    %378 = arith.maximumf %376, %377 : vector<8x32xf32>
    %c0_242 = arith.constant 0 : index
    %c0_243 = arith.constant 0 : index
    %c27 = arith.constant 27 : index
    %c0_244 = arith.constant 0 : index
    %379 = vector.load %arg7[%c0_242, %c0_243, %c27, %c0_244] : memref<1x8x32x32xf32, #tpu.memory_space<vmem>>, vector<1x8x1x32xf32>
    %380 = vector.shape_cast %379 : vector<1x8x1x32xf32> to vector<8x32xf32>
    %381 = vector.shape_cast %378 : vector<8x32xf32> to vector<1x8x1x32xf32>
    tpu.vector_store %arg7[%c0_242, %c0_243, %c27, %c0_244], %381 {strides = array<i32>} : memref<1x8x32x32xf32, #tpu.memory_space<vmem>>, vector<1x8x1x32xf32>,
    %c0_245 = arith.constant 0 : index
    %c0_246 = arith.constant 0 : index
    %c14_247 = arith.constant 14 : index
    %c0_248 = arith.constant 0 : index
    %382 = vector.load %arg2[%c0_245, %c0_246, %c14_247, %c0_248] : memref<1x16x16x16xf32, #tpu.memory_space<vmem>>, vector<1x16x1x16xf32>
    %383 = vector.shape_cast %382 : vector<1x16x1x16xf32> to vector<16x16xf32>
    %cst_249 = arith.constant dense<0.000000e+00> : vector<32x16xf32>
    %384 = tpu.matmul %0, %383, %cst_249 {dimension_numbers = #tpu.dot_dimension_numbers<[1], [0], [0], [1], [0, 0, 1, 1], [], []>} : vector<32x16xf32>, vector<16x16xf32>, vector<32x16xf32> -> vector<32x16xf32>
    %385 = vector.extract_strided_slice %384 {offsets = [0, 0], sizes = [8, 16], strides = [1, 1]} : vector<32x16xf32> to vector<8x16xf32>
    %386 = vector.extract_strided_slice %384 {offsets = [8, 0], sizes = [8, 16], strides = [1, 1]} : vector<32x16xf32> to vector<8x16xf32>
    %cst_250 = arith.constant dense<0.000000e+00> : vector<8x32xf32>
    %387 = tpu.matmul %385, %1, %cst_250 {dimension_numbers = #tpu.dot_dimension_numbers<[1], [0], [0], [1], [0, 0, 1, 1], [], []>} : vector<8x16xf32>, vector<16x32xf32>, vector<8x32xf32> -> vector<8x32xf32>
    %cst_251 = arith.constant dense<0.000000e+00> : vector<8x32xf32>
    %388 = tpu.matmul %386, %2, %cst_251 {dimension_numbers = #tpu.dot_dimension_numbers<[1], [0], [0], [1], [0, 0, 1, 1], [], []>} : vector<8x16xf32>, vector<16x32xf32>, vector<8x32xf32> -> vector<8x32xf32>
    %389 = arith.addf %387, %388 : vector<8x32xf32>
    %390 = vector.broadcast %3 : vector<8x1xf32> to vector<8x32xf32>
    %391 = arith.addf %389, %390 : vector<8x32xf32>
    %cst_252 = arith.constant 0.000000e+00 : f32
    %392 = vector.broadcast %cst_252 : f32 to vector<8x32xf32>
    %393 = arith.maximumf %391, %392 : vector<8x32xf32>
    %c0_253 = arith.constant 0 : index
    %c0_254 = arith.constant 0 : index
    %c28 = arith.constant 28 : index
    %c0_255 = arith.constant 0 : index
    %394 = vector.load %arg7[%c0_253, %c0_254, %c28, %c0_255] : memref<1x8x32x32xf32, #tpu.memory_space<vmem>>, vector<1x8x1x32xf32>
    %395 = vector.shape_cast %394 : vector<1x8x1x32xf32> to vector<8x32xf32>
    %396 = vector.shape_cast %393 : vector<8x32xf32> to vector<1x8x1x32xf32>
    tpu.vector_store %arg7[%c0_253, %c0_254, %c28, %c0_255], %396 {strides = array<i32>} : memref<1x8x32x32xf32, #tpu.memory_space<vmem>>, vector<1x8x1x32xf32>,
    %397 = vector.extract_strided_slice %384 {offsets = [16, 0], sizes = [8, 16], strides = [1, 1]} : vector<32x16xf32> to vector<8x16xf32>
    %398 = vector.extract_strided_slice %384 {offsets = [24, 0], sizes = [8, 16], strides = [1, 1]} : vector<32x16xf32> to vector<8x16xf32>
    %cst_256 = arith.constant dense<0.000000e+00> : vector<8x32xf32>
    %399 = tpu.matmul %397, %1, %cst_256 {dimension_numbers = #tpu.dot_dimension_numbers<[1], [0], [0], [1], [0, 0, 1, 1], [], []>} : vector<8x16xf32>, vector<16x32xf32>, vector<8x32xf32> -> vector<8x32xf32>
    %cst_257 = arith.constant dense<0.000000e+00> : vector<8x32xf32>
    %400 = tpu.matmul %398, %2, %cst_257 {dimension_numbers = #tpu.dot_dimension_numbers<[1], [0], [0], [1], [0, 0, 1, 1], [], []>} : vector<8x16xf32>, vector<16x32xf32>, vector<8x32xf32> -> vector<8x32xf32>
    %401 = arith.addf %399, %400 : vector<8x32xf32>
    %402 = vector.broadcast %3 : vector<8x1xf32> to vector<8x32xf32>
    %403 = arith.addf %401, %402 : vector<8x32xf32>
    %cst_258 = arith.constant 0.000000e+00 : f32
    %404 = vector.broadcast %cst_258 : f32 to vector<8x32xf32>
    %405 = arith.maximumf %403, %404 : vector<8x32xf32>
    %c0_259 = arith.constant 0 : index
    %c0_260 = arith.constant 0 : index
    %c29 = arith.constant 29 : index
    %c0_261 = arith.constant 0 : index
    %406 = vector.load %arg7[%c0_259, %c0_260, %c29, %c0_261] : memref<1x8x32x32xf32, #tpu.memory_space<vmem>>, vector<1x8x1x32xf32>
    %407 = vector.shape_cast %406 : vector<1x8x1x32xf32> to vector<8x32xf32>
    %408 = vector.shape_cast %405 : vector<8x32xf32> to vector<1x8x1x32xf32>
    tpu.vector_store %arg7[%c0_259, %c0_260, %c29, %c0_261], %408 {strides = array<i32>} : memref<1x8x32x32xf32, #tpu.memory_space<vmem>>, vector<1x8x1x32xf32>,
    %c0_262 = arith.constant 0 : index
    %c0_263 = arith.constant 0 : index
    %c15_264 = arith.constant 15 : index
    %c0_265 = arith.constant 0 : index
    %409 = vector.load %arg2[%c0_262, %c0_263, %c15_264, %c0_265] : memref<1x16x16x16xf32, #tpu.memory_space<vmem>>, vector<1x16x1x16xf32>
    %410 = vector.shape_cast %409 : vector<1x16x1x16xf32> to vector<16x16xf32>
    %cst_266 = arith.constant dense<0.000000e+00> : vector<32x16xf32>
    %411 = tpu.matmul %0, %410, %cst_266 {dimension_numbers = #tpu.dot_dimension_numbers<[1], [0], [0], [1], [0, 0, 1, 1], [], []>} : vector<32x16xf32>, vector<16x16xf32>, vector<32x16xf32> -> vector<32x16xf32>
    %412 = vector.extract_strided_slice %411 {offsets = [0, 0], sizes = [8, 16], strides = [1, 1]} : vector<32x16xf32> to vector<8x16xf32>
    %413 = vector.extract_strided_slice %411 {offsets = [8, 0], sizes = [8, 16], strides = [1, 1]} : vector<32x16xf32> to vector<8x16xf32>
    %cst_267 = arith.constant dense<0.000000e+00> : vector<8x32xf32>
    %414 = tpu.matmul %412, %1, %cst_267 {dimension_numbers = #tpu.dot_dimension_numbers<[1], [0], [0], [1], [0, 0, 1, 1], [], []>} : vector<8x16xf32>, vector<16x32xf32>, vector<8x32xf32> -> vector<8x32xf32>
    %cst_268 = arith.constant dense<0.000000e+00> : vector<8x32xf32>
    %415 = tpu.matmul %413, %2, %cst_268 {dimension_numbers = #tpu.dot_dimension_numbers<[1], [0], [0], [1], [0, 0, 1, 1], [], []>} : vector<8x16xf32>, vector<16x32xf32>, vector<8x32xf32> -> vector<8x32xf32>
    %416 = arith.addf %414, %415 : vector<8x32xf32>
    %417 = vector.broadcast %3 : vector<8x1xf32> to vector<8x32xf32>
    %418 = arith.addf %416, %417 : vector<8x32xf32>
    %cst_269 = arith.constant 0.000000e+00 : f32
    %419 = vector.broadcast %cst_269 : f32 to vector<8x32xf32>
    %420 = arith.maximumf %418, %419 : vector<8x32xf32>
    %c0_270 = arith.constant 0 : index
    %c0_271 = arith.constant 0 : index
    %c30 = arith.constant 30 : index
    %c0_272 = arith.constant 0 : index
    %421 = vector.load %arg7[%c0_270, %c0_271, %c30, %c0_272] : memref<1x8x32x32xf32, #tpu.memory_space<vmem>>, vector<1x8x1x32xf32>
    %422 = vector.shape_cast %421 : vector<1x8x1x32xf32> to vector<8x32xf32>
    %423 = vector.shape_cast %420 : vector<8x32xf32> to vector<1x8x1x32xf32>
    tpu.vector_store %arg7[%c0_270, %c0_271, %c30, %c0_272], %423 {strides = array<i32>} : memref<1x8x32x32xf32, #tpu.memory_space<vmem>>, vector<1x8x1x32xf32>,
    %424 = vector.extract_strided_slice %411 {offsets = [16, 0], sizes = [8, 16], strides = [1, 1]} : vector<32x16xf32> to vector<8x16xf32>
    %425 = vector.extract_strided_slice %411 {offsets = [24, 0], sizes = [8, 16], strides = [1, 1]} : vector<32x16xf32> to vector<8x16xf32>
    %cst_273 = arith.constant dense<0.000000e+00> : vector<8x32xf32>
    %426 = tpu.matmul %424, %1, %cst_273 {dimension_numbers = #tpu.dot_dimension_numbers<[1], [0], [0], [1], [0, 0, 1, 1], [], []>} : vector<8x16xf32>, vector<16x32xf32>, vector<8x32xf32> -> vector<8x32xf32>
    %cst_274 = arith.constant dense<0.000000e+00> : vector<8x32xf32>
    %427 = tpu.matmul %425, %2, %cst_274 {dimension_numbers = #tpu.dot_dimension_numbers<[1], [0], [0], [1], [0, 0, 1, 1], [], []>} : vector<8x16xf32>, vector<16x32xf32>, vector<8x32xf32> -> vector<8x32xf32>
    %428 = arith.addf %426, %427 : vector<8x32xf32>
    %429 = vector.broadcast %3 : vector<8x1xf32> to vector<8x32xf32>
    %430 = arith.addf %428, %429 : vector<8x32xf32>
    %cst_275 = arith.constant 0.000000e+00 : f32
    %431 = vector.broadcast %cst_275 : f32 to vector<8x32xf32>
    %432 = arith.maximumf %430, %431 : vector<8x32xf32>
    %c0_276 = arith.constant 0 : index
    %c0_277 = arith.constant 0 : index
    %c31 = arith.constant 31 : index
    %c0_278 = arith.constant 0 : index
    %433 = vector.load %arg7[%c0_276, %c0_277, %c31, %c0_278] : memref<1x8x32x32xf32, #tpu.memory_space<vmem>>, vector<1x8x1x32xf32>
    %434 = vector.shape_cast %433 : vector<1x8x1x32xf32> to vector<8x32xf32>
    %435 = vector.shape_cast %432 : vector<8x32xf32> to vector<1x8x1x32xf32>
    tpu.vector_store %arg7[%c0_276, %c0_277, %c31, %c0_278], %435 {strides = array<i32>} : memref<1x8x32x32xf32, #tpu.memory_space<vmem>>, vector<1x8x1x32xf32>,
    return
  }
  func.func @transform_0(%arg0: i32, %arg1: i32) -> (i32, i32, i32, i32) {
    %c0_i32 = arith.constant 0 : i32
    %c0_i32_0 = arith.constant 0 : i32
    %c0_i32_1 = arith.constant 0 : i32
    return %arg0, %c0_i32, %arg1, %c0_i32_0 : i32, i32, i32, i32
  }
  func.func @transform_1(%arg0: i32, %arg1: i32) -> (i32, i32) {
    %c0_i32 = arith.constant 0 : i32
    %c0_i32_0 = arith.constant 0 : i32
    %c0_i32_1 = arith.constant 0 : i32
    return %c0_i32, %c0_i32_0 : i32, i32
  }
  func.func @transform_2(%arg0: i32, %arg1: i32) -> (i32, i32) {
    %c0_i32 = arith.constant 0 : i32
    %c0_i32_0 = arith.constant 0 : i32
    %c0_i32_1 = arith.constant 0 : i32
    return %c0_i32, %c0_i32_0 : i32, i32
  }
  func.func @transform_3(%arg0: i32, %arg1: i32) -> (i32, i32) {
    %c0_i32 = arith.constant 0 : i32
    %c0_i32_0 = arith.constant 0 : i32
    %c0_i32_1 = arith.constant 0 : i32
    return %c0_i32, %c0_i32_0 : i32, i32
  }
  func.func @transform_4(%arg0: i32, %arg1: i32) -> (i32, i32) {
    %c0_i32 = arith.constant 0 : i32
    %c0_i32_0 = arith.constant 0 : i32
    %c0_i32_1 = arith.constant 0 : i32
    return %c0_i32, %c0_i32_0 : i32, i32
  }
  func.func @transform_5(%arg0: i32, %arg1: i32) -> (i32, i32, i32, i32) {
    %c0_i32 = arith.constant 0 : i32
    %c0_i32_0 = arith.constant 0 : i32
    %c0_i32_1 = arith.constant 0 : i32
    return %arg0, %c0_i32, %arg1, %c0_i32_0 : i32, i32, i32, i32
  }
}

</mosaic_0001>

<llo_original>
// kernel: upsampler_forward.1
$region0: #{upsampler_forward.1}
  #allocation0 [shape = 'u32[]', space=smem, size = 0x4, offset = 0x4, fixed_abs, tag = 'smem constant byte address 0x4 - core index']
  #allocation1 [shape = 'u32[144,128]{1,0:T(1,128)}', space=vmem, size = 0x12000, scoped, tag = 'internal scratch']
  %s0 = inlined_call_operand.hbm [shape: f32[2,16,16,16], index: 0, kind: input, shape index: {}]
  %s1 = inlined_call_operand.vmem [shape: f32[32,16], index: 1, kind: input, shape index: {}]
  %s2 = inlined_call_operand.vmem [shape: f32[8,1], index: 2, kind: input, shape index: {}]
  %s3 = inlined_call_operand.vmem [shape: f32[16,32], index: 3, kind: input, shape index: {}]
  %s4 = inlined_call_operand.vmem [shape: f32[16,32], index: 4, kind: input, shape index: {}]
  %s5 = inlined_call_operand.hbm [shape: f32[2,8,32,32], index: 5, kind: output, shape index: {}]
  %s6 = sld [smem:[#allocation0]]
  $region57: #{upsampler_forward.1} parent=0
    _
  %s8 = ssub.s32 1, %s6
  %s9 = scalar_select 0, %s8, %s6
  $region1: #{upsampler_forward.1} parent=0
    #allocation2 [shape = 'u8[262144]{0}', space=vmem, size = 0x40000, scoped, tag = 'input window, operand 0']
    #allocation3 [shape = 's32[2]{0}', space=sflag, size = 0x8, scoped, tag = 'scoped memory for upsampler_forward.1']
    #allocation4 [shape = 's32[2]{0}', space=sflag, size = 0x8, scoped, tag = 'scoped memory for upsampler_forward.1']
    #allocation5 [shape = 'u8[262144]{0}', space=vmem, size = 0x40000, scoped, tag = 'output window, operand 0']
    %10 = vsyncpa [#allocation3], 0
    %s11 = scalar_lea.sflag [#allocation3], 1
    %12 = vsyncpa %s11, 0
    %13 = vsyncpa [#allocation4], 0
    %s14 = scalar_lea.sflag [#allocation4], 1
    %15 = vsyncpa %s14, 0
    loop: start=0, step=1, limit=4
    $region2: #{upsampler_forward.1} parent=1 // loop_pre_header
      _
    $region3: #{upsampler_forward.1} parent=1 // loop_header
      %s17 = sphi 0, %s21
      %p18 = scmp.ge.s32.totalorder %s17, 4
      %s24 = sphi 0, %s36
      %s25 = sphi 0, %s32
      %s26 = sphi 0, %s24
      %s27 = sphi 0, %s25
      %s28 = sphi 0, %s26
      %s29 = sphi 0, %s27
      %s41 = sphi 0, %s43
      %s44 = sphi 0, %s41
      %s45 = sphi 0, %s44
      %s61 = sphi 0, %s45
      %s65 = sphi 0, %s65
      %s67 = sphi 0, %s65
      %s68 = sphi 0, %s67
      %s82 = sphi 0, %s68
      %s86 = sphi 0, %s86
      %s88 = sphi 0, %s86
      %s89 = sphi 0, %s88
      %s103 = sphi 0, %s89
      %s107 = sphi 0, %s107
      %s109 = sphi 0, %s107
      %s110 = sphi 0, %s109
      %s124 = sphi 0, %s110
      %s128 = sphi 0, %s128
      %s130 = sphi 0, %s128
      %s131 = sphi 0, %s130
      %s145 = sphi 0, %s131
      %s153 = sphi 0, %s155
      %s156 = sphi 0, %s153
      %s157 = sphi 0, %s156
      %s173 = sphi 0, %s157
    $region4: #{upsampler_forward.1} parent=1 // loop_header_branch
      %20 = sbr.rel (%p18) target = $region8
    $region5: #{upsampler_forward.1} parent=1 // loop_body
      %s22 = ssub.s32 %s17, 1
      %s23 = ssub.s32 %s17, 2
      %s30 = sadd.s32 1, %s25
      %p31 = scmp.ge.s32.totalorder %s30, 1
      %s32 = scalar_select %p31, 0, %s30
      %s33 = sadd.s32 1, %s24
      %s34 = scalar_select %p31, %s33, %s24
      %p35 = scmp.ge.s32.totalorder %s34, 2
      %s36 = scalar_select %p35, 0, %s34
      %s37 = ssub.s32 %s24, %s36
      %s38 = ssub.s32 %s25, %s32
      %s39 = sor.u32 %s37, %s38
      %p40 = scmp.eq.s32.totalorder %s39, 0
      %s42 = sadd.s32 %s41, 1
      %s43 = scalar_select %p40, %s41, %s42
      %p46 = pneg %p40
      %p47 = scmp.eq.s32.totalorder %s17, 1
      %p48 = por %p46, %p47
      %p49 = scmp.ne.s32.totalorder %s41, %s44
      %p50 = scmp.eq.s32.totalorder %s17, 0
      %p51 = por %p49, %p50
      %p52 = scmp.ne.s32.totalorder %s41, %s44
      %p53 = scmp.eq.s32.totalorder %s22, 1
      %p54 = por %p52, %p53
      %p55 = scmp.ne.s32.totalorder %s44, %s45
      %p56 = scmp.eq.s32.totalorder %s22, 0
      %p57 = por %p55, %p56
      %p58 = scmp.ne.s32.totalorder %s44, %s45
      %p59 = scmp.eq.s32.totalorder %s23, 1
      %p60 = por %p58, %p59
      %p62 = scmp.ne.s32.totalorder %s45, %s61
      %p63 = scmp.eq.s32.totalorder %s23, 0
      %p64 = por %p62, %p63
      %s66 = sadd.s32 %s65, 1
      %p69 = scmp.eq.s32.totalorder %s17, 1
      %p70 = scmp.ne.s32.totalorder %s65, %s67
      %p71 = scmp.eq.s32.totalorder %s17, 0
      %p72 = por %p70, %p71
      %p73 = scmp.ne.s32.totalorder %s65, %s67
      %p74 = scmp.eq.s32.totalorder %s22, 1
      %p75 = por %p73, %p74
      %p76 = scmp.ne.s32.totalorder %s67, %s68
      %p77 = scmp.eq.s32.totalorder %s22, 0
      %p78 = por %p76, %p77
      %p79 = scmp.ne.s32.totalorder %s67, %s68
      %p80 = scmp.eq.s32.totalorder %s23, 1
      %p81 = por %p79, %p80
      %p83 = scmp.ne.s32.totalorder %s68, %s82
      %p84 = scmp.eq.s32.totalorder %s23, 0
      %p85 = por %p83, %p84
      %s87 = sadd.s32 %s86, 1
      %p90 = scmp.eq.s32.totalorder %s17, 1
      %p91 = scmp.ne.s32.totalorder %s86, %s88
      %p92 = scmp.eq.s32.totalorder %s17, 0
      %p93 = por %p91, %p92
      %p94 = scmp.ne.s32.totalorder %s86, %s88
      %p95 = scmp.eq.s32.totalorder %s22, 1
      %p96 = por %p94, %p95
      %p97 = scmp.ne.s32.totalorder %s88, %s89
      %p98 = scmp.eq.s32.totalorder %s22, 0
      %p99 = por %p97, %p98
      %p100 = scmp.ne.s32.totalorder %s88, %s89
      %p101 = scmp.eq.s32.totalorder %s23, 1
      %p102 = por %p100, %p101
      %p104 = scmp.ne.s32.totalorder %s89, %s103
      %p105 = scmp.eq.s32.totalorder %s23, 0
      %p106 = por %p104, %p105
      %s108 = sadd.s32 %s107, 1
      %p111 = scmp.eq.s32.totalorder %s17, 1
      %p112 = scmp.ne.s32.totalorder %s107, %s109
      %p113 = scmp.eq.s32.totalorder %s17, 0
      %p114 = por %p112, %p113
      %p115 = scmp.ne.s32.totalorder %s107, %s109
      %p116 = scmp.eq.s32.totalorder %s22, 1
      %p117 = por %p115, %p116
      %p118 = scmp.ne.s32.totalorder %s109, %s110
      %p119 = scmp.eq.s32.totalorder %s22, 0
      %p120 = por %p118, %p119
      %p121 = scmp.ne.s32.totalorder %s109, %s110
      %p122 = scmp.eq.s32.totalorder %s23, 1
      %p123 = por %p121, %p122
      %p125 = scmp.ne.s32.totalorder %s110, %s124
      %p126 = scmp.eq.s32.totalorder %s23, 0
      %p127 = por %p125, %p126
      %s129 = sadd.s32 %s128, 1
      %p132 = scmp.eq.s32.totalorder %s17, 1
      %p133 = scmp.ne.s32.totalorder %s128, %s130
      %p134 = scmp.eq.s32.totalorder %s17, 0
      %p135 = por %p133, %p134
      %p136 = scmp.ne.s32.totalorder %s128, %s130
      %p137 = scmp.eq.s32.totalorder %s22, 1
      %p138 = por %p136, %p137
      %p139 = scmp.ne.s32.totalorder %s130, %s131
      %p140 = scmp.eq.s32.totalorder %s22, 0
      %p141 = por %p139, %p140
      %p142 = scmp.ne.s32.totalorder %s130, %s131
      %p143 = scmp.eq.s32.totalorder %s23, 1
      %p144 = por %p142, %p143
      %p146 = scmp.ne.s32.totalorder %s131, %s145
      %p147 = scmp.eq.s32.totalorder %s23, 0
      %p148 = por %p146, %p147
      %s149 = ssub.s32 %s24, %s36
      %s150 = ssub.s32 %s25, %s32
      %s151 = sor.u32 %s149, %s150
      %p152 = scmp.eq.s32.totalorder %s151, 0
      %s154 = sadd.s32 %s153, 1
      %s155 = scalar_select %p152, %s153, %s154
      %p158 = pneg %p152
      %p159 = scmp.eq.s32.totalorder %s17, 1
      %p160 = por %p158, %p159
      %p161 = scmp.ne.s32.totalorder %s153, %s156
      %p162 = scmp.eq.s32.totalorder %s17, 0
      %p163 = por %p161, %p162
      %p164 = scmp.ne.s32.totalorder %s153, %s156
      %p165 = scmp.eq.s32.totalorder %s22, 1
      %p166 = por %p164, %p165
      %p167 = scmp.ne.s32.totalorder %s156, %s157
      %p168 = scmp.eq.s32.totalorder %s22, 0
      %p169 = por %p167, %p168
      %p170 = scmp.ne.s32.totalorder %s156, %s157
      %p171 = scmp.eq.s32.totalorder %s23, 1
      %p172 = por %p170, %p171
      %p174 = scmp.ne.s32.totalorder %s157, %s173
      %p175 = scmp.eq.s32.totalorder %s23, 0
      %p176 = por %p174, %p175
      %p177 = scmp.le.s32.totalorder 1, %s17
      %p178 = scmp.lt.s32.totalorder %s17, 3
      %p179 = pnand %p177, %p178
      %p180 = pneg %p179
      // Predicated region
      $region9: #{upsampler_forward.1} parent=5 // pred_check
        _
      $region10: #{upsampler_forward.1} parent=5 // pred_check_branch
        %182 = sbr.rel (%p179) target = $region12
      $region11: #{upsampler_forward.1} parent=5 // pred_region
        %s183 = ssub.s32 %s17, 1
        // Predicated region
        $region13: #{upsampler_forward.1} parent=11 // pred_check
          %p184 = pneg %p78
        $region14: #{upsampler_forward.1} parent=11 // pred_check_branch
          %186 = sbr.rel (%p184) target = $region16
        $region15: #{upsampler_forward.1} parent=11 // pred_region
          _
        $region16: #{upsampler_forward.1} parent=11 // pred_fallthru
          _
        // Predicated region
        $region17: #{upsampler_forward.1} parent=11 // pred_check
          %p187 = pneg %p99
        $region18: #{upsampler_forward.1} parent=11 // pred_check_branch
          %189 = sbr.rel (%p187) target = $region20
        $region19: #{upsampler_forward.1} parent=11 // pred_region
          _
        $region20: #{upsampler_forward.1} parent=11 // pred_fallthru
          _
        // Predicated region
        $region21: #{upsampler_forward.1} parent=11 // pred_check
          %p190 = pneg %p120
        $region22: #{upsampler_forward.1} parent=11 // pred_check_branch
          %192 = sbr.rel (%p190) target = $region24
        $region23: #{upsampler_forward.1} parent=11 // pred_region
          _
        $region24: #{upsampler_forward.1} parent=11 // pred_fallthru
          _
        // Predicated region
        $region25: #{upsampler_forward.1} parent=11 // pred_check
          %p193 = pneg %p141
        $region26: #{upsampler_forward.1} parent=11 // pred_check_branch
          %195 = sbr.rel (%p193) target = $region28
        $region27: #{upsampler_forward.1} parent=11 // pred_region
          _
        $region28: #{upsampler_forward.1} parent=11 // pred_fallthru
          _
      $region12: #{upsampler_forward.1} parent=5 // pred_fallthru
        _
      %p196 = scmp.lt.s32.totalorder %s17, 2
      // Predicated region
      $region29: #{upsampler_forward.1} parent=5 // pred_check
        %p197 = pneg %p196
      $region30: #{upsampler_forward.1} parent=5 // pred_check_branch
        %199 = sbr.rel (%p197) target = $region32
      $region31: #{upsampler_forward.1} parent=5 // pred_region
        // Predicated region
        $region33: #{upsampler_forward.1} parent=31 // pred_check
          %p200 = pneg %p51
        $region34: #{upsampler_forward.1} parent=31 // pred_check_branch
          %202 = sbr.rel (%p200) target = $region36
        $region35: #{upsampler_forward.1} parent=31 // pred_region
          %s203 = sand.u32 %s41, 1
          %s204 = scalar_lea.sflag [#allocation3], %s203
          %s205 = sand.u32 %s41, 1
          %s206 = smul.addr %s205, 256
          %s207 = scalar_lea.vmem [#allocation2], %s206
          %s208 = smul.u32 2, %s25
          %s210 = ssub.s32 4096, 4096
          %211 = vsyncadd %s204, %s210
          %s212 = smul.addr %s24, 32
          %s213 = sadd.s32 %s208, %s212
          %s214 = smul.addr %s213, 128
          %s215 = scalar_lea.hbm %s0, %s214
          %s216 = sshll.u32 %s207, 4
          %s217 = int_to_ptr.vmem [resolvable:$true] %s216
          %222 = dma.hbm_to_vmem [thread:$0]  %s215, 4096, %s217, %s204, 128, 128, 8
        $region36: #{upsampler_forward.1} parent=31 // pred_fallthru
          _
      $region32: #{upsampler_forward.1} parent=5 // pred_fallthru
        _
      %p223 = scmp.le.s32.totalorder 1, %s17
      %p224 = scmp.lt.s32.totalorder %s17, 3
      %p225 = pnand %p223, %p224
      %p226 = pneg %p225
      // Predicated region
      $region37: #{upsampler_forward.1} parent=5 // pred_check
        _
      $region38: #{upsampler_forward.1} parent=5 // pred_check_branch
        %228 = sbr.rel (%p225) target = $region40
      $region39: #{upsampler_forward.1} parent=5 // pred_region
        %s229 = ssub.s32 %s17, 1
        %s230 = sand.u32 %s44, 1
        %s231 = scalar_lea.sflag [#allocation3], %s230
        %s232 = sand.u32 %s44, 1
        %s233 = smul.addr %s232, 256
        %s234 = scalar_lea.vmem [#allocation2], %s233
        // Predicated region
        $region41: #{upsampler_forward.1} parent=39 // pred_check
          %p235 = pneg %p57
        $region42: #{upsampler_forward.1} parent=39 // pred_check_branch
          %237 = sbr.rel (%p235) target = $region44
        $region43: #{upsampler_forward.1} parent=39 // pred_region
          %238 = dma.done %s231, 4096
        $region44: #{upsampler_forward.1} parent=39 // pred_fallthru
          _
        %s239 = sand.u32 %s44, 1
        %s240 = scalar_lea.sflag [#allocation3], %s239
        %s241 = sand.u32 %s44, 1
        %s242 = smul.addr %s241, 256
        %s243 = scalar_lea.vmem [#allocation2], %s242
        %p244 = pneg %p57
        %p245 = pneg %p54
        %p246 = pneg %p78
        %p247 = pneg %p75
        %p248 = pneg %p99
        %p249 = pneg %p96
        %p250 = pneg %p120
        %p251 = pneg %p117
        %p252 = pneg %p141
        %p253 = pneg %p138
        %p254 = pneg %p169
        %p255 = pneg %p166
        %s256 = sand.u32 %s156, 1
        %s257 = scalar_lea.sflag [#allocation4], %s256
        %s258 = sand.u32 %s156, 1
        %s259 = smul.addr %s258, 256
        %s260 = scalar_lea.vmem [#allocation5], %s259
        %s261 = smul.u32 2, %s27
        %s262 = smul.u32 4, %s27
        %v263 = vld [vmem:[%s1] sm:$0xff]
        %v264 = vld [vmem:[%s1 + $0x8] sm:$0xff]
        %v265 = vld [vmem:[%s1 + $0x10] sm:$0xff]
        %v266 = vld [vmem:[%s1 + $0x18] sm:$0xff]
        %v267 = vld [vmem:[%s3] sm:$0xff]
        %v268 = vld [vmem:[%s3 + $0x8] sm:$0xff]
        %v269 = vld [vmem:[%s4] sm:$0xff]
        %v270 = vld [vmem:[%s4 + $0x8] sm:$0xff]
        %v271 = vld [vmem:[%s2] sm:$0xff]
        %v272 = vld [vmem:[%s234] sm:$0x1]
        %v273 = vld [vmem:[%s234 + $0x10] sm:$0x1]
        %v274 = vld [vmem:[%s234 + $0x20] sm:$0x1]
        %v275 = vld [vmem:[%s234 + $0x30] sm:$0x1]
        %v276 = vld [vmem:[%s234 + $0x40] sm:$0x1]
        %v277 = vld [vmem:[%s234 + $0x50] sm:$0x1]
        %v278 = vld [vmem:[%s234 + $0x60] sm:$0x1]
        %v279 = vld [vmem:[%s234 + $0x70] sm:$0x1]
        %v280 = vld [vmem:[%s234 + $0x80] sm:$0x1]
        %v281 = vld [vmem:[%s234 + $0x90] sm:$0x1]
        %v282 = vld [vmem:[%s234 + $0xa0] sm:$0x1]
        %v283 = vld [vmem:[%s234 + $0xb0] sm:$0x1]
        %v284 = vld [vmem:[%s234 + $0xc0] sm:$0x1]
        %v285 = vld [vmem:[%s234 + $0xd0] sm:$0x1]
        %v286 = vld [vmem:[%s234 + $0xe0] sm:$0x1]
        %v287 = vld [vmem:[%s234 + $0xf0] sm:$0x1]
        %v304 = vrot.slane %v273, 7
        %vm305 = vcmask 1041409
        %v306 = vsel %vm305, %v304, %v272
        %v307 = vrot.slane %v274, 6
        %vm308 = vcmask 1042434
        %v309 = vsel %vm308, %v307, %v306
        %v310 = vrot.slane %v275, 5
        %vm311 = vcmask 1043459
        %v312 = vsel %vm311, %v310, %v309
        %v313 = vrot.slane %v276, 4
        %vm314 = vcmask 1044484
        %v315 = vsel %vm314, %v313, %v312
        %v316 = vrot.slane %v277, 3
        %vm317 = vcmask 1045509
        %v318 = vsel %vm317, %v316, %v315
        %v319 = vrot.slane %v278, 2
        %vm320 = vcmask 1046534
        %v321 = vsel %vm320, %v319, %v318
        %v322 = vrot.slane %v279, 1
        %vm323 = vcmask 1047559
        %v324 = vsel %vm323, %v322, %v321
        %v325 = vrot.slane %v281, 7
        %v326 = vsel %vm305, %v325, %v280
        %v327 = vrot.slane %v282, 6
        %v328 = vsel %vm308, %v327, %v326
        %v329 = vrot.slane %v283, 5
        %v330 = vsel %vm311, %v329, %v328
        %v331 = vrot.slane %v284, 4
        %v332 = vsel %vm314, %v331, %v330
        %v333 = vrot.slane %v285, 3
        %v334 = vsel %vm317, %v333, %v332
        %v335 = vrot.slane %v286, 2
        %v336 = vsel %vm320, %v335, %v334
        %v337 = vrot.slane %v287, 1
        %v338 = vsel %vm323, %v337, %v336
        %vm341 = vcmask 130048
        %v343 = vsel %vm341, %v263, 0
        %v346 = vsel %vm341, %v264, 0
        %v349 = vsel %vm341, %v265, 0
        %v352 = vsel %vm341, %v266, 0
        %354 = vmatprep.subr.mxu0 0.0
        %355 = vmatpush1.msra.mxu0 0.0
        %356 = vmatprep.subr.mxu0 0.0
        %357 = vmatpush1.msra.mxu0 0.0
        %358 = vmatprep.subr.mxu0 0.0
        %359 = vmatpush1.msra.mxu0 0.0
        %360 = vmatprep.subr.mxu0 0.0
        %361 = vmatpush1.msra.mxu0 0.0
        %362 = vmatprep.subr.mxu0 0.0
        %363 = vmatpush1.msra.mxu0 0.0
        %364 = vmatprep.subr.mxu0 0.0
        %365 = vmatpush1.msra.mxu0 0.0
        %366 = vmatprep.subr.mxu0 0.0
        %367 = vmatpush1.msra.mxu0 0.0
        %368 = vmatprep.subr.mxu0 0.0
        %369 = vmatpush1.msra.mxu0 0.0
        %370 = vmatprep.subr.mxu0 0.0
        %371 = vmatpush1.msra.mxu0 0.0
        %372 = vmatprep.subr.mxu0 0.0
        %373 = vmatpush1.msra.mxu0 0.0
        %374 = vmatprep.subr.mxu0 0.0
        %375 = vmatpush1.msra.mxu0 0.0
        %376 = vmatprep.subr.mxu0 0.0
        %377 = vmatpush1.msra.mxu0 0.0
        %378 = vmatprep.subr.mxu0 0.0
        %379 = vmatpush1.msra.mxu0 0.0
        %380 = vmatprep.subr.mxu0 0.0
        %381 = vmatpush1.msra.mxu0 0.0
        %382 = vmatprep.subr.mxu0 0.0
        %383 = vmatpush1.msra.mxu0 %v338
        %384 = vmatprep.subr.mxu0 0.0
        %385 = vmatpush1.msra.mxu0 %v324
        %386 = vmatprep.subr.mxu0 0.0
        %387 = vmatpush2.msra.mxu0 0.0
        %388 = vmatprep.subr.mxu0 0.0
        %389 = vmatpush2.msra.mxu0 0.0
        %390 = vmatprep.subr.mxu0 0.0
        %391 = vmatpush2.msra.mxu0 0.0
        %392 = vmatprep.subr.mxu0 0.0
        %393 = vmatpush2.msra.mxu0 0.0
        %394 = vmatprep.subr.mxu0 0.0
        %395 = vmatpush2.msra.mxu0 0.0
        %396 = vmatprep.subr.mxu0 0.0
        %397 = vmatpush2.msra.mxu0 0.0
        %398 = vmatprep.subr.mxu0 0.0
        %399 = vmatpush2.msra.mxu0 0.0
        %400 = vmatprep.subr.mxu0 0.0
        %401 = vmatpush2.msra.mxu0 0.0
        %402 = vmatprep.subr.mxu0 0.0
        %403 = vmatpush2.msra.mxu0 0.0
        %404 = vmatprep.subr.mxu0 0.0
        %405 = vmatpush2.msra.mxu0 0.0
        %406 = vmatprep.subr.mxu0 0.0
        %407 = vmatpush2.msra.mxu0 0.0
        %408 = vmatprep.subr.mxu0 0.0
        %409 = vmatpush2.msra.mxu0 0.0
        %410 = vmatprep.subr.mxu0 0.0
        %411 = vmatpush2.msra.mxu0 0.0
        %412 = vmatprep.subr.mxu0 0.0
        %413 = vmatpush2.msra.mxu0 0.0
        %414 = vmatprep.subr.mxu0 0.0
        %415 = vmatpush2.msra.mxu0 0.0
        %416 = vmatprep.subr.mxu0 0.0
        %417 = vmatpush2.msra.mxu0 0.0
        %418 = vmatprep.mubr.f32.mxu0 0.0
        %419 = vmatmul.mubr.f32.gmra.mxu0 %v343
        %v420 = vpop.f32.mrf.mxu0
        %v421 = vadd.f32 0.0, %v420
        %v422 = vpop.f32.mrf.mxu0
        %423 = vmatprep.mubr.f32.mxu0 0.0
        %424 = vmatmul.mubr.f32.gmra.mxu0 %v346
        %v425 = vpop.f32.mrf.mxu0
        %v426 = vadd.f32 0.0, %v425
        %v427 = vpop.f32.mrf.mxu0
        %428 = vmatprep.mubr.f32.mxu0 0.0
        %429 = vmatmul.mubr.f32.gmra.mxu0 %v349
        %v430 = vpop.f32.mrf.mxu0
        %v431 = vadd.f32 0.0, %v430
        %v432 = vpop.f32.mrf.mxu0
        %433 = vmatprep.mubr.f32.mxu0 0.0
        %434 = vmatmul.mubr.f32.gmra.mxu0 %v352
        %v435 = vpop.f32.mrf.mxu0
        %v436 = vadd.f32 0.0, %v435
        %v437 = vpop.f32.mrf.mxu0
        %438 = vdwg.mxu0
        %v440 = vsel %vm341, %v426, 0
        %442 = vmatprep.subr.mxu0 0.0
        %443 = vmatpush1.msra.mxu0 0.0
        %444 = vmatprep.subr.mxu0 0.0
        %445 = vmatpush1.msra.mxu0 0.0
        %446 = vmatprep.subr.mxu0 0.0
        %447 = vmatpush1.msra.mxu0 0.0
        %448 = vmatprep.subr.mxu0 0.0
        %449 = vmatpush1.msra.mxu0 0.0
        %450 = vmatprep.subr.mxu0 0.0
        %451 = vmatpush1.msra.mxu0 0.0
        %452 = vmatprep.subr.mxu0 0.0
        %453 = vmatpush1.msra.mxu0 0.0
        %454 = vmatprep.subr.mxu0 0.0
        %455 = vmatpush1.msra.mxu0 0.0
        %456 = vmatprep.subr.mxu0 0.0
        %457 = vmatpush1.msra.mxu0 0.0
        %458 = vmatprep.subr.mxu0 0.0
        %459 = vmatpush1.msra.mxu0 0.0
        %460 = vmatprep.subr.mxu0 0.0
        %461 = vmatpush1.msra.mxu0 0.0
        %462 = vmatprep.subr.mxu0 0.0
        %463 = vmatpush1.msra.mxu0 0.0
        %464 = vmatprep.subr.mxu0 0.0
        %465 = vmatpush1.msra.mxu0 0.0
        %466 = vmatprep.subr.mxu0 0.0
        %467 = vmatpush1.msra.mxu0 0.0
        %468 = vmatprep.subr.mxu0 0.0
        %469 = vmatpush1.msra.mxu0 0.0
        %470 = vmatprep.subr.mxu0 0.0
        %471 = vmatpush1.msra.mxu0 %v270
        %472 = vmatprep.subr.mxu0 0.0
        %473 = vmatpush1.msra.mxu0 %v269
        %474 = vmatprep.subr.mxu0 0.0
        %475 = vmatpush2.msra.mxu0 0.0
        %476 = vmatprep.subr.mxu0 0.0
        %477 = vmatpush2.msra.mxu0 0.0
        %478 = vmatprep.subr.mxu0 0.0
        %479 = vmatpush2.msra.mxu0 0.0
        %480 = vmatprep.subr.mxu0 0.0
        %481 = vmatpush2.msra.mxu0 0.0
        %482 = vmatprep.subr.mxu0 0.0
        %483 = vmatpush2.msra.mxu0 0.0
        %484 = vmatprep.subr.mxu0 0.0
        %485 = vmatpush2.msra.mxu0 0.0
        %486 = vmatprep.subr.mxu0 0.0
        %487 = vmatpush2.msra.mxu0 0.0
        %488 = vmatprep.subr.mxu0 0.0
        %489 = vmatpush2.msra.mxu0 0.0
        %490 = vmatprep.subr.mxu0 0.0
        %491 = vmatpush2.msra.mxu0 0.0
        %492 = vmatprep.subr.mxu0 0.0
        %493 = vmatpush2.msra.mxu0 0.0
        %494 = vmatprep.subr.mxu0 0.0
        %495 = vmatpush2.msra.mxu0 0.0
        %496 = vmatprep.subr.mxu0 0.0
        %497 = vmatpush2.msra.mxu0 0.0
        %498 = vmatprep.subr.mxu0 0.0
        %499 = vmatpush2.msra.mxu0 0.0
        %500 = vmatprep.subr.mxu0 0.0
        %501 = vmatpush2.msra.mxu0 0.0
        %502 = vmatprep.subr.mxu0 0.0
        %503 = vmatpush2.msra.mxu0 0.0
        %504 = vmatprep.subr.mxu0 0.0
        %505 = vmatpush2.msra.mxu0 0.0
        %506 = vmatprep.mubr.f32.mxu0 0.0
        %507 = vmatmul.mubr.f32.gmra.mxu0 %v440
        %v508 = vpop.f32.mrf.mxu0
        %v509 = vadd.f32 0.0, %v508
        %v510 = vpop.f32.mrf.mxu0
        %511 = vdwg.mxu0
        %v513 = vsel %vm341, %v421, 0
        %515 = vmatprep.subr.mxu0 0.0
        %516 = vmatpush1.msra.mxu0 0.0
        %517 = vmatprep.subr.mxu0 0.0
        %518 = vmatpush1.msra.mxu0 0.0
        %519 = vmatprep.subr.mxu0 0.0
        %520 = vmatpush1.msra.mxu0 0.0
        %521 = vmatprep.subr.mxu0 0.0
        %522 = vmatpush1.msra.mxu0 0.0
        %523 = vmatprep.subr.mxu0 0.0
        %524 = vmatpush1.msra.mxu0 0.0
        %525 = vmatprep.subr.mxu0 0.0
        %526 = vmatpush1.msra.mxu0 0.0
        %527 = vmatprep.subr.mxu0 0.0
        %528 = vmatpush1.msra.mxu0 0.0
        %529 = vmatprep.subr.mxu0 0.0
        %530 = vmatpush1.msra.mxu0 0.0
        %531 = vmatprep.subr.mxu0 0.0
        %532 = vmatpush1.msra.mxu0 0.0
        %533 = vmatprep.subr.mxu0 0.0
        %534 = vmatpush1.msra.mxu0 0.0
        %535 = vmatprep.subr.mxu0 0.0
        %536 = vmatpush1.msra.mxu0 0.0
        %537 = vmatprep.subr.mxu0 0.0
        %538 = vmatpush1.msra.mxu0 0.0
        %539 = vmatprep.subr.mxu0 0.0
        %540 = vmatpush1.msra.mxu0 0.0
        %541 = vmatprep.subr.mxu0 0.0
        %542 = vmatpush1.msra.mxu0 0.0
        %543 = vmatprep.subr.mxu0 0.0
        %544 = vmatpush1.msra.mxu0 %v268
        %545 = vmatprep.subr.mxu0 0.0
        %546 = vmatpush1.msra.mxu0 %v267
        %547 = vmatprep.subr.mxu0 0.0
        %548 = vmatpush2.msra.mxu0 0.0
        %549 = vmatprep.subr.mxu0 0.0
        %550 = vmatpush2.msra.mxu0 0.0
        %551 = vmatprep.subr.mxu0 0.0
        %552 = vmatpush2.msra.mxu0 0.0
        %553 = vmatprep.subr.mxu0 0.0
        %554 = vmatpush2.msra.mxu0 0.0
        %555 = vmatprep.subr.mxu0 0.0
        %556 = vmatpush2.msra.mxu0 0.0
        %557 = vmatprep.subr.mxu0 0.0
        %558 = vmatpush2.msra.mxu0 0.0
        %559 = vmatprep.subr.mxu0 0.0
        %560 = vmatpush2.msra.mxu0 0.0
        %561 = vmatprep.subr.mxu0 0.0
        %562 = vmatpush2.msra.mxu0 0.0
        %563 = vmatprep.subr.mxu0 0.0
        %564 = vmatpush2.msra.mxu0 0.0
        %565 = vmatprep.subr.mxu0 0.0
        %566 = vmatpush2.msra.mxu0 0.0
        %567 = vmatprep.subr.mxu0 0.0
        %568 = vmatpush2.msra.mxu0 0.0
        %569 = vmatprep.subr.mxu0 0.0
        %570 = vmatpush2.msra.mxu0 0.0
        %571 = vmatprep.subr.mxu0 0.0
        %572 = vmatpush2.msra.mxu0 0.0
        %573 = vmatprep.subr.mxu0 0.0
        %574 = vmatpush2.msra.mxu0 0.0
        %575 = vmatprep.subr.mxu0 0.0
        %576 = vmatpush2.msra.mxu0 0.0
        %577 = vmatprep.subr.mxu0 0.0
        %578 = vmatpush2.msra.mxu0 0.0
        %579 = vmatprep.mubr.f32.mxu0 0.0
        %580 = vmatmul.mubr.f32.gmra.mxu0 %v513
        %v581 = vpop.f32.mrf.mxu0
        %v582 = vadd.f32 %v509, %v581
        %v583 = vpop.f32.mrf.mxu0
        %584 = vdwg.mxu0
        %586 = vset.pattern.permute.xlu0 0
        %587 = vperm.xlu0 %586, %v271
        %v588 = vpop.permute.xlu0 %587
        %v590 = vadd.f32 %v582, %v588
        %v591 = vmax.f32 %v590, 0.0
        %v593 = vcombine.high %v591, %v591
        %v595 = vunpack.c.l.s4 1966171168
        %v596 = vunpack.c.0.s8 %v595
        %v597 = vlaneseq
        %v598 = vshrl.u32 %v597, 7
        %v599 = vsub.s32 %v596, %v598
        %v600 = vrot.slane %v591, %v599
        %v602 = vunpack.c.l.s4 1966171168
        %v603 = vunpack.c.0.s8 %v602
        %v604 = vlaneseq
        %v605 = vshrl.u32 %v604, 7
        %v606 = vsub.s32 %v603, %v605
        %v607 = vrot.slane %v593, %v606
        %v608 = vcombine.high %v600, %v600
        %v609 = vcombine.high %v607, %v607
        %v611 = vunpack.c.l.s4 1966171168
        %v612 = vunpack.c.0.s8 %v611
        %v613 = vlaneseq
        %v614 = vshrl.u32 %v613, 7
        %v615 = vsub.s32 %v612, %v614
        %v616 = vrot.slane %v600, %v615
        %v618 = vunpack.c.l.s4 1966171168
        %v619 = vunpack.c.0.s8 %v618
        %v620 = vlaneseq
        %v621 = vshrl.u32 %v620, 7
        %v622 = vsub.s32 %v619, %v621
        %v623 = vrot.slane %v607, %v622
        %v625 = vunpack.c.l.s4 1966171168
        %v626 = vunpack.c.0.s8 %v625
        %v627 = vlaneseq
        %v628 = vshrl.u32 %v627, 7
        %v629 = vsub.s32 %v626, %v628
        %v630 = vrot.slane %v608, %v629
        %v632 = vunpack.c.l.s4 1966171168
        %v633 = vunpack.c.0.s8 %v632
        %v634 = vlaneseq
        %v635 = vshrl.u32 %v634, 7
        %v636 = vsub.s32 %v633, %v635
        %v637 = vrot.slane %v609, %v636
        %v638 = vcombine.high %v616, %v616
        %v639 = vcombine.high %v623, %v623
        %v640 = vcombine.high %v630, %v630
        %v641 = vcombine.high %v637, %v637
        %vm650 = vcmask 253952
        %651 = vst.msk [vmem:[%s260] sm:$0x1] %vm650, %v616
        %652 = vst.msk [vmem:[%s260 + $0x20] sm:$0x1] %vm650, %v630
        %653 = vst.msk [vmem:[%s260 + $0x40] sm:$0x1] %vm650, %v638
        %654 = vst.msk [vmem:[%s260 + $0x60] sm:$0x1] %vm650, %v640
        %655 = vst.msk [vmem:[%s260 + $0x80] sm:$0x1] %vm650, %v623
        %656 = vst.msk [vmem:[%s260 + $0xa0] sm:$0x1] %vm650, %v637
        %657 = vst.msk [vmem:[%s260 + $0xc0] sm:$0x1] %vm650, %v639
        %658 = vst.msk [vmem:[%s260 + $0xe0] sm:$0x1] %vm650, %v641
        %v660 = vsel %vm341, %v436, 0
        %662 = vmatprep.subr.mxu0 0.0
        %663 = vmatpush1.msra.mxu0 0.0
        %664 = vmatprep.subr.mxu0 0.0
        %665 = vmatpush1.msra.mxu0 0.0
        %666 = vmatprep.subr.mxu0 0.0
        %667 = vmatpush1.msra.mxu0 0.0
        %668 = vmatprep.subr.mxu0 0.0
        %669 = vmatpush1.msra.mxu0 0.0
        %670 = vmatprep.subr.mxu0 0.0
        %671 = vmatpush1.msra.mxu0 0.0
        %672 = vmatprep.subr.mxu0 0.0
        %673 = vmatpush1.msra.mxu0 0.0
        %674 = vmatprep.subr.mxu0 0.0
        %675 = vmatpush1.msra.mxu0 0.0
        %676 = vmatprep.subr.mxu0 0.0
        %677 = vmatpush1.msra.mxu0 0.0
        %678 = vmatprep.subr.mxu0 0.0
        %679 = vmatpush1.msra.mxu0 0.0
        %680 = vmatprep.subr.mxu0 0.0
        %681 = vmatpush1.msra.mxu0 0.0
        %682 = vmatprep.subr.mxu0 0.0
        %683 = vmatpush1.msra.mxu0 0.0
        %684 = vmatprep.subr.mxu0 0.0
        %685 = vmatpush1.msra.mxu0 0.0
        %686 = vmatprep.subr.mxu0 0.0
        %687 = vmatpush1.msra.mxu0 0.0
        %688 = vmatprep.subr.mxu0 0.0
        %689 = vmatpush1.msra.mxu0 0.0
        %690 = vmatprep.subr.mxu0 0.0
        %691 = vmatpush1.msra.mxu0 %v270
        %692 = vmatprep.subr.mxu0 0.0
        %693 = vmatpush1.msra.mxu0 %v269
        %694 = vmatprep.subr.mxu0 0.0
        %695 = vmatpush2.msra.mxu0 0.0
        %696 = vmatprep.subr.mxu0 0.0
        %697 = vmatpush2.msra.mxu0 0.0
        %698 = vmatprep.subr.mxu0 0.0
        %699 = vmatpush2.msra.mxu0 0.0
        %700 = vmatprep.subr.mxu0 0.0
        %701 = vmatpush2.msra.mxu0 0.0
        %702 = vmatprep.subr.mxu0 0.0
        %703 = vmatpush2.msra.mxu0 0.0
        %704 = vmatprep.subr.mxu0 0.0
        %705 = vmatpush2.msra.mxu0 0.0
        %706 = vmatprep.subr.mxu0 0.0
        %707 = vmatpush2.msra.mxu0 0.0
        %708 = vmatprep.subr.mxu0 0.0
        %709 = vmatpush2.msra.mxu0 0.0
        %710 = vmatprep.subr.mxu0 0.0
        %711 = vmatpush2.msra.mxu0 0.0
        %712 = vmatprep.subr.mxu0 0.0
        %713 = vmatpush2.msra.mxu0 0.0
        %714 = vmatprep.subr.mxu0 0.0
        %715 = vmatpush2.msra.mxu0 0.0
        %716 = vmatprep.subr.mxu0 0.0
        %717 = vmatpush2.msra.mxu0 0.0
        %718 = vmatprep.subr.mxu0 0.0
        %719 = vmatpush2.msra.mxu0 0.0
        %720 = vmatprep.subr.mxu0 0.0
        %721 = vmatpush2.msra.mxu0 0.0
        %722 = vmatprep.subr.mxu0 0.0
        %723 = vmatpush2.msra.mxu0 0.0
        %724 = vmatprep.subr.mxu0 0.0
        %725 = vmatpush2.msra.mxu0 0.0
        %726 = vmatprep.mubr.f32.mxu0 0.0
        %727 = vmatmul.mubr.f32.gmra.mxu0 %v660
        %v728 = vpop.f32.mrf.mxu0
        %v729 = vadd.f32 0.0, %v728
        %v730 = vpop.f32.mrf.mxu0
        %731 = vdwg.mxu0
        %v733 = vsel %vm341, %v431, 0
        %735 = vmatprep.subr.mxu0 0.0
        %736 = vmatpush1.msra.mxu0 0.0
        %737 = vmatprep.subr.mxu0 0.0
        %738 = vmatpush1.msra.mxu0 0.0
        %739 = vmatprep.subr.mxu0 0.0
        %740 = vmatpush1.msra.mxu0 0.0
        %741 = vmatprep.subr.mxu0 0.0
        %742 = vmatpush1.msra.mxu0 0.0
        %743 = vmatprep.subr.mxu0 0.0
        %744 = vmatpush1.msra.mxu0 0.0
        %745 = vmatprep.subr.mxu0 0.0
        %746 = vmatpush1.msra.mxu0 0.0
        %747 = vmatprep.subr.mxu0 0.0
        %748 = vmatpush1.msra.mxu0 0.0
        %749 = vmatprep.subr.mxu0 0.0
        %750 = vmatpush1.msra.mxu0 0.0
        %751 = vmatprep.subr.mxu0 0.0
        %752 = vmatpush1.msra.mxu0 0.0
        %753 = vmatprep.subr.mxu0 0.0
        %754 = vmatpush1.msra.mxu0 0.0
        %755 = vmatprep.subr.mxu0 0.0
        %756 = vmatpush1.msra.mxu0 0.0
        %757 = vmatprep.subr.mxu0 0.0
        %758 = vmatpush1.msra.mxu0 0.0
        %759 = vmatprep.subr.mxu0 0.0
        %760 = vmatpush1.msra.mxu0 0.0
        %761 = vmatprep.subr.mxu0 0.0
        %762 = vmatpush1.msra.mxu0 0.0
        %763 = vmatprep.subr.mxu0 0.0
        %764 = vmatpush1.msra.mxu0 %v268
        %765 = vmatprep.subr.mxu0 0.0
        %766 = vmatpush1.msra.mxu0 %v267
        %767 = vmatprep.subr.mxu0 0.0
        %768 = vmatpush2.msra.mxu0 0.0
        %769 = vmatprep.subr.mxu0 0.0
        %770 = vmatpush2.msra.mxu0 0.0
        %771 = vmatprep.subr.mxu0 0.0
        %772 = vmatpush2.msra.mxu0 0.0
        %773 = vmatprep.subr.mxu0 0.0
        %774 = vmatpush2.msra.mxu0 0.0
        %775 = vmatprep.subr.mxu0 0.0
        %776 = vmatpush2.msra.mxu0 0.0
        %777 = vmatprep.subr.mxu0 0.0
        %778 = vmatpush2.msra.mxu0 0.0
        %779 = vmatprep.subr.mxu0 0.0
        %780 = vmatpush2.msra.mxu0 0.0
        %781 = vmatprep.subr.mxu0 0.0
        %782 = vmatpush2.msra.mxu0 0.0
        %783 = vmatprep.subr.mxu0 0.0
        %784 = vmatpush2.msra.mxu0 0.0
        %785 = vmatprep.subr.mxu0 0.0
        %786 = vmatpush2.msra.mxu0 0.0
        %787 = vmatprep.subr.mxu0 0.0
        %788 = vmatpush2.msra.mxu0 0.0
        %789 = vmatprep.subr.mxu0 0.0
        %790 = vmatpush2.msra.mxu0 0.0
        %791 = vmatprep.subr.mxu0 0.0
        %792 = vmatpush2.msra.mxu0 0.0
        %793 = vmatprep.subr.mxu0 0.0
        %794 = vmatpush2.msra.mxu0 0.0
        %795 = vmatprep.subr.mxu0 0.0
        %796 = vmatpush2.msra.mxu0 0.0
        %797 = vmatprep.subr.mxu0 0.0
        %798 = vmatpush2.msra.mxu0 0.0
        %799 = vmatprep.mubr.f32.mxu0 0.0
        %800 = vmatmul.mubr.f32.gmra.mxu0 %v733
        %v801 = vpop.f32.mrf.mxu0
        %v802 = vadd.f32 %v729, %v801
        %v803 = vpop.f32.mrf.mxu0
        %804 = vdwg.mxu0
        %v805 = vadd.f32 %v802, %v588
        %v806 = vmax.f32 %v805, 0.0
        %v808 = vcombine.high %v806, %v806
        %v810 = vunpack.c.l.s4 1966171168
        %v811 = vunpack.c.0.s8 %v810
        %v812 = vlaneseq
        %v813 = vshrl.u32 %v812, 7
        %v814 = vsub.s32 %v811, %v813
        %v815 = vrot.slane %v806, %v814
        %v817 = vunpack.c.l.s4 1966171168
        %v818 = vunpack.c.0.s8 %v817
        %v819 = vlaneseq
        %v820 = vshrl.u32 %v819, 7
        %v821 = vsub.s32 %v818, %v820
        %v822 = vrot.slane %v808, %v821
        %v823 = vcombine.high %v815, %v815
        %v824 = vcombine.high %v822, %v822
        %v826 = vunpack.c.l.s4 1966171168
        %v827 = vunpack.c.0.s8 %v826
        %v828 = vlaneseq
        %v829 = vshrl.u32 %v828, 7
        %v830 = vsub.s32 %v827, %v829
        %v831 = vrot.slane %v815, %v830
        %v833 = vunpack.c.l.s4 1966171168
        %v834 = vunpack.c.0.s8 %v833
        %v835 = vlaneseq
        %v836 = vshrl.u32 %v835, 7
        %v837 = vsub.s32 %v834, %v836
        %v838 = vrot.slane %v822, %v837
        %v840 = vunpack.c.l.s4 1966171168
        %v841 = vunpack.c.0.s8 %v840
        %v842 = vlaneseq
        %v843 = vshrl.u32 %v842, 7
        %v844 = vsub.s32 %v841, %v843
        %v845 = vrot.slane %v823, %v844
        %v847 = vunpack.c.l.s4 1966171168
        %v848 = vunpack.c.0.s8 %v847
        %v849 = vlaneseq
        %v850 = vshrl.u32 %v849, 7
        %v851 = vsub.s32 %v848, %v850
        %v852 = vrot.slane %v824, %v851
        %v853 = vcombine.high %v831, %v831
        %v854 = vcombine.high %v838, %v838
        %v855 = vcombine.high %v845, %v845
        %v856 = vcombine.high %v852, %v852
        %865 = vst.msk [vmem:[%s260 + $0x1] sm:$0x1] %vm650, %v831
        %866 = vst.msk [vmem:[%s260 + $0x21] sm:$0x1] %vm650, %v845
        %867 = vst.msk [vmem:[%s260 + $0x41] sm:$0x1] %vm650, %v853
        %868 = vst.msk [vmem:[%s260 + $0x61] sm:$0x1] %vm650, %v855
        %869 = vst.msk [vmem:[%s260 + $0x81] sm:$0x1] %vm650, %v838
        %870 = vst.msk [vmem:[%s260 + $0xa1] sm:$0x1] %vm650, %v852
        %871 = vst.msk [vmem:[%s260 + $0xc1] sm:$0x1] %vm650, %v854
        %872 = vst.msk [vmem:[%s260 + $0xe1] sm:$0x1] %vm650, %v856
        %v873 = vld [vmem:[%s234 + $0x1] sm:$0x1]
        %v874 = vld [vmem:[%s234 + $0x11] sm:$0x1]
        %v875 = vld [vmem:[%s234 + $0x21] sm:$0x1]
        %v876 = vld [vmem:[%s234 + $0x31] sm:$0x1]
        %v877 = vld [vmem:[%s234 + $0x41] sm:$0x1]
        %v878 = vld [vmem:[%s234 + $0x51] sm:$0x1]
        %v879 = vld [vmem:[%s234 + $0x61] sm:$0x1]
        %v880 = vld [vmem:[%s234 + $0x71] sm:$0x1]
        %v881 = vld [vmem:[%s234 + $0x81] sm:$0x1]
        %v882 = vld [vmem:[%s234 + $0x91] sm:$0x1]
        %v883 = vld [vmem:[%s234 + $0xa1] sm:$0x1]
        %v884 = vld [vmem:[%s234 + $0xb1] sm:$0x1]
        %v885 = vld [vmem:[%s234 + $0xc1] sm:$0x1]
        %v886 = vld [vmem:[%s234 + $0xd1] sm:$0x1]
        %v887 = vld [vmem:[%s234 + $0xe1] sm:$0x1]
        %v888 = vld [vmem:[%s234 + $0xf1] sm:$0x1]
        %v905 = vrot.slane %v874, 7
        %v906 = vsel %vm305, %v905, %v873
        %v907 = vrot.slane %v875, 6
        %v908 = vsel %vm308, %v907, %v906
        %v909 = vrot.slane %v876, 5
        %v910 = vsel %vm311, %v909, %v908
        %v911 = vrot.slane %v877, 4
        %v912 = vsel %vm314, %v911, %v910
        %v913 = vrot.slane %v878, 3
        %v914 = vsel %vm317, %v913, %v912
        %v915 = vrot.slane %v879, 2
        %v916 = vsel %vm320, %v915, %v914
        %v917 = vrot.slane %v880, 1
        %v918 = vsel %vm323, %v917, %v916
        %v919 = vrot.slane %v882, 7
        %v920 = vsel %vm305, %v919, %v881
        %v921 = vrot.slane %v883, 6
        %v922 = vsel %vm308, %v921, %v920
        %v923 = vrot.slane %v884, 5
        %v924 = vsel %vm311, %v923, %v922
        %v925 = vrot.slane %v885, 4
        %v926 = vsel %vm314, %v925, %v924
        %v927 = vrot.slane %v886, 3
        %v928 = vsel %vm317, %v927, %v926
        %v929 = vrot.slane %v887, 2
        %v930 = vsel %vm320, %v929, %v928
        %v931 = vrot.slane %v888, 1
        %v932 = vsel %vm323, %v931, %v930
        %935 = vmatprep.subr.mxu0 0.0
        %936 = vmatpush1.msra.mxu0 0.0
        %937 = vmatprep.subr.mxu0 0.0
        %938 = vmatpush1.msra.mxu0 0.0
        %939 = vmatprep.subr.mxu0 0.0
        %940 = vmatpush1.msra.mxu0 0.0
        %941 = vmatprep.subr.mxu0 0.0
        %942 = vmatpush1.msra.mxu0 0.0
        %943 = vmatprep.subr.mxu0 0.0
        %944 = vmatpush1.msra.mxu0 0.0
        %945 = vmatprep.subr.mxu0 0.0
        %946 = vmatpush1.msra.mxu0 0.0
        %947 = vmatprep.subr.mxu0 0.0
        %948 = vmatpush1.msra.mxu0 0.0
        %949 = vmatprep.subr.mxu0 0.0
        %950 = vmatpush1.msra.mxu0 0.0
        %951 = vmatprep.subr.mxu0 0.0
        %952 = vmatpush1.msra.mxu0 0.0
        %953 = vmatprep.subr.mxu0 0.0
        %954 = vmatpush1.msra.mxu0 0.0
        %955 = vmatprep.subr.mxu0 0.0
        %956 = vmatpush1.msra.mxu0 0.0
        %957 = vmatprep.subr.mxu0 0.0
        %958 = vmatpush1.msra.mxu0 0.0
        %959 = vmatprep.subr.mxu0 0.0
        %960 = vmatpush1.msra.mxu0 0.0
        %961 = vmatprep.subr.mxu0 0.0
        %962 = vmatpush1.msra.mxu0 0.0
        %963 = vmatprep.subr.mxu0 0.0
        %964 = vmatpush1.msra.mxu0 %v932
        %965 = vmatprep.subr.mxu0 0.0
        %966 = vmatpush1.msra.mxu0 %v918
        %967 = vmatprep.subr.mxu0 0.0
        %968 = vmatpush2.msra.mxu0 0.0
        %969 = vmatprep.subr.mxu0 0.0
        %970 = vmatpush2.msra.mxu0 0.0
        %971 = vmatprep.subr.mxu0 0.0
        %972 = vmatpush2.msra.mxu0 0.0
        %973 = vmatprep.subr.mxu0 0.0
        %974 = vmatpush2.msra.mxu0 0.0
        %975 = vmatprep.subr.mxu0 0.0
        %976 = vmatpush2.msra.mxu0 0.0
        %977 = vmatprep.subr.mxu0 0.0
        %978 = vmatpush2.msra.mxu0 0.0
        %979 = vmatprep.subr.mxu0 0.0
        %980 = vmatpush2.msra.mxu0 0.0
        %981 = vmatprep.subr.mxu0 0.0
        %982 = vmatpush2.msra.mxu0 0.0
        %983 = vmatprep.subr.mxu0 0.0
        %984 = vmatpush2.msra.mxu0 0.0
        %985 = vmatprep.subr.mxu0 0.0
        %986 = vmatpush2.msra.mxu0 0.0
        %987 = vmatprep.subr.mxu0 0.0
        %988 = vmatpush2.msra.mxu0 0.0
        %989 = vmatprep.subr.mxu0 0.0
        %990 = vmatpush2.msra.mxu0 0.0
        %991 = vmatprep.subr.mxu0 0.0
        %992 = vmatpush2.msra.mxu0 0.0
        %993 = vmatprep.subr.mxu0 0.0
        %994 = vmatpush2.msra.mxu0 0.0
        %995 = vmatprep.subr.mxu0 0.0
        %996 = vmatpush2.msra.mxu0 0.0
        %997 = vmatprep.subr.mxu0 0.0
        %998 = vmatpush2.msra.mxu0 0.0
        %999 = vmatprep.mubr.f32.mxu0 0.0
        %1000 = vmatmul.mubr.f32.gmra.mxu0 %v343
        %v1001 = vpop.f32.mrf.mxu0
        %v1002 = vadd.f32 0.0, %v1001
        %v1003 = vpop.f32.mrf.mxu0
        %1004 = vmatprep.mubr.f32.mxu0 0.0
        %1005 = vmatmul.mubr.f32.gmra.mxu0 %v346
        %v1006 = vpop.f32.mrf.mxu0
        %v1007 = vadd.f32 0.0, %v1006
        %v1008 = vpop.f32.mrf.mxu0
        %1009 = vmatprep.mubr.f32.mxu0 0.0
        %1010 = vmatmul.mubr.f32.gmra.mxu0 %v349
        %v1011 = vpop.f32.mrf.mxu0
        %v1012 = vadd.f32 0.0, %v1011
        %v1013 = vpop.f32.mrf.mxu0
        %1014 = vmatprep.mubr.f32.mxu0 0.0
        %1015 = vmatmul.mubr.f32.gmra.mxu0 %v352
        %v1016 = vpop.f32.mrf.mxu0
        %v1017 = vadd.f32 0.0, %v1016
        %v1018 = vpop.f32.mrf.mxu0
        %1019 = vdwg.mxu0
        %v1021 = vsel %vm341, %v1007, 0
        %1023 = vmatprep.subr.mxu0 0.0
        %1024 = vmatpush1.msra.mxu0 0.0
        %1025 = vmatprep.subr.mxu0 0.0
        %1026 = vmatpush1.msra.mxu0 0.0
        %1027 = vmatprep.subr.mxu0 0.0
        %1028 = vmatpush1.msra.mxu0 0.0
        %1029 = vmatprep.subr.mxu0 0.0
        %1030 = vmatpush1.msra.mxu0 0.0
        %1031 = vmatprep.subr.mxu0 0.0
        %1032 = vmatpush1.msra.mxu0 0.0
        %1033 = vmatprep.subr.mxu0 0.0
        %1034 = vmatpush1.msra.mxu0 0.0
        %1035 = vmatprep.subr.mxu0 0.0
        %1036 = vmatpush1.msra.mxu0 0.0
        %1037 = vmatprep.subr.mxu0 0.0
        %1038 = vmatpush1.msra.mxu0 0.0
        %1039 = vmatprep.subr.mxu0 0.0
        %1040 = vmatpush1.msra.mxu0 0.0
        %1041 = vmatprep.subr.mxu0 0.0
        %1042 = vmatpush1.msra.mxu0 0.0
        %1043 = vmatprep.subr.mxu0 0.0
        %1044 = vmatpush1.msra.mxu0 0.0
        %1045 = vmatprep.subr.mxu0 0.0
        %1046 = vmatpush1.msra.mxu0 0.0
        %1047 = vmatprep.subr.mxu0 0.0
        %1048 = vmatpush1.msra.mxu0 0.0
        %1049 = vmatprep.subr.mxu0 0.0
        %1050 = vmatpush1.msra.mxu0 0.0
        %1051 = vmatprep.subr.mxu0 0.0
        %1052 = vmatpush1.msra.mxu0 %v270
        %1053 = vmatprep.subr.mxu0 0.0
        %1054 = vmatpush1.msra.mxu0 %v269
        %1055 = vmatprep.subr.mxu0 0.0
        %1056 = vmatpush2.msra.mxu0 0.0
        %1057 = vmatprep.subr.mxu0 0.0
        %1058 = vmatpush2.msra.mxu0 0.0
        %1059 = vmatprep.subr.mxu0 0.0
        %1060 = vmatpush2.msra.mxu0 0.0
        %1061 = vmatprep.subr.mxu0 0.0
        %1062 = vmatpush2.msra.mxu0 0.0
        %1063 = vmatprep.subr.mxu0 0.0
        %1064 = vmatpush2.msra.mxu0 0.0
        %1065 = vmatprep.subr.mxu0 0.0
        %1066 = vmatpush2.msra.mxu0 0.0
        %1067 = vmatprep.subr.mxu0 0.0
        %1068 = vmatpush2.msra.mxu0 0.0
        %1069 = vmatprep.subr.mxu0 0.0
        %1070 = vmatpush2.msra.mxu0 0.0
        %1071 = vmatprep.subr.mxu0 0.0
        %1072 = vmatpush2.msra.mxu0 0.0
        %1073 = vmatprep.subr.mxu0 0.0
        %1074 = vmatpush2.msra.mxu0 0.0
        %1075 = vmatprep.subr.mxu0 0.0
        %1076 = vmatpush2.msra.mxu0 0.0
        %1077 = vmatprep.subr.mxu0 0.0
        %1078 = vmatpush2.msra.mxu0 0.0
        %1079 = vmatprep.subr.mxu0 0.0
        %1080 = vmatpush2.msra.mxu0 0.0
        %1081 = vmatprep.subr.mxu0 0.0
        %1082 = vmatpush2.msra.mxu0 0.0
        %1083 = vmatprep.subr.mxu0 0.0
        %1084 = vmatpush2.msra.mxu0 0.0
        %1085 = vmatprep.subr.mxu0 0.0
        %1086 = vmatpush2.msra.mxu0 0.0
        %1087 = vmatprep.mubr.f32.mxu0 0.0
        %1088 = vmatmul.mubr.f32.gmra.mxu0 %v1021
        %v1089 = vpop.f32.mrf.mxu0
        %v1090 = vadd.f32 0.0, %v1089
        %v1091 = vpop.f32.mrf.mxu0
        %1092 = vdwg.mxu0
        %v1094 = vsel %vm341, %v1002, 0
        %1096 = vmatprep.subr.mxu0 0.0
        %1097 = vmatpush1.msra.mxu0 0.0
        %1098 = vmatprep.subr.mxu0 0.0
        %1099 = vmatpush1.msra.mxu0 0.0
        %1100 = vmatprep.subr.mxu0 0.0
        %1101 = vmatpush1.msra.mxu0 0.0
        %1102 = vmatprep.subr.mxu0 0.0
        %1103 = vmatpush1.msra.mxu0 0.0
        %1104 = vmatprep.subr.mxu0 0.0
        %1105 = vmatpush1.msra.mxu0 0.0
        %1106 = vmatprep.subr.mxu0 0.0
        %1107 = vmatpush1.msra.mxu0 0.0
        %1108 = vmatprep.subr.mxu0 0.0
        %1109 = vmatpush1.msra.mxu0 0.0
        %1110 = vmatprep.subr.mxu0 0.0
        %1111 = vmatpush1.msra.mxu0 0.0
        %1112 = vmatprep.subr.mxu0 0.0
        %1113 = vmatpush1.msra.mxu0 0.0
        %1114 = vmatprep.subr.mxu0 0.0
        %1115 = vmatpush1.msra.mxu0 0.0
        %1116 = vmatprep.subr.mxu0 0.0
        %1117 = vmatpush1.msra.mxu0 0.0
        %1118 = vmatprep.subr.mxu0 0.0
        %1119 = vmatpush1.msra.mxu0 0.0
        %1120 = vmatprep.subr.mxu0 0.0
        %1121 = vmatpush1.msra.mxu0 0.0
        %1122 = vmatprep.subr.mxu0 0.0
        %1123 = vmatpush1.msra.mxu0 0.0
        %1124 = vmatprep.subr.mxu0 0.0
        %1125 = vmatpush1.msra.mxu0 %v268
        %1126 = vmatprep.subr.mxu0 0.0
        %1127 = vmatpush1.msra.mxu0 %v267
        %1128 = vmatprep.subr.mxu0 0.0
        %1129 = vmatpush2.msra.mxu0 0.0
        %1130 = vmatprep.subr.mxu0 0.0
        %1131 = vmatpush2.msra.mxu0 0.0
        %1132 = vmatprep.subr.mxu0 0.0
        %1133 = vmatpush2.msra.mxu0 0.0
        %1134 = vmatprep.subr.mxu0 0.0
        %1135 = vmatpush2.msra.mxu0 0.0
        %1136 = vmatprep.subr.mxu0 0.0
        %1137 = vmatpush2.msra.mxu0 0.0
        %1138 = vmatprep.subr.mxu0 0.0
        %1139 = vmatpush2.msra.mxu0 0.0
        %1140 = vmatprep.subr.mxu0 0.0
        %1141 = vmatpush2.msra.mxu0 0.0
        %1142 = vmatprep.subr.mxu0 0.0
        %1143 = vmatpush2.msra.mxu0 0.0
        %1144 = vmatprep.subr.mxu0 0.0
        %1145 = vmatpush2.msra.mxu0 0.0
        %1146 = vmatprep.subr.mxu0 0.0
        %1147 = vmatpush2.msra.mxu0 0.0
        %1148 = vmatprep.subr.mxu0 0.0
        %1149 = vmatpush2.msra.mxu0 0.0
        %1150 = vmatprep.subr.mxu0 0.0
        %1151 = vmatpush2.msra.mxu0 0.0
        %1152 = vmatprep.subr.mxu0 0.0
        %1153 = vmatpush2.msra.mxu0 0.0
        %1154 = vmatprep.subr.mxu0 0.0
        %1155 = vmatpush2.msra.mxu0 0.0
        %1156 = vmatprep.subr.mxu0 0.0
        %1157 = vmatpush2.msra.mxu0 0.0
        %1158 = vmatprep.subr.mxu0 0.0
        %1159 = vmatpush2.msra.mxu0 0.0
        %1160 = vmatprep.mubr.f32.mxu0 0.0
        %1161 = vmatmul.mubr.f32.gmra.mxu0 %v1094
        %v1162 = vpop.f32.mrf.mxu0
        %v1163 = vadd.f32 %v1090, %v1162
        %v1164 = vpop.f32.mrf.mxu0
        %1165 = vdwg.mxu0
        %v1166 = vadd.f32 %v1163, %v588
        %v1167 = vmax.f32 %v1166, 0.0
        %v1169 = vcombine.high %v1167, %v1167
        %v1171 = vunpack.c.l.s4 1966171168
        %v1172 = vunpack.c.0.s8 %v1171
        %v1173 = vlaneseq
        %v1174 = vshrl.u32 %v1173, 7
        %v1175 = vsub.s32 %v1172, %v1174
        %v1176 = vrot.slane %v1167, %v1175
        %v1178 = vunpack.c.l.s4 1966171168
        %v1179 = vunpack.c.0.s8 %v1178
        %v1180 = vlaneseq
        %v1181 = vshrl.u32 %v1180, 7
        %v1182 = vsub.s32 %v1179, %v1181
        %v1183 = vrot.slane %v1169, %v1182
        %v1184 = vcombine.high %v1176, %v1176
        %v1185 = vcombine.high %v1183, %v1183
        %v1187 = vunpack.c.l.s4 1966171168
        %v1188 = vunpack.c.0.s8 %v1187
        %v1189 = vlaneseq
        %v1190 = vshrl.u32 %v1189, 7
        %v1191 = vsub.s32 %v1188, %v1190
        %v1192 = vrot.slane %v1176, %v1191
        %v1194 = vunpack.c.l.s4 1966171168
        %v1195 = vunpack.c.0.s8 %v1194
        %v1196 = vlaneseq
        %v1197 = vshrl.u32 %v1196, 7
        %v1198 = vsub.s32 %v1195, %v1197
        %v1199 = vrot.slane %v1183, %v1198
        %v1201 = vunpack.c.l.s4 1966171168
        %v1202 = vunpack.c.0.s8 %v1201
        %v1203 = vlaneseq
        %v1204 = vshrl.u32 %v1203, 7
        %v1205 = vsub.s32 %v1202, %v1204
        %v1206 = vrot.slane %v1184, %v1205
        %v1208 = vunpack.c.l.s4 1966171168
        %v1209 = vunpack.c.0.s8 %v1208
        %v1210 = vlaneseq
        %v1211 = vshrl.u32 %v1210, 7
        %v1212 = vsub.s32 %v1209, %v1211
        %v1213 = vrot.slane %v1185, %v1212
        %v1214 = vcombine.high %v1192, %v1192
        %v1215 = vcombine.high %v1199, %v1199
        %v1216 = vcombine.high %v1206, %v1206
        %v1217 = vcombine.high %v1213, %v1213
        %1226 = vst.msk [vmem:[%s260 + $0x2] sm:$0x1] %vm650, %v1192
        %1227 = vst.msk [vmem:[%s260 + $0x22] sm:$0x1] %vm650, %v1206
        %1228 = vst.msk [vmem:[%s260 + $0x42] sm:$0x1] %vm650, %v1214
        %1229 = vst.msk [vmem:[%s260 + $0x62] sm:$0x1] %vm650, %v1216
        %1230 = vst.msk [vmem:[%s260 + $0x82] sm:$0x1] %vm650, %v1199
        %1231 = vst.msk [vmem:[%s260 + $0xa2] sm:$0x1] %vm650, %v1213
        %1232 = vst.msk [vmem:[%s260 + $0xc2] sm:$0x1] %vm650, %v1215
        %1233 = vst.msk [vmem:[%s260 + $0xe2] sm:$0x1] %vm650, %v1217
        %v1235 = vsel %vm341, %v1017, 0
        %1237 = vmatprep.subr.mxu0 0.0
        %1238 = vmatpush1.msra.mxu0 0.0
        %1239 = vmatprep.subr.mxu0 0.0
        %1240 = vmatpush1.msra.mxu0 0.0
        %1241 = vmatprep.subr.mxu0 0.0
        %1242 = vmatpush1.msra.mxu0 0.0
        %1243 = vmatprep.subr.mxu0 0.0
        %1244 = vmatpush1.msra.mxu0 0.0
        %1245 = vmatprep.subr.mxu0 0.0
        %1246 = vmatpush1.msra.mxu0 0.0
        %1247 = vmatprep.subr.mxu0 0.0
        %1248 = vmatpush1.msra.mxu0 0.0
        %1249 = vmatprep.subr.mxu0 0.0
        %1250 = vmatpush1.msra.mxu0 0.0
        %1251 = vmatprep.subr.mxu0 0.0
        %1252 = vmatpush1.msra.mxu0 0.0
        %1253 = vmatprep.subr.mxu0 0.0
        %1254 = vmatpush1.msra.mxu0 0.0
        %1255 = vmatprep.subr.mxu0 0.0
        %1256 = vmatpush1.msra.mxu0 0.0
        %1257 = vmatprep.subr.mxu0 0.0
        %1258 = vmatpush1.msra.mxu0 0.0
        %1259 = vmatprep.subr.mxu0 0.0
        %1260 = vmatpush1.msra.mxu0 0.0
        %1261 = vmatprep.subr.mxu0 0.0
        %1262 = vmatpush1.msra.mxu0 0.0
        %1263 = vmatprep.subr.mxu0 0.0
        %1264 = vmatpush1.msra.mxu0 0.0
        %1265 = vmatprep.subr.mxu0 0.0
        %1266 = vmatpush1.msra.mxu0 %v270
        %1267 = vmatprep.subr.mxu0 0.0
        %1268 = vmatpush1.msra.mxu0 %v269
        %1269 = vmatprep.subr.mxu0 0.0
        %1270 = vmatpush2.msra.mxu0 0.0
        %1271 = vmatprep.subr.mxu0 0.0
        %1272 = vmatpush2.msra.mxu0 0.0
        %1273 = vmatprep.subr.mxu0 0.0
        %1274 = vmatpush2.msra.mxu0 0.0
        %1275 = vmatprep.subr.mxu0 0.0
        %1276 = vmatpush2.msra.mxu0 0.0
        %1277 = vmatprep.subr.mxu0 0.0
        %1278 = vmatpush2.msra.mxu0 0.0
        %1279 = vmatprep.subr.mxu0 0.0
        %1280 = vmatpush2.msra.mxu0 0.0
        %1281 = vmatprep.subr.mxu0 0.0
        %1282 = vmatpush2.msra.mxu0 0.0
        %1283 = vmatprep.subr.mxu0 0.0
        %1284 = vmatpush2.msra.mxu0 0.0
        %1285 = vmatprep.subr.mxu0 0.0
        %1286 = vmatpush2.msra.mxu0 0.0
        %1287 = vmatprep.subr.mxu0 0.0
        %1288 = vmatpush2.msra.mxu0 0.0
        %1289 = vmatprep.subr.mxu0 0.0
        %1290 = vmatpush2.msra.mxu0 0.0
        %1291 = vmatprep.subr.mxu0 0.0
        %1292 = vmatpush2.msra.mxu0 0.0
        %1293 = vmatprep.subr.mxu0 0.0
        %1294 = vmatpush2.msra.mxu0 0.0
        %1295 = vmatprep.subr.mxu0 0.0
        %1296 = vmatpush2.msra.mxu0 0.0
        %1297 = vmatprep.subr.mxu0 0.0
        %1298 = vmatpush2.msra.mxu0 0.0
        %1299 = vmatprep.subr.mxu0 0.0
        %1300 = vmatpush2.msra.mxu0 0.0
        %1301 = vmatprep.mubr.f32.mxu0 0.0
        %1302 = vmatmul.mubr.f32.gmra.mxu0 %v1235
        %v1303 = vpop.f32.mrf.mxu0
        %v1304 = vadd.f32 0.0, %v1303
        %v1305 = vpop.f32.mrf.mxu0
        %1306 = vdwg.mxu0
        %v1308 = vsel %vm341, %v1012, 0
        %1310 = vmatprep.subr.mxu0 0.0
        %1311 = vmatpush1.msra.mxu0 0.0
        %1312 = vmatprep.subr.mxu0 0.0
        %1313 = vmatpush1.msra.mxu0 0.0
        %1314 = vmatprep.subr.mxu0 0.0
        %1315 = vmatpush1.msra.mxu0 0.0
        %1316 = vmatprep.subr.mxu0 0.0
        %1317 = vmatpush1.msra.mxu0 0.0
        %1318 = vmatprep.subr.mxu0 0.0
        %1319 = vmatpush1.msra.mxu0 0.0
        %1320 = vmatprep.subr.mxu0 0.0
        %1321 = vmatpush1.msra.mxu0 0.0
        %1322 = vmatprep.subr.mxu0 0.0
        %1323 = vmatpush1.msra.mxu0 0.0
        %1324 = vmatprep.subr.mxu0 0.0
        %1325 = vmatpush1.msra.mxu0 0.0
        %1326 = vmatprep.subr.mxu0 0.0
        %1327 = vmatpush1.msra.mxu0 0.0
        %1328 = vmatprep.subr.mxu0 0.0
        %1329 = vmatpush1.msra.mxu0 0.0
        %1330 = vmatprep.subr.mxu0 0.0
        %1331 = vmatpush1.msra.mxu0 0.0
        %1332 = vmatprep.subr.mxu0 0.0
        %1333 = vmatpush1.msra.mxu0 0.0
        %1334 = vmatprep.subr.mxu0 0.0
        %1335 = vmatpush1.msra.mxu0 0.0
        %1336 = vmatprep.subr.mxu0 0.0
        %1337 = vmatpush1.msra.mxu0 0.0
        %1338 = vmatprep.subr.mxu0 0.0
        %1339 = vmatpush1.msra.mxu0 %v268
        %1340 = vmatprep.subr.mxu0 0.0
        %1341 = vmatpush1.msra.mxu0 %v267
        %1342 = vmatprep.subr.mxu0 0.0
        %1343 = vmatpush2.msra.mxu0 0.0
        %1344 = vmatprep.subr.mxu0 0.0
        %1345 = vmatpush2.msra.mxu0 0.0
        %1346 = vmatprep.subr.mxu0 0.0
        %1347 = vmatpush2.msra.mxu0 0.0
        %1348 = vmatprep.subr.mxu0 0.0
        %1349 = vmatpush2.msra.mxu0 0.0
        %1350 = vmatprep.subr.mxu0 0.0
        %1351 = vmatpush2.msra.mxu0 0.0
        %1352 = vmatprep.subr.mxu0 0.0
        %1353 = vmatpush2.msra.mxu0 0.0
        %1354 = vmatprep.subr.mxu0 0.0
        %1355 = vmatpush2.msra.mxu0 0.0
        %1356 = vmatprep.subr.mxu0 0.0
        %1357 = vmatpush2.msra.mxu0 0.0
        %1358 = vmatprep.subr.mxu0 0.0
        %1359 = vmatpush2.msra.mxu0 0.0
        %1360 = vmatprep.subr.mxu0 0.0
        %1361 = vmatpush2.msra.mxu0 0.0
        %1362 = vmatprep.subr.mxu0 0.0
        %1363 = vmatpush2.msra.mxu0 0.0
        %1364 = vmatprep.subr.mxu0 0.0
        %1365 = vmatpush2.msra.mxu0 0.0
        %1366 = vmatprep.subr.mxu0 0.0
        %1367 = vmatpush2.msra.mxu0 0.0
        %1368 = vmatprep.subr.mxu0 0.0
        %1369 = vmatpush2.msra.mxu0 0.0
        %1370 = vmatprep.subr.mxu0 0.0
        %1371 = vmatpush2.msra.mxu0 0.0
        %1372 = vmatprep.subr.mxu0 0.0
        %1373 = vmatpush2.msra.mxu0 0.0
        %1374 = vmatprep.mubr.f32.mxu0 0.0
        %1375 = vmatmul.mubr.f32.gmra.mxu0 %v1308
        %v1376 = vpop.f32.mrf.mxu0
        %v1377 = vadd.f32 %v1304, %v1376
        %v1378 = vpop.f32.mrf.mxu0
        %1379 = vdwg.mxu0
        %v1380 = vadd.f32 %v1377, %v588
        %v1381 = vmax.f32 %v1380, 0.0
        %v1383 = vcombine.high %v1381, %v1381
        %v1385 = vunpack.c.l.s4 1966171168
        %v1386 = vunpack.c.0.s8 %v1385
        %v1387 = vlaneseq
        %v1388 = vshrl.u32 %v1387, 7
        %v1389 = vsub.s32 %v1386, %v1388
        %v1390 = vrot.slane %v1381, %v1389
        %v1392 = vunpack.c.l.s4 1966171168
        %v1393 = vunpack.c.0.s8 %v1392
        %v1394 = vlaneseq
        %v1395 = vshrl.u32 %v1394, 7
        %v1396 = vsub.s32 %v1393, %v1395
        %v1397 = vrot.slane %v1383, %v1396
        %v1398 = vcombine.high %v1390, %v1390
        %v1399 = vcombine.high %v1397, %v1397
        %v1401 = vunpack.c.l.s4 1966171168
        %v1402 = vunpack.c.0.s8 %v1401
        %v1403 = vlaneseq
        %v1404 = vshrl.u32 %v1403, 7
        %v1405 = vsub.s32 %v1402, %v1404
        %v1406 = vrot.slane %v1390, %v1405
        %v1408 = vunpack.c.l.s4 1966171168
        %v1409 = vunpack.c.0.s8 %v1408
        %v1410 = vlaneseq
        %v1411 = vshrl.u32 %v1410, 7
        %v1412 = vsub.s32 %v1409, %v1411
        %v1413 = vrot.slane %v1397, %v1412
        %v1415 = vunpack.c.l.s4 1966171168
        %v1416 = vunpack.c.0.s8 %v1415
        %v1417 = vlaneseq
        %v1418 = vshrl.u32 %v1417, 7
        %v1419 = vsub.s32 %v1416, %v1418
        %v1420 = vrot.slane %v1398, %v1419
        %v1422 = vunpack.c.l.s4 1966171168
        %v1423 = vunpack.c.0.s8 %v1422
        %v1424 = vlaneseq
        %v1425 = vshrl.u32 %v1424, 7
        %v1426 = vsub.s32 %v1423, %v1425
        %v1427 = vrot.slane %v1399, %v1426
        %v1428 = vcombine.high %v1406, %v1406
        %v1429 = vcombine.high %v1413, %v1413
        %v1430 = vcombine.high %v1420, %v1420
        %v1431 = vcombine.high %v1427, %v1427
        %1440 = vst.msk [vmem:[%s260 + $0x3] sm:$0x1] %vm650, %v1406
        %1441 = vst.msk [vmem:[%s260 + $0x23] sm:$0x1] %vm650, %v1420
        %1442 = vst.msk [vmem:[%s260 + $0x43] sm:$0x1] %vm650, %v1428
        %1443 = vst.msk [vmem:[%s260 + $0x63] sm:$0x1] %vm650, %v1430
        %1444 = vst.msk [vmem:[%s260 + $0x83] sm:$0x1] %vm650, %v1413
        %1445 = vst.msk [vmem:[%s260 + $0xa3] sm:$0x1] %vm650, %v1427
        %1446 = vst.msk [vmem:[%s260 + $0xc3] sm:$0x1] %vm650, %v1429
        %1447 = vst.msk [vmem:[%s260 + $0xe3] sm:$0x1] %vm650, %v1431
        %v1448 = vld [vmem:[%s234 + $0x2] sm:$0x1]
        %v1449 = vld [vmem:[%s234 + $0x12] sm:$0x1]
        %v1450 = vld [vmem:[%s234 + $0x22] sm:$0x1]
        %v1451 = vld [vmem:[%s234 + $0x32] sm:$0x1]
        %v1452 = vld [vmem:[%s234 + $0x42] sm:$0x1]
        %v1453 = vld [vmem:[%s234 + $0x52] sm:$0x1]
        %v1454 = vld [vmem:[%s234 + $0x62] sm:$0x1]
        %v1455 = vld [vmem:[%s234 + $0x72] sm:$0x1]
        %v1456 = vld [vmem:[%s234 + $0x82] sm:$0x1]
        %v1457 = vld [vmem:[%s234 + $0x92] sm:$0x1]
        %v1458 = vld [vmem:[%s234 + $0xa2] sm:$0x1]
        %v1459 = vld [vmem:[%s234 + $0xb2] sm:$0x1]
        %v1460 = vld [vmem:[%s234 + $0xc2] sm:$0x1]
        %v1461 = vld [vmem:[%s234 + $0xd2] sm:$0x1]
        %v1462 = vld [vmem:[%s234 + $0xe2] sm:$0x1]
        %v1463 = vld [vmem:[%s234 + $0xf2] sm:$0x1]
        %v1480 = vrot.slane %v1449, 7
        %v1481 = vsel %vm305, %v1480, %v1448
        %v1482 = vrot.slane %v1450, 6
        %v1483 = vsel %vm308, %v1482, %v1481
        %v1484 = vrot.slane %v1451, 5
        %v1485 = vsel %vm311, %v1484, %v1483
        %v1486 = vrot.slane %v1452, 4
        %v1487 = vsel %vm314, %v1486, %v1485
        %v1488 = vrot.slane %v1453, 3
        %v1489 = vsel %vm317, %v1488, %v1487
        %v1490 = vrot.slane %v1454, 2
        %v1491 = vsel %vm320, %v1490, %v1489
        %v1492 = vrot.slane %v1455, 1
        %v1493 = vsel %vm323, %v1492, %v1491
        %v1494 = vrot.slane %v1457, 7
        %v1495 = vsel %vm305, %v1494, %v1456
        %v1496 = vrot.slane %v1458, 6
        %v1497 = vsel %vm308, %v1496, %v1495
        %v1498 = vrot.slane %v1459, 5
        %v1499 = vsel %vm311, %v1498, %v1497
        %v1500 = vrot.slane %v1460, 4
        %v1501 = vsel %vm314, %v1500, %v1499
        %v1502 = vrot.slane %v1461, 3
        %v1503 = vsel %vm317, %v1502, %v1501
        %v1504 = vrot.slane %v1462, 2
        %v1505 = vsel %vm320, %v1504, %v1503
        %v1506 = vrot.slane %v1463, 1
        %v1507 = vsel %vm323, %v1506, %v1505
        %1510 = vmatprep.subr.mxu0 0.0
        %1511 = vmatpush1.msra.mxu0 0.0
        %1512 = vmatprep.subr.mxu0 0.0
        %1513 = vmatpush1.msra.mxu0 0.0
        %1514 = vmatprep.subr.mxu0 0.0
        %1515 = vmatpush1.msra.mxu0 0.0
        %1516 = vmatprep.subr.mxu0 0.0
        %1517 = vmatpush1.msra.mxu0 0.0
        %1518 = vmatprep.subr.mxu0 0.0
        %1519 = vmatpush1.msra.mxu0 0.0
        %1520 = vmatprep.subr.mxu0 0.0
        %1521 = vmatpush1.msra.mxu0 0.0
        %1522 = vmatprep.subr.mxu0 0.0
        %1523 = vmatpush1.msra.mxu0 0.0
        %1524 = vmatprep.subr.mxu0 0.0
        %1525 = vmatpush1.msra.mxu0 0.0
        %1526 = vmatprep.subr.mxu0 0.0
        %1527 = vmatpush1.msra.mxu0 0.0
        %1528 = vmatprep.subr.mxu0 0.0
        %1529 = vmatpush1.msra.mxu0 0.0
        %1530 = vmatprep.subr.mxu0 0.0
        %1531 = vmatpush1.msra.mxu0 0.0
        %1532 = vmatprep.subr.mxu0 0.0
        %1533 = vmatpush1.msra.mxu0 0.0
        %1534 = vmatprep.subr.mxu0 0.0
        %1535 = vmatpush1.msra.mxu0 0.0
        %1536 = vmatprep.subr.mxu0 0.0
        %1537 = vmatpush1.msra.mxu0 0.0
        %1538 = vmatprep.subr.mxu0 0.0
        %1539 = vmatpush1.msra.mxu0 %v1507
        %1540 = vmatprep.subr.mxu0 0.0
        %1541 = vmatpush1.msra.mxu0 %v1493
        %1542 = vmatprep.subr.mxu0 0.0
        %1543 = vmatpush2.msra.mxu0 0.0
        %1544 = vmatprep.subr.mxu0 0.0
        %1545 = vmatpush2.msra.mxu0 0.0
        %1546 = vmatprep.subr.mxu0 0.0
        %1547 = vmatpush2.msra.mxu0 0.0
        %1548 = vmatprep.subr.mxu0 0.0
        %1549 = vmatpush2.msra.mxu0 0.0
        %1550 = vmatprep.subr.mxu0 0.0
        %1551 = vmatpush2.msra.mxu0 0.0
        %1552 = vmatprep.subr.mxu0 0.0
        %1553 = vmatpush2.msra.mxu0 0.0
        %1554 = vmatprep.subr.mxu0 0.0
        %1555 = vmatpush2.msra.mxu0 0.0
        %1556 = vmatprep.subr.mxu0 0.0
        %1557 = vmatpush2.msra.mxu0 0.0
        %1558 = vmatprep.subr.mxu0 0.0
        %1559 = vmatpush2.msra.mxu0 0.0
        %1560 = vmatprep.subr.mxu0 0.0
        %1561 = vmatpush2.msra.mxu0 0.0
        %1562 = vmatprep.subr.mxu0 0.0
        %1563 = vmatpush2.msra.mxu0 0.0
        %1564 = vmatprep.subr.mxu0 0.0
        %1565 = vmatpush2.msra.mxu0 0.0
        %1566 = vmatprep.subr.mxu0 0.0
        %1567 = vmatpush2.msra.mxu0 0.0
        %1568 = vmatprep.subr.mxu0 0.0
        %1569 = vmatpush2.msra.mxu0 0.0
        %1570 = vmatprep.subr.mxu0 0.0
        %1571 = vmatpush2.msra.mxu0 0.0
        %1572 = vmatprep.subr.mxu0 0.0
        %1573 = vmatpush2.msra.mxu0 0.0
        %1574 = vmatprep.mubr.f32.mxu0 0.0
        %1575 = vmatmul.mubr.f32.gmra.mxu0 %v343
        %v1576 = vpop.f32.mrf.mxu0
        %v1577 = vadd.f32 0.0, %v1576
        %v1578 = vpop.f32.mrf.mxu0
        %1579 = vmatprep.mubr.f32.mxu0 0.0
        %1580 = vmatmul.mubr.f32.gmra.mxu0 %v346
        %v1581 = vpop.f32.mrf.mxu0
        %v1582 = vadd.f32 0.0, %v1581
        %v1583 = vpop.f32.mrf.mxu0
        %1584 = vmatprep.mubr.f32.mxu0 0.0
        %1585 = vmatmul.mubr.f32.gmra.mxu0 %v349
        %v1586 = vpop.f32.mrf.mxu0
        %v1587 = vadd.f32 0.0, %v1586
        %v1588 = vpop.f32.mrf.mxu0
        %1589 = vmatprep.mubr.f32.mxu0 0.0
        %1590 = vmatmul.mubr.f32.gmra.mxu0 %v352
        %v1591 = vpop.f32.mrf.mxu0
        %v1592 = vadd.f32 0.0, %v1591
        %v1593 = vpop.f32.mrf.mxu0
        %1594 = vdwg.mxu0
        %v1596 = vsel %vm341, %v1582, 0
        %1598 = vmatprep.subr.mxu0 0.0
        %1599 = vmatpush1.msra.mxu0 0.0
        %1600 = vmatprep.subr.mxu0 0.0
        %1601 = vmatpush1.msra.mxu0 0.0
        %1602 = vmatprep.subr.mxu0 0.0
        %1603 = vmatpush1.msra.mxu0 0.0
        %1604 = vmatprep.subr.mxu0 0.0
        %1605 = vmatpush1.msra.mxu0 0.0
        %1606 = vmatprep.subr.mxu0 0.0
        %1607 = vmatpush1.msra.mxu0 0.0
        %1608 = vmatprep.subr.mxu0 0.0
        %1609 = vmatpush1.msra.mxu0 0.0
        %1610 = vmatprep.subr.mxu0 0.0
        %1611 = vmatpush1.msra.mxu0 0.0
        %1612 = vmatprep.subr.mxu0 0.0
        %1613 = vmatpush1.msra.mxu0 0.0
        %1614 = vmatprep.subr.mxu0 0.0
        %1615 = vmatpush1.msra.mxu0 0.0
        %1616 = vmatprep.subr.mxu0 0.0
        %1617 = vmatpush1.msra.mxu0 0.0
        %1618 = vmatprep.subr.mxu0 0.0
        %1619 = vmatpush1.msra.mxu0 0.0
        %1620 = vmatprep.subr.mxu0 0.0
        %1621 = vmatpush1.msra.mxu0 0.0
        %1622 = vmatprep.subr.mxu0 0.0
        %1623 = vmatpush1.msra.mxu0 0.0
        %1624 = vmatprep.subr.mxu0 0.0
        %1625 = vmatpush1.msra.mxu0 0.0
        %1626 = vmatprep.subr.mxu0 0.0
        %1627 = vmatpush1.msra.mxu0 %v270
        %1628 = vmatprep.subr.mxu0 0.0
        %1629 = vmatpush1.msra.mxu0 %v269
        %1630 = vmatprep.subr.mxu0 0.0
        %1631 = vmatpush2.msra.mxu0 0.0
        %1632 = vmatprep.subr.mxu0 0.0
        %1633 = vmatpush2.msra.mxu0 0.0
        %1634 = vmatprep.subr.mxu0 0.0
        %1635 = vmatpush2.msra.mxu0 0.0
        %1636 = vmatprep.subr.mxu0 0.0
        %1637 = vmatpush2.msra.mxu0 0.0
        %1638 = vmatprep.subr.mxu0 0.0
        %1639 = vmatpush2.msra.mxu0 0.0
        %1640 = vmatprep.subr.mxu0 0.0
        %1641 = vmatpush2.msra.mxu0 0.0
        %1642 = vmatprep.subr.mxu0 0.0
        %1643 = vmatpush2.msra.mxu0 0.0
        %1644 = vmatprep.subr.mxu0 0.0
        %1645 = vmatpush2.msra.mxu0 0.0
        %1646 = vmatprep.subr.mxu0 0.0
        %1647 = vmatpush2.msra.mxu0 0.0
        %1648 = vmatprep.subr.mxu0 0.0
        %1649 = vmatpush2.msra.mxu0 0.0
        %1650 = vmatprep.subr.mxu0 0.0
        %1651 = vmatpush2.msra.mxu0 0.0
        %1652 = vmatprep.subr.mxu0 0.0
        %1653 = vmatpush2.msra.mxu0 0.0
        %1654 = vmatprep.subr.mxu0 0.0
        %1655 = vmatpush2.msra.mxu0 0.0
        %1656 = vmatprep.subr.mxu0 0.0
        %1657 = vmatpush2.msra.mxu0 0.0
        %1658 = vmatprep.subr.mxu0 0.0
        %1659 = vmatpush2.msra.mxu0 0.0
        %1660 = vmatprep.subr.mxu0 0.0
        %1661 = vmatpush2.msra.mxu0 0.0
        %1662 = vmatprep.mubr.f32.mxu0 0.0
        %1663 = vmatmul.mubr.f32.gmra.mxu0 %v1596
        %v1664 = vpop.f32.mrf.mxu0
        %v1665 = vadd.f32 0.0, %v1664
        %v1666 = vpop.f32.mrf.mxu0
        %1667 = vdwg.mxu0
        %v1669 = vsel %vm341, %v1577, 0
        %1671 = vmatprep.subr.mxu0 0.0
        %1672 = vmatpush1.msra.mxu0 0.0
        %1673 = vmatprep.subr.mxu0 0.0
        %1674 = vmatpush1.msra.mxu0 0.0
        %1675 = vmatprep.subr.mxu0 0.0
        %1676 = vmatpush1.msra.mxu0 0.0
        %1677 = vmatprep.subr.mxu0 0.0
        %1678 = vmatpush1.msra.mxu0 0.0
        %1679 = vmatprep.subr.mxu0 0.0
        %1680 = vmatpush1.msra.mxu0 0.0
        %1681 = vmatprep.subr.mxu0 0.0
        %1682 = vmatpush1.msra.mxu0 0.0
        %1683 = vmatprep.subr.mxu0 0.0
        %1684 = vmatpush1.msra.mxu0 0.0
        %1685 = vmatprep.subr.mxu0 0.0
        %1686 = vmatpush1.msra.mxu0 0.0
        %1687 = vmatprep.subr.mxu0 0.0
        %1688 = vmatpush1.msra.mxu0 0.0
        %1689 = vmatprep.subr.mxu0 0.0
        %1690 = vmatpush1.msra.mxu0 0.0
        %1691 = vmatprep.subr.mxu0 0.0
        %1692 = vmatpush1.msra.mxu0 0.0
        %1693 = vmatprep.subr.mxu0 0.0
        %1694 = vmatpush1.msra.mxu0 0.0
        %1695 = vmatprep.subr.mxu0 0.0
        %1696 = vmatpush1.msra.mxu0 0.0
        %1697 = vmatprep.subr.mxu0 0.0
        %1698 = vmatpush1.msra.mxu0 0.0
        %1699 = vmatprep.subr.mxu0 0.0
        %1700 = vmatpush1.msra.mxu0 %v268
        %1701 = vmatprep.subr.mxu0 0.0
        %1702 = vmatpush1.msra.mxu0 %v267
        %1703 = vmatprep.subr.mxu0 0.0
        %1704 = vmatpush2.msra.mxu0 0.0
        %1705 = vmatprep.subr.mxu0 0.0
        %1706 = vmatpush2.msra.mxu0 0.0
        %1707 = vmatprep.subr.mxu0 0.0
        %1708 = vmatpush2.msra.mxu0 0.0
        %1709 = vmatprep.subr.mxu0 0.0
        %1710 = vmatpush2.msra.mxu0 0.0
        %1711 = vmatprep.subr.mxu0 0.0
        %1712 = vmatpush2.msra.mxu0 0.0
        %1713 = vmatprep.subr.mxu0 0.0
        %1714 = vmatpush2.msra.mxu0 0.0
        %1715 = vmatprep.subr.mxu0 0.0
        %1716 = vmatpush2.msra.mxu0 0.0
        %1717 = vmatprep.subr.mxu0 0.0
        %1718 = vmatpush2.msra.mxu0 0.0
        %1719 = vmatprep.subr.mxu0 0.0
        %1720 = vmatpush2.msra.mxu0 0.0
        %1721 = vmatprep.subr.mxu0 0.0
        %1722 = vmatpush2.msra.mxu0 0.0
        %1723 = vmatprep.subr.mxu0 0.0
        %1724 = vmatpush2.msra.mxu0 0.0
        %1725 = vmatprep.subr.mxu0 0.0
        %1726 = vmatpush2.msra.mxu0 0.0
        %1727 = vmatprep.subr.mxu0 0.0
        %1728 = vmatpush2.msra.mxu0 0.0
        %1729 = vmatprep.subr.mxu0 0.0
        %1730 = vmatpush2.msra.mxu0 0.0
        %1731 = vmatprep.subr.mxu0 0.0
        %1732 = vmatpush2.msra.mxu0 0.0
        %1733 = vmatprep.subr.mxu0 0.0
        %1734 = vmatpush2.msra.mxu0 0.0
        %1735 = vmatprep.mubr.f32.mxu0 0.0
        %1736 = vmatmul.mubr.f32.gmra.mxu0 %v1669
        %v1737 = vpop.f32.mrf.mxu0
        %v1738 = vadd.f32 %v1665, %v1737
        %v1739 = vpop.f32.mrf.mxu0
        %1740 = vdwg.mxu0
        %v1741 = vadd.f32 %v1738, %v588
        %v1742 = vmax.f32 %v1741, 0.0
        %v1744 = vcombine.high %v1742, %v1742
        %v1746 = vunpack.c.l.s4 1966171168
        %v1747 = vunpack.c.0.s8 %v1746
        %v1748 = vlaneseq
        %v1749 = vshrl.u32 %v1748, 7
        %v1750 = vsub.s32 %v1747, %v1749
        %v1751 = vrot.slane %v1742, %v1750
        %v1753 = vunpack.c.l.s4 1966171168
        %v1754 = vunpack.c.0.s8 %v1753
        %v1755 = vlaneseq
        %v1756 = vshrl.u32 %v1755, 7
        %v1757 = vsub.s32 %v1754, %v1756
        %v1758 = vrot.slane %v1744, %v1757
        %v1759 = vcombine.high %v1751, %v1751
        %v1760 = vcombine.high %v1758, %v1758
        %v1762 = vunpack.c.l.s4 1966171168
        %v1763 = vunpack.c.0.s8 %v1762
        %v1764 = vlaneseq
        %v1765 = vshrl.u32 %v1764, 7
        %v1766 = vsub.s32 %v1763, %v1765
        %v1767 = vrot.slane %v1751, %v1766
        %v1769 = vunpack.c.l.s4 1966171168
        %v1770 = vunpack.c.0.s8 %v1769
        %v1771 = vlaneseq
        %v1772 = vshrl.u32 %v1771, 7
        %v1773 = vsub.s32 %v1770, %v1772
        %v1774 = vrot.slane %v1758, %v1773
        %v1776 = vunpack.c.l.s4 1966171168
        %v1777 = vunpack.c.0.s8 %v1776
        %v1778 = vlaneseq
        %v1779 = vshrl.u32 %v1778, 7
        %v1780 = vsub.s32 %v1777, %v1779
        %v1781 = vrot.slane %v1759, %v1780
        %v1783 = vunpack.c.l.s4 1966171168
        %v1784 = vunpack.c.0.s8 %v1783
        %v1785 = vlaneseq
        %v1786 = vshrl.u32 %v1785, 7
        %v1787 = vsub.s32 %v1784, %v1786
        %v1788 = vrot.slane %v1760, %v1787
        %v1789 = vcombine.high %v1767, %v1767
        %v1790 = vcombine.high %v1774, %v1774
        %v1791 = vcombine.high %v1781, %v1781
        %v1792 = vcombine.high %v1788, %v1788
        %1801 = vst.msk [vmem:[%s260 + $0x4] sm:$0x1] %vm650, %v1767
        %1802 = vst.msk [vmem:[%s260 + $0x24] sm:$0x1] %vm650, %v1781
        %1803 = vst.msk [vmem:[%s260 + $0x44] sm:$0x1] %vm650, %v1789
        %1804 = vst.msk [vmem:[%s260 + $0x64] sm:$0x1] %vm650, %v1791
        %1805 = vst.msk [vmem:[%s260 + $0x84] sm:$0x1] %vm650, %v1774
        %1806 = vst.msk [vmem:[%s260 + $0xa4] sm:$0x1] %vm650, %v1788
        %1807 = vst.msk [vmem:[%s260 + $0xc4] sm:$0x1] %vm650, %v1790
        %1808 = vst.msk [vmem:[%s260 + $0xe4] sm:$0x1] %vm650, %v1792
        %v1810 = vsel %vm341, %v1592, 0
        %1812 = vmatprep.subr.mxu0 0.0
        %1813 = vmatpush1.msra.mxu0 0.0
        %1814 = vmatprep.subr.mxu0 0.0
        %1815 = vmatpush1.msra.mxu0 0.0
        %1816 = vmatprep.subr.mxu0 0.0
        %1817 = vmatpush1.msra.mxu0 0.0
        %1818 = vmatprep.subr.mxu0 0.0
        %1819 = vmatpush1.msra.mxu0 0.0
        %1820 = vmatprep.subr.mxu0 0.0
        %1821 = vmatpush1.msra.mxu0 0.0
        %1822 = vmatprep.subr.mxu0 0.0
        %1823 = vmatpush1.msra.mxu0 0.0
        %1824 = vmatprep.subr.mxu0 0.0
        %1825 = vmatpush1.msra.mxu0 0.0
        %1826 = vmatprep.subr.mxu0 0.0
        %1827 = vmatpush1.msra.mxu0 0.0
        %1828 = vmatprep.subr.mxu0 0.0
        %1829 = vmatpush1.msra.mxu0 0.0
        %1830 = vmatprep.subr.mxu0 0.0
        %1831 = vmatpush1.msra.mxu0 0.0
        %1832 = vmatprep.subr.mxu0 0.0
        %1833 = vmatpush1.msra.mxu0 0.0
        %1834 = vmatprep.subr.mxu0 0.0
        %1835 = vmatpush1.msra.mxu0 0.0
        %1836 = vmatprep.subr.mxu0 0.0
        %1837 = vmatpush1.msra.mxu0 0.0
        %1838 = vmatprep.subr.mxu0 0.0
        %1839 = vmatpush1.msra.mxu0 0.0
        %1840 = vmatprep.subr.mxu0 0.0
        %1841 = vmatpush1.msra.mxu0 %v270
        %1842 = vmatprep.subr.mxu0 0.0
        %1843 = vmatpush1.msra.mxu0 %v269
        %1844 = vmatprep.subr.mxu0 0.0
        %1845 = vmatpush2.msra.mxu0 0.0
        %1846 = vmatprep.subr.mxu0 0.0
        %1847 = vmatpush2.msra.mxu0 0.0
        %1848 = vmatprep.subr.mxu0 0.0
        %1849 = vmatpush2.msra.mxu0 0.0
        %1850 = vmatprep.subr.mxu0 0.0
        %1851 = vmatpush2.msra.mxu0 0.0
        %1852 = vmatprep.subr.mxu0 0.0
        %1853 = vmatpush2.msra.mxu0 0.0
        %1854 = vmatprep.subr.mxu0 0.0
        %1855 = vmatpush2.msra.mxu0 0.0
        %1856 = vmatprep.subr.mxu0 0.0
        %1857 = vmatpush2.msra.mxu0 0.0
        %1858 = vmatprep.subr.mxu0 0.0
        %1859 = vmatpush2.msra.mxu0 0.0
        %1860 = vmatprep.subr.mxu0 0.0
        %1861 = vmatpush2.msra.mxu0 0.0
        %1862 = vmatprep.subr.mxu0 0.0
        %1863 = vmatpush2.msra.mxu0 0.0
        %1864 = vmatprep.subr.mxu0 0.0
        %1865 = vmatpush2.msra.mxu0 0.0
        %1866 = vmatprep.subr.mxu0 0.0
        %1867 = vmatpush2.msra.mxu0 0.0
        %1868 = vmatprep.subr.mxu0 0.0
        %1869 = vmatpush2.msra.mxu0 0.0
        %1870 = vmatprep.subr.mxu0 0.0
        %1871 = vmatpush2.msra.mxu0 0.0
        %1872 = vmatprep.subr.mxu0 0.0
        %1873 = vmatpush2.msra.mxu0 0.0
        %1874 = vmatprep.subr.mxu0 0.0
        %1875 = vmatpush2.msra.mxu0 0.0
        %1876 = vmatprep.mubr.f32.mxu0 0.0
        %1877 = vmatmul.mubr.f32.gmra.mxu0 %v1810
        %v1878 = vpop.f32.mrf.mxu0
        %v1879 = vadd.f32 0.0, %v1878
        %v1880 = vpop.f32.mrf.mxu0
        %1881 = vdwg.mxu0
        %v1883 = vsel %vm341, %v1587, 0
        %1885 = vmatprep.subr.mxu0 0.0
        %1886 = vmatpush1.msra.mxu0 0.0
        %1887 = vmatprep.subr.mxu0 0.0
        %1888 = vmatpush1.msra.mxu0 0.0
        %1889 = vmatprep.subr.mxu0 0.0
        %1890 = vmatpush1.msra.mxu0 0.0
        %1891 = vmatprep.subr.mxu0 0.0
        %1892 = vmatpush1.msra.mxu0 0.0
        %1893 = vmatprep.subr.mxu0 0.0
        %1894 = vmatpush1.msra.mxu0 0.0
        %1895 = vmatprep.subr.mxu0 0.0
        %1896 = vmatpush1.msra.mxu0 0.0
        %1897 = vmatprep.subr.mxu0 0.0
        %1898 = vmatpush1.msra.mxu0 0.0
        %1899 = vmatprep.subr.mxu0 0.0
        %1900 = vmatpush1.msra.mxu0 0.0
        %1901 = vmatprep.subr.mxu0 0.0
        %1902 = vmatpush1.msra.mxu0 0.0
        %1903 = vmatprep.subr.mxu0 0.0
        %1904 = vmatpush1.msra.mxu0 0.0
        %1905 = vmatprep.subr.mxu0 0.0
        %1906 = vmatpush1.msra.mxu0 0.0
        %1907 = vmatprep.subr.mxu0 0.0
        %1908 = vmatpush1.msra.mxu0 0.0
        %1909 = vmatprep.subr.mxu0 0.0
        %1910 = vmatpush1.msra.mxu0 0.0
        %1911 = vmatprep.subr.mxu0 0.0
        %1912 = vmatpush1.msra.mxu0 0.0
        %1913 = vmatprep.subr.mxu0 0.0
        %1914 = vmatpush1.msra.mxu0 %v268
        %1915 = vmatprep.subr.mxu0 0.0
        %1916 = vmatpush1.msra.mxu0 %v267
        %1917 = vmatprep.subr.mxu0 0.0
        %1918 = vmatpush2.msra.mxu0 0.0
        %1919 = vmatprep.subr.mxu0 0.0
        %1920 = vmatpush2.msra.mxu0 0.0
        %1921 = vmatprep.subr.mxu0 0.0
        %1922 = vmatpush2.msra.mxu0 0.0
        %1923 = vmatprep.subr.mxu0 0.0
        %1924 = vmatpush2.msra.mxu0 0.0
        %1925 = vmatprep.subr.mxu0 0.0
        %1926 = vmatpush2.msra.mxu0 0.0
        %1927 = vmatprep.subr.mxu0 0.0
        %1928 = vmatpush2.msra.mxu0 0.0
        %1929 = vmatprep.subr.mxu0 0.0
        %1930 = vmatpush2.msra.mxu0 0.0
        %1931 = vmatprep.subr.mxu0 0.0
        %1932 = vmatpush2.msra.mxu0 0.0
        %1933 = vmatprep.subr.mxu0 0.0
        %1934 = vmatpush2.msra.mxu0 0.0
        %1935 = vmatprep.subr.mxu0 0.0
        %1936 = vmatpush2.msra.mxu0 0.0
        %1937 = vmatprep.subr.mxu0 0.0
        %1938 = vmatpush2.msra.mxu0 0.0
        %1939 = vmatprep.subr.mxu0 0.0
        %1940 = vmatpush2.msra.mxu0 0.0
        %1941 = vmatprep.subr.mxu0 0.0
        %1942 = vmatpush2.msra.mxu0 0.0
        %1943 = vmatprep.subr.mxu0 0.0
        %1944 = vmatpush2.msra.mxu0 0.0
        %1945 = vmatprep.subr.mxu0 0.0
        %1946 = vmatpush2.msra.mxu0 0.0
        %1947 = vmatprep.subr.mxu0 0.0
        %1948 = vmatpush2.msra.mxu0 0.0
        %1949 = vmatprep.mubr.f32.mxu0 0.0
        %1950 = vmatmul.mubr.f32.gmra.mxu0 %v1883
        %v1951 = vpop.f32.mrf.mxu0
        %v1952 = vadd.f32 %v1879, %v1951
        %v1953 = vpop.f32.mrf.mxu0
        %1954 = vdwg.mxu0
        %v1955 = vadd.f32 %v1952, %v588
        %v1956 = vmax.f32 %v1955, 0.0
        %v1958 = vcombine.high %v1956, %v1956
        %v1960 = vunpack.c.l.s4 1966171168
        %v1961 = vunpack.c.0.s8 %v1960
        %v1962 = vlaneseq
        %v1963 = vshrl.u32 %v1962, 7
        %v1964 = vsub.s32 %v1961, %v1963
        %v1965 = vrot.slane %v1956, %v1964
        %v1967 = vunpack.c.l.s4 1966171168
        %v1968 = vunpack.c.0.s8 %v1967
        %v1969 = vlaneseq
        %v1970 = vshrl.u32 %v1969, 7
        %v1971 = vsub.s32 %v1968, %v1970
        %v1972 = vrot.slane %v1958, %v1971
        %v1973 = vcombine.high %v1965, %v1965
        %v1974 = vcombine.high %v1972, %v1972
        %v1976 = vunpack.c.l.s4 1966171168
        %v1977 = vunpack.c.0.s8 %v1976
        %v1978 = vlaneseq
        %v1979 = vshrl.u32 %v1978, 7
        %v1980 = vsub.s32 %v1977, %v1979
        %v1981 = vrot.slane %v1965, %v1980
        %v1983 = vunpack.c.l.s4 1966171168
        %v1984 = vunpack.c.0.s8 %v1983
        %v1985 = vlaneseq
        %v1986 = vshrl.u32 %v1985, 7
        %v1987 = vsub.s32 %v1984, %v1986
        %v1988 = vrot.slane %v1972, %v1987
        %v1990 = vunpack.c.l.s4 1966171168
        %v1991 = vunpack.c.0.s8 %v1990
        %v1992 = vlaneseq
        %v1993 = vshrl.u32 %v1992, 7
        %v1994 = vsub.s32 %v1991, %v1993
        %v1995 = vrot.slane %v1973, %v1994
        %v1997 = vunpack.c.l.s4 1966171168
        %v1998 = vunpack.c.0.s8 %v1997
        %v1999 = vlaneseq
        %v2000 = vshrl.u32 %v1999, 7
        %v2001 = vsub.s32 %v1998, %v2000
        %v2002 = vrot.slane %v1974, %v2001
        %v2003 = vcombine.high %v1981, %v1981
        %v2004 = vcombine.high %v1988, %v1988
        %v2005 = vcombine.high %v1995, %v1995
        %v2006 = vcombine.high %v2002, %v2002
        %2015 = vst.msk [vmem:[%s260 + $0x5] sm:$0x1] %vm650, %v1981
        %2016 = vst.msk [vmem:[%s260 + $0x25] sm:$0x1] %vm650, %v1995
        %2017 = vst.msk [vmem:[%s260 + $0x45] sm:$0x1] %vm650, %v2003
        %2018 = vst.msk [vmem:[%s260 + $0x65] sm:$0x1] %vm650, %v2005
        %2019 = vst.msk [vmem:[%s260 + $0x85] sm:$0x1] %vm650, %v1988
        %2020 = vst.msk [vmem:[%s260 + $0xa5] sm:$0x1] %vm650, %v2002
        %2021 = vst.msk [vmem:[%s260 + $0xc5] sm:$0x1] %vm650, %v2004
        %2022 = vst.msk [vmem:[%s260 + $0xe5] sm:$0x1] %vm650, %v2006
        %v2023 = vld [vmem:[%s234 + $0x3] sm:$0x1]
        %v2024 = vld [vmem:[%s234 + $0x13] sm:$0x1]
        %v2025 = vld [vmem:[%s234 + $0x23] sm:$0x1]
        %v2026 = vld [vmem:[%s234 + $0x33] sm:$0x1]
        %v2027 = vld [vmem:[%s234 + $0x43] sm:$0x1]
        %v2028 = vld [vmem:[%s234 + $0x53] sm:$0x1]
        %v2029 = vld [vmem:[%s234 + $0x63] sm:$0x1]
        %v2030 = vld [vmem:[%s234 + $0x73] sm:$0x1]
        %v2031 = vld [vmem:[%s234 + $0x83] sm:$0x1]
        %v2032 = vld [vmem:[%s234 + $0x93] sm:$0x1]
        %v2033 = vld [vmem:[%s234 + $0xa3] sm:$0x1]
        %v2034 = vld [vmem:[%s234 + $0xb3] sm:$0x1]
        %v2035 = vld [vmem:[%s234 + $0xc3] sm:$0x1]
        %v2036 = vld [vmem:[%s234 + $0xd3] sm:$0x1]
        %v2037 = vld [vmem:[%s234 + $0xe3] sm:$0x1]
        %v2038 = vld [vmem:[%s234 + $0xf3] sm:$0x1]
        %v2055 = vrot.slane %v2024, 7
        %v2056 = vsel %vm305, %v2055, %v2023
        %v2057 = vrot.slane %v2025, 6
        %v2058 = vsel %vm308, %v2057, %v2056
        %v2059 = vrot.slane %v2026, 5
        %v2060 = vsel %vm311, %v2059, %v2058
        %v2061 = vrot.slane %v2027, 4
        %v2062 = vsel %vm314, %v2061, %v2060
        %v2063 = vrot.slane %v2028, 3
        %v2064 = vsel %vm317, %v2063, %v2062
        %v2065 = vrot.slane %v2029, 2
        %v2066 = vsel %vm320, %v2065, %v2064
        %v2067 = vrot.slane %v2030, 1
        %v2068 = vsel %vm323, %v2067, %v2066
        %v2069 = vrot.slane %v2032, 7
        %v2070 = vsel %vm305, %v2069, %v2031
        %v2071 = vrot.slane %v2033, 6
        %v2072 = vsel %vm308, %v2071, %v2070
        %v2073 = vrot.slane %v2034, 5
        %v2074 = vsel %vm311, %v2073, %v2072
        %v2075 = vrot.slane %v2035, 4
        %v2076 = vsel %vm314, %v2075, %v2074
        %v2077 = vrot.slane %v2036, 3
        %v2078 = vsel %vm317, %v2077, %v2076
        %v2079 = vrot.slane %v2037, 2
        %v2080 = vsel %vm320, %v2079, %v2078
        %v2081 = vrot.slane %v2038, 1
        %v2082 = vsel %vm323, %v2081, %v2080
        %2085 = vmatprep.subr.mxu0 0.0
        %2086 = vmatpush1.msra.mxu0 0.0
        %2087 = vmatprep.subr.mxu0 0.0
        %2088 = vmatpush1.msra.mxu0 0.0
        %2089 = vmatprep.subr.mxu0 0.0
        %2090 = vmatpush1.msra.mxu0 0.0
        %2091 = vmatprep.subr.mxu0 0.0
        %2092 = vmatpush1.msra.mxu0 0.0
        %2093 = vmatprep.subr.mxu0 0.0
        %2094 = vmatpush1.msra.mxu0 0.0
        %2095 = vmatprep.subr.mxu0 0.0
        %2096 = vmatpush1.msra.mxu0 0.0
        %2097 = vmatprep.subr.mxu0 0.0
        %2098 = vmatpush1.msra.mxu0 0.0
        %2099 = vmatprep.subr.mxu0 0.0
        %2100 = vmatpush1.msra.mxu0 0.0
        %2101 = vmatprep.subr.mxu0 0.0
        %2102 = vmatpush1.msra.mxu0 0.0
        %2103 = vmatprep.subr.mxu0 0.0
        %2104 = vmatpush1.msra.mxu0 0.0
        %2105 = vmatprep.subr.mxu0 0.0
        %2106 = vmatpush1.msra.mxu0 0.0
        %2107 = vmatprep.subr.mxu0 0.0
        %2108 = vmatpush1.msra.mxu0 0.0
        %2109 = vmatprep.subr.mxu0 0.0
        %2110 = vmatpush1.msra.mxu0 0.0
        %2111 = vmatprep.subr.mxu0 0.0
        %2112 = vmatpush1.msra.mxu0 0.0
        %2113 = vmatprep.subr.mxu0 0.0
        %2114 = vmatpush1.msra.mxu0 %v2082
        %2115 = vmatprep.subr.mxu0 0.0
        %2116 = vmatpush1.msra.mxu0 %v2068
        %2117 = vmatprep.subr.mxu0 0.0
        %2118 = vmatpush2.msra.mxu0 0.0
        %2119 = vmatprep.subr.mxu0 0.0
        %2120 = vmatpush2.msra.mxu0 0.0
        %2121 = vmatprep.subr.mxu0 0.0
        %2122 = vmatpush2.msra.mxu0 0.0
        %2123 = vmatprep.subr.mxu0 0.0
        %2124 = vmatpush2.msra.mxu0 0.0
        %2125 = vmatprep.subr.mxu0 0.0
        %2126 = vmatpush2.msra.mxu0 0.0
        %2127 = vmatprep.subr.mxu0 0.0
        %2128 = vmatpush2.msra.mxu0 0.0
        %2129 = vmatprep.subr.mxu0 0.0
        %2130 = vmatpush2.msra.mxu0 0.0
        %2131 = vmatprep.subr.mxu0 0.0
        %2132 = vmatpush2.msra.mxu0 0.0
        %2133 = vmatprep.subr.mxu0 0.0
        %2134 = vmatpush2.msra.mxu0 0.0
        %2135 = vmatprep.subr.mxu0 0.0
        %2136 = vmatpush2.msra.mxu0 0.0
        %2137 = vmatprep.subr.mxu0 0.0
        %2138 = vmatpush2.msra.mxu0 0.0
        %2139 = vmatprep.subr.mxu0 0.0
        %2140 = vmatpush2.msra.mxu0 0.0
        %2141 = vmatprep.subr.mxu0 0.0
        %2142 = vmatpush2.msra.mxu0 0.0
        %2143 = vmatprep.subr.mxu0 0.0
        %2144 = vmatpush2.msra.mxu0 0.0
        %2145 = vmatprep.subr.mxu0 0.0
        %2146 = vmatpush2.msra.mxu0 0.0
        %2147 = vmatprep.subr.mxu0 0.0
        %2148 = vmatpush2.msra.mxu0 0.0
        %2149 = vmatprep.mubr.f32.mxu0 0.0
        %2150 = vmatmul.mubr.f32.gmra.mxu0 %v343
        %v2151 = vpop.f32.mrf.mxu0
        %v2152 = vadd.f32 0.0, %v2151
        %v2153 = vpop.f32.mrf.mxu0
        %2154 = vmatprep.mubr.f32.mxu0 0.0
        %2155 = vmatmul.mubr.f32.gmra.mxu0 %v346
        %v2156 = vpop.f32.mrf.mxu0
        %v2157 = vadd.f32 0.0, %v2156
        %v2158 = vpop.f32.mrf.mxu0
        %2159 = vmatprep.mubr.f32.mxu0 0.0
        %2160 = vmatmul.mubr.f32.gmra.mxu0 %v349
        %v2161 = vpop.f32.mrf.mxu0
        %v2162 = vadd.f32 0.0, %v2161
        %v2163 = vpop.f32.mrf.mxu0
        %2164 = vmatprep.mubr.f32.mxu0 0.0
        %2165 = vmatmul.mubr.f32.gmra.mxu0 %v352
        %v2166 = vpop.f32.mrf.mxu0
        %v2167 = vadd.f32 0.0, %v2166
        %v2168 = vpop.f32.mrf.mxu0
        %2169 = vdwg.mxu0
        %v2171 = vsel %vm341, %v2157, 0
        %2173 = vmatprep.subr.mxu0 0.0
        %2174 = vmatpush1.msra.mxu0 0.0
        %2175 = vmatprep.subr.mxu0 0.0
        %2176 = vmatpush1.msra.mxu0 0.0
        %2177 = vmatprep.subr.mxu0 0.0
        %2178 = vmatpush1.msra.mxu0 0.0
        %2179 = vmatprep.subr.mxu0 0.0
        %2180 = vmatpush1.msra.mxu0 0.0
        %2181 = vmatprep.subr.mxu0 0.0
        %2182 = vmatpush1.msra.mxu0 0.0
        %2183 = vmatprep.subr.mxu0 0.0
        %2184 = vmatpush1.msra.mxu0 0.0
        %2185 = vmatprep.subr.mxu0 0.0
        %2186 = vmatpush1.msra.mxu0 0.0
        %2187 = vmatprep.subr.mxu0 0.0
        %2188 = vmatpush1.msra.mxu0 0.0
        %2189 = vmatprep.subr.mxu0 0.0
        %2190 = vmatpush1.msra.mxu0 0.0
        %2191 = vmatprep.subr.mxu0 0.0
        %2192 = vmatpush1.msra.mxu0 0.0
        %2193 = vmatprep.subr.mxu0 0.0
        %2194 = vmatpush1.msra.mxu0 0.0
        %2195 = vmatprep.subr.mxu0 0.0
        %2196 = vmatpush1.msra.mxu0 0.0
        %2197 = vmatprep.subr.mxu0 0.0
        %2198 = vmatpush1.msra.mxu0 0.0
        %2199 = vmatprep.subr.mxu0 0.0
        %2200 = vmatpush1.msra.mxu0 0.0
        %2201 = vmatprep.subr.mxu0 0.0
        %2202 = vmatpush1.msra.mxu0 %v270
        %2203 = vmatprep.subr.mxu0 0.0
        %2204 = vmatpush1.msra.mxu0 %v269
        %2205 = vmatprep.subr.mxu0 0.0
        %2206 = vmatpush2.msra.mxu0 0.0
        %2207 = vmatprep.subr.mxu0 0.0
        %2208 = vmatpush2.msra.mxu0 0.0
        %2209 = vmatprep.subr.mxu0 0.0
        %2210 = vmatpush2.msra.mxu0 0.0
        %2211 = vmatprep.subr.mxu0 0.0
        %2212 = vmatpush2.msra.mxu0 0.0
        %2213 = vmatprep.subr.mxu0 0.0
        %2214 = vmatpush2.msra.mxu0 0.0
        %2215 = vmatprep.subr.mxu0 0.0
        %2216 = vmatpush2.msra.mxu0 0.0
        %2217 = vmatprep.subr.mxu0 0.0
        %2218 = vmatpush2.msra.mxu0 0.0
        %2219 = vmatprep.subr.mxu0 0.0
        %2220 = vmatpush2.msra.mxu0 0.0
        %2221 = vmatprep.subr.mxu0 0.0
        %2222 = vmatpush2.msra.mxu0 0.0
        %2223 = vmatprep.subr.mxu0 0.0
        %2224 = vmatpush2.msra.mxu0 0.0
        %2225 = vmatprep.subr.mxu0 0.0
        %2226 = vmatpush2.msra.mxu0 0.0
        %2227 = vmatprep.subr.mxu0 0.0
        %2228 = vmatpush2.msra.mxu0 0.0
        %2229 = vmatprep.subr.mxu0 0.0
        %2230 = vmatpush2.msra.mxu0 0.0
        %2231 = vmatprep.subr.mxu0 0.0
        %2232 = vmatpush2.msra.mxu0 0.0
        %2233 = vmatprep.subr.mxu0 0.0
        %2234 = vmatpush2.msra.mxu0 0.0
        %2235 = vmatprep.subr.mxu0 0.0
        %2236 = vmatpush2.msra.mxu0 0.0
        %2237 = vmatprep.mubr.f32.mxu0 0.0
        %2238 = vmatmul.mubr.f32.gmra.mxu0 %v2171
        %v2239 = vpop.f32.mrf.mxu0
        %v2240 = vadd.f32 0.0, %v2239
        %v2241 = vpop.f32.mrf.mxu0
        %2242 = vdwg.mxu0
        %v2244 = vsel %vm341, %v2152, 0
        %2246 = vmatprep.subr.mxu0 0.0
        %2247 = vmatpush1.msra.mxu0 0.0
        %2248 = vmatprep.subr.mxu0 0.0
        %2249 = vmatpush1.msra.mxu0 0.0
        %2250 = vmatprep.subr.mxu0 0.0
        %2251 = vmatpush1.msra.mxu0 0.0
        %2252 = vmatprep.subr.mxu0 0.0
        %2253 = vmatpush1.msra.mxu0 0.0
        %2254 = vmatprep.subr.mxu0 0.0
        %2255 = vmatpush1.msra.mxu0 0.0
        %2256 = vmatprep.subr.mxu0 0.0
        %2257 = vmatpush1.msra.mxu0 0.0
        %2258 = vmatprep.subr.mxu0 0.0
        %2259 = vmatpush1.msra.mxu0 0.0
        %2260 = vmatprep.subr.mxu0 0.0
        %2261 = vmatpush1.msra.mxu0 0.0
        %2262 = vmatprep.subr.mxu0 0.0
        %2263 = vmatpush1.msra.mxu0 0.0
        %2264 = vmatprep.subr.mxu0 0.0
        %2265 = vmatpush1.msra.mxu0 0.0
        %2266 = vmatprep.subr.mxu0 0.0
        %2267 = vmatpush1.msra.mxu0 0.0
        %2268 = vmatprep.subr.mxu0 0.0
        %2269 = vmatpush1.msra.mxu0 0.0
        %2270 = vmatprep.subr.mxu0 0.0
        %2271 = vmatpush1.msra.mxu0 0.0
        %2272 = vmatprep.subr.mxu0 0.0
        %2273 = vmatpush1.msra.mxu0 0.0
        %2274 = vmatprep.subr.mxu0 0.0
        %2275 = vmatpush1.msra.mxu0 %v268
        %2276 = vmatprep.subr.mxu0 0.0
        %2277 = vmatpush1.msra.mxu0 %v267
        %2278 = vmatprep.subr.mxu0 0.0
        %2279 = vmatpush2.msra.mxu0 0.0
        %2280 = vmatprep.subr.mxu0 0.0
        %2281 = vmatpush2.msra.mxu0 0.0
        %2282 = vmatprep.subr.mxu0 0.0
        %2283 = vmatpush2.msra.mxu0 0.0
        %2284 = vmatprep.subr.mxu0 0.0
        %2285 = vmatpush2.msra.mxu0 0.0
        %2286 = vmatprep.subr.mxu0 0.0
        %2287 = vmatpush2.msra.mxu0 0.0
        %2288 = vmatprep.subr.mxu0 0.0
        %2289 = vmatpush2.msra.mxu0 0.0
        %2290 = vmatprep.subr.mxu0 0.0
        %2291 = vmatpush2.msra.mxu0 0.0
        %2292 = vmatprep.subr.mxu0 0.0
        %2293 = vmatpush2.msra.mxu0 0.0
        %2294 = vmatprep.subr.mxu0 0.0
        %2295 = vmatpush2.msra.mxu0 0.0
        %2296 = vmatprep.subr.mxu0 0.0
        %2297 = vmatpush2.msra.mxu0 0.0
        %2298 = vmatprep.subr.mxu0 0.0
        %2299 = vmatpush2.msra.mxu0 0.0
        %2300 = vmatprep.subr.mxu0 0.0
        %2301 = vmatpush2.msra.mxu0 0.0
        %2302 = vmatprep.subr.mxu0 0.0
        %2303 = vmatpush2.msra.mxu0 0.0
        %2304 = vmatprep.subr.mxu0 0.0
        %2305 = vmatpush2.msra.mxu0 0.0
        %2306 = vmatprep.subr.mxu0 0.0
        %2307 = vmatpush2.msra.mxu0 0.0
        %2308 = vmatprep.subr.mxu0 0.0
        %2309 = vmatpush2.msra.mxu0 0.0
        %2310 = vmatprep.mubr.f32.mxu0 0.0
        %2311 = vmatmul.mubr.f32.gmra.mxu0 %v2244
        %v2312 = vpop.f32.mrf.mxu0
        %v2313 = vadd.f32 %v2240, %v2312
        %v2314 = vpop.f32.mrf.mxu0
        %2315 = vdwg.mxu0
        %v2316 = vadd.f32 %v2313, %v588
        %v2317 = vmax.f32 %v2316, 0.0
        %v2319 = vcombine.high %v2317, %v2317
        %v2321 = vunpack.c.l.s4 1966171168
        %v2322 = vunpack.c.0.s8 %v2321
        %v2323 = vlaneseq
        %v2324 = vshrl.u32 %v2323, 7
        %v2325 = vsub.s32 %v2322, %v2324
        %v2326 = vrot.slane %v2317, %v2325
        %v2328 = vunpack.c.l.s4 1966171168
        %v2329 = vunpack.c.0.s8 %v2328
        %v2330 = vlaneseq
        %v2331 = vshrl.u32 %v2330, 7
        %v2332 = vsub.s32 %v2329, %v2331
        %v2333 = vrot.slane %v2319, %v2332
        %v2334 = vcombine.high %v2326, %v2326
        %v2335 = vcombine.high %v2333, %v2333
        %v2337 = vunpack.c.l.s4 1966171168
        %v2338 = vunpack.c.0.s8 %v2337
        %v2339 = vlaneseq
        %v2340 = vshrl.u32 %v2339, 7
        %v2341 = vsub.s32 %v2338, %v2340
        %v2342 = vrot.slane %v2326, %v2341
        %v2344 = vunpack.c.l.s4 1966171168
        %v2345 = vunpack.c.0.s8 %v2344
        %v2346 = vlaneseq
        %v2347 = vshrl.u32 %v2346, 7
        %v2348 = vsub.s32 %v2345, %v2347
        %v2349 = vrot.slane %v2333, %v2348
        %v2351 = vunpack.c.l.s4 1966171168
        %v2352 = vunpack.c.0.s8 %v2351
        %v2353 = vlaneseq
        %v2354 = vshrl.u32 %v2353, 7
        %v2355 = vsub.s32 %v2352, %v2354
        %v2356 = vrot.slane %v2334, %v2355
        %v2358 = vunpack.c.l.s4 1966171168
        %v2359 = vunpack.c.0.s8 %v2358
        %v2360 = vlaneseq
        %v2361 = vshrl.u32 %v2360, 7
        %v2362 = vsub.s32 %v2359, %v2361
        %v2363 = vrot.slane %v2335, %v2362
        %v2364 = vcombine.high %v2342, %v2342
        %v2365 = vcombine.high %v2349, %v2349
        %v2366 = vcombine.high %v2356, %v2356
        %v2367 = vcombine.high %v2363, %v2363
        %2376 = vst.msk [vmem:[%s260 + $0x6] sm:$0x1] %vm650, %v2342
        %2377 = vst.msk [vmem:[%s260 + $0x26] sm:$0x1] %vm650, %v2356
        %2378 = vst.msk [vmem:[%s260 + $0x46] sm:$0x1] %vm650, %v2364
        %2379 = vst.msk [vmem:[%s260 + $0x66] sm:$0x1] %vm650, %v2366
        %2380 = vst.msk [vmem:[%s260 + $0x86] sm:$0x1] %vm650, %v2349
        %2381 = vst.msk [vmem:[%s260 + $0xa6] sm:$0x1] %vm650, %v2363
        %2382 = vst.msk [vmem:[%s260 + $0xc6] sm:$0x1] %vm650, %v2365
        %2383 = vst.msk [vmem:[%s260 + $0xe6] sm:$0x1] %vm650, %v2367
        %v2385 = vsel %vm341, %v2167, 0
        %2387 = vmatprep.subr.mxu0 0.0
        %2388 = vmatpush1.msra.mxu0 0.0
        %2389 = vmatprep.subr.mxu0 0.0
        %2390 = vmatpush1.msra.mxu0 0.0
        %2391 = vmatprep.subr.mxu0 0.0
        %2392 = vmatpush1.msra.mxu0 0.0
        %2393 = vmatprep.subr.mxu0 0.0
        %2394 = vmatpush1.msra.mxu0 0.0
        %2395 = vmatprep.subr.mxu0 0.0
        %2396 = vmatpush1.msra.mxu0 0.0
        %2397 = vmatprep.subr.mxu0 0.0
        %2398 = vmatpush1.msra.mxu0 0.0
        %2399 = vmatprep.subr.mxu0 0.0
        %2400 = vmatpush1.msra.mxu0 0.0
        %2401 = vmatprep.subr.mxu0 0.0
        %2402 = vmatpush1.msra.mxu0 0.0
        %2403 = vmatprep.subr.mxu0 0.0
        %2404 = vmatpush1.msra.mxu0 0.0
        %2405 = vmatprep.subr.mxu0 0.0
        %2406 = vmatpush1.msra.mxu0 0.0
        %2407 = vmatprep.subr.mxu0 0.0
        %2408 = vmatpush1.msra.mxu0 0.0
        %2409 = vmatprep.subr.mxu0 0.0
        %2410 = vmatpush1.msra.mxu0 0.0
        %2411 = vmatprep.subr.mxu0 0.0
        %2412 = vmatpush1.msra.mxu0 0.0
        %2413 = vmatprep.subr.mxu0 0.0
        %2414 = vmatpush1.msra.mxu0 0.0
        %2415 = vmatprep.subr.mxu0 0.0
        %2416 = vmatpush1.msra.mxu0 %v270
        %2417 = vmatprep.subr.mxu0 0.0
        %2418 = vmatpush1.msra.mxu0 %v269
        %2419 = vmatprep.subr.mxu0 0.0
        %2420 = vmatpush2.msra.mxu0 0.0
        %2421 = vmatprep.subr.mxu0 0.0
        %2422 = vmatpush2.msra.mxu0 0.0
        %2423 = vmatprep.subr.mxu0 0.0
        %2424 = vmatpush2.msra.mxu0 0.0
        %2425 = vmatprep.subr.mxu0 0.0
        %2426 = vmatpush2.msra.mxu0 0.0
        %2427 = vmatprep.subr.mxu0 0.0
        %2428 = vmatpush2.msra.mxu0 0.0
        %2429 = vmatprep.subr.mxu0 0.0
        %2430 = vmatpush2.msra.mxu0 0.0
        %2431 = vmatprep.subr.mxu0 0.0
        %2432 = vmatpush2.msra.mxu0 0.0
        %2433 = vmatprep.subr.mxu0 0.0
        %2434 = vmatpush2.msra.mxu0 0.0
        %2435 = vmatprep.subr.mxu0 0.0
        %2436 = vmatpush2.msra.mxu0 0.0
        %2437 = vmatprep.subr.mxu0 0.0
        %2438 = vmatpush2.msra.mxu0 0.0
        %2439 = vmatprep.subr.mxu0 0.0
        %2440 = vmatpush2.msra.mxu0 0.0
        %2441 = vmatprep.subr.mxu0 0.0
        %2442 = vmatpush2.msra.mxu0 0.0
        %2443 = vmatprep.subr.mxu0 0.0
        %2444 = vmatpush2.msra.mxu0 0.0
        %2445 = vmatprep.subr.mxu0 0.0
        %2446 = vmatpush2.msra.mxu0 0.0
        %2447 = vmatprep.subr.mxu0 0.0
        %2448 = vmatpush2.msra.mxu0 0.0
        %2449 = vmatprep.subr.mxu0 0.0
        %2450 = vmatpush2.msra.mxu0 0.0
        %2451 = vmatprep.mubr.f32.mxu0 0.0
        %2452 = vmatmul.mubr.f32.gmra.mxu0 %v2385
        %v2453 = vpop.f32.mrf.mxu0
        %v2454 = vadd.f32 0.0, %v2453
        %v2455 = vpop.f32.mrf.mxu0
        %2456 = vdwg.mxu0
        %v2458 = vsel %vm341, %v2162, 0
        %2460 = vmatprep.subr.mxu0 0.0
        %2461 = vmatpush1.msra.mxu0 0.0
        %2462 = vmatprep.subr.mxu0 0.0
        %2463 = vmatpush1.msra.mxu0 0.0
        %2464 = vmatprep.subr.mxu0 0.0
        %2465 = vmatpush1.msra.mxu0 0.0
        %2466 = vmatprep.subr.mxu0 0.0
        %2467 = vmatpush1.msra.mxu0 0.0
        %2468 = vmatprep.subr.mxu0 0.0
        %2469 = vmatpush1.msra.mxu0 0.0
        %2470 = vmatprep.subr.mxu0 0.0
        %2471 = vmatpush1.msra.mxu0 0.0
        %2472 = vmatprep.subr.mxu0 0.0
        %2473 = vmatpush1.msra.mxu0 0.0
        %2474 = vmatprep.subr.mxu0 0.0
        %2475 = vmatpush1.msra.mxu0 0.0
        %2476 = vmatprep.subr.mxu0 0.0
        %2477 = vmatpush1.msra.mxu0 0.0
        %2478 = vmatprep.subr.mxu0 0.0
        %2479 = vmatpush1.msra.mxu0 0.0
        %2480 = vmatprep.subr.mxu0 0.0
        %2481 = vmatpush1.msra.mxu0 0.0
        %2482 = vmatprep.subr.mxu0 0.0
        %2483 = vmatpush1.msra.mxu0 0.0
        %2484 = vmatprep.subr.mxu0 0.0
        %2485 = vmatpush1.msra.mxu0 0.0
        %2486 = vmatprep.subr.mxu0 0.0
        %2487 = vmatpush1.msra.mxu0 0.0
        %2488 = vmatprep.subr.mxu0 0.0
        %2489 = vmatpush1.msra.mxu0 %v268
        %2490 = vmatprep.subr.mxu0 0.0
        %2491 = vmatpush1.msra.mxu0 %v267
        %2492 = vmatprep.subr.mxu0 0.0
        %2493 = vmatpush2.msra.mxu0 0.0
        %2494 = vmatprep.subr.mxu0 0.0
        %2495 = vmatpush2.msra.mxu0 0.0
        %2496 = vmatprep.subr.mxu0 0.0
        %2497 = vmatpush2.msra.mxu0 0.0
        %2498 = vmatprep.subr.mxu0 0.0
        %2499 = vmatpush2.msra.mxu0 0.0
        %2500 = vmatprep.subr.mxu0 0.0
        %2501 = vmatpush2.msra.mxu0 0.0
        %2502 = vmatprep.subr.mxu0 0.0
        %2503 = vmatpush2.msra.mxu0 0.0
        %2504 = vmatprep.subr.mxu0 0.0
        %2505 = vmatpush2.msra.mxu0 0.0
        %2506 = vmatprep.subr.mxu0 0.0
        %2507 = vmatpush2.msra.mxu0 0.0
        %2508 = vmatprep.subr.mxu0 0.0
        %2509 = vmatpush2.msra.mxu0 0.0
        %2510 = vmatprep.subr.mxu0 0.0
        %2511 = vmatpush2.msra.mxu0 0.0
        %2512 = vmatprep.subr.mxu0 0.0
        %2513 = vmatpush2.msra.mxu0 0.0
        %2514 = vmatprep.subr.mxu0 0.0
        %2515 = vmatpush2.msra.mxu0 0.0
        %2516 = vmatprep.subr.mxu0 0.0
        %2517 = vmatpush2.msra.mxu0 0.0
        %2518 = vmatprep.subr.mxu0 0.0
        %2519 = vmatpush2.msra.mxu0 0.0
        %2520 = vmatprep.subr.mxu0 0.0
        %2521 = vmatpush2.msra.mxu0 0.0
        %2522 = vmatprep.subr.mxu0 0.0
        %2523 = vmatpush2.msra.mxu0 0.0
        %2524 = vmatprep.mubr.f32.mxu0 0.0
        %2525 = vmatmul.mubr.f32.gmra.mxu0 %v2458
        %v2526 = vpop.f32.mrf.mxu0
        %v2527 = vadd.f32 %v2454, %v2526
        %v2528 = vpop.f32.mrf.mxu0
        %2529 = vdwg.mxu0
        %v2530 = vadd.f32 %v2527, %v588
        %v2531 = vmax.f32 %v2530, 0.0
        %v2533 = vcombine.high %v2531, %v2531
        %v2535 = vunpack.c.l.s4 1966171168
        %v2536 = vunpack.c.0.s8 %v2535
        %v2537 = vlaneseq
        %v2538 = vshrl.u32 %v2537, 7
        %v2539 = vsub.s32 %v2536, %v2538
        %v2540 = vrot.slane %v2531, %v2539
        %v2542 = vunpack.c.l.s4 1966171168
        %v2543 = vunpack.c.0.s8 %v2542
        %v2544 = vlaneseq
        %v2545 = vshrl.u32 %v2544, 7
        %v2546 = vsub.s32 %v2543, %v2545
        %v2547 = vrot.slane %v2533, %v2546
        %v2548 = vcombine.high %v2540, %v2540
        %v2549 = vcombine.high %v2547, %v2547
        %v2551 = vunpack.c.l.s4 1966171168
        %v2552 = vunpack.c.0.s8 %v2551
        %v2553 = vlaneseq
        %v2554 = vshrl.u32 %v2553, 7
        %v2555 = vsub.s32 %v2552, %v2554
        %v2556 = vrot.slane %v2540, %v2555
        %v2558 = vunpack.c.l.s4 1966171168
        %v2559 = vunpack.c.0.s8 %v2558
        %v2560 = vlaneseq
        %v2561 = vshrl.u32 %v2560, 7
        %v2562 = vsub.s32 %v2559, %v2561
        %v2563 = vrot.slane %v2547, %v2562
        %v2565 = vunpack.c.l.s4 1966171168
        %v2566 = vunpack.c.0.s8 %v2565
        %v2567 = vlaneseq
        %v2568 = vshrl.u32 %v2567, 7
        %v2569 = vsub.s32 %v2566, %v2568
        %v2570 = vrot.slane %v2548, %v2569
        %v2572 = vunpack.c.l.s4 1966171168
        %v2573 = vunpack.c.0.s8 %v2572
        %v2574 = vlaneseq
        %v2575 = vshrl.u32 %v2574, 7
        %v2576 = vsub.s32 %v2573, %v2575
        %v2577 = vrot.slane %v2549, %v2576
        %v2578 = vcombine.high %v2556, %v2556
        %v2579 = vcombine.high %v2563, %v2563
        %v2580 = vcombine.high %v2570, %v2570
        %v2581 = vcombine.high %v2577, %v2577
        %2590 = vst.msk [vmem:[%s260 + $0x7] sm:$0x1] %vm650, %v2556
        %2591 = vst.msk [vmem:[%s260 + $0x27] sm:$0x1] %vm650, %v2570
        %2592 = vst.msk [vmem:[%s260 + $0x47] sm:$0x1] %vm650, %v2578
        %2593 = vst.msk [vmem:[%s260 + $0x67] sm:$0x1] %vm650, %v2580
        %2594 = vst.msk [vmem:[%s260 + $0x87] sm:$0x1] %vm650, %v2563
        %2595 = vst.msk [vmem:[%s260 + $0xa7] sm:$0x1] %vm650, %v2577
        %2596 = vst.msk [vmem:[%s260 + $0xc7] sm:$0x1] %vm650, %v2579
        %2597 = vst.msk [vmem:[%s260 + $0xe7] sm:$0x1] %vm650, %v2581
        %v2598 = vld [vmem:[%s234 + $0x4] sm:$0x1]
        %v2599 = vld [vmem:[%s234 + $0x14] sm:$0x1]
        %v2600 = vld [vmem:[%s234 + $0x24] sm:$0x1]
        %v2601 = vld [vmem:[%s234 + $0x34] sm:$0x1]
        %v2602 = vld [vmem:[%s234 + $0x44] sm:$0x1]
        %v2603 = vld [vmem:[%s234 + $0x54] sm:$0x1]
        %v2604 = vld [vmem:[%s234 + $0x64] sm:$0x1]
        %v2605 = vld [vmem:[%s234 + $0x74] sm:$0x1]
        %v2606 = vld [vmem:[%s234 + $0x84] sm:$0x1]
        %v2607 = vld [vmem:[%s234 + $0x94] sm:$0x1]
        %v2608 = vld [vmem:[%s234 + $0xa4] sm:$0x1]
        %v2609 = vld [vmem:[%s234 + $0xb4] sm:$0x1]
        %v2610 = vld [vmem:[%s234 + $0xc4] sm:$0x1]
        %v2611 = vld [vmem:[%s234 + $0xd4] sm:$0x1]
        %v2612 = vld [vmem:[%s234 + $0xe4] sm:$0x1]
        %v2613 = vld [vmem:[%s234 + $0xf4] sm:$0x1]
        %v2630 = vrot.slane %v2599, 7
        %v2631 = vsel %vm305, %v2630, %v2598
        %v2632 = vrot.slane %v2600, 6
        %v2633 = vsel %vm308, %v2632, %v2631
        %v2634 = vrot.slane %v2601, 5
        %v2635 = vsel %vm311, %v2634, %v2633
        %v2636 = vrot.slane %v2602, 4
        %v2637 = vsel %vm314, %v2636, %v2635
        %v2638 = vrot.slane %v2603, 3
        %v2639 = vsel %vm317, %v2638, %v2637
        %v2640 = vrot.slane %v2604, 2
        %v2641 = vsel %vm320, %v2640, %v2639
        %v2642 = vrot.slane %v2605, 1
        %v2643 = vsel %vm323, %v2642, %v2641
        %v2644 = vrot.slane %v2607, 7
        %v2645 = vsel %vm305, %v2644, %v2606
        %v2646 = vrot.slane %v2608, 6
        %v2647 = vsel %vm308, %v2646, %v2645
        %v2648 = vrot.slane %v2609, 5
        %v2649 = vsel %vm311, %v2648, %v2647
        %v2650 = vrot.slane %v2610, 4
        %v2651 = vsel %vm314, %v2650, %v2649
        %v2652 = vrot.slane %v2611, 3
        %v2653 = vsel %vm317, %v2652, %v2651
        %v2654 = vrot.slane %v2612, 2
        %v2655 = vsel %vm320, %v2654, %v2653
        %v2656 = vrot.slane %v2613, 1
        %v2657 = vsel %vm323, %v2656, %v2655
        %2660 = vmatprep.subr.mxu0 0.0
        %2661 = vmatpush1.msra.mxu0 0.0
        %2662 = vmatprep.subr.mxu0 0.0
        %2663 = vmatpush1.msra.mxu0 0.0
        %2664 = vmatprep.subr.mxu0 0.0
        %2665 = vmatpush1.msra.mxu0 0.0
        %2666 = vmatprep.subr.mxu0 0.0
        %2667 = vmatpush1.msra.mxu0 0.0
        %2668 = vmatprep.subr.mxu0 0.0
        %2669 = vmatpush1.msra.mxu0 0.0
        %2670 = vmatprep.subr.mxu0 0.0
        %2671 = vmatpush1.msra.mxu0 0.0
        %2672 = vmatprep.subr.mxu0 0.0
        %2673 = vmatpush1.msra.mxu0 0.0
        %2674 = vmatprep.subr.mxu0 0.0
        %2675 = vmatpush1.msra.mxu0 0.0
        %2676 = vmatprep.subr.mxu0 0.0
        %2677 = vmatpush1.msra.mxu0 0.0
        %2678 = vmatprep.subr.mxu0 0.0
        %2679 = vmatpush1.msra.mxu0 0.0
        %2680 = vmatprep.subr.mxu0 0.0
        %2681 = vmatpush1.msra.mxu0 0.0
        %2682 = vmatprep.subr.mxu0 0.0
        %2683 = vmatpush1.msra.mxu0 0.0
        %2684 = vmatprep.subr.mxu0 0.0
        %2685 = vmatpush1.msra.mxu0 0.0
        %2686 = vmatprep.subr.mxu0 0.0
        %2687 = vmatpush1.msra.mxu0 0.0
        %2688 = vmatprep.subr.mxu0 0.0
        %2689 = vmatpush1.msra.mxu0 %v2657
        %2690 = vmatprep.subr.mxu0 0.0
        %2691 = vmatpush1.msra.mxu0 %v2643
        %2692 = vmatprep.subr.mxu0 0.0
        %2693 = vmatpush2.msra.mxu0 0.0
        %2694 = vmatprep.subr.mxu0 0.0
        %2695 = vmatpush2.msra.mxu0 0.0
        %2696 = vmatprep.subr.mxu0 0.0
        %2697 = vmatpush2.msra.mxu0 0.0
        %2698 = vmatprep.subr.mxu0 0.0
        %2699 = vmatpush2.msra.mxu0 0.0
        %2700 = vmatprep.subr.mxu0 0.0
        %2701 = vmatpush2.msra.mxu0 0.0
        %2702 = vmatprep.subr.mxu0 0.0
        %2703 = vmatpush2.msra.mxu0 0.0
        %2704 = vmatprep.subr.mxu0 0.0
        %2705 = vmatpush2.msra.mxu0 0.0
        %2706 = vmatprep.subr.mxu0 0.0
        %2707 = vmatpush2.msra.mxu0 0.0
        %2708 = vmatprep.subr.mxu0 0.0
        %2709 = vmatpush2.msra.mxu0 0.0
        %2710 = vmatprep.subr.mxu0 0.0
        %2711 = vmatpush2.msra.mxu0 0.0
        %2712 = vmatprep.subr.mxu0 0.0
        %2713 = vmatpush2.msra.mxu0 0.0
        %2714 = vmatprep.subr.mxu0 0.0
        %2715 = vmatpush2.msra.mxu0 0.0
        %2716 = vmatprep.subr.mxu0 0.0
        %2717 = vmatpush2.msra.mxu0 0.0
        %2718 = vmatprep.subr.mxu0 0.0
        %2719 = vmatpush2.msra.mxu0 0.0
        %2720 = vmatprep.subr.mxu0 0.0
        %2721 = vmatpush2.msra.mxu0 0.0
        %2722 = vmatprep.subr.mxu0 0.0
        %2723 = vmatpush2.msra.mxu0 0.0
        %2724 = vmatprep.mubr.f32.mxu0 0.0
        %2725 = vmatmul.mubr.f32.gmra.mxu0 %v343
        %v2726 = vpop.f32.mrf.mxu0
        %v2727 = vadd.f32 0.0, %v2726
        %v2728 = vpop.f32.mrf.mxu0
        %2729 = vmatprep.mubr.f32.mxu0 0.0
        %2730 = vmatmul.mubr.f32.gmra.mxu0 %v346
        %v2731 = vpop.f32.mrf.mxu0
        %v2732 = vadd.f32 0.0, %v2731
        %v2733 = vpop.f32.mrf.mxu0
        %2734 = vmatprep.mubr.f32.mxu0 0.0
        %2735 = vmatmul.mubr.f32.gmra.mxu0 %v349
        %v2736 = vpop.f32.mrf.mxu0
        %v2737 = vadd.f32 0.0, %v2736
        %v2738 = vpop.f32.mrf.mxu0
        %2739 = vmatprep.mubr.f32.mxu0 0.0
        %2740 = vmatmul.mubr.f32.gmra.mxu0 %v352
        %v2741 = vpop.f32.mrf.mxu0
        %v2742 = vadd.f32 0.0, %v2741
        %v2743 = vpop.f32.mrf.mxu0
        %2744 = vdwg.mxu0
        %v2746 = vsel %vm341, %v2732, 0
        %2748 = vmatprep.subr.mxu0 0.0
        %2749 = vmatpush1.msra.mxu0 0.0
        %2750 = vmatprep.subr.mxu0 0.0
        %2751 = vmatpush1.msra.mxu0 0.0
        %2752 = vmatprep.subr.mxu0 0.0
        %2753 = vmatpush1.msra.mxu0 0.0
        %2754 = vmatprep.subr.mxu0 0.0
        %2755 = vmatpush1.msra.mxu0 0.0
        %2756 = vmatprep.subr.mxu0 0.0
        %2757 = vmatpush1.msra.mxu0 0.0
        %2758 = vmatprep.subr.mxu0 0.0
        %2759 = vmatpush1.msra.mxu0 0.0
        %2760 = vmatprep.subr.mxu0 0.0
        %2761 = vmatpush1.msra.mxu0 0.0
        %2762 = vmatprep.subr.mxu0 0.0
        %2763 = vmatpush1.msra.mxu0 0.0
        %2764 = vmatprep.subr.mxu0 0.0
        %2765 = vmatpush1.msra.mxu0 0.0
        %2766 = vmatprep.subr.mxu0 0.0
        %2767 = vmatpush1.msra.mxu0 0.0
        %2768 = vmatprep.subr.mxu0 0.0
        %2769 = vmatpush1.msra.mxu0 0.0
        %2770 = vmatprep.subr.mxu0 0.0
        %2771 = vmatpush1.msra.mxu0 0.0
        %2772 = vmatprep.subr.mxu0 0.0
        %2773 = vmatpush1.msra.mxu0 0.0
        %2774 = vmatprep.subr.mxu0 0.0
        %2775 = vmatpush1.msra.mxu0 0.0
        %2776 = vmatprep.subr.mxu0 0.0
        %2777 = vmatpush1.msra.mxu0 %v270
        %2778 = vmatprep.subr.mxu0 0.0
        %2779 = vmatpush1.msra.mxu0 %v269
        %2780 = vmatprep.subr.mxu0 0.0
        %2781 = vmatpush2.msra.mxu0 0.0
        %2782 = vmatprep.subr.mxu0 0.0
        %2783 = vmatpush2.msra.mxu0 0.0
        %2784 = vmatprep.subr.mxu0 0.0
        %2785 = vmatpush2.msra.mxu0 0.0
        %2786 = vmatprep.subr.mxu0 0.0
        %2787 = vmatpush2.msra.mxu0 0.0
        %2788 = vmatprep.subr.mxu0 0.0
        %2789 = vmatpush2.msra.mxu0 0.0
        %2790 = vmatprep.subr.mxu0 0.0
        %2791 = vmatpush2.msra.mxu0 0.0
        %2792 = vmatprep.subr.mxu0 0.0
        %2793 = vmatpush2.msra.mxu0 0.0
        %2794 = vmatprep.subr.mxu0 0.0
        %2795 = vmatpush2.msra.mxu0 0.0
        %2796 = vmatprep.subr.mxu0 0.0
        %2797 = vmatpush2.msra.mxu0 0.0
        %2798 = vmatprep.subr.mxu0 0.0
        %2799 = vmatpush2.msra.mxu0 0.0
        %2800 = vmatprep.subr.mxu0 0.0
        %2801 = vmatpush2.msra.mxu0 0.0
        %2802 = vmatprep.subr.mxu0 0.0
        %2803 = vmatpush2.msra.mxu0 0.0
        %2804 = vmatprep.subr.mxu0 0.0
        %2805 = vmatpush2.msra.mxu0 0.0
        %2806 = vmatprep.subr.mxu0 0.0
        %2807 = vmatpush2.msra.mxu0 0.0
        %2808 = vmatprep.subr.mxu0 0.0
        %2809 = vmatpush2.msra.mxu0 0.0
        %2810 = vmatprep.subr.mxu0 0.0
        %2811 = vmatpush2.msra.mxu0 0.0
        %2812 = vmatprep.mubr.f32.mxu0 0.0
        %2813 = vmatmul.mubr.f32.gmra.mxu0 %v2746
        %v2814 = vpop.f32.mrf.mxu0
        %v2815 = vadd.f32 0.0, %v2814
        %v2816 = vpop.f32.mrf.mxu0
        %2817 = vdwg.mxu0
        %v2819 = vsel %vm341, %v2727, 0
        %2821 = vmatprep.subr.mxu0 0.0
        %2822 = vmatpush1.msra.mxu0 0.0
        %2823 = vmatprep.subr.mxu0 0.0
        %2824 = vmatpush1.msra.mxu0 0.0
        %2825 = vmatprep.subr.mxu0 0.0
        %2826 = vmatpush1.msra.mxu0 0.0
        %2827 = vmatprep.subr.mxu0 0.0
        %2828 = vmatpush1.msra.mxu0 0.0
        %2829 = vmatprep.subr.mxu0 0.0
        %2830 = vmatpush1.msra.mxu0 0.0
        %2831 = vmatprep.subr.mxu0 0.0
        %2832 = vmatpush1.msra.mxu0 0.0
        %2833 = vmatprep.subr.mxu0 0.0
        %2834 = vmatpush1.msra.mxu0 0.0
        %2835 = vmatprep.subr.mxu0 0.0
        %2836 = vmatpush1.msra.mxu0 0.0
        %2837 = vmatprep.subr.mxu0 0.0
        %2838 = vmatpush1.msra.mxu0 0.0
        %2839 = vmatprep.subr.mxu0 0.0
        %2840 = vmatpush1.msra.mxu0 0.0
        %2841 = vmatprep.subr.mxu0 0.0
        %2842 = vmatpush1.msra.mxu0 0.0
        %2843 = vmatprep.subr.mxu0 0.0
        %2844 = vmatpush1.msra.mxu0 0.0
        %2845 = vmatprep.subr.mxu0 0.0
        %2846 = vmatpush1.msra.mxu0 0.0
        %2847 = vmatprep.subr.mxu0 0.0
        %2848 = vmatpush1.msra.mxu0 0.0
        %2849 = vmatprep.subr.mxu0 0.0
        %2850 = vmatpush1.msra.mxu0 %v268
        %2851 = vmatprep.subr.mxu0 0.0
        %2852 = vmatpush1.msra.mxu0 %v267
        %2853 = vmatprep.subr.mxu0 0.0
        %2854 = vmatpush2.msra.mxu0 0.0
        %2855 = vmatprep.subr.mxu0 0.0
        %2856 = vmatpush2.msra.mxu0 0.0
        %2857 = vmatprep.subr.mxu0 0.0
        %2858 = vmatpush2.msra.mxu0 0.0
        %2859 = vmatprep.subr.mxu0 0.0
        %2860 = vmatpush2.msra.mxu0 0.0
        %2861 = vmatprep.subr.mxu0 0.0
        %2862 = vmatpush2.msra.mxu0 0.0
        %2863 = vmatprep.subr.mxu0 0.0
        %2864 = vmatpush2.msra.mxu0 0.0
        %2865 = vmatprep.subr.mxu0 0.0
        %2866 = vmatpush2.msra.mxu0 0.0
        %2867 = vmatprep.subr.mxu0 0.0
        %2868 = vmatpush2.msra.mxu0 0.0
        %2869 = vmatprep.subr.mxu0 0.0
        %2870 = vmatpush2.msra.mxu0 0.0
        %2871 = vmatprep.subr.mxu0 0.0
        %2872 = vmatpush2.msra.mxu0 0.0
        %2873 = vmatprep.subr.mxu0 0.0
        %2874 = vmatpush2.msra.mxu0 0.0
        %2875 = vmatprep.subr.mxu0 0.0
        %2876 = vmatpush2.msra.mxu0 0.0
        %2877 = vmatprep.subr.mxu0 0.0
        %2878 = vmatpush2.msra.mxu0 0.0
        %2879 = vmatprep.subr.mxu0 0.0
        %2880 = vmatpush2.msra.mxu0 0.0
        %2881 = vmatprep.subr.mxu0 0.0
        %2882 = vmatpush2.msra.mxu0 0.0
        %2883 = vmatprep.subr.mxu0 0.0
        %2884 = vmatpush2.msra.mxu0 0.0
        %2885 = vmatprep.mubr.f32.mxu0 0.0
        %2886 = vmatmul.mubr.f32.gmra.mxu0 %v2819
        %v2887 = vpop.f32.mrf.mxu0
        %v2888 = vadd.f32 %v2815, %v2887
        %v2889 = vpop.f32.mrf.mxu0
        %2890 = vdwg.mxu0
        %v2891 = vadd.f32 %v2888, %v588
        %v2892 = vmax.f32 %v2891, 0.0
        %v2894 = vcombine.high %v2892, %v2892
        %v2896 = vunpack.c.l.s4 1966171168
        %v2897 = vunpack.c.0.s8 %v2896
        %v2898 = vlaneseq
        %v2899 = vshrl.u32 %v2898, 7
        %v2900 = vsub.s32 %v2897, %v2899
        %v2901 = vrot.slane %v2892, %v2900
        %v2903 = vunpack.c.l.s4 1966171168
        %v2904 = vunpack.c.0.s8 %v2903
        %v2905 = vlaneseq
        %v2906 = vshrl.u32 %v2905, 7
        %v2907 = vsub.s32 %v2904, %v2906
        %v2908 = vrot.slane %v2894, %v2907
        %v2909 = vcombine.high %v2901, %v2901
        %v2910 = vcombine.high %v2908, %v2908
        %v2912 = vunpack.c.l.s4 1966171168
        %v2913 = vunpack.c.0.s8 %v2912
        %v2914 = vlaneseq
        %v2915 = vshrl.u32 %v2914, 7
        %v2916 = vsub.s32 %v2913, %v2915
        %v2917 = vrot.slane %v2901, %v2916
        %v2919 = vunpack.c.l.s4 1966171168
        %v2920 = vunpack.c.0.s8 %v2919
        %v2921 = vlaneseq
        %v2922 = vshrl.u32 %v2921, 7
        %v2923 = vsub.s32 %v2920, %v2922
        %v2924 = vrot.slane %v2908, %v2923
        %v2926 = vunpack.c.l.s4 1966171168
        %v2927 = vunpack.c.0.s8 %v2926
        %v2928 = vlaneseq
        %v2929 = vshrl.u32 %v2928, 7
        %v2930 = vsub.s32 %v2927, %v2929
        %v2931 = vrot.slane %v2909, %v2930
        %v2933 = vunpack.c.l.s4 1966171168
        %v2934 = vunpack.c.0.s8 %v2933
        %v2935 = vlaneseq
        %v2936 = vshrl.u32 %v2935, 7
        %v2937 = vsub.s32 %v2934, %v2936
        %v2938 = vrot.slane %v2910, %v2937
        %v2939 = vcombine.high %v2917, %v2917
        %v2940 = vcombine.high %v2924, %v2924
        %v2941 = vcombine.high %v2931, %v2931
        %v2942 = vcombine.high %v2938, %v2938
        %2951 = vst.msk [vmem:[%s260 + $0x8] sm:$0x1] %vm650, %v2917
        %2952 = vst.msk [vmem:[%s260 + $0x28] sm:$0x1] %vm650, %v2931
        %2953 = vst.msk [vmem:[%s260 + $0x48] sm:$0x1] %vm650, %v2939
        %2954 = vst.msk [vmem:[%s260 + $0x68] sm:$0x1] %vm650, %v2941
        %2955 = vst.msk [vmem:[%s260 + $0x88] sm:$0x1] %vm650, %v2924
        %2956 = vst.msk [vmem:[%s260 + $0xa8] sm:$0x1] %vm650, %v2938
        %2957 = vst.msk [vmem:[%s260 + $0xc8] sm:$0x1] %vm650, %v2940
        %2958 = vst.msk [vmem:[%s260 + $0xe8] sm:$0x1] %vm650, %v2942
        %v2960 = vsel %vm341, %v2742, 0
        %2962 = vmatprep.subr.mxu0 0.0
        %2963 = vmatpush1.msra.mxu0 0.0
        %2964 = vmatprep.subr.mxu0 0.0
        %2965 = vmatpush1.msra.mxu0 0.0
        %2966 = vmatprep.subr.mxu0 0.0
        %2967 = vmatpush1.msra.mxu0 0.0
        %2968 = vmatprep.subr.mxu0 0.0
        %2969 = vmatpush1.msra.mxu0 0.0
        %2970 = vmatprep.subr.mxu0 0.0
        %2971 = vmatpush1.msra.mxu0 0.0
        %2972 = vmatprep.subr.mxu0 0.0
        %2973 = vmatpush1.msra.mxu0 0.0
        %2974 = vmatprep.subr.mxu0 0.0
        %2975 = vmatpush1.msra.mxu0 0.0
        %2976 = vmatprep.subr.mxu0 0.0
        %2977 = vmatpush1.msra.mxu0 0.0
        %2978 = vmatprep.subr.mxu0 0.0
        %2979 = vmatpush1.msra.mxu0 0.0
        %2980 = vmatprep.subr.mxu0 0.0
        %2981 = vmatpush1.msra.mxu0 0.0
        %2982 = vmatprep.subr.mxu0 0.0
        %2983 = vmatpush1.msra.mxu0 0.0
        %2984 = vmatprep.subr.mxu0 0.0
        %2985 = vmatpush1.msra.mxu0 0.0
        %2986 = vmatprep.subr.mxu0 0.0
        %2987 = vmatpush1.msra.mxu0 0.0
        %2988 = vmatprep.subr.mxu0 0.0
        %2989 = vmatpush1.msra.mxu0 0.0
        %2990 = vmatprep.subr.mxu0 0.0
        %2991 = vmatpush1.msra.mxu0 %v270
        %2992 = vmatprep.subr.mxu0 0.0
        %2993 = vmatpush1.msra.mxu0 %v269
        %2994 = vmatprep.subr.mxu0 0.0
        %2995 = vmatpush2.msra.mxu0 0.0
        %2996 = vmatprep.subr.mxu0 0.0
        %2997 = vmatpush2.msra.mxu0 0.0
        %2998 = vmatprep.subr.mxu0 0.0
        %2999 = vmatpush2.msra.mxu0 0.0
        %3000 = vmatprep.subr.mxu0 0.0
        %3001 = vmatpush2.msra.mxu0 0.0
        %3002 = vmatprep.subr.mxu0 0.0
        %3003 = vmatpush2.msra.mxu0 0.0
        %3004 = vmatprep.subr.mxu0 0.0
        %3005 = vmatpush2.msra.mxu0 0.0
        %3006 = vmatprep.subr.mxu0 0.0
        %3007 = vmatpush2.msra.mxu0 0.0
        %3008 = vmatprep.subr.mxu0 0.0
        %3009 = vmatpush2.msra.mxu0 0.0
        %3010 = vmatprep.subr.mxu0 0.0
        %3011 = vmatpush2.msra.mxu0 0.0
        %3012 = vmatprep.subr.mxu0 0.0
        %3013 = vmatpush2.msra.mxu0 0.0
        %3014 = vmatprep.subr.mxu0 0.0
        %3015 = vmatpush2.msra.mxu0 0.0
        %3016 = vmatprep.subr.mxu0 0.0
        %3017 = vmatpush2.msra.mxu0 0.0
        %3018 = vmatprep.subr.mxu0 0.0
        %3019 = vmatpush2.msra.mxu0 0.0
        %3020 = vmatprep.subr.mxu0 0.0
        %3021 = vmatpush2.msra.mxu0 0.0
        %3022 = vmatprep.subr.mxu0 0.0
        %3023 = vmatpush2.msra.mxu0 0.0
        %3024 = vmatprep.subr.mxu0 0.0
        %3025 = vmatpush2.msra.mxu0 0.0
        %3026 = vmatprep.mubr.f32.mxu0 0.0
        %3027 = vmatmul.mubr.f32.gmra.mxu0 %v2960
        %v3028 = vpop.f32.mrf.mxu0
        %v3029 = vadd.f32 0.0, %v3028
        %v3030 = vpop.f32.mrf.mxu0
        %3031 = vdwg.mxu0
        %v3033 = vsel %vm341, %v2737, 0
        %3035 = vmatprep.subr.mxu0 0.0
        %3036 = vmatpush1.msra.mxu0 0.0
        %3037 = vmatprep.subr.mxu0 0.0
        %3038 = vmatpush1.msra.mxu0 0.0
        %3039 = vmatprep.subr.mxu0 0.0
        %3040 = vmatpush1.msra.mxu0 0.0
        %3041 = vmatprep.subr.mxu0 0.0
        %3042 = vmatpush1.msra.mxu0 0.0
        %3043 = vmatprep.subr.mxu0 0.0
        %3044 = vmatpush1.msra.mxu0 0.0
        %3045 = vmatprep.subr.mxu0 0.0
        %3046 = vmatpush1.msra.mxu0 0.0
        %3047 = vmatprep.subr.mxu0 0.0
        %3048 = vmatpush1.msra.mxu0 0.0
        %3049 = vmatprep.subr.mxu0 0.0
        %3050 = vmatpush1.msra.mxu0 0.0
        %3051 = vmatprep.subr.mxu0 0.0
        %3052 = vmatpush1.msra.mxu0 0.0
        %3053 = vmatprep.subr.mxu0 0.0
        %3054 = vmatpush1.msra.mxu0 0.0
        %3055 = vmatprep.subr.mxu0 0.0
        %3056 = vmatpush1.msra.mxu0 0.0
        %3057 = vmatprep.subr.mxu0 0.0
        %3058 = vmatpush1.msra.mxu0 0.0
        %3059 = vmatprep.subr.mxu0 0.0
        %3060 = vmatpush1.msra.mxu0 0.0
        %3061 = vmatprep.subr.mxu0 0.0
        %3062 = vmatpush1.msra.mxu0 0.0
        %3063 = vmatprep.subr.mxu0 0.0
        %3064 = vmatpush1.msra.mxu0 %v268
        %3065 = vmatprep.subr.mxu0 0.0
        %3066 = vmatpush1.msra.mxu0 %v267
        %3067 = vmatprep.subr.mxu0 0.0
        %3068 = vmatpush2.msra.mxu0 0.0
        %3069 = vmatprep.subr.mxu0 0.0
        %3070 = vmatpush2.msra.mxu0 0.0
        %3071 = vmatprep.subr.mxu0 0.0
        %3072 = vmatpush2.msra.mxu0 0.0
        %3073 = vmatprep.subr.mxu0 0.0
        %3074 = vmatpush2.msra.mxu0 0.0
        %3075 = vmatprep.subr.mxu0 0.0
        %3076 = vmatpush2.msra.mxu0 0.0
        %3077 = vmatprep.subr.mxu0 0.0
        %3078 = vmatpush2.msra.mxu0 0.0
        %3079 = vmatprep.subr.mxu0 0.0
        %3080 = vmatpush2.msra.mxu0 0.0
        %3081 = vmatprep.subr.mxu0 0.0
        %3082 = vmatpush2.msra.mxu0 0.0
        %3083 = vmatprep.subr.mxu0 0.0
        %3084 = vmatpush2.msra.mxu0 0.0
        %3085 = vmatprep.subr.mxu0 0.0
        %3086 = vmatpush2.msra.mxu0 0.0
        %3087 = vmatprep.subr.mxu0 0.0
        %3088 = vmatpush2.msra.mxu0 0.0
        %3089 = vmatprep.subr.mxu0 0.0
        %3090 = vmatpush2.msra.mxu0 0.0
        %3091 = vmatprep.subr.mxu0 0.0
        %3092 = vmatpush2.msra.mxu0 0.0
        %3093 = vmatprep.subr.mxu0 0.0
        %3094 = vmatpush2.msra.mxu0 0.0
        %3095 = vmatprep.subr.mxu0 0.0
        %3096 = vmatpush2.msra.mxu0 0.0
        %3097 = vmatprep.subr.mxu0 0.0
        %3098 = vmatpush2.msra.mxu0 0.0
        %3099 = vmatprep.mubr.f32.mxu0 0.0
        %3100 = vmatmul.mubr.f32.gmra.mxu0 %v3033
        %v3101 = vpop.f32.mrf.mxu0
        %v3102 = vadd.f32 %v3029, %v3101
        %v3103 = vpop.f32.mrf.mxu0
        %3104 = vdwg.mxu0
        %v3105 = vadd.f32 %v3102, %v588
        %v3106 = vmax.f32 %v3105, 0.0
        %v3108 = vcombine.high %v3106, %v3106
        %v3110 = vunpack.c.l.s4 1966171168
        %v3111 = vunpack.c.0.s8 %v3110
        %v3112 = vlaneseq
        %v3113 = vshrl.u32 %v3112, 7
        %v3114 = vsub.s32 %v3111, %v3113
        %v3115 = vrot.slane %v3106, %v3114
        %v3117 = vunpack.c.l.s4 1966171168
        %v3118 = vunpack.c.0.s8 %v3117
        %v3119 = vlaneseq
        %v3120 = vshrl.u32 %v3119, 7
        %v3121 = vsub.s32 %v3118, %v3120
        %v3122 = vrot.slane %v3108, %v3121
        %v3123 = vcombine.high %v3115, %v3115
        %v3124 = vcombine.high %v3122, %v3122
        %v3126 = vunpack.c.l.s4 1966171168
        %v3127 = vunpack.c.0.s8 %v3126
        %v3128 = vlaneseq
        %v3129 = vshrl.u32 %v3128, 7
        %v3130 = vsub.s32 %v3127, %v3129
        %v3131 = vrot.slane %v3115, %v3130
        %v3133 = vunpack.c.l.s4 1966171168
        %v3134 = vunpack.c.0.s8 %v3133
        %v3135 = vlaneseq
        %v3136 = vshrl.u32 %v3135, 7
        %v3137 = vsub.s32 %v3134, %v3136
        %v3138 = vrot.slane %v3122, %v3137
        %v3140 = vunpack.c.l.s4 1966171168
        %v3141 = vunpack.c.0.s8 %v3140
        %v3142 = vlaneseq
        %v3143 = vshrl.u32 %v3142, 7
        %v3144 = vsub.s32 %v3141, %v3143
        %v3145 = vrot.slane %v3123, %v3144
        %v3147 = vunpack.c.l.s4 1966171168
        %v3148 = vunpack.c.0.s8 %v3147
        %v3149 = vlaneseq
        %v3150 = vshrl.u32 %v3149, 7
        %v3151 = vsub.s32 %v3148, %v3150
        %v3152 = vrot.slane %v3124, %v3151
        %v3153 = vcombine.high %v3131, %v3131
        %v3154 = vcombine.high %v3138, %v3138
        %v3155 = vcombine.high %v3145, %v3145
        %v3156 = vcombine.high %v3152, %v3152
        %3165 = vst.msk [vmem:[%s260 + $0x9] sm:$0x1] %vm650, %v3131
        %3166 = vst.msk [vmem:[%s260 + $0x29] sm:$0x1] %vm650, %v3145
        %3167 = vst.msk [vmem:[%s260 + $0x49] sm:$0x1] %vm650, %v3153
        %3168 = vst.msk [vmem:[%s260 + $0x69] sm:$0x1] %vm650, %v3155
        %3169 = vst.msk [vmem:[%s260 + $0x89] sm:$0x1] %vm650, %v3138
        %3170 = vst.msk [vmem:[%s260 + $0xa9] sm:$0x1] %vm650, %v3152
        %3171 = vst.msk [vmem:[%s260 + $0xc9] sm:$0x1] %vm650, %v3154
        %3172 = vst.msk [vmem:[%s260 + $0xe9] sm:$0x1] %vm650, %v3156
        %v3173 = vld [vmem:[%s234 + $0x5] sm:$0x1]
        %v3174 = vld [vmem:[%s234 + $0x15] sm:$0x1]
        %v3175 = vld [vmem:[%s234 + $0x25] sm:$0x1]
        %v3176 = vld [vmem:[%s234 + $0x35] sm:$0x1]
        %v3177 = vld [vmem:[%s234 + $0x45] sm:$0x1]
        %v3178 = vld [vmem:[%s234 + $0x55] sm:$0x1]
        %v3179 = vld [vmem:[%s234 + $0x65] sm:$0x1]
        %v3180 = vld [vmem:[%s234 + $0x75] sm:$0x1]
        %v3181 = vld [vmem:[%s234 + $0x85] sm:$0x1]
        %v3182 = vld [vmem:[%s234 + $0x95] sm:$0x1]
        %v3183 = vld [vmem:[%s234 + $0xa5] sm:$0x1]
        %v3184 = vld [vmem:[%s234 + $0xb5] sm:$0x1]
        %v3185 = vld [vmem:[%s234 + $0xc5] sm:$0x1]
        %v3186 = vld [vmem:[%s234 + $0xd5] sm:$0x1]
        %v3187 = vld [vmem:[%s234 + $0xe5] sm:$0x1]
        %v3188 = vld [vmem:[%s234 + $0xf5] sm:$0x1]
        %v3205 = vrot.slane %v3174, 7
        %v3206 = vsel %vm305, %v3205, %v3173
        %v3207 = vrot.slane %v3175, 6
        %v3208 = vsel %vm308, %v3207, %v3206
        %v3209 = vrot.slane %v3176, 5
        %v3210 = vsel %vm311, %v3209, %v3208
        %v3211 = vrot.slane %v3177, 4
        %v3212 = vsel %vm314, %v3211, %v3210
        %v3213 = vrot.slane %v3178, 3
        %v3214 = vsel %vm317, %v3213, %v3212
        %v3215 = vrot.slane %v3179, 2
        %v3216 = vsel %vm320, %v3215, %v3214
        %v3217 = vrot.slane %v3180, 1
        %v3218 = vsel %vm323, %v3217, %v3216
        %v3219 = vrot.slane %v3182, 7
        %v3220 = vsel %vm305, %v3219, %v3181
        %v3221 = vrot.slane %v3183, 6
        %v3222 = vsel %vm308, %v3221, %v3220
        %v3223 = vrot.slane %v3184, 5
        %v3224 = vsel %vm311, %v3223, %v3222
        %v3225 = vrot.slane %v3185, 4
        %v3226 = vsel %vm314, %v3225, %v3224
        %v3227 = vrot.slane %v3186, 3
        %v3228 = vsel %vm317, %v3227, %v3226
        %v3229 = vrot.slane %v3187, 2
        %v3230 = vsel %vm320, %v3229, %v3228
        %v3231 = vrot.slane %v3188, 1
        %v3232 = vsel %vm323, %v3231, %v3230
        %3235 = vmatprep.subr.mxu0 0.0
        %3236 = vmatpush1.msra.mxu0 0.0
        %3237 = vmatprep.subr.mxu0 0.0
        %3238 = vmatpush1.msra.mxu0 0.0
        %3239 = vmatprep.subr.mxu0 0.0
        %3240 = vmatpush1.msra.mxu0 0.0
        %3241 = vmatprep.subr.mxu0 0.0
        %3242 = vmatpush1.msra.mxu0 0.0
        %3243 = vmatprep.subr.mxu0 0.0
        %3244 = vmatpush1.msra.mxu0 0.0
        %3245 = vmatprep.subr.mxu0 0.0
        %3246 = vmatpush1.msra.mxu0 0.0
        %3247 = vmatprep.subr.mxu0 0.0
        %3248 = vmatpush1.msra.mxu0 0.0
        %3249 = vmatprep.subr.mxu0 0.0
        %3250 = vmatpush1.msra.mxu0 0.0
        %3251 = vmatprep.subr.mxu0 0.0
        %3252 = vmatpush1.msra.mxu0 0.0
        %3253 = vmatprep.subr.mxu0 0.0
        %3254 = vmatpush1.msra.mxu0 0.0
        %3255 = vmatprep.subr.mxu0 0.0
        %3256 = vmatpush1.msra.mxu0 0.0
        %3257 = vmatprep.subr.mxu0 0.0
        %3258 = vmatpush1.msra.mxu0 0.0
        %3259 = vmatprep.subr.mxu0 0.0
        %3260 = vmatpush1.msra.mxu0 0.0
        %3261 = vmatprep.subr.mxu0 0.0
        %3262 = vmatpush1.msra.mxu0 0.0
        %3263 = vmatprep.subr.mxu0 0.0
        %3264 = vmatpush1.msra.mxu0 %v3232
        %3265 = vmatprep.subr.mxu0 0.0
        %3266 = vmatpush1.msra.mxu0 %v3218
        %3267 = vmatprep.subr.mxu0 0.0
        %3268 = vmatpush2.msra.mxu0 0.0
        %3269 = vmatprep.subr.mxu0 0.0
        %3270 = vmatpush2.msra.mxu0 0.0
        %3271 = vmatprep.subr.mxu0 0.0
        %3272 = vmatpush2.msra.mxu0 0.0
        %3273 = vmatprep.subr.mxu0 0.0
        %3274 = vmatpush2.msra.mxu0 0.0
        %3275 = vmatprep.subr.mxu0 0.0
        %3276 = vmatpush2.msra.mxu0 0.0
        %3277 = vmatprep.subr.mxu0 0.0
        %3278 = vmatpush2.msra.mxu0 0.0
        %3279 = vmatprep.subr.mxu0 0.0
        %3280 = vmatpush2.msra.mxu0 0.0
        %3281 = vmatprep.subr.mxu0 0.0
        %3282 = vmatpush2.msra.mxu0 0.0
        %3283 = vmatprep.subr.mxu0 0.0
        %3284 = vmatpush2.msra.mxu0 0.0
        %3285 = vmatprep.subr.mxu0 0.0
        %3286 = vmatpush2.msra.mxu0 0.0
        %3287 = vmatprep.subr.mxu0 0.0
        %3288 = vmatpush2.msra.mxu0 0.0
        %3289 = vmatprep.subr.mxu0 0.0
        %3290 = vmatpush2.msra.mxu0 0.0
        %3291 = vmatprep.subr.mxu0 0.0
        %3292 = vmatpush2.msra.mxu0 0.0
        %3293 = vmatprep.subr.mxu0 0.0
        %3294 = vmatpush2.msra.mxu0 0.0
        %3295 = vmatprep.subr.mxu0 0.0
        %3296 = vmatpush2.msra.mxu0 0.0
        %3297 = vmatprep.subr.mxu0 0.0
        %3298 = vmatpush2.msra.mxu0 0.0
        %3299 = vmatprep.mubr.f32.mxu0 0.0
        %3300 = vmatmul.mubr.f32.gmra.mxu0 %v343
        %v3301 = vpop.f32.mrf.mxu0
        %v3302 = vadd.f32 0.0, %v3301
        %v3303 = vpop.f32.mrf.mxu0
        %3304 = vmatprep.mubr.f32.mxu0 0.0
        %3305 = vmatmul.mubr.f32.gmra.mxu0 %v346
        %v3306 = vpop.f32.mrf.mxu0
        %v3307 = vadd.f32 0.0, %v3306
        %v3308 = vpop.f32.mrf.mxu0
        %3309 = vmatprep.mubr.f32.mxu0 0.0
        %3310 = vmatmul.mubr.f32.gmra.mxu0 %v349
        %v3311 = vpop.f32.mrf.mxu0
        %v3312 = vadd.f32 0.0, %v3311
        %v3313 = vpop.f32.mrf.mxu0
        %3314 = vmatprep.mubr.f32.mxu0 0.0
        %3315 = vmatmul.mubr.f32.gmra.mxu0 %v352
        %v3316 = vpop.f32.mrf.mxu0
        %v3317 = vadd.f32 0.0, %v3316
        %v3318 = vpop.f32.mrf.mxu0
        %3319 = vdwg.mxu0
        %v3321 = vsel %vm341, %v3307, 0
        %3323 = vmatprep.subr.mxu0 0.0
        %3324 = vmatpush1.msra.mxu0 0.0
        %3325 = vmatprep.subr.mxu0 0.0
        %3326 = vmatpush1.msra.mxu0 0.0
        %3327 = vmatprep.subr.mxu0 0.0
        %3328 = vmatpush1.msra.mxu0 0.0
        %3329 = vmatprep.subr.mxu0 0.0
        %3330 = vmatpush1.msra.mxu0 0.0
        %3331 = vmatprep.subr.mxu0 0.0
        %3332 = vmatpush1.msra.mxu0 0.0
        %3333 = vmatprep.subr.mxu0 0.0
        %3334 = vmatpush1.msra.mxu0 0.0
        %3335 = vmatprep.subr.mxu0 0.0
        %3336 = vmatpush1.msra.mxu0 0.0
        %3337 = vmatprep.subr.mxu0 0.0
        %3338 = vmatpush1.msra.mxu0 0.0
        %3339 = vmatprep.subr.mxu0 0.0
        %3340 = vmatpush1.msra.mxu0 0.0
        %3341 = vmatprep.subr.mxu0 0.0
        %3342 = vmatpush1.msra.mxu0 0.0
        %3343 = vmatprep.subr.mxu0 0.0
        %3344 = vmatpush1.msra.mxu0 0.0
        %3345 = vmatprep.subr.mxu0 0.0
        %3346 = vmatpush1.msra.mxu0 0.0
        %3347 = vmatprep.subr.mxu0 0.0
        %3348 = vmatpush1.msra.mxu0 0.0
        %3349 = vmatprep.subr.mxu0 0.0
        %3350 = vmatpush1.msra.mxu0 0.0
        %3351 = vmatprep.subr.mxu0 0.0
        %3352 = vmatpush1.msra.mxu0 %v270
        %3353 = vmatprep.subr.mxu0 0.0
        %3354 = vmatpush1.msra.mxu0 %v269
        %3355 = vmatprep.subr.mxu0 0.0
        %3356 = vmatpush2.msra.mxu0 0.0
        %3357 = vmatprep.subr.mxu0 0.0
        %3358 = vmatpush2.msra.mxu0 0.0
        %3359 = vmatprep.subr.mxu0 0.0
        %3360 = vmatpush2.msra.mxu0 0.0
        %3361 = vmatprep.subr.mxu0 0.0
        %3362 = vmatpush2.msra.mxu0 0.0
        %3363 = vmatprep.subr.mxu0 0.0
        %3364 = vmatpush2.msra.mxu0 0.0
        %3365 = vmatprep.subr.mxu0 0.0
        %3366 = vmatpush2.msra.mxu0 0.0
        %3367 = vmatprep.subr.mxu0 0.0
        %3368 = vmatpush2.msra.mxu0 0.0
        %3369 = vmatprep.subr.mxu0 0.0
        %3370 = vmatpush2.msra.mxu0 0.0
        %3371 = vmatprep.subr.mxu0 0.0
        %3372 = vmatpush2.msra.mxu0 0.0
        %3373 = vmatprep.subr.mxu0 0.0
        %3374 = vmatpush2.msra.mxu0 0.0
        %3375 = vmatprep.subr.mxu0 0.0
        %3376 = vmatpush2.msra.mxu0 0.0
        %3377 = vmatprep.subr.mxu0 0.0
        %3378 = vmatpush2.msra.mxu0 0.0
        %3379 = vmatprep.subr.mxu0 0.0
        %3380 = vmatpush2.msra.mxu0 0.0
        %3381 = vmatprep.subr.mxu0 0.0
        %3382 = vmatpush2.msra.mxu0 0.0
        %3383 = vmatprep.subr.mxu0 0.0
        %3384 = vmatpush2.msra.mxu0 0.0
        %3385 = vmatprep.subr.mxu0 0.0
        %3386 = vmatpush2.msra.mxu0 0.0
        %3387 = vmatprep.mubr.f32.mxu0 0.0
        %3388 = vmatmul.mubr.f32.gmra.mxu0 %v3321
        %v3389 = vpop.f32.mrf.mxu0
        %v3390 = vadd.f32 0.0, %v3389
        %v3391 = vpop.f32.mrf.mxu0
        %3392 = vdwg.mxu0
        %v3394 = vsel %vm341, %v3302, 0
        %3396 = vmatprep.subr.mxu0 0.0
        %3397 = vmatpush1.msra.mxu0 0.0
        %3398 = vmatprep.subr.mxu0 0.0
        %3399 = vmatpush1.msra.mxu0 0.0
        %3400 = vmatprep.subr.mxu0 0.0
        %3401 = vmatpush1.msra.mxu0 0.0
        %3402 = vmatprep.subr.mxu0 0.0
        %3403 = vmatpush1.msra.mxu0 0.0
        %3404 = vmatprep.subr.mxu0 0.0
        %3405 = vmatpush1.msra.mxu0 0.0
        %3406 = vmatprep.subr.mxu0 0.0
        %3407 = vmatpush1.msra.mxu0 0.0
        %3408 = vmatprep.subr.mxu0 0.0
        %3409 = vmatpush1.msra.mxu0 0.0
        %3410 = vmatprep.subr.mxu0 0.0
        %3411 = vmatpush1.msra.mxu0 0.0
        %3412 = vmatprep.subr.mxu0 0.0
        %3413 = vmatpush1.msra.mxu0 0.0
        %3414 = vmatprep.subr.mxu0 0.0
        %3415 = vmatpush1.msra.mxu0 0.0
        %3416 = vmatprep.subr.mxu0 0.0
        %3417 = vmatpush1.msra.mxu0 0.0
        %3418 = vmatprep.subr.mxu0 0.0
        %3419 = vmatpush1.msra.mxu0 0.0
        %3420 = vmatprep.subr.mxu0 0.0
        %3421 = vmatpush1.msra.mxu0 0.0
        %3422 = vmatprep.subr.mxu0 0.0
        %3423 = vmatpush1.msra.mxu0 0.0
        %3424 = vmatprep.subr.mxu0 0.0
        %3425 = vmatpush1.msra.mxu0 %v268
        %3426 = vmatprep.subr.mxu0 0.0
        %3427 = vmatpush1.msra.mxu0 %v267
        %3428 = vmatprep.subr.mxu0 0.0
        %3429 = vmatpush2.msra.mxu0 0.0
        %3430 = vmatprep.subr.mxu0 0.0
        %3431 = vmatpush2.msra.mxu0 0.0
        %3432 = vmatprep.subr.mxu0 0.0
        %3433 = vmatpush2.msra.mxu0 0.0
        %3434 = vmatprep.subr.mxu0 0.0
        %3435 = vmatpush2.msra.mxu0 0.0
        %3436 = vmatprep.subr.mxu0 0.0
        %3437 = vmatpush2.msra.mxu0 0.0
        %3438 = vmatprep.subr.mxu0 0.0
        %3439 = vmatpush2.msra.mxu0 0.0
        %3440 = vmatprep.subr.mxu0 0.0
        %3441 = vmatpush2.msra.mxu0 0.0
        %3442 = vmatprep.subr.mxu0 0.0
        %3443 = vmatpush2.msra.mxu0 0.0
        %3444 = vmatprep.subr.mxu0 0.0
        %3445 = vmatpush2.msra.mxu0 0.0
        %3446 = vmatprep.subr.mxu0 0.0
        %3447 = vmatpush2.msra.mxu0 0.0
        %3448 = vmatprep.subr.mxu0 0.0
        %3449 = vmatpush2.msra.mxu0 0.0
        %3450 = vmatprep.subr.mxu0 0.0
        %3451 = vmatpush2.msra.mxu0 0.0
        %3452 = vmatprep.subr.mxu0 0.0
        %3453 = vmatpush2.msra.mxu0 0.0
        %3454 = vmatprep.subr.mxu0 0.0
        %3455 = vmatpush2.msra.mxu0 0.0
        %3456 = vmatprep.subr.mxu0 0.0
        %3457 = vmatpush2.msra.mxu0 0.0
        %3458 = vmatprep.subr.mxu0 0.0
        %3459 = vmatpush2.msra.mxu0 0.0
        %3460 = vmatprep.mubr.f32.mxu0 0.0
        %3461 = vmatmul.mubr.f32.gmra.mxu0 %v3394
        %v3462 = vpop.f32.mrf.mxu0
        %v3463 = vadd.f32 %v3390, %v3462
        %v3464 = vpop.f32.mrf.mxu0
        %3465 = vdwg.mxu0
        %v3466 = vadd.f32 %v3463, %v588
        %v3467 = vmax.f32 %v3466, 0.0
        %v3469 = vcombine.high %v3467, %v3467
        %v3471 = vunpack.c.l.s4 1966171168
        %v3472 = vunpack.c.0.s8 %v3471
        %v3473 = vlaneseq
        %v3474 = vshrl.u32 %v3473, 7
        %v3475 = vsub.s32 %v3472, %v3474
        %v3476 = vrot.slane %v3467, %v3475
        %v3478 = vunpack.c.l.s4 1966171168
        %v3479 = vunpack.c.0.s8 %v3478
        %v3480 = vlaneseq
        %v3481 = vshrl.u32 %v3480, 7
        %v3482 = vsub.s32 %v3479, %v3481
        %v3483 = vrot.slane %v3469, %v3482
        %v3484 = vcombine.high %v3476, %v3476
        %v3485 = vcombine.high %v3483, %v3483
        %v3487 = vunpack.c.l.s4 1966171168
        %v3488 = vunpack.c.0.s8 %v3487
        %v3489 = vlaneseq
        %v3490 = vshrl.u32 %v3489, 7
        %v3491 = vsub.s32 %v3488, %v3490
        %v3492 = vrot.slane %v3476, %v3491
        %v3494 = vunpack.c.l.s4 1966171168
        %v3495 = vunpack.c.0.s8 %v3494
        %v3496 = vlaneseq
        %v3497 = vshrl.u32 %v3496, 7
        %v3498 = vsub.s32 %v3495, %v3497
        %v3499 = vrot.slane %v3483, %v3498
        %v3501 = vunpack.c.l.s4 1966171168
        %v3502 = vunpack.c.0.s8 %v3501
        %v3503 = vlaneseq
        %v3504 = vshrl.u32 %v3503, 7
        %v3505 = vsub.s32 %v3502, %v3504
        %v3506 = vrot.slane %v3484, %v3505
        %v3508 = vunpack.c.l.s4 1966171168
        %v3509 = vunpack.c.0.s8 %v3508
        %v3510 = vlaneseq
        %v3511 = vshrl.u32 %v3510, 7
        %v3512 = vsub.s32 %v3509, %v3511
        %v3513 = vrot.slane %v3485, %v3512
        %v3514 = vcombine.high %v3492, %v3492
        %v3515 = vcombine.high %v3499, %v3499
        %v3516 = vcombine.high %v3506, %v3506
        %v3517 = vcombine.high %v3513, %v3513
        %3526 = vst.msk [vmem:[%s260 + $0xa] sm:$0x1] %vm650, %v3492
        %3527 = vst.msk [vmem:[%s260 + $0x2a] sm:$0x1] %vm650, %v3506
        %3528 = vst.msk [vmem:[%s260 + $0x4a] sm:$0x1] %vm650, %v3514
        %3529 = vst.msk [vmem:[%s260 + $0x6a] sm:$0x1] %vm650, %v3516
        %3530 = vst.msk [vmem:[%s260 + $0x8a] sm:$0x1] %vm650, %v3499
        %3531 = vst.msk [vmem:[%s260 + $0xaa] sm:$0x1] %vm650, %v3513
        %3532 = vst.msk [vmem:[%s260 + $0xca] sm:$0x1] %vm650, %v3515
        %3533 = vst.msk [vmem:[%s260 + $0xea] sm:$0x1] %vm650, %v3517
        %v3535 = vsel %vm341, %v3317, 0
        %3537 = vmatprep.subr.mxu0 0.0
        %3538 = vmatpush1.msra.mxu0 0.0
        %3539 = vmatprep.subr.mxu0 0.0
        %3540 = vmatpush1.msra.mxu0 0.0
        %3541 = vmatprep.subr.mxu0 0.0
        %3542 = vmatpush1.msra.mxu0 0.0
        %3543 = vmatprep.subr.mxu0 0.0
        %3544 = vmatpush1.msra.mxu0 0.0
        %3545 = vmatprep.subr.mxu0 0.0
        %3546 = vmatpush1.msra.mxu0 0.0
        %3547 = vmatprep.subr.mxu0 0.0
        %3548 = vmatpush1.msra.mxu0 0.0
        %3549 = vmatprep.subr.mxu0 0.0
        %3550 = vmatpush1.msra.mxu0 0.0
        %3551 = vmatprep.subr.mxu0 0.0
        %3552 = vmatpush1.msra.mxu0 0.0
        %3553 = vmatprep.subr.mxu0 0.0
        %3554 = vmatpush1.msra.mxu0 0.0
        %3555 = vmatprep.subr.mxu0 0.0
        %3556 = vmatpush1.msra.mxu0 0.0
        %3557 = vmatprep.subr.mxu0 0.0
        %3558 = vmatpush1.msra.mxu0 0.0
        %3559 = vmatprep.subr.mxu0 0.0
        %3560 = vmatpush1.msra.mxu0 0.0
        %3561 = vmatprep.subr.mxu0 0.0
        %3562 = vmatpush1.msra.mxu0 0.0
        %3563 = vmatprep.subr.mxu0 0.0
        %3564 = vmatpush1.msra.mxu0 0.0
        %3565 = vmatprep.subr.mxu0 0.0
        %3566 = vmatpush1.msra.mxu0 %v270
        %3567 = vmatprep.subr.mxu0 0.0
        %3568 = vmatpush1.msra.mxu0 %v269
        %3569 = vmatprep.subr.mxu0 0.0
        %3570 = vmatpush2.msra.mxu0 0.0
        %3571 = vmatprep.subr.mxu0 0.0
        %3572 = vmatpush2.msra.mxu0 0.0
        %3573 = vmatprep.subr.mxu0 0.0
        %3574 = vmatpush2.msra.mxu0 0.0
        %3575 = vmatprep.subr.mxu0 0.0
        %3576 = vmatpush2.msra.mxu0 0.0
        %3577 = vmatprep.subr.mxu0 0.0
        %3578 = vmatpush2.msra.mxu0 0.0
        %3579 = vmatprep.subr.mxu0 0.0
        %3580 = vmatpush2.msra.mxu0 0.0
        %3581 = vmatprep.subr.mxu0 0.0
        %3582 = vmatpush2.msra.mxu0 0.0
        %3583 = vmatprep.subr.mxu0 0.0
        %3584 = vmatpush2.msra.mxu0 0.0
        %3585 = vmatprep.subr.mxu0 0.0
        %3586 = vmatpush2.msra.mxu0 0.0
        %3587 = vmatprep.subr.mxu0 0.0
        %3588 = vmatpush2.msra.mxu0 0.0
        %3589 = vmatprep.subr.mxu0 0.0
        %3590 = vmatpush2.msra.mxu0 0.0
        %3591 = vmatprep.subr.mxu0 0.0
        %3592 = vmatpush2.msra.mxu0 0.0
        %3593 = vmatprep.subr.mxu0 0.0
        %3594 = vmatpush2.msra.mxu0 0.0
        %3595 = vmatprep.subr.mxu0 0.0
        %3596 = vmatpush2.msra.mxu0 0.0
        %3597 = vmatprep.subr.mxu0 0.0
        %3598 = vmatpush2.msra.mxu0 0.0
        %3599 = vmatprep.subr.mxu0 0.0
        %3600 = vmatpush2.msra.mxu0 0.0
        %3601 = vmatprep.mubr.f32.mxu0 0.0
        %3602 = vmatmul.mubr.f32.gmra.mxu0 %v3535
        %v3603 = vpop.f32.mrf.mxu0
        %v3604 = vadd.f32 0.0, %v3603
        %v3605 = vpop.f32.mrf.mxu0
        %3606 = vdwg.mxu0
        %v3608 = vsel %vm341, %v3312, 0
        %3610 = vmatprep.subr.mxu0 0.0
        %3611 = vmatpush1.msra.mxu0 0.0
        %3612 = vmatprep.subr.mxu0 0.0
        %3613 = vmatpush1.msra.mxu0 0.0
        %3614 = vmatprep.subr.mxu0 0.0
        %3615 = vmatpush1.msra.mxu0 0.0
        %3616 = vmatprep.subr.mxu0 0.0
        %3617 = vmatpush1.msra.mxu0 0.0
        %3618 = vmatprep.subr.mxu0 0.0
        %3619 = vmatpush1.msra.mxu0 0.0
        %3620 = vmatprep.subr.mxu0 0.0
        %3621 = vmatpush1.msra.mxu0 0.0
        %3622 = vmatprep.subr.mxu0 0.0
        %3623 = vmatpush1.msra.mxu0 0.0
        %3624 = vmatprep.subr.mxu0 0.0
        %3625 = vmatpush1.msra.mxu0 0.0
        %3626 = vmatprep.subr.mxu0 0.0
        %3627 = vmatpush1.msra.mxu0 0.0
        %3628 = vmatprep.subr.mxu0 0.0
        %3629 = vmatpush1.msra.mxu0 0.0
        %3630 = vmatprep.subr.mxu0 0.0
        %3631 = vmatpush1.msra.mxu0 0.0
        %3632 = vmatprep.subr.mxu0 0.0
        %3633 = vmatpush1.msra.mxu0 0.0
        %3634 = vmatprep.subr.mxu0 0.0
        %3635 = vmatpush1.msra.mxu0 0.0
        %3636 = vmatprep.subr.mxu0 0.0
        %3637 = vmatpush1.msra.mxu0 0.0
        %3638 = vmatprep.subr.mxu0 0.0
        %3639 = vmatpush1.msra.mxu0 %v268
        %3640 = vmatprep.subr.mxu0 0.0
        %3641 = vmatpush1.msra.mxu0 %v267
        %3642 = vmatprep.subr.mxu0 0.0
        %3643 = vmatpush2.msra.mxu0 0.0
        %3644 = vmatprep.subr.mxu0 0.0
        %3645 = vmatpush2.msra.mxu0 0.0
        %3646 = vmatprep.subr.mxu0 0.0
        %3647 = vmatpush2.msra.mxu0 0.0
        %3648 = vmatprep.subr.mxu0 0.0
        %3649 = vmatpush2.msra.mxu0 0.0
        %3650 = vmatprep.subr.mxu0 0.0
        %3651 = vmatpush2.msra.mxu0 0.0
        %3652 = vmatprep.subr.mxu0 0.0
        %3653 = vmatpush2.msra.mxu0 0.0
        %3654 = vmatprep.subr.mxu0 0.0
        %3655 = vmatpush2.msra.mxu0 0.0
        %3656 = vmatprep.subr.mxu0 0.0
        %3657 = vmatpush2.msra.mxu0 0.0
        %3658 = vmatprep.subr.mxu0 0.0
        %3659 = vmatpush2.msra.mxu0 0.0
        %3660 = vmatprep.subr.mxu0 0.0
        %3661 = vmatpush2.msra.mxu0 0.0
        %3662 = vmatprep.subr.mxu0 0.0
        %3663 = vmatpush2.msra.mxu0 0.0
        %3664 = vmatprep.subr.mxu0 0.0
        %3665 = vmatpush2.msra.mxu0 0.0
        %3666 = vmatprep.subr.mxu0 0.0
        %3667 = vmatpush2.msra.mxu0 0.0
        %3668 = vmatprep.subr.mxu0 0.0
        %3669 = vmatpush2.msra.mxu0 0.0
        %3670 = vmatprep.subr.mxu0 0.0
        %3671 = vmatpush2.msra.mxu0 0.0
        %3672 = vmatprep.subr.mxu0 0.0
        %3673 = vmatpush2.msra.mxu0 0.0
        %3674 = vmatprep.mubr.f32.mxu0 0.0
        %3675 = vmatmul.mubr.f32.gmra.mxu0 %v3608
        %v3676 = vpop.f32.mrf.mxu0
        %v3677 = vadd.f32 %v3604, %v3676
        %v3678 = vpop.f32.mrf.mxu0
        %3679 = vdwg.mxu0
        %v3680 = vadd.f32 %v3677, %v588
        %v3681 = vmax.f32 %v3680, 0.0
        %v3683 = vcombine.high %v3681, %v3681
        %v3685 = vunpack.c.l.s4 1966171168
        %v3686 = vunpack.c.0.s8 %v3685
        %v3687 = vlaneseq
        %v3688 = vshrl.u32 %v3687, 7
        %v3689 = vsub.s32 %v3686, %v3688
        %v3690 = vrot.slane %v3681, %v3689
        %v3692 = vunpack.c.l.s4 1966171168
        %v3693 = vunpack.c.0.s8 %v3692
        %v3694 = vlaneseq
        %v3695 = vshrl.u32 %v3694, 7
        %v3696 = vsub.s32 %v3693, %v3695
        %v3697 = vrot.slane %v3683, %v3696
        %v3698 = vcombine.high %v3690, %v3690
        %v3699 = vcombine.high %v3697, %v3697
        %v3701 = vunpack.c.l.s4 1966171168
        %v3702 = vunpack.c.0.s8 %v3701
        %v3703 = vlaneseq
        %v3704 = vshrl.u32 %v3703, 7
        %v3705 = vsub.s32 %v3702, %v3704
        %v3706 = vrot.slane %v3690, %v3705
        %v3708 = vunpack.c.l.s4 1966171168
        %v3709 = vunpack.c.0.s8 %v3708
        %v3710 = vlaneseq
        %v3711 = vshrl.u32 %v3710, 7
        %v3712 = vsub.s32 %v3709, %v3711
        %v3713 = vrot.slane %v3697, %v3712
        %v3715 = vunpack.c.l.s4 1966171168
        %v3716 = vunpack.c.0.s8 %v3715
        %v3717 = vlaneseq
        %v3718 = vshrl.u32 %v3717, 7
        %v3719 = vsub.s32 %v3716, %v3718
        %v3720 = vrot.slane %v3698, %v3719
        %v3722 = vunpack.c.l.s4 1966171168
        %v3723 = vunpack.c.0.s8 %v3722
        %v3724 = vlaneseq
        %v3725 = vshrl.u32 %v3724, 7
        %v3726 = vsub.s32 %v3723, %v3725
        %v3727 = vrot.slane %v3699, %v3726
        %v3728 = vcombine.high %v3706, %v3706
        %v3729 = vcombine.high %v3713, %v3713
        %v3730 = vcombine.high %v3720, %v3720
        %v3731 = vcombine.high %v3727, %v3727
        %3740 = vst.msk [vmem:[%s260 + $0xb] sm:$0x1] %vm650, %v3706
        %3741 = vst.msk [vmem:[%s260 + $0x2b] sm:$0x1] %vm650, %v3720
        %3742 = vst.msk [vmem:[%s260 + $0x4b] sm:$0x1] %vm650, %v3728
        %3743 = vst.msk [vmem:[%s260 + $0x6b] sm:$0x1] %vm650, %v3730
        %3744 = vst.msk [vmem:[%s260 + $0x8b] sm:$0x1] %vm650, %v3713
        %3745 = vst.msk [vmem:[%s260 + $0xab] sm:$0x1] %vm650, %v3727
        %3746 = vst.msk [vmem:[%s260 + $0xcb] sm:$0x1] %vm650, %v3729
        %3747 = vst.msk [vmem:[%s260 + $0xeb] sm:$0x1] %vm650, %v3731
        %v3748 = vld [vmem:[%s234 + $0x6] sm:$0x1]
        %v3749 = vld [vmem:[%s234 + $0x16] sm:$0x1]
        %v3750 = vld [vmem:[%s234 + $0x26] sm:$0x1]
        %v3751 = vld [vmem:[%s234 + $0x36] sm:$0x1]
        %v3752 = vld [vmem:[%s234 + $0x46] sm:$0x1]
        %v3753 = vld [vmem:[%s234 + $0x56] sm:$0x1]
        %v3754 = vld [vmem:[%s234 + $0x66] sm:$0x1]
        %v3755 = vld [vmem:[%s234 + $0x76] sm:$0x1]
        %v3756 = vld [vmem:[%s234 + $0x86] sm:$0x1]
        %v3757 = vld [vmem:[%s234 + $0x96] sm:$0x1]
        %v3758 = vld [vmem:[%s234 + $0xa6] sm:$0x1]
        %v3759 = vld [vmem:[%s234 + $0xb6] sm:$0x1]
        %v3760 = vld [vmem:[%s234 + $0xc6] sm:$0x1]
        %v3761 = vld [vmem:[%s234 + $0xd6] sm:$0x1]
        %v3762 = vld [vmem:[%s234 + $0xe6] sm:$0x1]
        %v3763 = vld [vmem:[%s234 + $0xf6] sm:$0x1]
        %v3780 = vrot.slane %v3749, 7
        %v3781 = vsel %vm305, %v3780, %v3748
        %v3782 = vrot.slane %v3750, 6
        %v3783 = vsel %vm308, %v3782, %v3781
        %v3784 = vrot.slane %v3751, 5
        %v3785 = vsel %vm311, %v3784, %v3783
        %v3786 = vrot.slane %v3752, 4
        %v3787 = vsel %vm314, %v3786, %v3785
        %v3788 = vrot.slane %v3753, 3
        %v3789 = vsel %vm317, %v3788, %v3787
        %v3790 = vrot.slane %v3754, 2
        %v3791 = vsel %vm320, %v3790, %v3789
        %v3792 = vrot.slane %v3755, 1
        %v3793 = vsel %vm323, %v3792, %v3791
        %v3794 = vrot.slane %v3757, 7
        %v3795 = vsel %vm305, %v3794, %v3756
        %v3796 = vrot.slane %v3758, 6
        %v3797 = vsel %vm308, %v3796, %v3795
        %v3798 = vrot.slane %v3759, 5
        %v3799 = vsel %vm311, %v3798, %v3797
        %v3800 = vrot.slane %v3760, 4
        %v3801 = vsel %vm314, %v3800, %v3799
        %v3802 = vrot.slane %v3761, 3
        %v3803 = vsel %vm317, %v3802, %v3801
        %v3804 = vrot.slane %v3762, 2
        %v3805 = vsel %vm320, %v3804, %v3803
        %v3806 = vrot.slane %v3763, 1
        %v3807 = vsel %vm323, %v3806, %v3805
        %3810 = vmatprep.subr.mxu0 0.0
        %3811 = vmatpush1.msra.mxu0 0.0
        %3812 = vmatprep.subr.mxu0 0.0
        %3813 = vmatpush1.msra.mxu0 0.0
        %3814 = vmatprep.subr.mxu0 0.0
        %3815 = vmatpush1.msra.mxu0 0.0
        %3816 = vmatprep.subr.mxu0 0.0
        %3817 = vmatpush1.msra.mxu0 0.0
        %3818 = vmatprep.subr.mxu0 0.0
        %3819 = vmatpush1.msra.mxu0 0.0
        %3820 = vmatprep.subr.mxu0 0.0
        %3821 = vmatpush1.msra.mxu0 0.0
        %3822 = vmatprep.subr.mxu0 0.0
        %3823 = vmatpush1.msra.mxu0 0.0
        %3824 = vmatprep.subr.mxu0 0.0
        %3825 = vmatpush1.msra.mxu0 0.0
        %3826 = vmatprep.subr.mxu0 0.0
        %3827 = vmatpush1.msra.mxu0 0.0
        %3828 = vmatprep.subr.mxu0 0.0
        %3829 = vmatpush1.msra.mxu0 0.0
        %3830 = vmatprep.subr.mxu0 0.0
        %3831 = vmatpush1.msra.mxu0 0.0
        %3832 = vmatprep.subr.mxu0 0.0
        %3833 = vmatpush1.msra.mxu0 0.0
        %3834 = vmatprep.subr.mxu0 0.0
        %3835 = vmatpush1.msra.mxu0 0.0
        %3836 = vmatprep.subr.mxu0 0.0
        %3837 = vmatpush1.msra.mxu0 0.0
        %3838 = vmatprep.subr.mxu0 0.0
        %3839 = vmatpush1.msra.mxu0 %v3807
        %3840 = vmatprep.subr.mxu0 0.0
        %3841 = vmatpush1.msra.mxu0 %v3793
        %3842 = vmatprep.subr.mxu0 0.0
        %3843 = vmatpush2.msra.mxu0 0.0
        %3844 = vmatprep.subr.mxu0 0.0
        %3845 = vmatpush2.msra.mxu0 0.0
        %3846 = vmatprep.subr.mxu0 0.0
        %3847 = vmatpush2.msra.mxu0 0.0
        %3848 = vmatprep.subr.mxu0 0.0
        %3849 = vmatpush2.msra.mxu0 0.0
        %3850 = vmatprep.subr.mxu0 0.0
        %3851 = vmatpush2.msra.mxu0 0.0
        %3852 = vmatprep.subr.mxu0 0.0
        %3853 = vmatpush2.msra.mxu0 0.0
        %3854 = vmatprep.subr.mxu0 0.0
        %3855 = vmatpush2.msra.mxu0 0.0
        %3856 = vmatprep.subr.mxu0 0.0
        %3857 = vmatpush2.msra.mxu0 0.0
        %3858 = vmatprep.subr.mxu0 0.0
        %3859 = vmatpush2.msra.mxu0 0.0
        %3860 = vmatprep.subr.mxu0 0.0
        %3861 = vmatpush2.msra.mxu0 0.0
        %3862 = vmatprep.subr.mxu0 0.0
        %3863 = vmatpush2.msra.mxu0 0.0
        %3864 = vmatprep.subr.mxu0 0.0
        %3865 = vmatpush2.msra.mxu0 0.0
        %3866 = vmatprep.subr.mxu0 0.0
        %3867 = vmatpush2.msra.mxu0 0.0
        %3868 = vmatprep.subr.mxu0 0.0
        %3869 = vmatpush2.msra.mxu0 0.0
        %3870 = vmatprep.subr.mxu0 0.0
        %3871 = vmatpush2.msra.mxu0 0.0
        %3872 = vmatprep.subr.mxu0 0.0
        %3873 = vmatpush2.msra.mxu0 0.0
        %3874 = vmatprep.mubr.f32.mxu0 0.0
        %3875 = vmatmul.mubr.f32.gmra.mxu0 %v343
        %v3876 = vpop.f32.mrf.mxu0
        %v3877 = vadd.f32 0.0, %v3876
        %v3878 = vpop.f32.mrf.mxu0
        %3879 = vmatprep.mubr.f32.mxu0 0.0
        %3880 = vmatmul.mubr.f32.gmra.mxu0 %v346
        %v3881 = vpop.f32.mrf.mxu0
        %v3882 = vadd.f32 0.0, %v3881
        %v3883 = vpop.f32.mrf.mxu0
        %3884 = vmatprep.mubr.f32.mxu0 0.0
        %3885 = vmatmul.mubr.f32.gmra.mxu0 %v349
        %v3886 = vpop.f32.mrf.mxu0
        %v3887 = vadd.f32 0.0, %v3886
        %v3888 = vpop.f32.mrf.mxu0
        %3889 = vmatprep.mubr.f32.mxu0 0.0
        %3890 = vmatmul.mubr.f32.gmra.mxu0 %v352
        %v3891 = vpop.f32.mrf.mxu0
        %v3892 = vadd.f32 0.0, %v3891
        %v3893 = vpop.f32.mrf.mxu0
        %3894 = vdwg.mxu0
        %v3896 = vsel %vm341, %v3882, 0
        %3898 = vmatprep.subr.mxu0 0.0
        %3899 = vmatpush1.msra.mxu0 0.0
        %3900 = vmatprep.subr.mxu0 0.0
        %3901 = vmatpush1.msra.mxu0 0.0
        %3902 = vmatprep.subr.mxu0 0.0
        %3903 = vmatpush1.msra.mxu0 0.0
        %3904 = vmatprep.subr.mxu0 0.0
        %3905 = vmatpush1.msra.mxu0 0.0
        %3906 = vmatprep.subr.mxu0 0.0
        %3907 = vmatpush1.msra.mxu0 0.0
        %3908 = vmatprep.subr.mxu0 0.0
        %3909 = vmatpush1.msra.mxu0 0.0
        %3910 = vmatprep.subr.mxu0 0.0
        %3911 = vmatpush1.msra.mxu0 0.0
        %3912 = vmatprep.subr.mxu0 0.0
        %3913 = vmatpush1.msra.mxu0 0.0
        %3914 = vmatprep.subr.mxu0 0.0
        %3915 = vmatpush1.msra.mxu0 0.0
        %3916 = vmatprep.subr.mxu0 0.0
        %3917 = vmatpush1.msra.mxu0 0.0
        %3918 = vmatprep.subr.mxu0 0.0
        %3919 = vmatpush1.msra.mxu0 0.0
        %3920 = vmatprep.subr.mxu0 0.0
        %3921 = vmatpush1.msra.mxu0 0.0
        %3922 = vmatprep.subr.mxu0 0.0
        %3923 = vmatpush1.msra.mxu0 0.0
        %3924 = vmatprep.subr.mxu0 0.0
        %3925 = vmatpush1.msra.mxu0 0.0
        %3926 = vmatprep.subr.mxu0 0.0
        %3927 = vmatpush1.msra.mxu0 %v270
        %3928 = vmatprep.subr.mxu0 0.0
        %3929 = vmatpush1.msra.mxu0 %v269
        %3930 = vmatprep.subr.mxu0 0.0
        %3931 = vmatpush2.msra.mxu0 0.0
        %3932 = vmatprep.subr.mxu0 0.0
        %3933 = vmatpush2.msra.mxu0 0.0
        %3934 = vmatprep.subr.mxu0 0.0
        %3935 = vmatpush2.msra.mxu0 0.0
        %3936 = vmatprep.subr.mxu0 0.0
        %3937 = vmatpush2.msra.mxu0 0.0
        %3938 = vmatprep.subr.mxu0 0.0
        %3939 = vmatpush2.msra.mxu0 0.0
        %3940 = vmatprep.subr.mxu0 0.0
        %3941 = vmatpush2.msra.mxu0 0.0
        %3942 = vmatprep.subr.mxu0 0.0
        %3943 = vmatpush2.msra.mxu0 0.0
        %3944 = vmatprep.subr.mxu0 0.0
        %3945 = vmatpush2.msra.mxu0 0.0
        %3946 = vmatprep.subr.mxu0 0.0
        %3947 = vmatpush2.msra.mxu0 0.0
        %3948 = vmatprep.subr.mxu0 0.0
        %3949 = vmatpush2.msra.mxu0 0.0
        %3950 = vmatprep.subr.mxu0 0.0
        %3951 = vmatpush2.msra.mxu0 0.0
        %3952 = vmatprep.subr.mxu0 0.0
        %3953 = vmatpush2.msra.mxu0 0.0
        %3954 = vmatprep.subr.mxu0 0.0
        %3955 = vmatpush2.msra.mxu0 0.0
        %3956 = vmatprep.subr.mxu0 0.0
        %3957 = vmatpush2.msra.mxu0 0.0
        %3958 = vmatprep.subr.mxu0 0.0
        %3959 = vmatpush2.msra.mxu0 0.0
        %3960 = vmatprep.subr.mxu0 0.0
        %3961 = vmatpush2.msra.mxu0 0.0
        %3962 = vmatprep.mubr.f32.mxu0 0.0
        %3963 = vmatmul.mubr.f32.gmra.mxu0 %v3896
        %v3964 = vpop.f32.mrf.mxu0
        %v3965 = vadd.f32 0.0, %v3964
        %v3966 = vpop.f32.mrf.mxu0
        %3967 = vdwg.mxu0
        %v3969 = vsel %vm341, %v3877, 0
        %3971 = vmatprep.subr.mxu0 0.0
        %3972 = vmatpush1.msra.mxu0 0.0
        %3973 = vmatprep.subr.mxu0 0.0
        %3974 = vmatpush1.msra.mxu0 0.0
        %3975 = vmatprep.subr.mxu0 0.0
        %3976 = vmatpush1.msra.mxu0 0.0
        %3977 = vmatprep.subr.mxu0 0.0
        %3978 = vmatpush1.msra.mxu0 0.0
        %3979 = vmatprep.subr.mxu0 0.0
        %3980 = vmatpush1.msra.mxu0 0.0
        %3981 = vmatprep.subr.mxu0 0.0
        %3982 = vmatpush1.msra.mxu0 0.0
        %3983 = vmatprep.subr.mxu0 0.0
        %3984 = vmatpush1.msra.mxu0 0.0
        %3985 = vmatprep.subr.mxu0 0.0
        %3986 = vmatpush1.msra.mxu0 0.0
        %3987 = vmatprep.subr.mxu0 0.0
        %3988 = vmatpush1.msra.mxu0 0.0
        %3989 = vmatprep.subr.mxu0 0.0
        %3990 = vmatpush1.msra.mxu0 0.0
        %3991 = vmatprep.subr.mxu0 0.0
        %3992 = vmatpush1.msra.mxu0 0.0
        %3993 = vmatprep.subr.mxu0 0.0
        %3994 = vmatpush1.msra.mxu0 0.0
        %3995 = vmatprep.subr.mxu0 0.0
        %3996 = vmatpush1.msra.mxu0 0.0
        %3997 = vmatprep.subr.mxu0 0.0
        %3998 = vmatpush1.msra.mxu0 0.0
        %3999 = vmatprep.subr.mxu0 0.0
        %4000 = vmatpush1.msra.mxu0 %v268
        %4001 = vmatprep.subr.mxu0 0.0
        %4002 = vmatpush1.msra.mxu0 %v267
        %4003 = vmatprep.subr.mxu0 0.0
        %4004 = vmatpush2.msra.mxu0 0.0
        %4005 = vmatprep.subr.mxu0 0.0
        %4006 = vmatpush2.msra.mxu0 0.0
        %4007 = vmatprep.subr.mxu0 0.0
        %4008 = vmatpush2.msra.mxu0 0.0
        %4009 = vmatprep.subr.mxu0 0.0
        %4010 = vmatpush2.msra.mxu0 0.0
        %4011 = vmatprep.subr.mxu0 0.0
        %4012 = vmatpush2.msra.mxu0 0.0
        %4013 = vmatprep.subr.mxu0 0.0
        %4014 = vmatpush2.msra.mxu0 0.0
        %4015 = vmatprep.subr.mxu0 0.0
        %4016 = vmatpush2.msra.mxu0 0.0
        %4017 = vmatprep.subr.mxu0 0.0
        %4018 = vmatpush2.msra.mxu0 0.0
        %4019 = vmatprep.subr.mxu0 0.0
        %4020 = vmatpush2.msra.mxu0 0.0
        %4021 = vmatprep.subr.mxu0 0.0
        %4022 = vmatpush2.msra.mxu0 0.0
        %4023 = vmatprep.subr.mxu0 0.0
        %4024 = vmatpush2.msra.mxu0 0.0
        %4025 = vmatprep.subr.mxu0 0.0
        %4026 = vmatpush2.msra.mxu0 0.0
        %4027 = vmatprep.subr.mxu0 0.0
        %4028 = vmatpush2.msra.mxu0 0.0
        %4029 = vmatprep.subr.mxu0 0.0
        %4030 = vmatpush2.msra.mxu0 0.0
        %4031 = vmatprep.subr.mxu0 0.0
        %4032 = vmatpush2.msra.mxu0 0.0
        %4033 = vmatprep.subr.mxu0 0.0
        %4034 = vmatpush2.msra.mxu0 0.0
        %4035 = vmatprep.mubr.f32.mxu0 0.0
        %4036 = vmatmul.mubr.f32.gmra.mxu0 %v3969
        %v4037 = vpop.f32.mrf.mxu0
        %v4038 = vadd.f32 %v3965, %v4037
        %v4039 = vpop.f32.mrf.mxu0
        %4040 = vdwg.mxu0
        %v4041 = vadd.f32 %v4038, %v588
        %v4042 = vmax.f32 %v4041, 0.0
        %v4044 = vcombine.high %v4042, %v4042
        %v4046 = vunpack.c.l.s4 1966171168
        %v4047 = vunpack.c.0.s8 %v4046
        %v4048 = vlaneseq
        %v4049 = vshrl.u32 %v4048, 7
        %v4050 = vsub.s32 %v4047, %v4049
        %v4051 = vrot.slane %v4042, %v4050
        %v4053 = vunpack.c.l.s4 1966171168
        %v4054 = vunpack.c.0.s8 %v4053
        %v4055 = vlaneseq
        %v4056 = vshrl.u32 %v4055, 7
        %v4057 = vsub.s32 %v4054, %v4056
        %v4058 = vrot.slane %v4044, %v4057
        %v4059 = vcombine.high %v4051, %v4051
        %v4060 = vcombine.high %v4058, %v4058
        %v4062 = vunpack.c.l.s4 1966171168
        %v4063 = vunpack.c.0.s8 %v4062
        %v4064 = vlaneseq
        %v4065 = vshrl.u32 %v4064, 7
        %v4066 = vsub.s32 %v4063, %v4065
        %v4067 = vrot.slane %v4051, %v4066
        %v4069 = vunpack.c.l.s4 1966171168
        %v4070 = vunpack.c.0.s8 %v4069
        %v4071 = vlaneseq
        %v4072 = vshrl.u32 %v4071, 7
        %v4073 = vsub.s32 %v4070, %v4072
        %v4074 = vrot.slane %v4058, %v4073
        %v4076 = vunpack.c.l.s4 1966171168
        %v4077 = vunpack.c.0.s8 %v4076
        %v4078 = vlaneseq
        %v4079 = vshrl.u32 %v4078, 7
        %v4080 = vsub.s32 %v4077, %v4079
        %v4081 = vrot.slane %v4059, %v4080
        %v4083 = vunpack.c.l.s4 1966171168
        %v4084 = vunpack.c.0.s8 %v4083
        %v4085 = vlaneseq
        %v4086 = vshrl.u32 %v4085, 7
        %v4087 = vsub.s32 %v4084, %v4086
        %v4088 = vrot.slane %v4060, %v4087
        %v4089 = vcombine.high %v4067, %v4067
        %v4090 = vcombine.high %v4074, %v4074
        %v4091 = vcombine.high %v4081, %v4081
        %v4092 = vcombine.high %v4088, %v4088
        %4101 = vst.msk [vmem:[%s260 + $0xc] sm:$0x1] %vm650, %v4067
        %4102 = vst.msk [vmem:[%s260 + $0x2c] sm:$0x1] %vm650, %v4081
        %4103 = vst.msk [vmem:[%s260 + $0x4c] sm:$0x1] %vm650, %v4089
        %4104 = vst.msk [vmem:[%s260 + $0x6c] sm:$0x1] %vm650, %v4091
        %4105 = vst.msk [vmem:[%s260 + $0x8c] sm:$0x1] %vm650, %v4074
        %4106 = vst.msk [vmem:[%s260 + $0xac] sm:$0x1] %vm650, %v4088
        %4107 = vst.msk [vmem:[%s260 + $0xcc] sm:$0x1] %vm650, %v4090
        %4108 = vst.msk [vmem:[%s260 + $0xec] sm:$0x1] %vm650, %v4092
        %v4110 = vsel %vm341, %v3892, 0
        %4112 = vmatprep.subr.mxu0 0.0
        %4113 = vmatpush1.msra.mxu0 0.0
        %4114 = vmatprep.subr.mxu0 0.0
        %4115 = vmatpush1.msra.mxu0 0.0
        %4116 = vmatprep.subr.mxu0 0.0
        %4117 = vmatpush1.msra.mxu0 0.0
        %4118 = vmatprep.subr.mxu0 0.0
        %4119 = vmatpush1.msra.mxu0 0.0
        %4120 = vmatprep.subr.mxu0 0.0
        %4121 = vmatpush1.msra.mxu0 0.0
        %4122 = vmatprep.subr.mxu0 0.0
        %4123 = vmatpush1.msra.mxu0 0.0
        %4124 = vmatprep.subr.mxu0 0.0
        %4125 = vmatpush1.msra.mxu0 0.0
        %4126 = vmatprep.subr.mxu0 0.0
        %4127 = vmatpush1.msra.mxu0 0.0
        %4128 = vmatprep.subr.mxu0 0.0
        %4129 = vmatpush1.msra.mxu0 0.0
        %4130 = vmatprep.subr.mxu0 0.0
        %4131 = vmatpush1.msra.mxu0 0.0
        %4132 = vmatprep.subr.mxu0 0.0
        %4133 = vmatpush1.msra.mxu0 0.0
        %4134 = vmatprep.subr.mxu0 0.0
        %4135 = vmatpush1.msra.mxu0 0.0
        %4136 = vmatprep.subr.mxu0 0.0
        %4137 = vmatpush1.msra.mxu0 0.0
        %4138 = vmatprep.subr.mxu0 0.0
        %4139 = vmatpush1.msra.mxu0 0.0
        %4140 = vmatprep.subr.mxu0 0.0
        %4141 = vmatpush1.msra.mxu0 %v270
        %4142 = vmatprep.subr.mxu0 0.0
        %4143 = vmatpush1.msra.mxu0 %v269
        %4144 = vmatprep.subr.mxu0 0.0
        %4145 = vmatpush2.msra.mxu0 0.0
        %4146 = vmatprep.subr.mxu0 0.0
        %4147 = vmatpush2.msra.mxu0 0.0
        %4148 = vmatprep.subr.mxu0 0.0
        %4149 = vmatpush2.msra.mxu0 0.0
        %4150 = vmatprep.subr.mxu0 0.0
        %4151 = vmatpush2.msra.mxu0 0.0
        %4152 = vmatprep.subr.mxu0 0.0
        %4153 = vmatpush2.msra.mxu0 0.0
        %4154 = vmatprep.subr.mxu0 0.0
        %4155 = vmatpush2.msra.mxu0 0.0
        %4156 = vmatprep.subr.mxu0 0.0
        %4157 = vmatpush2.msra.mxu0 0.0
        %4158 = vmatprep.subr.mxu0 0.0
        %4159 = vmatpush2.msra.mxu0 0.0
        %4160 = vmatprep.subr.mxu0 0.0
        %4161 = vmatpush2.msra.mxu0 0.0
        %4162 = vmatprep.subr.mxu0 0.0
        %4163 = vmatpush2.msra.mxu0 0.0
        %4164 = vmatprep.subr.mxu0 0.0
        %4165 = vmatpush2.msra.mxu0 0.0
        %4166 = vmatprep.subr.mxu0 0.0
        %4167 = vmatpush2.msra.mxu0 0.0
        %4168 = vmatprep.subr.mxu0 0.0
        %4169 = vmatpush2.msra.mxu0 0.0
        %4170 = vmatprep.subr.mxu0 0.0
        %4171 = vmatpush2.msra.mxu0 0.0
        %4172 = vmatprep.subr.mxu0 0.0
        %4173 = vmatpush2.msra.mxu0 0.0
        %4174 = vmatprep.subr.mxu0 0.0
        %4175 = vmatpush2.msra.mxu0 0.0
        %4176 = vmatprep.mubr.f32.mxu0 0.0
        %4177 = vmatmul.mubr.f32.gmra.mxu0 %v4110
        %v4178 = vpop.f32.mrf.mxu0
        %v4179 = vadd.f32 0.0, %v4178
        %v4180 = vpop.f32.mrf.mxu0
        %4181 = vdwg.mxu0
        %v4183 = vsel %vm341, %v3887, 0
        %4185 = vmatprep.subr.mxu0 0.0
        %4186 = vmatpush1.msra.mxu0 0.0
        %4187 = vmatprep.subr.mxu0 0.0
        %4188 = vmatpush1.msra.mxu0 0.0
        %4189 = vmatprep.subr.mxu0 0.0
        %4190 = vmatpush1.msra.mxu0 0.0
        %4191 = vmatprep.subr.mxu0 0.0
        %4192 = vmatpush1.msra.mxu0 0.0
        %4193 = vmatprep.subr.mxu0 0.0
        %4194 = vmatpush1.msra.mxu0 0.0
        %4195 = vmatprep.subr.mxu0 0.0
        %4196 = vmatpush1.msra.mxu0 0.0
        %4197 = vmatprep.subr.mxu0 0.0
        %4198 = vmatpush1.msra.mxu0 0.0
        %4199 = vmatprep.subr.mxu0 0.0
        %4200 = vmatpush1.msra.mxu0 0.0
        %4201 = vmatprep.subr.mxu0 0.0
        %4202 = vmatpush1.msra.mxu0 0.0
        %4203 = vmatprep.subr.mxu0 0.0
        %4204 = vmatpush1.msra.mxu0 0.0
        %4205 = vmatprep.subr.mxu0 0.0
        %4206 = vmatpush1.msra.mxu0 0.0
        %4207 = vmatprep.subr.mxu0 0.0
        %4208 = vmatpush1.msra.mxu0 0.0
        %4209 = vmatprep.subr.mxu0 0.0
        %4210 = vmatpush1.msra.mxu0 0.0
        %4211 = vmatprep.subr.mxu0 0.0
        %4212 = vmatpush1.msra.mxu0 0.0
        %4213 = vmatprep.subr.mxu0 0.0
        %4214 = vmatpush1.msra.mxu0 %v268
        %4215 = vmatprep.subr.mxu0 0.0
        %4216 = vmatpush1.msra.mxu0 %v267
        %4217 = vmatprep.subr.mxu0 0.0
        %4218 = vmatpush2.msra.mxu0 0.0
        %4219 = vmatprep.subr.mxu0 0.0
        %4220 = vmatpush2.msra.mxu0 0.0
        %4221 = vmatprep.subr.mxu0 0.0
        %4222 = vmatpush2.msra.mxu0 0.0
        %4223 = vmatprep.subr.mxu0 0.0
        %4224 = vmatpush2.msra.mxu0 0.0
        %4225 = vmatprep.subr.mxu0 0.0
        %4226 = vmatpush2.msra.mxu0 0.0
        %4227 = vmatprep.subr.mxu0 0.0
        %4228 = vmatpush2.msra.mxu0 0.0
        %4229 = vmatprep.subr.mxu0 0.0
        %4230 = vmatpush2.msra.mxu0 0.0
        %4231 = vmatprep.subr.mxu0 0.0
        %4232 = vmatpush2.msra.mxu0 0.0
        %4233 = vmatprep.subr.mxu0 0.0
        %4234 = vmatpush2.msra.mxu0 0.0
        %4235 = vmatprep.subr.mxu0 0.0
        %4236 = vmatpush2.msra.mxu0 0.0
        %4237 = vmatprep.subr.mxu0 0.0
        %4238 = vmatpush2.msra.mxu0 0.0
        %4239 = vmatprep.subr.mxu0 0.0
        %4240 = vmatpush2.msra.mxu0 0.0
        %4241 = vmatprep.subr.mxu0 0.0
        %4242 = vmatpush2.msra.mxu0 0.0
        %4243 = vmatprep.subr.mxu0 0.0
        %4244 = vmatpush2.msra.mxu0 0.0
        %4245 = vmatprep.subr.mxu0 0.0
        %4246 = vmatpush2.msra.mxu0 0.0
        %4247 = vmatprep.subr.mxu0 0.0
        %4248 = vmatpush2.msra.mxu0 0.0
        %4249 = vmatprep.mubr.f32.mxu0 0.0
        %4250 = vmatmul.mubr.f32.gmra.mxu0 %v4183
        %v4251 = vpop.f32.mrf.mxu0
        %v4252 = vadd.f32 %v4179, %v4251
        %v4253 = vpop.f32.mrf.mxu0
        %4254 = vdwg.mxu0
        %v4255 = vadd.f32 %v4252, %v588
        %v4256 = vmax.f32 %v4255, 0.0
        %v4258 = vcombine.high %v4256, %v4256
        %v4260 = vunpack.c.l.s4 1966171168
        %v4261 = vunpack.c.0.s8 %v4260
        %v4262 = vlaneseq
        %v4263 = vshrl.u32 %v4262, 7
        %v4264 = vsub.s32 %v4261, %v4263
        %v4265 = vrot.slane %v4256, %v4264
        %v4267 = vunpack.c.l.s4 1966171168
        %v4268 = vunpack.c.0.s8 %v4267
        %v4269 = vlaneseq
        %v4270 = vshrl.u32 %v4269, 7
        %v4271 = vsub.s32 %v4268, %v4270
        %v4272 = vrot.slane %v4258, %v4271
        %v4273 = vcombine.high %v4265, %v4265
        %v4274 = vcombine.high %v4272, %v4272
        %v4276 = vunpack.c.l.s4 1966171168
        %v4277 = vunpack.c.0.s8 %v4276
        %v4278 = vlaneseq
        %v4279 = vshrl.u32 %v4278, 7
        %v4280 = vsub.s32 %v4277, %v4279
        %v4281 = vrot.slane %v4265, %v4280
        %v4283 = vunpack.c.l.s4 1966171168
        %v4284 = vunpack.c.0.s8 %v4283
        %v4285 = vlaneseq
        %v4286 = vshrl.u32 %v4285, 7
        %v4287 = vsub.s32 %v4284, %v4286
        %v4288 = vrot.slane %v4272, %v4287
        %v4290 = vunpack.c.l.s4 1966171168
        %v4291 = vunpack.c.0.s8 %v4290
        %v4292 = vlaneseq
        %v4293 = vshrl.u32 %v4292, 7
        %v4294 = vsub.s32 %v4291, %v4293
        %v4295 = vrot.slane %v4273, %v4294
        %v4297 = vunpack.c.l.s4 1966171168
        %v4298 = vunpack.c.0.s8 %v4297
        %v4299 = vlaneseq
        %v4300 = vshrl.u32 %v4299, 7
        %v4301 = vsub.s32 %v4298, %v4300
        %v4302 = vrot.slane %v4274, %v4301
        %v4303 = vcombine.high %v4281, %v4281
        %v4304 = vcombine.high %v4288, %v4288
        %v4305 = vcombine.high %v4295, %v4295
        %v4306 = vcombine.high %v4302, %v4302
        %4315 = vst.msk [vmem:[%s260 + $0xd] sm:$0x1] %vm650, %v4281
        %4316 = vst.msk [vmem:[%s260 + $0x2d] sm:$0x1] %vm650, %v4295
        %4317 = vst.msk [vmem:[%s260 + $0x4d] sm:$0x1] %vm650, %v4303
        %4318 = vst.msk [vmem:[%s260 + $0x6d] sm:$0x1] %vm650, %v4305
        %4319 = vst.msk [vmem:[%s260 + $0x8d] sm:$0x1] %vm650, %v4288
        %4320 = vst.msk [vmem:[%s260 + $0xad] sm:$0x1] %vm650, %v4302
        %4321 = vst.msk [vmem:[%s260 + $0xcd] sm:$0x1] %vm650, %v4304
        %4322 = vst.msk [vmem:[%s260 + $0xed] sm:$0x1] %vm650, %v4306
        %v4323 = vld [vmem:[%s234 + $0x7] sm:$0x1]
        %v4324 = vld [vmem:[%s234 + $0x17] sm:$0x1]
        %v4325 = vld [vmem:[%s234 + $0x27] sm:$0x1]
        %v4326 = vld [vmem:[%s234 + $0x37] sm:$0x1]
        %v4327 = vld [vmem:[%s234 + $0x47] sm:$0x1]
        %v4328 = vld [vmem:[%s234 + $0x57] sm:$0x1]
        %v4329 = vld [vmem:[%s234 + $0x67] sm:$0x1]
        %v4330 = vld [vmem:[%s234 + $0x77] sm:$0x1]
        %v4331 = vld [vmem:[%s234 + $0x87] sm:$0x1]
        %v4332 = vld [vmem:[%s234 + $0x97] sm:$0x1]
        %v4333 = vld [vmem:[%s234 + $0xa7] sm:$0x1]
        %v4334 = vld [vmem:[%s234 + $0xb7] sm:$0x1]
        %v4335 = vld [vmem:[%s234 + $0xc7] sm:$0x1]
        %v4336 = vld [vmem:[%s234 + $0xd7] sm:$0x1]
        %v4337 = vld [vmem:[%s234 + $0xe7] sm:$0x1]
        %v4338 = vld [vmem:[%s234 + $0xf7] sm:$0x1]
        %v4355 = vrot.slane %v4324, 7
        %v4356 = vsel %vm305, %v4355, %v4323
        %v4357 = vrot.slane %v4325, 6
        %v4358 = vsel %vm308, %v4357, %v4356
        %v4359 = vrot.slane %v4326, 5
        %v4360 = vsel %vm311, %v4359, %v4358
        %v4361 = vrot.slane %v4327, 4
        %v4362 = vsel %vm314, %v4361, %v4360
        %v4363 = vrot.slane %v4328, 3
        %v4364 = vsel %vm317, %v4363, %v4362
        %v4365 = vrot.slane %v4329, 2
        %v4366 = vsel %vm320, %v4365, %v4364
        %v4367 = vrot.slane %v4330, 1
        %v4368 = vsel %vm323, %v4367, %v4366
        %v4369 = vrot.slane %v4332, 7
        %v4370 = vsel %vm305, %v4369, %v4331
        %v4371 = vrot.slane %v4333, 6
        %v4372 = vsel %vm308, %v4371, %v4370
        %v4373 = vrot.slane %v4334, 5
        %v4374 = vsel %vm311, %v4373, %v4372
        %v4375 = vrot.slane %v4335, 4
        %v4376 = vsel %vm314, %v4375, %v4374
        %v4377 = vrot.slane %v4336, 3
        %v4378 = vsel %vm317, %v4377, %v4376
        %v4379 = vrot.slane %v4337, 2
        %v4380 = vsel %vm320, %v4379, %v4378
        %v4381 = vrot.slane %v4338, 1
        %v4382 = vsel %vm323, %v4381, %v4380
        %4385 = vmatprep.subr.mxu0 0.0
        %4386 = vmatpush1.msra.mxu0 0.0
        %4387 = vmatprep.subr.mxu0 0.0
        %4388 = vmatpush1.msra.mxu0 0.0
        %4389 = vmatprep.subr.mxu0 0.0
        %4390 = vmatpush1.msra.mxu0 0.0
        %4391 = vmatprep.subr.mxu0 0.0
        %4392 = vmatpush1.msra.mxu0 0.0
        %4393 = vmatprep.subr.mxu0 0.0
        %4394 = vmatpush1.msra.mxu0 0.0
        %4395 = vmatprep.subr.mxu0 0.0
        %4396 = vmatpush1.msra.mxu0 0.0
        %4397 = vmatprep.subr.mxu0 0.0
        %4398 = vmatpush1.msra.mxu0 0.0
        %4399 = vmatprep.subr.mxu0 0.0
        %4400 = vmatpush1.msra.mxu0 0.0
        %4401 = vmatprep.subr.mxu0 0.0
        %4402 = vmatpush1.msra.mxu0 0.0
        %4403 = vmatprep.subr.mxu0 0.0
        %4404 = vmatpush1.msra.mxu0 0.0
        %4405 = vmatprep.subr.mxu0 0.0
        %4406 = vmatpush1.msra.mxu0 0.0
        %4407 = vmatprep.subr.mxu0 0.0
        %4408 = vmatpush1.msra.mxu0 0.0
        %4409 = vmatprep.subr.mxu0 0.0
        %4410 = vmatpush1.msra.mxu0 0.0
        %4411 = vmatprep.subr.mxu0 0.0
        %4412 = vmatpush1.msra.mxu0 0.0
        %4413 = vmatprep.subr.mxu0 0.0
        %4414 = vmatpush1.msra.mxu0 %v4382
        %4415 = vmatprep.subr.mxu0 0.0
        %4416 = vmatpush1.msra.mxu0 %v4368
        %4417 = vmatprep.subr.mxu0 0.0
        %4418 = vmatpush2.msra.mxu0 0.0
        %4419 = vmatprep.subr.mxu0 0.0
        %4420 = vmatpush2.msra.mxu0 0.0
        %4421 = vmatprep.subr.mxu0 0.0
        %4422 = vmatpush2.msra.mxu0 0.0
        %4423 = vmatprep.subr.mxu0 0.0
        %4424 = vmatpush2.msra.mxu0 0.0
        %4425 = vmatprep.subr.mxu0 0.0
        %4426 = vmatpush2.msra.mxu0 0.0
        %4427 = vmatprep.subr.mxu0 0.0
        %4428 = vmatpush2.msra.mxu0 0.0
        %4429 = vmatprep.subr.mxu0 0.0
        %4430 = vmatpush2.msra.mxu0 0.0
        %4431 = vmatprep.subr.mxu0 0.0
        %4432 = vmatpush2.msra.mxu0 0.0
        %4433 = vmatprep.subr.mxu0 0.0
        %4434 = vmatpush2.msra.mxu0 0.0
        %4435 = vmatprep.subr.mxu0 0.0
        %4436 = vmatpush2.msra.mxu0 0.0
        %4437 = vmatprep.subr.mxu0 0.0
        %4438 = vmatpush2.msra.mxu0 0.0
        %4439 = vmatprep.subr.mxu0 0.0
        %4440 = vmatpush2.msra.mxu0 0.0
        %4441 = vmatprep.subr.mxu0 0.0
        %4442 = vmatpush2.msra.mxu0 0.0
        %4443 = vmatprep.subr.mxu0 0.0
        %4444 = vmatpush2.msra.mxu0 0.0
        %4445 = vmatprep.subr.mxu0 0.0
        %4446 = vmatpush2.msra.mxu0 0.0
        %4447 = vmatprep.subr.mxu0 0.0
        %4448 = vmatpush2.msra.mxu0 0.0
        %4449 = vmatprep.mubr.f32.mxu0 0.0
        %4450 = vmatmul.mubr.f32.gmra.mxu0 %v343
        %v4451 = vpop.f32.mrf.mxu0
        %v4452 = vadd.f32 0.0, %v4451
        %v4453 = vpop.f32.mrf.mxu0
        %4454 = vmatprep.mubr.f32.mxu0 0.0
        %4455 = vmatmul.mubr.f32.gmra.mxu0 %v346
        %v4456 = vpop.f32.mrf.mxu0
        %v4457 = vadd.f32 0.0, %v4456
        %v4458 = vpop.f32.mrf.mxu0
        %4459 = vmatprep.mubr.f32.mxu0 0.0
        %4460 = vmatmul.mubr.f32.gmra.mxu0 %v349
        %v4461 = vpop.f32.mrf.mxu0
        %v4462 = vadd.f32 0.0, %v4461
        %v4463 = vpop.f32.mrf.mxu0
        %4464 = vmatprep.mubr.f32.mxu0 0.0
        %4465 = vmatmul.mubr.f32.gmra.mxu0 %v352
        %v4466 = vpop.f32.mrf.mxu0
        %v4467 = vadd.f32 0.0, %v4466
        %v4468 = vpop.f32.mrf.mxu0
        %4469 = vdwg.mxu0
        %v4471 = vsel %vm341, %v4457, 0
        %4473 = vmatprep.subr.mxu0 0.0
        %4474 = vmatpush1.msra.mxu0 0.0
        %4475 = vmatprep.subr.mxu0 0.0
        %4476 = vmatpush1.msra.mxu0 0.0
        %4477 = vmatprep.subr.mxu0 0.0
        %4478 = vmatpush1.msra.mxu0 0.0
        %4479 = vmatprep.subr.mxu0 0.0
        %4480 = vmatpush1.msra.mxu0 0.0
        %4481 = vmatprep.subr.mxu0 0.0
        %4482 = vmatpush1.msra.mxu0 0.0
        %4483 = vmatprep.subr.mxu0 0.0
        %4484 = vmatpush1.msra.mxu0 0.0
        %4485 = vmatprep.subr.mxu0 0.0
        %4486 = vmatpush1.msra.mxu0 0.0
        %4487 = vmatprep.subr.mxu0 0.0
        %4488 = vmatpush1.msra.mxu0 0.0
        %4489 = vmatprep.subr.mxu0 0.0
        %4490 = vmatpush1.msra.mxu0 0.0
        %4491 = vmatprep.subr.mxu0 0.0
        %4492 = vmatpush1.msra.mxu0 0.0
        %4493 = vmatprep.subr.mxu0 0.0
        %4494 = vmatpush1.msra.mxu0 0.0
        %4495 = vmatprep.subr.mxu0 0.0
        %4496 = vmatpush1.msra.mxu0 0.0
        %4497 = vmatprep.subr.mxu0 0.0
        %4498 = vmatpush1.msra.mxu0 0.0
        %4499 = vmatprep.subr.mxu0 0.0
        %4500 = vmatpush1.msra.mxu0 0.0
        %4501 = vmatprep.subr.mxu0 0.0
        %4502 = vmatpush1.msra.mxu0 %v270
        %4503 = vmatprep.subr.mxu0 0.0
        %4504 = vmatpush1.msra.mxu0 %v269
        %4505 = vmatprep.subr.mxu0 0.0
        %4506 = vmatpush2.msra.mxu0 0.0
        %4507 = vmatprep.subr.mxu0 0.0
        %4508 = vmatpush2.msra.mxu0 0.0
        %4509 = vmatprep.subr.mxu0 0.0
        %4510 = vmatpush2.msra.mxu0 0.0
        %4511 = vmatprep.subr.mxu0 0.0
        %4512 = vmatpush2.msra.mxu0 0.0
        %4513 = vmatprep.subr.mxu0 0.0
        %4514 = vmatpush2.msra.mxu0 0.0
        %4515 = vmatprep.subr.mxu0 0.0
        %4516 = vmatpush2.msra.mxu0 0.0
        %4517 = vmatprep.subr.mxu0 0.0
        %4518 = vmatpush2.msra.mxu0 0.0
        %4519 = vmatprep.subr.mxu0 0.0
        %4520 = vmatpush2.msra.mxu0 0.0
        %4521 = vmatprep.subr.mxu0 0.0
        %4522 = vmatpush2.msra.mxu0 0.0
        %4523 = vmatprep.subr.mxu0 0.0
        %4524 = vmatpush2.msra.mxu0 0.0
        %4525 = vmatprep.subr.mxu0 0.0
        %4526 = vmatpush2.msra.mxu0 0.0
        %4527 = vmatprep.subr.mxu0 0.0
        %4528 = vmatpush2.msra.mxu0 0.0
        %4529 = vmatprep.subr.mxu0 0.0
        %4530 = vmatpush2.msra.mxu0 0.0
        %4531 = vmatprep.subr.mxu0 0.0
        %4532 = vmatpush2.msra.mxu0 0.0
        %4533 = vmatprep.subr.mxu0 0.0
        %4534 = vmatpush2.msra.mxu0 0.0
        %4535 = vmatprep.subr.mxu0 0.0
        %4536 = vmatpush2.msra.mxu0 0.0
        %4537 = vmatprep.mubr.f32.mxu0 0.0
        %4538 = vmatmul.mubr.f32.gmra.mxu0 %v4471
        %v4539 = vpop.f32.mrf.mxu0
        %v4540 = vadd.f32 0.0, %v4539
        %v4541 = vpop.f32.mrf.mxu0
        %4542 = vdwg.mxu0
        %v4544 = vsel %vm341, %v4452, 0
        %4546 = vmatprep.subr.mxu0 0.0
        %4547 = vmatpush1.msra.mxu0 0.0
        %4548 = vmatprep.subr.mxu0 0.0
        %4549 = vmatpush1.msra.mxu0 0.0
        %4550 = vmatprep.subr.mxu0 0.0
        %4551 = vmatpush1.msra.mxu0 0.0
        %4552 = vmatprep.subr.mxu0 0.0
        %4553 = vmatpush1.msra.mxu0 0.0
        %4554 = vmatprep.subr.mxu0 0.0
        %4555 = vmatpush1.msra.mxu0 0.0
        %4556 = vmatprep.subr.mxu0 0.0
        %4557 = vmatpush1.msra.mxu0 0.0
        %4558 = vmatprep.subr.mxu0 0.0
        %4559 = vmatpush1.msra.mxu0 0.0
        %4560 = vmatprep.subr.mxu0 0.0
        %4561 = vmatpush1.msra.mxu0 0.0
        %4562 = vmatprep.subr.mxu0 0.0
        %4563 = vmatpush1.msra.mxu0 0.0
        %4564 = vmatprep.subr.mxu0 0.0
        %4565 = vmatpush1.msra.mxu0 0.0
        %4566 = vmatprep.subr.mxu0 0.0
        %4567 = vmatpush1.msra.mxu0 0.0
        %4568 = vmatprep.subr.mxu0 0.0
        %4569 = vmatpush1.msra.mxu0 0.0
        %4570 = vmatprep.subr.mxu0 0.0
        %4571 = vmatpush1.msra.mxu0 0.0
        %4572 = vmatprep.subr.mxu0 0.0
        %4573 = vmatpush1.msra.mxu0 0.0
        %4574 = vmatprep.subr.mxu0 0.0
        %4575 = vmatpush1.msra.mxu0 %v268
        %4576 = vmatprep.subr.mxu0 0.0
        %4577 = vmatpush1.msra.mxu0 %v267
        %4578 = vmatprep.subr.mxu0 0.0
        %4579 = vmatpush2.msra.mxu0 0.0
        %4580 = vmatprep.subr.mxu0 0.0
        %4581 = vmatpush2.msra.mxu0 0.0
        %4582 = vmatprep.subr.mxu0 0.0
        %4583 = vmatpush2.msra.mxu0 0.0
        %4584 = vmatprep.subr.mxu0 0.0
        %4585 = vmatpush2.msra.mxu0 0.0
        %4586 = vmatprep.subr.mxu0 0.0
        %4587 = vmatpush2.msra.mxu0 0.0
        %4588 = vmatprep.subr.mxu0 0.0
        %4589 = vmatpush2.msra.mxu0 0.0
        %4590 = vmatprep.subr.mxu0 0.0
        %4591 = vmatpush2.msra.mxu0 0.0
        %4592 = vmatprep.subr.mxu0 0.0
        %4593 = vmatpush2.msra.mxu0 0.0
        %4594 = vmatprep.subr.mxu0 0.0
        %4595 = vmatpush2.msra.mxu0 0.0
        %4596 = vmatprep.subr.mxu0 0.0
        %4597 = vmatpush2.msra.mxu0 0.0
        %4598 = vmatprep.subr.mxu0 0.0
        %4599 = vmatpush2.msra.mxu0 0.0
        %4600 = vmatprep.subr.mxu0 0.0
        %4601 = vmatpush2.msra.mxu0 0.0
        %4602 = vmatprep.subr.mxu0 0.0
        %4603 = vmatpush2.msra.mxu0 0.0
        %4604 = vmatprep.subr.mxu0 0.0
        %4605 = vmatpush2.msra.mxu0 0.0
        %4606 = vmatprep.subr.mxu0 0.0
        %4607 = vmatpush2.msra.mxu0 0.0
        %4608 = vmatprep.subr.mxu0 0.0
        %4609 = vmatpush2.msra.mxu0 0.0
        %4610 = vmatprep.mubr.f32.mxu0 0.0
        %4611 = vmatmul.mubr.f32.gmra.mxu0 %v4544
        %v4612 = vpop.f32.mrf.mxu0
        %v4613 = vadd.f32 %v4540, %v4612
        %v4614 = vpop.f32.mrf.mxu0
        %4615 = vdwg.mxu0
        %v4616 = vadd.f32 %v4613, %v588
        %v4617 = vmax.f32 %v4616, 0.0
        %v4619 = vcombine.high %v4617, %v4617
        %v4621 = vunpack.c.l.s4 1966171168
        %v4622 = vunpack.c.0.s8 %v4621
        %v4623 = vlaneseq
        %v4624 = vshrl.u32 %v4623, 7
        %v4625 = vsub.s32 %v4622, %v4624
        %v4626 = vrot.slane %v4617, %v4625
        %v4628 = vunpack.c.l.s4 1966171168
        %v4629 = vunpack.c.0.s8 %v4628
        %v4630 = vlaneseq
        %v4631 = vshrl.u32 %v4630, 7
        %v4632 = vsub.s32 %v4629, %v4631
        %v4633 = vrot.slane %v4619, %v4632
        %v4634 = vcombine.high %v4626, %v4626
        %v4635 = vcombine.high %v4633, %v4633
        %v4637 = vunpack.c.l.s4 1966171168
        %v4638 = vunpack.c.0.s8 %v4637
        %v4639 = vlaneseq
        %v4640 = vshrl.u32 %v4639, 7
        %v4641 = vsub.s32 %v4638, %v4640
        %v4642 = vrot.slane %v4626, %v4641
        %v4644 = vunpack.c.l.s4 1966171168
        %v4645 = vunpack.c.0.s8 %v4644
        %v4646 = vlaneseq
        %v4647 = vshrl.u32 %v4646, 7
        %v4648 = vsub.s32 %v4645, %v4647
        %v4649 = vrot.slane %v4633, %v4648
        %v4651 = vunpack.c.l.s4 1966171168
        %v4652 = vunpack.c.0.s8 %v4651
        %v4653 = vlaneseq
        %v4654 = vshrl.u32 %v4653, 7
        %v4655 = vsub.s32 %v4652, %v4654
        %v4656 = vrot.slane %v4634, %v4655
        %v4658 = vunpack.c.l.s4 1966171168
        %v4659 = vunpack.c.0.s8 %v4658
        %v4660 = vlaneseq
        %v4661 = vshrl.u32 %v4660, 7
        %v4662 = vsub.s32 %v4659, %v4661
        %v4663 = vrot.slane %v4635, %v4662
        %v4664 = vcombine.high %v4642, %v4642
        %v4665 = vcombine.high %v4649, %v4649
        %v4666 = vcombine.high %v4656, %v4656
        %v4667 = vcombine.high %v4663, %v4663
        %4676 = vst.msk [vmem:[%s260 + $0xe] sm:$0x1] %vm650, %v4642
        %4677 = vst.msk [vmem:[%s260 + $0x2e] sm:$0x1] %vm650, %v4656
        %4678 = vst.msk [vmem:[%s260 + $0x4e] sm:$0x1] %vm650, %v4664
        %4679 = vst.msk [vmem:[%s260 + $0x6e] sm:$0x1] %vm650, %v4666
        %4680 = vst.msk [vmem:[%s260 + $0x8e] sm:$0x1] %vm650, %v4649
        %4681 = vst.msk [vmem:[%s260 + $0xae] sm:$0x1] %vm650, %v4663
        %4682 = vst.msk [vmem:[%s260 + $0xce] sm:$0x1] %vm650, %v4665
        %4683 = vst.msk [vmem:[%s260 + $0xee] sm:$0x1] %vm650, %v4667
        %v4685 = vsel %vm341, %v4467, 0
        %4687 = vmatprep.subr.mxu0 0.0
        %4688 = vmatpush1.msra.mxu0 0.0
        %4689 = vmatprep.subr.mxu0 0.0
        %4690 = vmatpush1.msra.mxu0 0.0
        %4691 = vmatprep.subr.mxu0 0.0
        %4692 = vmatpush1.msra.mxu0 0.0
        %4693 = vmatprep.subr.mxu0 0.0
        %4694 = vmatpush1.msra.mxu0 0.0
        %4695 = vmatprep.subr.mxu0 0.0
        %4696 = vmatpush1.msra.mxu0 0.0
        %4697 = vmatprep.subr.mxu0 0.0
        %4698 = vmatpush1.msra.mxu0 0.0
        %4699 = vmatprep.subr.mxu0 0.0
        %4700 = vmatpush1.msra.mxu0 0.0
        %4701 = vmatprep.subr.mxu0 0.0
        %4702 = vmatpush1.msra.mxu0 0.0
        %4703 = vmatprep.subr.mxu0 0.0
        %4704 = vmatpush1.msra.mxu0 0.0
        %4705 = vmatprep.subr.mxu0 0.0
        %4706 = vmatpush1.msra.mxu0 0.0
        %4707 = vmatprep.subr.mxu0 0.0
        %4708 = vmatpush1.msra.mxu0 0.0
        %4709 = vmatprep.subr.mxu0 0.0
        %4710 = vmatpush1.msra.mxu0 0.0
        %4711 = vmatprep.subr.mxu0 0.0
        %4712 = vmatpush1.msra.mxu0 0.0
        %4713 = vmatprep.subr.mxu0 0.0
        %4714 = vmatpush1.msra.mxu0 0.0
        %4715 = vmatprep.subr.mxu0 0.0
        %4716 = vmatpush1.msra.mxu0 %v270
        %4717 = vmatprep.subr.mxu0 0.0
        %4718 = vmatpush1.msra.mxu0 %v269
        %4719 = vmatprep.subr.mxu0 0.0
        %4720 = vmatpush2.msra.mxu0 0.0
        %4721 = vmatprep.subr.mxu0 0.0
        %4722 = vmatpush2.msra.mxu0 0.0
        %4723 = vmatprep.subr.mxu0 0.0
        %4724 = vmatpush2.msra.mxu0 0.0
        %4725 = vmatprep.subr.mxu0 0.0
        %4726 = vmatpush2.msra.mxu0 0.0
        %4727 = vmatprep.subr.mxu0 0.0
        %4728 = vmatpush2.msra.mxu0 0.0
        %4729 = vmatprep.subr.mxu0 0.0
        %4730 = vmatpush2.msra.mxu0 0.0
        %4731 = vmatprep.subr.mxu0 0.0
        %4732 = vmatpush2.msra.mxu0 0.0
        %4733 = vmatprep.subr.mxu0 0.0
        %4734 = vmatpush2.msra.mxu0 0.0
        %4735 = vmatprep.subr.mxu0 0.0
        %4736 = vmatpush2.msra.mxu0 0.0
        %4737 = vmatprep.subr.mxu0 0.0
        %4738 = vmatpush2.msra.mxu0 0.0
        %4739 = vmatprep.subr.mxu0 0.0
        %4740 = vmatpush2.msra.mxu0 0.0
        %4741 = vmatprep.subr.mxu0 0.0
        %4742 = vmatpush2.msra.mxu0 0.0
        %4743 = vmatprep.subr.mxu0 0.0
        %4744 = vmatpush2.msra.mxu0 0.0
        %4745 = vmatprep.subr.mxu0 0.0
        %4746 = vmatpush2.msra.mxu0 0.0
        %4747 = vmatprep.subr.mxu0 0.0
        %4748 = vmatpush2.msra.mxu0 0.0
        %4749 = vmatprep.subr.mxu0 0.0
        %4750 = vmatpush2.msra.mxu0 0.0
        %4751 = vmatprep.mubr.f32.mxu0 0.0
        %4752 = vmatmul.mubr.f32.gmra.mxu0 %v4685
        %v4753 = vpop.f32.mrf.mxu0
        %v4754 = vadd.f32 0.0, %v4753
        %v4755 = vpop.f32.mrf.mxu0
        %4756 = vdwg.mxu0
        %v4758 = vsel %vm341, %v4462, 0
        %4760 = vmatprep.subr.mxu0 0.0
        %4761 = vmatpush1.msra.mxu0 0.0
        %4762 = vmatprep.subr.mxu0 0.0
        %4763 = vmatpush1.msra.mxu0 0.0
        %4764 = vmatprep.subr.mxu0 0.0
        %4765 = vmatpush1.msra.mxu0 0.0
        %4766 = vmatprep.subr.mxu0 0.0
        %4767 = vmatpush1.msra.mxu0 0.0
        %4768 = vmatprep.subr.mxu0 0.0
        %4769 = vmatpush1.msra.mxu0 0.0
        %4770 = vmatprep.subr.mxu0 0.0
        %4771 = vmatpush1.msra.mxu0 0.0
        %4772 = vmatprep.subr.mxu0 0.0
        %4773 = vmatpush1.msra.mxu0 0.0
        %4774 = vmatprep.subr.mxu0 0.0
        %4775 = vmatpush1.msra.mxu0 0.0
        %4776 = vmatprep.subr.mxu0 0.0
        %4777 = vmatpush1.msra.mxu0 0.0
        %4778 = vmatprep.subr.mxu0 0.0
        %4779 = vmatpush1.msra.mxu0 0.0
        %4780 = vmatprep.subr.mxu0 0.0
        %4781 = vmatpush1.msra.mxu0 0.0
        %4782 = vmatprep.subr.mxu0 0.0
        %4783 = vmatpush1.msra.mxu0 0.0
        %4784 = vmatprep.subr.mxu0 0.0
        %4785 = vmatpush1.msra.mxu0 0.0
        %4786 = vmatprep.subr.mxu0 0.0
        %4787 = vmatpush1.msra.mxu0 0.0
        %4788 = vmatprep.subr.mxu0 0.0
        %4789 = vmatpush1.msra.mxu0 %v268
        %4790 = vmatprep.subr.mxu0 0.0
        %4791 = vmatpush1.msra.mxu0 %v267
        %4792 = vmatprep.subr.mxu0 0.0
        %4793 = vmatpush2.msra.mxu0 0.0
        %4794 = vmatprep.subr.mxu0 0.0
        %4795 = vmatpush2.msra.mxu0 0.0
        %4796 = vmatprep.subr.mxu0 0.0
        %4797 = vmatpush2.msra.mxu0 0.0
        %4798 = vmatprep.subr.mxu0 0.0
        %4799 = vmatpush2.msra.mxu0 0.0
        %4800 = vmatprep.subr.mxu0 0.0
        %4801 = vmatpush2.msra.mxu0 0.0
        %4802 = vmatprep.subr.mxu0 0.0
        %4803 = vmatpush2.msra.mxu0 0.0
        %4804 = vmatprep.subr.mxu0 0.0
        %4805 = vmatpush2.msra.mxu0 0.0
        %4806 = vmatprep.subr.mxu0 0.0
        %4807 = vmatpush2.msra.mxu0 0.0
        %4808 = vmatprep.subr.mxu0 0.0
        %4809 = vmatpush2.msra.mxu0 0.0
        %4810 = vmatprep.subr.mxu0 0.0
        %4811 = vmatpush2.msra.mxu0 0.0
        %4812 = vmatprep.subr.mxu0 0.0
        %4813 = vmatpush2.msra.mxu0 0.0
        %4814 = vmatprep.subr.mxu0 0.0
        %4815 = vmatpush2.msra.mxu0 0.0
        %4816 = vmatprep.subr.mxu0 0.0
        %4817 = vmatpush2.msra.mxu0 0.0
        %4818 = vmatprep.subr.mxu0 0.0
        %4819 = vmatpush2.msra.mxu0 0.0
        %4820 = vmatprep.subr.mxu0 0.0
        %4821 = vmatpush2.msra.mxu0 0.0
        %4822 = vmatprep.subr.mxu0 0.0
        %4823 = vmatpush2.msra.mxu0 0.0
        %4824 = vmatprep.mubr.f32.mxu0 0.0
        %4825 = vmatmul.mubr.f32.gmra.mxu0 %v4758
        %v4826 = vpop.f32.mrf.mxu0
        %v4827 = vadd.f32 %v4754, %v4826
        %v4828 = vpop.f32.mrf.mxu0
        %4829 = vdwg.mxu0
        %v4830 = vadd.f32 %v4827, %v588
        %v4831 = vmax.f32 %v4830, 0.0
        %v4833 = vcombine.high %v4831, %v4831
        %v4835 = vunpack.c.l.s4 1966171168
        %v4836 = vunpack.c.0.s8 %v4835
        %v4837 = vlaneseq
        %v4838 = vshrl.u32 %v4837, 7
        %v4839 = vsub.s32 %v4836, %v4838
        %v4840 = vrot.slane %v4831, %v4839
        %v4842 = vunpack.c.l.s4 1966171168
        %v4843 = vunpack.c.0.s8 %v4842
        %v4844 = vlaneseq
        %v4845 = vshrl.u32 %v4844, 7
        %v4846 = vsub.s32 %v4843, %v4845
        %v4847 = vrot.slane %v4833, %v4846
        %v4848 = vcombine.high %v4840, %v4840
        %v4849 = vcombine.high %v4847, %v4847
        %v4851 = vunpack.c.l.s4 1966171168
        %v4852 = vunpack.c.0.s8 %v4851
        %v4853 = vlaneseq
        %v4854 = vshrl.u32 %v4853, 7
        %v4855 = vsub.s32 %v4852, %v4854
        %v4856 = vrot.slane %v4840, %v4855
        %v4858 = vunpack.c.l.s4 1966171168
        %v4859 = vunpack.c.0.s8 %v4858
        %v4860 = vlaneseq
        %v4861 = vshrl.u32 %v4860, 7
        %v4862 = vsub.s32 %v4859, %v4861
        %v4863 = vrot.slane %v4847, %v4862
        %v4865 = vunpack.c.l.s4 1966171168
        %v4866 = vunpack.c.0.s8 %v4865
        %v4867 = vlaneseq
        %v4868 = vshrl.u32 %v4867, 7
        %v4869 = vsub.s32 %v4866, %v4868
        %v4870 = vrot.slane %v4848, %v4869
        %v4872 = vunpack.c.l.s4 1966171168
        %v4873 = vunpack.c.0.s8 %v4872
        %v4874 = vlaneseq
        %v4875 = vshrl.u32 %v4874, 7
        %v4876 = vsub.s32 %v4873, %v4875
        %v4877 = vrot.slane %v4849, %v4876
        %v4878 = vcombine.high %v4856, %v4856
        %v4879 = vcombine.high %v4863, %v4863
        %v4880 = vcombine.high %v4870, %v4870
        %v4881 = vcombine.high %v4877, %v4877
        %4890 = vst.msk [vmem:[%s260 + $0xf] sm:$0x1] %vm650, %v4856
        %4891 = vst.msk [vmem:[%s260 + $0x2f] sm:$0x1] %vm650, %v4870
        %4892 = vst.msk [vmem:[%s260 + $0x4f] sm:$0x1] %vm650, %v4878
        %4893 = vst.msk [vmem:[%s260 + $0x6f] sm:$0x1] %vm650, %v4880
        %4894 = vst.msk [vmem:[%s260 + $0x8f] sm:$0x1] %vm650, %v4863
        %4895 = vst.msk [vmem:[%s260 + $0xaf] sm:$0x1] %vm650, %v4877
        %4896 = vst.msk [vmem:[%s260 + $0xcf] sm:$0x1] %vm650, %v4879
        %4897 = vst.msk [vmem:[%s260 + $0xef] sm:$0x1] %vm650, %v4881
        %v4898 = vld [vmem:[%s234 + $0x8] sm:$0x1]
        %v4899 = vld [vmem:[%s234 + $0x18] sm:$0x1]
        %v4900 = vld [vmem:[%s234 + $0x28] sm:$0x1]
        %v4901 = vld [vmem:[%s234 + $0x38] sm:$0x1]
        %v4902 = vld [vmem:[%s234 + $0x48] sm:$0x1]
        %v4903 = vld [vmem:[%s234 + $0x58] sm:$0x1]
        %v4904 = vld [vmem:[%s234 + $0x68] sm:$0x1]
        %v4905 = vld [vmem:[%s234 + $0x78] sm:$0x1]
        %v4906 = vld [vmem:[%s234 + $0x88] sm:$0x1]
        %v4907 = vld [vmem:[%s234 + $0x98] sm:$0x1]
        %v4908 = vld [vmem:[%s234 + $0xa8] sm:$0x1]
        %v4909 = vld [vmem:[%s234 + $0xb8] sm:$0x1]
        %v4910 = vld [vmem:[%s234 + $0xc8] sm:$0x1]
        %v4911 = vld [vmem:[%s234 + $0xd8] sm:$0x1]
        %v4912 = vld [vmem:[%s234 + $0xe8] sm:$0x1]
        %v4913 = vld [vmem:[%s234 + $0xf8] sm:$0x1]
        %v4930 = vrot.slane %v4899, 7
        %v4931 = vsel %vm305, %v4930, %v4898
        %v4932 = vrot.slane %v4900, 6
        %v4933 = vsel %vm308, %v4932, %v4931
        %v4934 = vrot.slane %v4901, 5
        %v4935 = vsel %vm311, %v4934, %v4933
        %v4936 = vrot.slane %v4902, 4
        %v4937 = vsel %vm314, %v4936, %v4935
        %v4938 = vrot.slane %v4903, 3
        %v4939 = vsel %vm317, %v4938, %v4937
        %v4940 = vrot.slane %v4904, 2
        %v4941 = vsel %vm320, %v4940, %v4939
        %v4942 = vrot.slane %v4905, 1
        %v4943 = vsel %vm323, %v4942, %v4941
        %v4944 = vrot.slane %v4907, 7
        %v4945 = vsel %vm305, %v4944, %v4906
        %v4946 = vrot.slane %v4908, 6
        %v4947 = vsel %vm308, %v4946, %v4945
        %v4948 = vrot.slane %v4909, 5
        %v4949 = vsel %vm311, %v4948, %v4947
        %v4950 = vrot.slane %v4910, 4
        %v4951 = vsel %vm314, %v4950, %v4949
        %v4952 = vrot.slane %v4911, 3
        %v4953 = vsel %vm317, %v4952, %v4951
        %v4954 = vrot.slane %v4912, 2
        %v4955 = vsel %vm320, %v4954, %v4953
        %v4956 = vrot.slane %v4913, 1
        %v4957 = vsel %vm323, %v4956, %v4955
        %4960 = vmatprep.subr.mxu0 0.0
        %4961 = vmatpush1.msra.mxu0 0.0
        %4962 = vmatprep.subr.mxu0 0.0
        %4963 = vmatpush1.msra.mxu0 0.0
        %4964 = vmatprep.subr.mxu0 0.0
        %4965 = vmatpush1.msra.mxu0 0.0
        %4966 = vmatprep.subr.mxu0 0.0
        %4967 = vmatpush1.msra.mxu0 0.0
        %4968 = vmatprep.subr.mxu0 0.0
        %4969 = vmatpush1.msra.mxu0 0.0
        %4970 = vmatprep.subr.mxu0 0.0
        %4971 = vmatpush1.msra.mxu0 0.0
        %4972 = vmatprep.subr.mxu0 0.0
        %4973 = vmatpush1.msra.mxu0 0.0
        %4974 = vmatprep.subr.mxu0 0.0
        %4975 = vmatpush1.msra.mxu0 0.0
        %4976 = vmatprep.subr.mxu0 0.0
        %4977 = vmatpush1.msra.mxu0 0.0
        %4978 = vmatprep.subr.mxu0 0.0
        %4979 = vmatpush1.msra.mxu0 0.0
        %4980 = vmatprep.subr.mxu0 0.0
        %4981 = vmatpush1.msra.mxu0 0.0
        %4982 = vmatprep.subr.mxu0 0.0
        %4983 = vmatpush1.msra.mxu0 0.0
        %4984 = vmatprep.subr.mxu0 0.0
        %4985 = vmatpush1.msra.mxu0 0.0
        %4986 = vmatprep.subr.mxu0 0.0
        %4987 = vmatpush1.msra.mxu0 0.0
        %4988 = vmatprep.subr.mxu0 0.0
        %4989 = vmatpush1.msra.mxu0 %v4957
        %4990 = vmatprep.subr.mxu0 0.0
        %4991 = vmatpush1.msra.mxu0 %v4943
        %4992 = vmatprep.subr.mxu0 0.0
        %4993 = vmatpush2.msra.mxu0 0.0
        %4994 = vmatprep.subr.mxu0 0.0
        %4995 = vmatpush2.msra.mxu0 0.0
        %4996 = vmatprep.subr.mxu0 0.0
        %4997 = vmatpush2.msra.mxu0 0.0
        %4998 = vmatprep.subr.mxu0 0.0
        %4999 = vmatpush2.msra.mxu0 0.0
        %5000 = vmatprep.subr.mxu0 0.0
        %5001 = vmatpush2.msra.mxu0 0.0
        %5002 = vmatprep.subr.mxu0 0.0
        %5003 = vmatpush2.msra.mxu0 0.0
        %5004 = vmatprep.subr.mxu0 0.0
        %5005 = vmatpush2.msra.mxu0 0.0
        %5006 = vmatprep.subr.mxu0 0.0
        %5007 = vmatpush2.msra.mxu0 0.0
        %5008 = vmatprep.subr.mxu0 0.0
        %5009 = vmatpush2.msra.mxu0 0.0
        %5010 = vmatprep.subr.mxu0 0.0
        %5011 = vmatpush2.msra.mxu0 0.0
        %5012 = vmatprep.subr.mxu0 0.0
        %5013 = vmatpush2.msra.mxu0 0.0
        %5014 = vmatprep.subr.mxu0 0.0
        %5015 = vmatpush2.msra.mxu0 0.0
        %5016 = vmatprep.subr.mxu0 0.0
        %5017 = vmatpush2.msra.mxu0 0.0
        %5018 = vmatprep.subr.mxu0 0.0
        %5019 = vmatpush2.msra.mxu0 0.0
        %5020 = vmatprep.subr.mxu0 0.0
        %5021 = vmatpush2.msra.mxu0 0.0
        %5022 = vmatprep.subr.mxu0 0.0
        %5023 = vmatpush2.msra.mxu0 0.0
        %5024 = vmatprep.mubr.f32.mxu0 0.0
        %5025 = vmatmul.mubr.f32.gmra.mxu0 %v343
        %v5026 = vpop.f32.mrf.mxu0
        %v5027 = vadd.f32 0.0, %v5026
        %v5028 = vpop.f32.mrf.mxu0
        %5029 = vmatprep.mubr.f32.mxu0 0.0
        %5030 = vmatmul.mubr.f32.gmra.mxu0 %v346
        %v5031 = vpop.f32.mrf.mxu0
        %v5032 = vadd.f32 0.0, %v5031
        %v5033 = vpop.f32.mrf.mxu0
        %5034 = vmatprep.mubr.f32.mxu0 0.0
        %5035 = vmatmul.mubr.f32.gmra.mxu0 %v349
        %v5036 = vpop.f32.mrf.mxu0
        %v5037 = vadd.f32 0.0, %v5036
        %v5038 = vpop.f32.mrf.mxu0
        %5039 = vmatprep.mubr.f32.mxu0 0.0
        %5040 = vmatmul.mubr.f32.gmra.mxu0 %v352
        %v5041 = vpop.f32.mrf.mxu0
        %v5042 = vadd.f32 0.0, %v5041
        %v5043 = vpop.f32.mrf.mxu0
        %5044 = vdwg.mxu0
        %v5046 = vsel %vm341, %v5032, 0
        %5048 = vmatprep.subr.mxu0 0.0
        %5049 = vmatpush1.msra.mxu0 0.0
        %5050 = vmatprep.subr.mxu0 0.0
        %5051 = vmatpush1.msra.mxu0 0.0
        %5052 = vmatprep.subr.mxu0 0.0
        %5053 = vmatpush1.msra.mxu0 0.0
        %5054 = vmatprep.subr.mxu0 0.0
        %5055 = vmatpush1.msra.mxu0 0.0
        %5056 = vmatprep.subr.mxu0 0.0
        %5057 = vmatpush1.msra.mxu0 0.0
        %5058 = vmatprep.subr.mxu0 0.0
        %5059 = vmatpush1.msra.mxu0 0.0
        %5060 = vmatprep.subr.mxu0 0.0
        %5061 = vmatpush1.msra.mxu0 0.0
        %5062 = vmatprep.subr.mxu0 0.0
        %5063 = vmatpush1.msra.mxu0 0.0
        %5064 = vmatprep.subr.mxu0 0.0
        %5065 = vmatpush1.msra.mxu0 0.0
        %5066 = vmatprep.subr.mxu0 0.0
        %5067 = vmatpush1.msra.mxu0 0.0
        %5068 = vmatprep.subr.mxu0 0.0
        %5069 = vmatpush1.msra.mxu0 0.0
        %5070 = vmatprep.subr.mxu0 0.0
        %5071 = vmatpush1.msra.mxu0 0.0
        %5072 = vmatprep.subr.mxu0 0.0
        %5073 = vmatpush1.msra.mxu0 0.0
        %5074 = vmatprep.subr.mxu0 0.0
        %5075 = vmatpush1.msra.mxu0 0.0
        %5076 = vmatprep.subr.mxu0 0.0
        %5077 = vmatpush1.msra.mxu0 %v270
        %5078 = vmatprep.subr.mxu0 0.0
        %5079 = vmatpush1.msra.mxu0 %v269
        %5080 = vmatprep.subr.mxu0 0.0
        %5081 = vmatpush2.msra.mxu0 0.0
        %5082 = vmatprep.subr.mxu0 0.0
        %5083 = vmatpush2.msra.mxu0 0.0
        %5084 = vmatprep.subr.mxu0 0.0
        %5085 = vmatpush2.msra.mxu0 0.0
        %5086 = vmatprep.subr.mxu0 0.0
        %5087 = vmatpush2.msra.mxu0 0.0
        %5088 = vmatprep.subr.mxu0 0.0
        %5089 = vmatpush2.msra.mxu0 0.0
        %5090 = vmatprep.subr.mxu0 0.0
        %5091 = vmatpush2.msra.mxu0 0.0
        %5092 = vmatprep.subr.mxu0 0.0
        %5093 = vmatpush2.msra.mxu0 0.0
        %5094 = vmatprep.subr.mxu0 0.0
        %5095 = vmatpush2.msra.mxu0 0.0
        %5096 = vmatprep.subr.mxu0 0.0
        %5097 = vmatpush2.msra.mxu0 0.0
        %5098 = vmatprep.subr.mxu0 0.0
        %5099 = vmatpush2.msra.mxu0 0.0
        %5100 = vmatprep.subr.mxu0 0.0
        %5101 = vmatpush2.msra.mxu0 0.0
        %5102 = vmatprep.subr.mxu0 0.0
        %5103 = vmatpush2.msra.mxu0 0.0
        %5104 = vmatprep.subr.mxu0 0.0
        %5105 = vmatpush2.msra.mxu0 0.0
        %5106 = vmatprep.subr.mxu0 0.0
        %5107 = vmatpush2.msra.mxu0 0.0
        %5108 = vmatprep.subr.mxu0 0.0
        %5109 = vmatpush2.msra.mxu0 0.0
        %5110 = vmatprep.subr.mxu0 0.0
        %5111 = vmatpush2.msra.mxu0 0.0
        %5112 = vmatprep.mubr.f32.mxu0 0.0
        %5113 = vmatmul.mubr.f32.gmra.mxu0 %v5046
        %v5114 = vpop.f32.mrf.mxu0
        %v5115 = vadd.f32 0.0, %v5114
        %v5116 = vpop.f32.mrf.mxu0
        %5117 = vdwg.mxu0
        %v5119 = vsel %vm341, %v5027, 0
        %5121 = vmatprep.subr.mxu0 0.0
        %5122 = vmatpush1.msra.mxu0 0.0
        %5123 = vmatprep.subr.mxu0 0.0
        %5124 = vmatpush1.msra.mxu0 0.0
        %5125 = vmatprep.subr.mxu0 0.0
        %5126 = vmatpush1.msra.mxu0 0.0
        %5127 = vmatprep.subr.mxu0 0.0
        %5128 = vmatpush1.msra.mxu0 0.0
        %5129 = vmatprep.subr.mxu0 0.0
        %5130 = vmatpush1.msra.mxu0 0.0
        %5131 = vmatprep.subr.mxu0 0.0
        %5132 = vmatpush1.msra.mxu0 0.0
        %5133 = vmatprep.subr.mxu0 0.0
        %5134 = vmatpush1.msra.mxu0 0.0
        %5135 = vmatprep.subr.mxu0 0.0
        %5136 = vmatpush1.msra.mxu0 0.0
        %5137 = vmatprep.subr.mxu0 0.0
        %5138 = vmatpush1.msra.mxu0 0.0
        %5139 = vmatprep.subr.mxu0 0.0
        %5140 = vmatpush1.msra.mxu0 0.0
        %5141 = vmatprep.subr.mxu0 0.0
        %5142 = vmatpush1.msra.mxu0 0.0
        %5143 = vmatprep.subr.mxu0 0.0
        %5144 = vmatpush1.msra.mxu0 0.0
        %5145 = vmatprep.subr.mxu0 0.0
        %5146 = vmatpush1.msra.mxu0 0.0
        %5147 = vmatprep.subr.mxu0 0.0
        %5148 = vmatpush1.msra.mxu0 0.0
        %5149 = vmatprep.subr.mxu0 0.0
        %5150 = vmatpush1.msra.mxu0 %v268
        %5151 = vmatprep.subr.mxu0 0.0
        %5152 = vmatpush1.msra.mxu0 %v267
        %5153 = vmatprep.subr.mxu0 0.0
        %5154 = vmatpush2.msra.mxu0 0.0
        %5155 = vmatprep.subr.mxu0 0.0
        %5156 = vmatpush2.msra.mxu0 0.0
        %5157 = vmatprep.subr.mxu0 0.0
        %5158 = vmatpush2.msra.mxu0 0.0
        %5159 = vmatprep.subr.mxu0 0.0
        %5160 = vmatpush2.msra.mxu0 0.0
        %5161 = vmatprep.subr.mxu0 0.0
        %5162 = vmatpush2.msra.mxu0 0.0
        %5163 = vmatprep.subr.mxu0 0.0
        %5164 = vmatpush2.msra.mxu0 0.0
        %5165 = vmatprep.subr.mxu0 0.0
        %5166 = vmatpush2.msra.mxu0 0.0
        %5167 = vmatprep.subr.mxu0 0.0
        %5168 = vmatpush2.msra.mxu0 0.0
        %5169 = vmatprep.subr.mxu0 0.0
        %5170 = vmatpush2.msra.mxu0 0.0
        %5171 = vmatprep.subr.mxu0 0.0
        %5172 = vmatpush2.msra.mxu0 0.0
        %5173 = vmatprep.subr.mxu0 0.0
        %5174 = vmatpush2.msra.mxu0 0.0
        %5175 = vmatprep.subr.mxu0 0.0
        %5176 = vmatpush2.msra.mxu0 0.0
        %5177 = vmatprep.subr.mxu0 0.0
        %5178 = vmatpush2.msra.mxu0 0.0
        %5179 = vmatprep.subr.mxu0 0.0
        %5180 = vmatpush2.msra.mxu0 0.0
        %5181 = vmatprep.subr.mxu0 0.0
        %5182 = vmatpush2.msra.mxu0 0.0
        %5183 = vmatprep.subr.mxu0 0.0
        %5184 = vmatpush2.msra.mxu0 0.0
        %5185 = vmatprep.mubr.f32.mxu0 0.0
        %5186 = vmatmul.mubr.f32.gmra.mxu0 %v5119
        %v5187 = vpop.f32.mrf.mxu0
        %v5188 = vadd.f32 %v5115, %v5187
        %v5189 = vpop.f32.mrf.mxu0
        %5190 = vdwg.mxu0
        %v5191 = vadd.f32 %v5188, %v588
        %v5192 = vmax.f32 %v5191, 0.0
        %v5194 = vcombine.high %v5192, %v5192
        %v5196 = vunpack.c.l.s4 1966171168
        %v5197 = vunpack.c.0.s8 %v5196
        %v5198 = vlaneseq
        %v5199 = vshrl.u32 %v5198, 7
        %v5200 = vsub.s32 %v5197, %v5199
        %v5201 = vrot.slane %v5192, %v5200
        %v5203 = vunpack.c.l.s4 1966171168
        %v5204 = vunpack.c.0.s8 %v5203
        %v5205 = vlaneseq
        %v5206 = vshrl.u32 %v5205, 7
        %v5207 = vsub.s32 %v5204, %v5206
        %v5208 = vrot.slane %v5194, %v5207
        %v5209 = vcombine.high %v5201, %v5201
        %v5210 = vcombine.high %v5208, %v5208
        %v5212 = vunpack.c.l.s4 1966171168
        %v5213 = vunpack.c.0.s8 %v5212
        %v5214 = vlaneseq
        %v5215 = vshrl.u32 %v5214, 7
        %v5216 = vsub.s32 %v5213, %v5215
        %v5217 = vrot.slane %v5201, %v5216
        %v5219 = vunpack.c.l.s4 1966171168
        %v5220 = vunpack.c.0.s8 %v5219
        %v5221 = vlaneseq
        %v5222 = vshrl.u32 %v5221, 7
        %v5223 = vsub.s32 %v5220, %v5222
        %v5224 = vrot.slane %v5208, %v5223
        %v5226 = vunpack.c.l.s4 1966171168
        %v5227 = vunpack.c.0.s8 %v5226
        %v5228 = vlaneseq
        %v5229 = vshrl.u32 %v5228, 7
        %v5230 = vsub.s32 %v5227, %v5229
        %v5231 = vrot.slane %v5209, %v5230
        %v5233 = vunpack.c.l.s4 1966171168
        %v5234 = vunpack.c.0.s8 %v5233
        %v5235 = vlaneseq
        %v5236 = vshrl.u32 %v5235, 7
        %v5237 = vsub.s32 %v5234, %v5236
        %v5238 = vrot.slane %v5210, %v5237
        %v5239 = vcombine.high %v5217, %v5217
        %v5240 = vcombine.high %v5224, %v5224
        %v5241 = vcombine.high %v5231, %v5231
        %v5242 = vcombine.high %v5238, %v5238
        %5251 = vst.msk [vmem:[%s260 + $0x10] sm:$0x1] %vm650, %v5217
        %5252 = vst.msk [vmem:[%s260 + $0x30] sm:$0x1] %vm650, %v5231
        %5253 = vst.msk [vmem:[%s260 + $0x50] sm:$0x1] %vm650, %v5239
        %5254 = vst.msk [vmem:[%s260 + $0x70] sm:$0x1] %vm650, %v5241
        %5255 = vst.msk [vmem:[%s260 + $0x90] sm:$0x1] %vm650, %v5224
        %5256 = vst.msk [vmem:[%s260 + $0xb0] sm:$0x1] %vm650, %v5238
        %5257 = vst.msk [vmem:[%s260 + $0xd0] sm:$0x1] %vm650, %v5240
        %5258 = vst.msk [vmem:[%s260 + $0xf0] sm:$0x1] %vm650, %v5242
        %v5260 = vsel %vm341, %v5042, 0
        %5262 = vmatprep.subr.mxu0 0.0
        %5263 = vmatpush1.msra.mxu0 0.0
        %5264 = vmatprep.subr.mxu0 0.0
        %5265 = vmatpush1.msra.mxu0 0.0
        %5266 = vmatprep.subr.mxu0 0.0
        %5267 = vmatpush1.msra.mxu0 0.0
        %5268 = vmatprep.subr.mxu0 0.0
        %5269 = vmatpush1.msra.mxu0 0.0
        %5270 = vmatprep.subr.mxu0 0.0
        %5271 = vmatpush1.msra.mxu0 0.0
        %5272 = vmatprep.subr.mxu0 0.0
        %5273 = vmatpush1.msra.mxu0 0.0
        %5274 = vmatprep.subr.mxu0 0.0
        %5275 = vmatpush1.msra.mxu0 0.0
        %5276 = vmatprep.subr.mxu0 0.0
        %5277 = vmatpush1.msra.mxu0 0.0
        %5278 = vmatprep.subr.mxu0 0.0
        %5279 = vmatpush1.msra.mxu0 0.0
        %5280 = vmatprep.subr.mxu0 0.0
        %5281 = vmatpush1.msra.mxu0 0.0
        %5282 = vmatprep.subr.mxu0 0.0
        %5283 = vmatpush1.msra.mxu0 0.0
        %5284 = vmatprep.subr.mxu0 0.0
        %5285 = vmatpush1.msra.mxu0 0.0
        %5286 = vmatprep.subr.mxu0 0.0
        %5287 = vmatpush1.msra.mxu0 0.0
        %5288 = vmatprep.subr.mxu0 0.0
        %5289 = vmatpush1.msra.mxu0 0.0
        %5290 = vmatprep.subr.mxu0 0.0
        %5291 = vmatpush1.msra.mxu0 %v270
        %5292 = vmatprep.subr.mxu0 0.0
        %5293 = vmatpush1.msra.mxu0 %v269
        %5294 = vmatprep.subr.mxu0 0.0
        %5295 = vmatpush2.msra.mxu0 0.0
        %5296 = vmatprep.subr.mxu0 0.0
        %5297 = vmatpush2.msra.mxu0 0.0
        %5298 = vmatprep.subr.mxu0 0.0
        %5299 = vmatpush2.msra.mxu0 0.0
        %5300 = vmatprep.subr.mxu0 0.0
        %5301 = vmatpush2.msra.mxu0 0.0
        %5302 = vmatprep.subr.mxu0 0.0
        %5303 = vmatpush2.msra.mxu0 0.0
        %5304 = vmatprep.subr.mxu0 0.0
        %5305 = vmatpush2.msra.mxu0 0.0
        %5306 = vmatprep.subr.mxu0 0.0
        %5307 = vmatpush2.msra.mxu0 0.0
        %5308 = vmatprep.subr.mxu0 0.0
        %5309 = vmatpush2.msra.mxu0 0.0
        %5310 = vmatprep.subr.mxu0 0.0
        %5311 = vmatpush2.msra.mxu0 0.0
        %5312 = vmatprep.subr.mxu0 0.0
        %5313 = vmatpush2.msra.mxu0 0.0
        %5314 = vmatprep.subr.mxu0 0.0
        %5315 = vmatpush2.msra.mxu0 0.0
        %5316 = vmatprep.subr.mxu0 0.0
        %5317 = vmatpush2.msra.mxu0 0.0
        %5318 = vmatprep.subr.mxu0 0.0
        %5319 = vmatpush2.msra.mxu0 0.0
        %5320 = vmatprep.subr.mxu0 0.0
        %5321 = vmatpush2.msra.mxu0 0.0
        %5322 = vmatprep.subr.mxu0 0.0
        %5323 = vmatpush2.msra.mxu0 0.0
        %5324 = vmatprep.subr.mxu0 0.0
        %5325 = vmatpush2.msra.mxu0 0.0
        %5326 = vmatprep.mubr.f32.mxu0 0.0
        %5327 = vmatmul.mubr.f32.gmra.mxu0 %v5260
        %v5328 = vpop.f32.mrf.mxu0
        %v5329 = vadd.f32 0.0, %v5328
        %v5330 = vpop.f32.mrf.mxu0
        %5331 = vdwg.mxu0
        %v5333 = vsel %vm341, %v5037, 0
        %5335 = vmatprep.subr.mxu0 0.0
        %5336 = vmatpush1.msra.mxu0 0.0
        %5337 = vmatprep.subr.mxu0 0.0
        %5338 = vmatpush1.msra.mxu0 0.0
        %5339 = vmatprep.subr.mxu0 0.0
        %5340 = vmatpush1.msra.mxu0 0.0
        %5341 = vmatprep.subr.mxu0 0.0
        %5342 = vmatpush1.msra.mxu0 0.0
        %5343 = vmatprep.subr.mxu0 0.0
        %5344 = vmatpush1.msra.mxu0 0.0
        %5345 = vmatprep.subr.mxu0 0.0
        %5346 = vmatpush1.msra.mxu0 0.0
        %5347 = vmatprep.subr.mxu0 0.0
        %5348 = vmatpush1.msra.mxu0 0.0
        %5349 = vmatprep.subr.mxu0 0.0
        %5350 = vmatpush1.msra.mxu0 0.0
        %5351 = vmatprep.subr.mxu0 0.0
        %5352 = vmatpush1.msra.mxu0 0.0
        %5353 = vmatprep.subr.mxu0 0.0
        %5354 = vmatpush1.msra.mxu0 0.0
        %5355 = vmatprep.subr.mxu0 0.0
        %5356 = vmatpush1.msra.mxu0 0.0
        %5357 = vmatprep.subr.mxu0 0.0
        %5358 = vmatpush1.msra.mxu0 0.0
        %5359 = vmatprep.subr.mxu0 0.0
        %5360 = vmatpush1.msra.mxu0 0.0
        %5361 = vmatprep.subr.mxu0 0.0
        %5362 = vmatpush1.msra.mxu0 0.0
        %5363 = vmatprep.subr.mxu0 0.0
        %5364 = vmatpush1.msra.mxu0 %v268
        %5365 = vmatprep.subr.mxu0 0.0
        %5366 = vmatpush1.msra.mxu0 %v267
        %5367 = vmatprep.subr.mxu0 0.0
        %5368 = vmatpush2.msra.mxu0 0.0
        %5369 = vmatprep.subr.mxu0 0.0
        %5370 = vmatpush2.msra.mxu0 0.0
        %5371 = vmatprep.subr.mxu0 0.0
        %5372 = vmatpush2.msra.mxu0 0.0
        %5373 = vmatprep.subr.mxu0 0.0
        %5374 = vmatpush2.msra.mxu0 0.0
        %5375 = vmatprep.subr.mxu0 0.0
        %5376 = vmatpush2.msra.mxu0 0.0
        %5377 = vmatprep.subr.mxu0 0.0
        %5378 = vmatpush2.msra.mxu0 0.0
        %5379 = vmatprep.subr.mxu0 0.0
        %5380 = vmatpush2.msra.mxu0 0.0
        %5381 = vmatprep.subr.mxu0 0.0
        %5382 = vmatpush2.msra.mxu0 0.0
        %5383 = vmatprep.subr.mxu0 0.0
        %5384 = vmatpush2.msra.mxu0 0.0
        %5385 = vmatprep.subr.mxu0 0.0
        %5386 = vmatpush2.msra.mxu0 0.0
        %5387 = vmatprep.subr.mxu0 0.0
        %5388 = vmatpush2.msra.mxu0 0.0
        %5389 = vmatprep.subr.mxu0 0.0
        %5390 = vmatpush2.msra.mxu0 0.0
        %5391 = vmatprep.subr.mxu0 0.0
        %5392 = vmatpush2.msra.mxu0 0.0
        %5393 = vmatprep.subr.mxu0 0.0
        %5394 = vmatpush2.msra.mxu0 0.0
        %5395 = vmatprep.subr.mxu0 0.0
        %5396 = vmatpush2.msra.mxu0 0.0
        %5397 = vmatprep.subr.mxu0 0.0
        %5398 = vmatpush2.msra.mxu0 0.0
        %5399 = vmatprep.mubr.f32.mxu0 0.0
        %5400 = vmatmul.mubr.f32.gmra.mxu0 %v5333
        %v5401 = vpop.f32.mrf.mxu0
        %v5402 = vadd.f32 %v5329, %v5401
        %v5403 = vpop.f32.mrf.mxu0
        %5404 = vdwg.mxu0
        %v5405 = vadd.f32 %v5402, %v588
        %v5406 = vmax.f32 %v5405, 0.0
        %v5408 = vcombine.high %v5406, %v5406
        %v5410 = vunpack.c.l.s4 1966171168
        %v5411 = vunpack.c.0.s8 %v5410
        %v5412 = vlaneseq
        %v5413 = vshrl.u32 %v5412, 7
        %v5414 = vsub.s32 %v5411, %v5413
        %v5415 = vrot.slane %v5406, %v5414
        %v5417 = vunpack.c.l.s4 1966171168
        %v5418 = vunpack.c.0.s8 %v5417
        %v5419 = vlaneseq
        %v5420 = vshrl.u32 %v5419, 7
        %v5421 = vsub.s32 %v5418, %v5420
        %v5422 = vrot.slane %v5408, %v5421
        %v5423 = vcombine.high %v5415, %v5415
        %v5424 = vcombine.high %v5422, %v5422
        %v5426 = vunpack.c.l.s4 1966171168
        %v5427 = vunpack.c.0.s8 %v5426
        %v5428 = vlaneseq
        %v5429 = vshrl.u32 %v5428, 7
        %v5430 = vsub.s32 %v5427, %v5429
        %v5431 = vrot.slane %v5415, %v5430
        %v5433 = vunpack.c.l.s4 1966171168
        %v5434 = vunpack.c.0.s8 %v5433
        %v5435 = vlaneseq
        %v5436 = vshrl.u32 %v5435, 7
        %v5437 = vsub.s32 %v5434, %v5436
        %v5438 = vrot.slane %v5422, %v5437
        %v5440 = vunpack.c.l.s4 1966171168
        %v5441 = vunpack.c.0.s8 %v5440
        %v5442 = vlaneseq
        %v5443 = vshrl.u32 %v5442, 7
        %v5444 = vsub.s32 %v5441, %v5443
        %v5445 = vrot.slane %v5423, %v5444
        %v5447 = vunpack.c.l.s4 1966171168
        %v5448 = vunpack.c.0.s8 %v5447
        %v5449 = vlaneseq
        %v5450 = vshrl.u32 %v5449, 7
        %v5451 = vsub.s32 %v5448, %v5450
        %v5452 = vrot.slane %v5424, %v5451
        %v5453 = vcombine.high %v5431, %v5431
        %v5454 = vcombine.high %v5438, %v5438
        %v5455 = vcombine.high %v5445, %v5445
        %v5456 = vcombine.high %v5452, %v5452
        %5465 = vst.msk [vmem:[%s260 + $0x11] sm:$0x1] %vm650, %v5431
        %5466 = vst.msk [vmem:[%s260 + $0x31] sm:$0x1] %vm650, %v5445
        %5467 = vst.msk [vmem:[%s260 + $0x51] sm:$0x1] %vm650, %v5453
        %5468 = vst.msk [vmem:[%s260 + $0x71] sm:$0x1] %vm650, %v5455
        %5469 = vst.msk [vmem:[%s260 + $0x91] sm:$0x1] %vm650, %v5438
        %5470 = vst.msk [vmem:[%s260 + $0xb1] sm:$0x1] %vm650, %v5452
        %5471 = vst.msk [vmem:[%s260 + $0xd1] sm:$0x1] %vm650, %v5454
        %5472 = vst.msk [vmem:[%s260 + $0xf1] sm:$0x1] %vm650, %v5456
        %v5473 = vld [vmem:[%s234 + $0x9] sm:$0x1]
        %v5474 = vld [vmem:[%s234 + $0x19] sm:$0x1]
        %v5475 = vld [vmem:[%s234 + $0x29] sm:$0x1]
        %v5476 = vld [vmem:[%s234 + $0x39] sm:$0x1]
        %v5477 = vld [vmem:[%s234 + $0x49] sm:$0x1]
        %v5478 = vld [vmem:[%s234 + $0x59] sm:$0x1]
        %v5479 = vld [vmem:[%s234 + $0x69] sm:$0x1]
        %v5480 = vld [vmem:[%s234 + $0x79] sm:$0x1]
        %v5481 = vld [vmem:[%s234 + $0x89] sm:$0x1]
        %v5482 = vld [vmem:[%s234 + $0x99] sm:$0x1]
        %v5483 = vld [vmem:[%s234 + $0xa9] sm:$0x1]
        %v5484 = vld [vmem:[%s234 + $0xb9] sm:$0x1]
        %v5485 = vld [vmem:[%s234 + $0xc9] sm:$0x1]
        %v5486 = vld [vmem:[%s234 + $0xd9] sm:$0x1]
        %v5487 = vld [vmem:[%s234 + $0xe9] sm:$0x1]
        %v5488 = vld [vmem:[%s234 + $0xf9] sm:$0x1]
        %v5505 = vrot.slane %v5474, 7
        %v5506 = vsel %vm305, %v5505, %v5473
        %v5507 = vrot.slane %v5475, 6
        %v5508 = vsel %vm308, %v5507, %v5506
        %v5509 = vrot.slane %v5476, 5
        %v5510 = vsel %vm311, %v5509, %v5508
        %v5511 = vrot.slane %v5477, 4
        %v5512 = vsel %vm314, %v5511, %v5510
        %v5513 = vrot.slane %v5478, 3
        %v5514 = vsel %vm317, %v5513, %v5512
        %v5515 = vrot.slane %v5479, 2
        %v5516 = vsel %vm320, %v5515, %v5514
        %v5517 = vrot.slane %v5480, 1
        %v5518 = vsel %vm323, %v5517, %v5516
        %v5519 = vrot.slane %v5482, 7
        %v5520 = vsel %vm305, %v5519, %v5481
        %v5521 = vrot.slane %v5483, 6
        %v5522 = vsel %vm308, %v5521, %v5520
        %v5523 = vrot.slane %v5484, 5
        %v5524 = vsel %vm311, %v5523, %v5522
        %v5525 = vrot.slane %v5485, 4
        %v5526 = vsel %vm314, %v5525, %v5524
        %v5527 = vrot.slane %v5486, 3
        %v5528 = vsel %vm317, %v5527, %v5526
        %v5529 = vrot.slane %v5487, 2
        %v5530 = vsel %vm320, %v5529, %v5528
        %v5531 = vrot.slane %v5488, 1
        %v5532 = vsel %vm323, %v5531, %v5530
        %5535 = vmatprep.subr.mxu0 0.0
        %5536 = vmatpush1.msra.mxu0 0.0
        %5537 = vmatprep.subr.mxu0 0.0
        %5538 = vmatpush1.msra.mxu0 0.0
        %5539 = vmatprep.subr.mxu0 0.0
        %5540 = vmatpush1.msra.mxu0 0.0
        %5541 = vmatprep.subr.mxu0 0.0
        %5542 = vmatpush1.msra.mxu0 0.0
        %5543 = vmatprep.subr.mxu0 0.0
        %5544 = vmatpush1.msra.mxu0 0.0
        %5545 = vmatprep.subr.mxu0 0.0
        %5546 = vmatpush1.msra.mxu0 0.0
        %5547 = vmatprep.subr.mxu0 0.0
        %5548 = vmatpush1.msra.mxu0 0.0
        %5549 = vmatprep.subr.mxu0 0.0
        %5550 = vmatpush1.msra.mxu0 0.0
        %5551 = vmatprep.subr.mxu0 0.0
        %5552 = vmatpush1.msra.mxu0 0.0
        %5553 = vmatprep.subr.mxu0 0.0
        %5554 = vmatpush1.msra.mxu0 0.0
        %5555 = vmatprep.subr.mxu0 0.0
        %5556 = vmatpush1.msra.mxu0 0.0
        %5557 = vmatprep.subr.mxu0 0.0
        %5558 = vmatpush1.msra.mxu0 0.0
        %5559 = vmatprep.subr.mxu0 0.0
        %5560 = vmatpush1.msra.mxu0 0.0
        %5561 = vmatprep.subr.mxu0 0.0
        %5562 = vmatpush1.msra.mxu0 0.0
        %5563 = vmatprep.subr.mxu0 0.0
        %5564 = vmatpush1.msra.mxu0 %v5532
        %5565 = vmatprep.subr.mxu0 0.0
        %5566 = vmatpush1.msra.mxu0 %v5518
        %5567 = vmatprep.subr.mxu0 0.0
        %5568 = vmatpush2.msra.mxu0 0.0
        %5569 = vmatprep.subr.mxu0 0.0
        %5570 = vmatpush2.msra.mxu0 0.0
        %5571 = vmatprep.subr.mxu0 0.0
        %5572 = vmatpush2.msra.mxu0 0.0
        %5573 = vmatprep.subr.mxu0 0.0
        %5574 = vmatpush2.msra.mxu0 0.0
        %5575 = vmatprep.subr.mxu0 0.0
        %5576 = vmatpush2.msra.mxu0 0.0
        %5577 = vmatprep.subr.mxu0 0.0
        %5578 = vmatpush2.msra.mxu0 0.0
        %5579 = vmatprep.subr.mxu0 0.0
        %5580 = vmatpush2.msra.mxu0 0.0
        %5581 = vmatprep.subr.mxu0 0.0
        %5582 = vmatpush2.msra.mxu0 0.0
        %5583 = vmatprep.subr.mxu0 0.0
        %5584 = vmatpush2.msra.mxu0 0.0
        %5585 = vmatprep.subr.mxu0 0.0
        %5586 = vmatpush2.msra.mxu0 0.0
        %5587 = vmatprep.subr.mxu0 0.0
        %5588 = vmatpush2.msra.mxu0 0.0
        %5589 = vmatprep.subr.mxu0 0.0
        %5590 = vmatpush2.msra.mxu0 0.0
        %5591 = vmatprep.subr.mxu0 0.0
        %5592 = vmatpush2.msra.mxu0 0.0
        %5593 = vmatprep.subr.mxu0 0.0
        %5594 = vmatpush2.msra.mxu0 0.0
        %5595 = vmatprep.subr.mxu0 0.0
        %5596 = vmatpush2.msra.mxu0 0.0
        %5597 = vmatprep.subr.mxu0 0.0
        %5598 = vmatpush2.msra.mxu0 0.0
        %5599 = vmatprep.mubr.f32.mxu0 0.0
        %5600 = vmatmul.mubr.f32.gmra.mxu0 %v343
        %v5601 = vpop.f32.mrf.mxu0
        %v5602 = vadd.f32 0.0, %v5601
        %v5603 = vpop.f32.mrf.mxu0
        %5604 = vmatprep.mubr.f32.mxu0 0.0
        %5605 = vmatmul.mubr.f32.gmra.mxu0 %v346
        %v5606 = vpop.f32.mrf.mxu0
        %v5607 = vadd.f32 0.0, %v5606
        %v5608 = vpop.f32.mrf.mxu0
        %5609 = vmatprep.mubr.f32.mxu0 0.0
        %5610 = vmatmul.mubr.f32.gmra.mxu0 %v349
        %v5611 = vpop.f32.mrf.mxu0
        %v5612 = vadd.f32 0.0, %v5611
        %v5613 = vpop.f32.mrf.mxu0
        %5614 = vmatprep.mubr.f32.mxu0 0.0
        %5615 = vmatmul.mubr.f32.gmra.mxu0 %v352
        %v5616 = vpop.f32.mrf.mxu0
        %v5617 = vadd.f32 0.0, %v5616
        %v5618 = vpop.f32.mrf.mxu0
        %5619 = vdwg.mxu0
        %v5621 = vsel %vm341, %v5607, 0
        %5623 = vmatprep.subr.mxu0 0.0
        %5624 = vmatpush1.msra.mxu0 0.0
        %5625 = vmatprep.subr.mxu0 0.0
        %5626 = vmatpush1.msra.mxu0 0.0
        %5627 = vmatprep.subr.mxu0 0.0
        %5628 = vmatpush1.msra.mxu0 0.0
        %5629 = vmatprep.subr.mxu0 0.0
        %5630 = vmatpush1.msra.mxu0 0.0
        %5631 = vmatprep.subr.mxu0 0.0
        %5632 = vmatpush1.msra.mxu0 0.0
        %5633 = vmatprep.subr.mxu0 0.0
        %5634 = vmatpush1.msra.mxu0 0.0
        %5635 = vmatprep.subr.mxu0 0.0
        %5636 = vmatpush1.msra.mxu0 0.0
        %5637 = vmatprep.subr.mxu0 0.0
        %5638 = vmatpush1.msra.mxu0 0.0
        %5639 = vmatprep.subr.mxu0 0.0
        %5640 = vmatpush1.msra.mxu0 0.0
        %5641 = vmatprep.subr.mxu0 0.0
        %5642 = vmatpush1.msra.mxu0 0.0
        %5643 = vmatprep.subr.mxu0 0.0
        %5644 = vmatpush1.msra.mxu0 0.0
        %5645 = vmatprep.subr.mxu0 0.0
        %5646 = vmatpush1.msra.mxu0 0.0
        %5647 = vmatprep.subr.mxu0 0.0
        %5648 = vmatpush1.msra.mxu0 0.0
        %5649 = vmatprep.subr.mxu0 0.0
        %5650 = vmatpush1.msra.mxu0 0.0
        %5651 = vmatprep.subr.mxu0 0.0
        %5652 = vmatpush1.msra.mxu0 %v270
        %5653 = vmatprep.subr.mxu0 0.0
        %5654 = vmatpush1.msra.mxu0 %v269
        %5655 = vmatprep.subr.mxu0 0.0
        %5656 = vmatpush2.msra.mxu0 0.0
        %5657 = vmatprep.subr.mxu0 0.0
        %5658 = vmatpush2.msra.mxu0 0.0
        %5659 = vmatprep.subr.mxu0 0.0
        %5660 = vmatpush2.msra.mxu0 0.0
        %5661 = vmatprep.subr.mxu0 0.0
        %5662 = vmatpush2.msra.mxu0 0.0
        %5663 = vmatprep.subr.mxu0 0.0
        %5664 = vmatpush2.msra.mxu0 0.0
        %5665 = vmatprep.subr.mxu0 0.0
        %5666 = vmatpush2.msra.mxu0 0.0
        %5667 = vmatprep.subr.mxu0 0.0
        %5668 = vmatpush2.msra.mxu0 0.0
        %5669 = vmatprep.subr.mxu0 0.0
        %5670 = vmatpush2.msra.mxu0 0.0
        %5671 = vmatprep.subr.mxu0 0.0
        %5672 = vmatpush2.msra.mxu0 0.0
        %5673 = vmatprep.subr.mxu0 0.0
        %5674 = vmatpush2.msra.mxu0 0.0
        %5675 = vmatprep.subr.mxu0 0.0
        %5676 = vmatpush2.msra.mxu0 0.0
        %5677 = vmatprep.subr.mxu0 0.0
        %5678 = vmatpush2.msra.mxu0 0.0
        %5679 = vmatprep.subr.mxu0 0.0
        %5680 = vmatpush2.msra.mxu0 0.0
        %5681 = vmatprep.subr.mxu0 0.0
        %5682 = vmatpush2.msra.mxu0 0.0
        %5683 = vmatprep.subr.mxu0 0.0
        %5684 = vmatpush2.msra.mxu0 0.0
        %5685 = vmatprep.subr.mxu0 0.0
        %5686 = vmatpush2.msra.mxu0 0.0
        %5687 = vmatprep.mubr.f32.mxu0 0.0
        %5688 = vmatmul.mubr.f32.gmra.mxu0 %v5621
        %v5689 = vpop.f32.mrf.mxu0
        %v5690 = vadd.f32 0.0, %v5689
        %v5691 = vpop.f32.mrf.mxu0
        %5692 = vdwg.mxu0
        %v5694 = vsel %vm341, %v5602, 0
        %5696 = vmatprep.subr.mxu0 0.0
        %5697 = vmatpush1.msra.mxu0 0.0
        %5698 = vmatprep.subr.mxu0 0.0
        %5699 = vmatpush1.msra.mxu0 0.0
        %5700 = vmatprep.subr.mxu0 0.0
        %5701 = vmatpush1.msra.mxu0 0.0
        %5702 = vmatprep.subr.mxu0 0.0
        %5703 = vmatpush1.msra.mxu0 0.0
        %5704 = vmatprep.subr.mxu0 0.0
        %5705 = vmatpush1.msra.mxu0 0.0
        %5706 = vmatprep.subr.mxu0 0.0
        %5707 = vmatpush1.msra.mxu0 0.0
        %5708 = vmatprep.subr.mxu0 0.0
        %5709 = vmatpush1.msra.mxu0 0.0
        %5710 = vmatprep.subr.mxu0 0.0
        %5711 = vmatpush1.msra.mxu0 0.0
        %5712 = vmatprep.subr.mxu0 0.0
        %5713 = vmatpush1.msra.mxu0 0.0
        %5714 = vmatprep.subr.mxu0 0.0
        %5715 = vmatpush1.msra.mxu0 0.0
        %5716 = vmatprep.subr.mxu0 0.0
        %5717 = vmatpush1.msra.mxu0 0.0
        %5718 = vmatprep.subr.mxu0 0.0
        %5719 = vmatpush1.msra.mxu0 0.0
        %5720 = vmatprep.subr.mxu0 0.0
        %5721 = vmatpush1.msra.mxu0 0.0
        %5722 = vmatprep.subr.mxu0 0.0
        %5723 = vmatpush1.msra.mxu0 0.0
        %5724 = vmatprep.subr.mxu0 0.0
        %5725 = vmatpush1.msra.mxu0 %v268
        %5726 = vmatprep.subr.mxu0 0.0
        %5727 = vmatpush1.msra.mxu0 %v267
        %5728 = vmatprep.subr.mxu0 0.0
        %5729 = vmatpush2.msra.mxu0 0.0
        %5730 = vmatprep.subr.mxu0 0.0
        %5731 = vmatpush2.msra.mxu0 0.0
        %5732 = vmatprep.subr.mxu0 0.0
        %5733 = vmatpush2.msra.mxu0 0.0
        %5734 = vmatprep.subr.mxu0 0.0
        %5735 = vmatpush2.msra.mxu0 0.0
        %5736 = vmatprep.subr.mxu0 0.0
        %5737 = vmatpush2.msra.mxu0 0.0
        %5738 = vmatprep.subr.mxu0 0.0
        %5739 = vmatpush2.msra.mxu0 0.0
        %5740 = vmatprep.subr.mxu0 0.0
        %5741 = vmatpush2.msra.mxu0 0.0
        %5742 = vmatprep.subr.mxu0 0.0
        %5743 = vmatpush2.msra.mxu0 0.0
        %5744 = vmatprep.subr.mxu0 0.0
        %5745 = vmatpush2.msra.mxu0 0.0
        %5746 = vmatprep.subr.mxu0 0.0
        %5747 = vmatpush2.msra.mxu0 0.0
        %5748 = vmatprep.subr.mxu0 0.0
        %5749 = vmatpush2.msra.mxu0 0.0
        %5750 = vmatprep.subr.mxu0 0.0
        %5751 = vmatpush2.msra.mxu0 0.0
        %5752 = vmatprep.subr.mxu0 0.0
        %5753 = vmatpush2.msra.mxu0 0.0
        %5754 = vmatprep.subr.mxu0 0.0
        %5755 = vmatpush2.msra.mxu0 0.0
        %5756 = vmatprep.subr.mxu0 0.0
        %5757 = vmatpush2.msra.mxu0 0.0
        %5758 = vmatprep.subr.mxu0 0.0
        %5759 = vmatpush2.msra.mxu0 0.0
        %5760 = vmatprep.mubr.f32.mxu0 0.0
        %5761 = vmatmul.mubr.f32.gmra.mxu0 %v5694
        %v5762 = vpop.f32.mrf.mxu0
        %v5763 = vadd.f32 %v5690, %v5762
        %v5764 = vpop.f32.mrf.mxu0
        %5765 = vdwg.mxu0
        %v5766 = vadd.f32 %v5763, %v588
        %v5767 = vmax.f32 %v5766, 0.0
        %v5769 = vcombine.high %v5767, %v5767
        %v5771 = vunpack.c.l.s4 1966171168
        %v5772 = vunpack.c.0.s8 %v5771
        %v5773 = vlaneseq
        %v5774 = vshrl.u32 %v5773, 7
        %v5775 = vsub.s32 %v5772, %v5774
        %v5776 = vrot.slane %v5767, %v5775
        %v5778 = vunpack.c.l.s4 1966171168
        %v5779 = vunpack.c.0.s8 %v5778
        %v5780 = vlaneseq
        %v5781 = vshrl.u32 %v5780, 7
        %v5782 = vsub.s32 %v5779, %v5781
        %v5783 = vrot.slane %v5769, %v5782
        %v5784 = vcombine.high %v5776, %v5776
        %v5785 = vcombine.high %v5783, %v5783
        %v5787 = vunpack.c.l.s4 1966171168
        %v5788 = vunpack.c.0.s8 %v5787
        %v5789 = vlaneseq
        %v5790 = vshrl.u32 %v5789, 7
        %v5791 = vsub.s32 %v5788, %v5790
        %v5792 = vrot.slane %v5776, %v5791
        %v5794 = vunpack.c.l.s4 1966171168
        %v5795 = vunpack.c.0.s8 %v5794
        %v5796 = vlaneseq
        %v5797 = vshrl.u32 %v5796, 7
        %v5798 = vsub.s32 %v5795, %v5797
        %v5799 = vrot.slane %v5783, %v5798
        %v5801 = vunpack.c.l.s4 1966171168
        %v5802 = vunpack.c.0.s8 %v5801
        %v5803 = vlaneseq
        %v5804 = vshrl.u32 %v5803, 7
        %v5805 = vsub.s32 %v5802, %v5804
        %v5806 = vrot.slane %v5784, %v5805
        %v5808 = vunpack.c.l.s4 1966171168
        %v5809 = vunpack.c.0.s8 %v5808
        %v5810 = vlaneseq
        %v5811 = vshrl.u32 %v5810, 7
        %v5812 = vsub.s32 %v5809, %v5811
        %v5813 = vrot.slane %v5785, %v5812
        %v5814 = vcombine.high %v5792, %v5792
        %v5815 = vcombine.high %v5799, %v5799
        %v5816 = vcombine.high %v5806, %v5806
        %v5817 = vcombine.high %v5813, %v5813
        %5826 = vst.msk [vmem:[%s260 + $0x12] sm:$0x1] %vm650, %v5792
        %5827 = vst.msk [vmem:[%s260 + $0x32] sm:$0x1] %vm650, %v5806
        %5828 = vst.msk [vmem:[%s260 + $0x52] sm:$0x1] %vm650, %v5814
        %5829 = vst.msk [vmem:[%s260 + $0x72] sm:$0x1] %vm650, %v5816
        %5830 = vst.msk [vmem:[%s260 + $0x92] sm:$0x1] %vm650, %v5799
        %5831 = vst.msk [vmem:[%s260 + $0xb2] sm:$0x1] %vm650, %v5813
        %5832 = vst.msk [vmem:[%s260 + $0xd2] sm:$0x1] %vm650, %v5815
        %5833 = vst.msk [vmem:[%s260 + $0xf2] sm:$0x1] %vm650, %v5817
        %v5835 = vsel %vm341, %v5617, 0
        %5837 = vmatprep.subr.mxu0 0.0
        %5838 = vmatpush1.msra.mxu0 0.0
        %5839 = vmatprep.subr.mxu0 0.0
        %5840 = vmatpush1.msra.mxu0 0.0
        %5841 = vmatprep.subr.mxu0 0.0
        %5842 = vmatpush1.msra.mxu0 0.0
        %5843 = vmatprep.subr.mxu0 0.0
        %5844 = vmatpush1.msra.mxu0 0.0
        %5845 = vmatprep.subr.mxu0 0.0
        %5846 = vmatpush1.msra.mxu0 0.0
        %5847 = vmatprep.subr.mxu0 0.0
        %5848 = vmatpush1.msra.mxu0 0.0
        %5849 = vmatprep.subr.mxu0 0.0
        %5850 = vmatpush1.msra.mxu0 0.0
        %5851 = vmatprep.subr.mxu0 0.0
        %5852 = vmatpush1.msra.mxu0 0.0
        %5853 = vmatprep.subr.mxu0 0.0
        %5854 = vmatpush1.msra.mxu0 0.0
        %5855 = vmatprep.subr.mxu0 0.0
        %5856 = vmatpush1.msra.mxu0 0.0
        %5857 = vmatprep.subr.mxu0 0.0
        %5858 = vmatpush1.msra.mxu0 0.0
        %5859 = vmatprep.subr.mxu0 0.0
        %5860 = vmatpush1.msra.mxu0 0.0
        %5861 = vmatprep.subr.mxu0 0.0
        %5862 = vmatpush1.msra.mxu0 0.0
        %5863 = vmatprep.subr.mxu0 0.0
        %5864 = vmatpush1.msra.mxu0 0.0
        %5865 = vmatprep.subr.mxu0 0.0
        %5866 = vmatpush1.msra.mxu0 %v270
        %5867 = vmatprep.subr.mxu0 0.0
        %5868 = vmatpush1.msra.mxu0 %v269
        %5869 = vmatprep.subr.mxu0 0.0
        %5870 = vmatpush2.msra.mxu0 0.0
        %5871 = vmatprep.subr.mxu0 0.0
        %5872 = vmatpush2.msra.mxu0 0.0
        %5873 = vmatprep.subr.mxu0 0.0
        %5874 = vmatpush2.msra.mxu0 0.0
        %5875 = vmatprep.subr.mxu0 0.0
        %5876 = vmatpush2.msra.mxu0 0.0
        %5877 = vmatprep.subr.mxu0 0.0
        %5878 = vmatpush2.msra.mxu0 0.0
        %5879 = vmatprep.subr.mxu0 0.0
        %5880 = vmatpush2.msra.mxu0 0.0
        %5881 = vmatprep.subr.mxu0 0.0
        %5882 = vmatpush2.msra.mxu0 0.0
        %5883 = vmatprep.subr.mxu0 0.0
        %5884 = vmatpush2.msra.mxu0 0.0
        %5885 = vmatprep.subr.mxu0 0.0
        %5886 = vmatpush2.msra.mxu0 0.0
        %5887 = vmatprep.subr.mxu0 0.0
        %5888 = vmatpush2.msra.mxu0 0.0
        %5889 = vmatprep.subr.mxu0 0.0
        %5890 = vmatpush2.msra.mxu0 0.0
        %5891 = vmatprep.subr.mxu0 0.0
        %5892 = vmatpush2.msra.mxu0 0.0
        %5893 = vmatprep.subr.mxu0 0.0
        %5894 = vmatpush2.msra.mxu0 0.0
        %5895 = vmatprep.subr.mxu0 0.0
        %5896 = vmatpush2.msra.mxu0 0.0
        %5897 = vmatprep.subr.mxu0 0.0
        %5898 = vmatpush2.msra.mxu0 0.0
        %5899 = vmatprep.subr.mxu0 0.0
        %5900 = vmatpush2.msra.mxu0 0.0
        %5901 = vmatprep.mubr.f32.mxu0 0.0
        %5902 = vmatmul.mubr.f32.gmra.mxu0 %v5835
        %v5903 = vpop.f32.mrf.mxu0
        %v5904 = vadd.f32 0.0, %v5903
        %v5905 = vpop.f32.mrf.mxu0
        %5906 = vdwg.mxu0
        %v5908 = vsel %vm341, %v5612, 0
        %5910 = vmatprep.subr.mxu0 0.0
        %5911 = vmatpush1.msra.mxu0 0.0
        %5912 = vmatprep.subr.mxu0 0.0
        %5913 = vmatpush1.msra.mxu0 0.0
        %5914 = vmatprep.subr.mxu0 0.0
        %5915 = vmatpush1.msra.mxu0 0.0
        %5916 = vmatprep.subr.mxu0 0.0
        %5917 = vmatpush1.msra.mxu0 0.0
        %5918 = vmatprep.subr.mxu0 0.0
        %5919 = vmatpush1.msra.mxu0 0.0
        %5920 = vmatprep.subr.mxu0 0.0
        %5921 = vmatpush1.msra.mxu0 0.0
        %5922 = vmatprep.subr.mxu0 0.0
        %5923 = vmatpush1.msra.mxu0 0.0
        %5924 = vmatprep.subr.mxu0 0.0
        %5925 = vmatpush1.msra.mxu0 0.0
        %5926 = vmatprep.subr.mxu0 0.0
        %5927 = vmatpush1.msra.mxu0 0.0
        %5928 = vmatprep.subr.mxu0 0.0
        %5929 = vmatpush1.msra.mxu0 0.0
        %5930 = vmatprep.subr.mxu0 0.0
        %5931 = vmatpush1.msra.mxu0 0.0
        %5932 = vmatprep.subr.mxu0 0.0
        %5933 = vmatpush1.msra.mxu0 0.0
        %5934 = vmatprep.subr.mxu0 0.0
        %5935 = vmatpush1.msra.mxu0 0.0
        %5936 = vmatprep.subr.mxu0 0.0
        %5937 = vmatpush1.msra.mxu0 0.0
        %5938 = vmatprep.subr.mxu0 0.0
        %5939 = vmatpush1.msra.mxu0 %v268
        %5940 = vmatprep.subr.mxu0 0.0
        %5941 = vmatpush1.msra.mxu0 %v267
        %5942 = vmatprep.subr.mxu0 0.0
        %5943 = vmatpush2.msra.mxu0 0.0
        %5944 = vmatprep.subr.mxu0 0.0
        %5945 = vmatpush2.msra.mxu0 0.0
        %5946 = vmatprep.subr.mxu0 0.0
        %5947 = vmatpush2.msra.mxu0 0.0
        %5948 = vmatprep.subr.mxu0 0.0
        %5949 = vmatpush2.msra.mxu0 0.0
        %5950 = vmatprep.subr.mxu0 0.0
        %5951 = vmatpush2.msra.mxu0 0.0
        %5952 = vmatprep.subr.mxu0 0.0
        %5953 = vmatpush2.msra.mxu0 0.0
        %5954 = vmatprep.subr.mxu0 0.0
        %5955 = vmatpush2.msra.mxu0 0.0
        %5956 = vmatprep.subr.mxu0 0.0
        %5957 = vmatpush2.msra.mxu0 0.0
        %5958 = vmatprep.subr.mxu0 0.0
        %5959 = vmatpush2.msra.mxu0 0.0
        %5960 = vmatprep.subr.mxu0 0.0
        %5961 = vmatpush2.msra.mxu0 0.0
        %5962 = vmatprep.subr.mxu0 0.0
        %5963 = vmatpush2.msra.mxu0 0.0
        %5964 = vmatprep.subr.mxu0 0.0
        %5965 = vmatpush2.msra.mxu0 0.0
        %5966 = vmatprep.subr.mxu0 0.0
        %5967 = vmatpush2.msra.mxu0 0.0
        %5968 = vmatprep.subr.mxu0 0.0
        %5969 = vmatpush2.msra.mxu0 0.0
        %5970 = vmatprep.subr.mxu0 0.0
        %5971 = vmatpush2.msra.mxu0 0.0
        %5972 = vmatprep.subr.mxu0 0.0
        %5973 = vmatpush2.msra.mxu0 0.0
        %5974 = vmatprep.mubr.f32.mxu0 0.0
        %5975 = vmatmul.mubr.f32.gmra.mxu0 %v5908
        %v5976 = vpop.f32.mrf.mxu0
        %v5977 = vadd.f32 %v5904, %v5976
        %v5978 = vpop.f32.mrf.mxu0
        %5979 = vdwg.mxu0
        %v5980 = vadd.f32 %v5977, %v588
        %v5981 = vmax.f32 %v5980, 0.0
        %v5983 = vcombine.high %v5981, %v5981
        %v5985 = vunpack.c.l.s4 1966171168
        %v5986 = vunpack.c.0.s8 %v5985
        %v5987 = vlaneseq
        %v5988 = vshrl.u32 %v5987, 7
        %v5989 = vsub.s32 %v5986, %v5988
        %v5990 = vrot.slane %v5981, %v5989
        %v5992 = vunpack.c.l.s4 1966171168
        %v5993 = vunpack.c.0.s8 %v5992
        %v5994 = vlaneseq
        %v5995 = vshrl.u32 %v5994, 7
        %v5996 = vsub.s32 %v5993, %v5995
        %v5997 = vrot.slane %v5983, %v5996
        %v5998 = vcombine.high %v5990, %v5990
        %v5999 = vcombine.high %v5997, %v5997
        %v6001 = vunpack.c.l.s4 1966171168
        %v6002 = vunpack.c.0.s8 %v6001
        %v6003 = vlaneseq
        %v6004 = vshrl.u32 %v6003, 7
        %v6005 = vsub.s32 %v6002, %v6004
        %v6006 = vrot.slane %v5990, %v6005
        %v6008 = vunpack.c.l.s4 1966171168
        %v6009 = vunpack.c.0.s8 %v6008
        %v6010 = vlaneseq
        %v6011 = vshrl.u32 %v6010, 7
        %v6012 = vsub.s32 %v6009, %v6011
        %v6013 = vrot.slane %v5997, %v6012
        %v6015 = vunpack.c.l.s4 1966171168
        %v6016 = vunpack.c.0.s8 %v6015
        %v6017 = vlaneseq
        %v6018 = vshrl.u32 %v6017, 7
        %v6019 = vsub.s32 %v6016, %v6018
        %v6020 = vrot.slane %v5998, %v6019
        %v6022 = vunpack.c.l.s4 1966171168
        %v6023 = vunpack.c.0.s8 %v6022
        %v6024 = vlaneseq
        %v6025 = vshrl.u32 %v6024, 7
        %v6026 = vsub.s32 %v6023, %v6025
        %v6027 = vrot.slane %v5999, %v6026
        %v6028 = vcombine.high %v6006, %v6006
        %v6029 = vcombine.high %v6013, %v6013
        %v6030 = vcombine.high %v6020, %v6020
        %v6031 = vcombine.high %v6027, %v6027
        %6040 = vst.msk [vmem:[%s260 + $0x13] sm:$0x1] %vm650, %v6006
        %6041 = vst.msk [vmem:[%s260 + $0x33] sm:$0x1] %vm650, %v6020
        %6042 = vst.msk [vmem:[%s260 + $0x53] sm:$0x1] %vm650, %v6028
        %6043 = vst.msk [vmem:[%s260 + $0x73] sm:$0x1] %vm650, %v6030
        %6044 = vst.msk [vmem:[%s260 + $0x93] sm:$0x1] %vm650, %v6013
        %6045 = vst.msk [vmem:[%s260 + $0xb3] sm:$0x1] %vm650, %v6027
        %6046 = vst.msk [vmem:[%s260 + $0xd3] sm:$0x1] %vm650, %v6029
        %6047 = vst.msk [vmem:[%s260 + $0xf3] sm:$0x1] %vm650, %v6031
        %v6048 = vld [vmem:[%s234 + $0xa] sm:$0x1]
        %v6049 = vld [vmem:[%s234 + $0x1a] sm:$0x1]
        %v6050 = vld [vmem:[%s234 + $0x2a] sm:$0x1]
        %v6051 = vld [vmem:[%s234 + $0x3a] sm:$0x1]
        %v6052 = vld [vmem:[%s234 + $0x4a] sm:$0x1]
        %v6053 = vld [vmem:[%s234 + $0x5a] sm:$0x1]
        %v6054 = vld [vmem:[%s234 + $0x6a] sm:$0x1]
        %v6055 = vld [vmem:[%s234 + $0x7a] sm:$0x1]
        %v6056 = vld [vmem:[%s234 + $0x8a] sm:$0x1]
        %v6057 = vld [vmem:[%s234 + $0x9a] sm:$0x1]
        %v6058 = vld [vmem:[%s234 + $0xaa] sm:$0x1]
        %v6059 = vld [vmem:[%s234 + $0xba] sm:$0x1]
        %v6060 = vld [vmem:[%s234 + $0xca] sm:$0x1]
        %v6061 = vld [vmem:[%s234 + $0xda] sm:$0x1]
        %v6062 = vld [vmem:[%s234 + $0xea] sm:$0x1]
        %v6063 = vld [vmem:[%s234 + $0xfa] sm:$0x1]
        %v6080 = vrot.slane %v6049, 7
        %v6081 = vsel %vm305, %v6080, %v6048
        %v6082 = vrot.slane %v6050, 6
        %v6083 = vsel %vm308, %v6082, %v6081
        %v6084 = vrot.slane %v6051, 5
        %v6085 = vsel %vm311, %v6084, %v6083
        %v6086 = vrot.slane %v6052, 4
        %v6087 = vsel %vm314, %v6086, %v6085
        %v6088 = vrot.slane %v6053, 3
        %v6089 = vsel %vm317, %v6088, %v6087
        %v6090 = vrot.slane %v6054, 2
        %v6091 = vsel %vm320, %v6090, %v6089
        %v6092 = vrot.slane %v6055, 1
        %v6093 = vsel %vm323, %v6092, %v6091
        %v6094 = vrot.slane %v6057, 7
        %v6095 = vsel %vm305, %v6094, %v6056
        %v6096 = vrot.slane %v6058, 6
        %v6097 = vsel %vm308, %v6096, %v6095
        %v6098 = vrot.slane %v6059, 5
        %v6099 = vsel %vm311, %v6098, %v6097
        %v6100 = vrot.slane %v6060, 4
        %v6101 = vsel %vm314, %v6100, %v6099
        %v6102 = vrot.slane %v6061, 3
        %v6103 = vsel %vm317, %v6102, %v6101
        %v6104 = vrot.slane %v6062, 2
        %v6105 = vsel %vm320, %v6104, %v6103
        %v6106 = vrot.slane %v6063, 1
        %v6107 = vsel %vm323, %v6106, %v6105
        %6110 = vmatprep.subr.mxu0 0.0
        %6111 = vmatpush1.msra.mxu0 0.0
        %6112 = vmatprep.subr.mxu0 0.0
        %6113 = vmatpush1.msra.mxu0 0.0
        %6114 = vmatprep.subr.mxu0 0.0
        %6115 = vmatpush1.msra.mxu0 0.0
        %6116 = vmatprep.subr.mxu0 0.0
        %6117 = vmatpush1.msra.mxu0 0.0
        %6118 = vmatprep.subr.mxu0 0.0
        %6119 = vmatpush1.msra.mxu0 0.0
        %6120 = vmatprep.subr.mxu0 0.0
        %6121 = vmatpush1.msra.mxu0 0.0
        %6122 = vmatprep.subr.mxu0 0.0
        %6123 = vmatpush1.msra.mxu0 0.0
        %6124 = vmatprep.subr.mxu0 0.0
        %6125 = vmatpush1.msra.mxu0 0.0
        %6126 = vmatprep.subr.mxu0 0.0
        %6127 = vmatpush1.msra.mxu0 0.0
        %6128 = vmatprep.subr.mxu0 0.0
        %6129 = vmatpush1.msra.mxu0 0.0
        %6130 = vmatprep.subr.mxu0 0.0
        %6131 = vmatpush1.msra.mxu0 0.0
        %6132 = vmatprep.subr.mxu0 0.0
        %6133 = vmatpush1.msra.mxu0 0.0
        %6134 = vmatprep.subr.mxu0 0.0
        %6135 = vmatpush1.msra.mxu0 0.0
        %6136 = vmatprep.subr.mxu0 0.0
        %6137 = vmatpush1.msra.mxu0 0.0
        %6138 = vmatprep.subr.mxu0 0.0
        %6139 = vmatpush1.msra.mxu0 %v6107
        %6140 = vmatprep.subr.mxu0 0.0
        %6141 = vmatpush1.msra.mxu0 %v6093
        %6142 = vmatprep.subr.mxu0 0.0
        %6143 = vmatpush2.msra.mxu0 0.0
        %6144 = vmatprep.subr.mxu0 0.0
        %6145 = vmatpush2.msra.mxu0 0.0
        %6146 = vmatprep.subr.mxu0 0.0
        %6147 = vmatpush2.msra.mxu0 0.0
        %6148 = vmatprep.subr.mxu0 0.0
        %6149 = vmatpush2.msra.mxu0 0.0
        %6150 = vmatprep.subr.mxu0 0.0
        %6151 = vmatpush2.msra.mxu0 0.0
        %6152 = vmatprep.subr.mxu0 0.0
        %6153 = vmatpush2.msra.mxu0 0.0
        %6154 = vmatprep.subr.mxu0 0.0
        %6155 = vmatpush2.msra.mxu0 0.0
        %6156 = vmatprep.subr.mxu0 0.0
        %6157 = vmatpush2.msra.mxu0 0.0
        %6158 = vmatprep.subr.mxu0 0.0
        %6159 = vmatpush2.msra.mxu0 0.0
        %6160 = vmatprep.subr.mxu0 0.0
        %6161 = vmatpush2.msra.mxu0 0.0
        %6162 = vmatprep.subr.mxu0 0.0
        %6163 = vmatpush2.msra.mxu0 0.0
        %6164 = vmatprep.subr.mxu0 0.0
        %6165 = vmatpush2.msra.mxu0 0.0
        %6166 = vmatprep.subr.mxu0 0.0
        %6167 = vmatpush2.msra.mxu0 0.0
        %6168 = vmatprep.subr.mxu0 0.0
        %6169 = vmatpush2.msra.mxu0 0.0
        %6170 = vmatprep.subr.mxu0 0.0
        %6171 = vmatpush2.msra.mxu0 0.0
        %6172 = vmatprep.subr.mxu0 0.0
        %6173 = vmatpush2.msra.mxu0 0.0
        %6174 = vmatprep.mubr.f32.mxu0 0.0
        %6175 = vmatmul.mubr.f32.gmra.mxu0 %v343
        %v6176 = vpop.f32.mrf.mxu0
        %v6177 = vadd.f32 0.0, %v6176
        %v6178 = vpop.f32.mrf.mxu0
        %6179 = vmatprep.mubr.f32.mxu0 0.0
        %6180 = vmatmul.mubr.f32.gmra.mxu0 %v346
        %v6181 = vpop.f32.mrf.mxu0
        %v6182 = vadd.f32 0.0, %v6181
        %v6183 = vpop.f32.mrf.mxu0
        %6184 = vmatprep.mubr.f32.mxu0 0.0
        %6185 = vmatmul.mubr.f32.gmra.mxu0 %v349
        %v6186 = vpop.f32.mrf.mxu0
        %v6187 = vadd.f32 0.0, %v6186
        %v6188 = vpop.f32.mrf.mxu0
        %6189 = vmatprep.mubr.f32.mxu0 0.0
        %6190 = vmatmul.mubr.f32.gmra.mxu0 %v352
        %v6191 = vpop.f32.mrf.mxu0
        %v6192 = vadd.f32 0.0, %v6191
        %v6193 = vpop.f32.mrf.mxu0
        %6194 = vdwg.mxu0
        %v6196 = vsel %vm341, %v6182, 0
        %6198 = vmatprep.subr.mxu0 0.0
        %6199 = vmatpush1.msra.mxu0 0.0
        %6200 = vmatprep.subr.mxu0 0.0
        %6201 = vmatpush1.msra.mxu0 0.0
        %6202 = vmatprep.subr.mxu0 0.0
        %6203 = vmatpush1.msra.mxu0 0.0
        %6204 = vmatprep.subr.mxu0 0.0
        %6205 = vmatpush1.msra.mxu0 0.0
        %6206 = vmatprep.subr.mxu0 0.0
        %6207 = vmatpush1.msra.mxu0 0.0
        %6208 = vmatprep.subr.mxu0 0.0
        %6209 = vmatpush1.msra.mxu0 0.0
        %6210 = vmatprep.subr.mxu0 0.0
        %6211 = vmatpush1.msra.mxu0 0.0
        %6212 = vmatprep.subr.mxu0 0.0
        %6213 = vmatpush1.msra.mxu0 0.0
        %6214 = vmatprep.subr.mxu0 0.0
        %6215 = vmatpush1.msra.mxu0 0.0
        %6216 = vmatprep.subr.mxu0 0.0
        %6217 = vmatpush1.msra.mxu0 0.0
        %6218 = vmatprep.subr.mxu0 0.0
        %6219 = vmatpush1.msra.mxu0 0.0
        %6220 = vmatprep.subr.mxu0 0.0
        %6221 = vmatpush1.msra.mxu0 0.0
        %6222 = vmatprep.subr.mxu0 0.0
        %6223 = vmatpush1.msra.mxu0 0.0
        %6224 = vmatprep.subr.mxu0 0.0
        %6225 = vmatpush1.msra.mxu0 0.0
        %6226 = vmatprep.subr.mxu0 0.0
        %6227 = vmatpush1.msra.mxu0 %v270
        %6228 = vmatprep.subr.mxu0 0.0
        %6229 = vmatpush1.msra.mxu0 %v269
        %6230 = vmatprep.subr.mxu0 0.0
        %6231 = vmatpush2.msra.mxu0 0.0
        %6232 = vmatprep.subr.mxu0 0.0
        %6233 = vmatpush2.msra.mxu0 0.0
        %6234 = vmatprep.subr.mxu0 0.0
        %6235 = vmatpush2.msra.mxu0 0.0
        %6236 = vmatprep.subr.mxu0 0.0
        %6237 = vmatpush2.msra.mxu0 0.0
        %6238 = vmatprep.subr.mxu0 0.0
        %6239 = vmatpush2.msra.mxu0 0.0
        %6240 = vmatprep.subr.mxu0 0.0
        %6241 = vmatpush2.msra.mxu0 0.0
        %6242 = vmatprep.subr.mxu0 0.0
        %6243 = vmatpush2.msra.mxu0 0.0
        %6244 = vmatprep.subr.mxu0 0.0
        %6245 = vmatpush2.msra.mxu0 0.0
        %6246 = vmatprep.subr.mxu0 0.0
        %6247 = vmatpush2.msra.mxu0 0.0
        %6248 = vmatprep.subr.mxu0 0.0
        %6249 = vmatpush2.msra.mxu0 0.0
        %6250 = vmatprep.subr.mxu0 0.0
        %6251 = vmatpush2.msra.mxu0 0.0
        %6252 = vmatprep.subr.mxu0 0.0
        %6253 = vmatpush2.msra.mxu0 0.0
        %6254 = vmatprep.subr.mxu0 0.0
        %6255 = vmatpush2.msra.mxu0 0.0
        %6256 = vmatprep.subr.mxu0 0.0
        %6257 = vmatpush2.msra.mxu0 0.0
        %6258 = vmatprep.subr.mxu0 0.0
        %6259 = vmatpush2.msra.mxu0 0.0
        %6260 = vmatprep.subr.mxu0 0.0
        %6261 = vmatpush2.msra.mxu0 0.0
        %6262 = vmatprep.mubr.f32.mxu0 0.0
        %6263 = vmatmul.mubr.f32.gmra.mxu0 %v6196
        %v6264 = vpop.f32.mrf.mxu0
        %v6265 = vadd.f32 0.0, %v6264
        %v6266 = vpop.f32.mrf.mxu0
        %6267 = vdwg.mxu0
        %v6269 = vsel %vm341, %v6177, 0
        %6271 = vmatprep.subr.mxu0 0.0
        %6272 = vmatpush1.msra.mxu0 0.0
        %6273 = vmatprep.subr.mxu0 0.0
        %6274 = vmatpush1.msra.mxu0 0.0
        %6275 = vmatprep.subr.mxu0 0.0
        %6276 = vmatpush1.msra.mxu0 0.0
        %6277 = vmatprep.subr.mxu0 0.0
        %6278 = vmatpush1.msra.mxu0 0.0
        %6279 = vmatprep.subr.mxu0 0.0
        %6280 = vmatpush1.msra.mxu0 0.0
        %6281 = vmatprep.subr.mxu0 0.0
        %6282 = vmatpush1.msra.mxu0 0.0
        %6283 = vmatprep.subr.mxu0 0.0
        %6284 = vmatpush1.msra.mxu0 0.0
        %6285 = vmatprep.subr.mxu0 0.0
        %6286 = vmatpush1.msra.mxu0 0.0
        %6287 = vmatprep.subr.mxu0 0.0
        %6288 = vmatpush1.msra.mxu0 0.0
        %6289 = vmatprep.subr.mxu0 0.0
        %6290 = vmatpush1.msra.mxu0 0.0
        %6291 = vmatprep.subr.mxu0 0.0
        %6292 = vmatpush1.msra.mxu0 0.0
        %6293 = vmatprep.subr.mxu0 0.0
        %6294 = vmatpush1.msra.mxu0 0.0
        %6295 = vmatprep.subr.mxu0 0.0
        %6296 = vmatpush1.msra.mxu0 0.0
        %6297 = vmatprep.subr.mxu0 0.0
        %6298 = vmatpush1.msra.mxu0 0.0
        %6299 = vmatprep.subr.mxu0 0.0
        %6300 = vmatpush1.msra.mxu0 %v268
        %6301 = vmatprep.subr.mxu0 0.0
        %6302 = vmatpush1.msra.mxu0 %v267
        %6303 = vmatprep.subr.mxu0 0.0
        %6304 = vmatpush2.msra.mxu0 0.0
        %6305 = vmatprep.subr.mxu0 0.0
        %6306 = vmatpush2.msra.mxu0 0.0
        %6307 = vmatprep.subr.mxu0 0.0
        %6308 = vmatpush2.msra.mxu0 0.0
        %6309 = vmatprep.subr.mxu0 0.0
        %6310 = vmatpush2.msra.mxu0 0.0
        %6311 = vmatprep.subr.mxu0 0.0
        %6312 = vmatpush2.msra.mxu0 0.0
        %6313 = vmatprep.subr.mxu0 0.0
        %6314 = vmatpush2.msra.mxu0 0.0
        %6315 = vmatprep.subr.mxu0 0.0
        %6316 = vmatpush2.msra.mxu0 0.0
        %6317 = vmatprep.subr.mxu0 0.0
        %6318 = vmatpush2.msra.mxu0 0.0
        %6319 = vmatprep.subr.mxu0 0.0
        %6320 = vmatpush2.msra.mxu0 0.0
        %6321 = vmatprep.subr.mxu0 0.0
        %6322 = vmatpush2.msra.mxu0 0.0
        %6323 = vmatprep.subr.mxu0 0.0
        %6324 = vmatpush2.msra.mxu0 0.0
        %6325 = vmatprep.subr.mxu0 0.0
        %6326 = vmatpush2.msra.mxu0 0.0
        %6327 = vmatprep.subr.mxu0 0.0
        %6328 = vmatpush2.msra.mxu0 0.0
        %6329 = vmatprep.subr.mxu0 0.0
        %6330 = vmatpush2.msra.mxu0 0.0
        %6331 = vmatprep.subr.mxu0 0.0
        %6332 = vmatpush2.msra.mxu0 0.0
        %6333 = vmatprep.subr.mxu0 0.0
        %6334 = vmatpush2.msra.mxu0 0.0
        %6335 = vmatprep.mubr.f32.mxu0 0.0
        %6336 = vmatmul.mubr.f32.gmra.mxu0 %v6269
        %v6337 = vpop.f32.mrf.mxu0
        %v6338 = vadd.f32 %v6265, %v6337
        %v6339 = vpop.f32.mrf.mxu0
        %6340 = vdwg.mxu0
        %v6341 = vadd.f32 %v6338, %v588
        %v6342 = vmax.f32 %v6341, 0.0
        %v6344 = vcombine.high %v6342, %v6342
        %v6346 = vunpack.c.l.s4 1966171168
        %v6347 = vunpack.c.0.s8 %v6346
        %v6348 = vlaneseq
        %v6349 = vshrl.u32 %v6348, 7
        %v6350 = vsub.s32 %v6347, %v6349
        %v6351 = vrot.slane %v6342, %v6350
        %v6353 = vunpack.c.l.s4 1966171168
        %v6354 = vunpack.c.0.s8 %v6353
        %v6355 = vlaneseq
        %v6356 = vshrl.u32 %v6355, 7
        %v6357 = vsub.s32 %v6354, %v6356
        %v6358 = vrot.slane %v6344, %v6357
        %v6359 = vcombine.high %v6351, %v6351
        %v6360 = vcombine.high %v6358, %v6358
        %v6362 = vunpack.c.l.s4 1966171168
        %v6363 = vunpack.c.0.s8 %v6362
        %v6364 = vlaneseq
        %v6365 = vshrl.u32 %v6364, 7
        %v6366 = vsub.s32 %v6363, %v6365
        %v6367 = vrot.slane %v6351, %v6366
        %v6369 = vunpack.c.l.s4 1966171168
        %v6370 = vunpack.c.0.s8 %v6369
        %v6371 = vlaneseq
        %v6372 = vshrl.u32 %v6371, 7
        %v6373 = vsub.s32 %v6370, %v6372
        %v6374 = vrot.slane %v6358, %v6373
        %v6376 = vunpack.c.l.s4 1966171168
        %v6377 = vunpack.c.0.s8 %v6376
        %v6378 = vlaneseq
        %v6379 = vshrl.u32 %v6378, 7
        %v6380 = vsub.s32 %v6377, %v6379
        %v6381 = vrot.slane %v6359, %v6380
        %v6383 = vunpack.c.l.s4 1966171168
        %v6384 = vunpack.c.0.s8 %v6383
        %v6385 = vlaneseq
        %v6386 = vshrl.u32 %v6385, 7
        %v6387 = vsub.s32 %v6384, %v6386
        %v6388 = vrot.slane %v6360, %v6387
        %v6389 = vcombine.high %v6367, %v6367
        %v6390 = vcombine.high %v6374, %v6374
        %v6391 = vcombine.high %v6381, %v6381
        %v6392 = vcombine.high %v6388, %v6388
        %6401 = vst.msk [vmem:[%s260 + $0x14] sm:$0x1] %vm650, %v6367
        %6402 = vst.msk [vmem:[%s260 + $0x34] sm:$0x1] %vm650, %v6381
        %6403 = vst.msk [vmem:[%s260 + $0x54] sm:$0x1] %vm650, %v6389
        %6404 = vst.msk [vmem:[%s260 + $0x74] sm:$0x1] %vm650, %v6391
        %6405 = vst.msk [vmem:[%s260 + $0x94] sm:$0x1] %vm650, %v6374
        %6406 = vst.msk [vmem:[%s260 + $0xb4] sm:$0x1] %vm650, %v6388
        %6407 = vst.msk [vmem:[%s260 + $0xd4] sm:$0x1] %vm650, %v6390
        %6408 = vst.msk [vmem:[%s260 + $0xf4] sm:$0x1] %vm650, %v6392
        %v6410 = vsel %vm341, %v6192, 0
        %6412 = vmatprep.subr.mxu0 0.0
        %6413 = vmatpush1.msra.mxu0 0.0
        %6414 = vmatprep.subr.mxu0 0.0
        %6415 = vmatpush1.msra.mxu0 0.0
        %6416 = vmatprep.subr.mxu0 0.0
        %6417 = vmatpush1.msra.mxu0 0.0
        %6418 = vmatprep.subr.mxu0 0.0
        %6419 = vmatpush1.msra.mxu0 0.0
        %6420 = vmatprep.subr.mxu0 0.0
        %6421 = vmatpush1.msra.mxu0 0.0
        %6422 = vmatprep.subr.mxu0 0.0
        %6423 = vmatpush1.msra.mxu0 0.0
        %6424 = vmatprep.subr.mxu0 0.0
        %6425 = vmatpush1.msra.mxu0 0.0
        %6426 = vmatprep.subr.mxu0 0.0
        %6427 = vmatpush1.msra.mxu0 0.0
        %6428 = vmatprep.subr.mxu0 0.0
        %6429 = vmatpush1.msra.mxu0 0.0
        %6430 = vmatprep.subr.mxu0 0.0
        %6431 = vmatpush1.msra.mxu0 0.0
        %6432 = vmatprep.subr.mxu0 0.0
        %6433 = vmatpush1.msra.mxu0 0.0
        %6434 = vmatprep.subr.mxu0 0.0
        %6435 = vmatpush1.msra.mxu0 0.0
        %6436 = vmatprep.subr.mxu0 0.0
        %6437 = vmatpush1.msra.mxu0 0.0
        %6438 = vmatprep.subr.mxu0 0.0
        %6439 = vmatpush1.msra.mxu0 0.0
        %6440 = vmatprep.subr.mxu0 0.0
        %6441 = vmatpush1.msra.mxu0 %v270
        %6442 = vmatprep.subr.mxu0 0.0
        %6443 = vmatpush1.msra.mxu0 %v269
        %6444 = vmatprep.subr.mxu0 0.0
        %6445 = vmatpush2.msra.mxu0 0.0
        %6446 = vmatprep.subr.mxu0 0.0
        %6447 = vmatpush2.msra.mxu0 0.0
        %6448 = vmatprep.subr.mxu0 0.0
        %6449 = vmatpush2.msra.mxu0 0.0
        %6450 = vmatprep.subr.mxu0 0.0
        %6451 = vmatpush2.msra.mxu0 0.0
        %6452 = vmatprep.subr.mxu0 0.0
        %6453 = vmatpush2.msra.mxu0 0.0
        %6454 = vmatprep.subr.mxu0 0.0
        %6455 = vmatpush2.msra.mxu0 0.0
        %6456 = vmatprep.subr.mxu0 0.0
        %6457 = vmatpush2.msra.mxu0 0.0
        %6458 = vmatprep.subr.mxu0 0.0
        %6459 = vmatpush2.msra.mxu0 0.0
        %6460 = vmatprep.subr.mxu0 0.0
        %6461 = vmatpush2.msra.mxu0 0.0
        %6462 = vmatprep.subr.mxu0 0.0
        %6463 = vmatpush2.msra.mxu0 0.0
        %6464 = vmatprep.subr.mxu0 0.0
        %6465 = vmatpush2.msra.mxu0 0.0
        %6466 = vmatprep.subr.mxu0 0.0
        %6467 = vmatpush2.msra.mxu0 0.0
        %6468 = vmatprep.subr.mxu0 0.0
        %6469 = vmatpush2.msra.mxu0 0.0
        %6470 = vmatprep.subr.mxu0 0.0
        %6471 = vmatpush2.msra.mxu0 0.0
        %6472 = vmatprep.subr.mxu0 0.0
        %6473 = vmatpush2.msra.mxu0 0.0
        %6474 = vmatprep.subr.mxu0 0.0
        %6475 = vmatpush2.msra.mxu0 0.0
        %6476 = vmatprep.mubr.f32.mxu0 0.0
        %6477 = vmatmul.mubr.f32.gmra.mxu0 %v6410
        %v6478 = vpop.f32.mrf.mxu0
        %v6479 = vadd.f32 0.0, %v6478
        %v6480 = vpop.f32.mrf.mxu0
        %6481 = vdwg.mxu0
        %v6483 = vsel %vm341, %v6187, 0
        %6485 = vmatprep.subr.mxu0 0.0
        %6486 = vmatpush1.msra.mxu0 0.0
        %6487 = vmatprep.subr.mxu0 0.0
        %6488 = vmatpush1.msra.mxu0 0.0
        %6489 = vmatprep.subr.mxu0 0.0
        %6490 = vmatpush1.msra.mxu0 0.0
        %6491 = vmatprep.subr.mxu0 0.0
        %6492 = vmatpush1.msra.mxu0 0.0
        %6493 = vmatprep.subr.mxu0 0.0
        %6494 = vmatpush1.msra.mxu0 0.0
        %6495 = vmatprep.subr.mxu0 0.0
        %6496 = vmatpush1.msra.mxu0 0.0
        %6497 = vmatprep.subr.mxu0 0.0
        %6498 = vmatpush1.msra.mxu0 0.0
        %6499 = vmatprep.subr.mxu0 0.0
        %6500 = vmatpush1.msra.mxu0 0.0
        %6501 = vmatprep.subr.mxu0 0.0
        %6502 = vmatpush1.msra.mxu0 0.0
        %6503 = vmatprep.subr.mxu0 0.0
        %6504 = vmatpush1.msra.mxu0 0.0
        %6505 = vmatprep.subr.mxu0 0.0
        %6506 = vmatpush1.msra.mxu0 0.0
        %6507 = vmatprep.subr.mxu0 0.0
        %6508 = vmatpush1.msra.mxu0 0.0
        %6509 = vmatprep.subr.mxu0 0.0
        %6510 = vmatpush1.msra.mxu0 0.0
        %6511 = vmatprep.subr.mxu0 0.0
        %6512 = vmatpush1.msra.mxu0 0.0
        %6513 = vmatprep.subr.mxu0 0.0
        %6514 = vmatpush1.msra.mxu0 %v268
        %6515 = vmatprep.subr.mxu0 0.0
        %6516 = vmatpush1.msra.mxu0 %v267
        %6517 = vmatprep.subr.mxu0 0.0
        %6518 = vmatpush2.msra.mxu0 0.0
        %6519 = vmatprep.subr.mxu0 0.0
        %6520 = vmatpush2.msra.mxu0 0.0
        %6521 = vmatprep.subr.mxu0 0.0
        %6522 = vmatpush2.msra.mxu0 0.0
        %6523 = vmatprep.subr.mxu0 0.0
        %6524 = vmatpush2.msra.mxu0 0.0
        %6525 = vmatprep.subr.mxu0 0.0
        %6526 = vmatpush2.msra.mxu0 0.0
        %6527 = vmatprep.subr.mxu0 0.0
        %6528 = vmatpush2.msra.mxu0 0.0
        %6529 = vmatprep.subr.mxu0 0.0
        %6530 = vmatpush2.msra.mxu0 0.0
        %6531 = vmatprep.subr.mxu0 0.0
        %6532 = vmatpush2.msra.mxu0 0.0
        %6533 = vmatprep.subr.mxu0 0.0
        %6534 = vmatpush2.msra.mxu0 0.0
        %6535 = vmatprep.subr.mxu0 0.0
        %6536 = vmatpush2.msra.mxu0 0.0
        %6537 = vmatprep.subr.mxu0 0.0
        %6538 = vmatpush2.msra.mxu0 0.0
        %6539 = vmatprep.subr.mxu0 0.0
        %6540 = vmatpush2.msra.mxu0 0.0
        %6541 = vmatprep.subr.mxu0 0.0
        %6542 = vmatpush2.msra.mxu0 0.0
        %6543 = vmatprep.subr.mxu0 0.0
        %6544 = vmatpush2.msra.mxu0 0.0
        %6545 = vmatprep.subr.mxu0 0.0
        %6546 = vmatpush2.msra.mxu0 0.0
        %6547 = vmatprep.subr.mxu0 0.0
        %6548 = vmatpush2.msra.mxu0 0.0
        %6549 = vmatprep.mubr.f32.mxu0 0.0
        %6550 = vmatmul.mubr.f32.gmra.mxu0 %v6483
        %v6551 = vpop.f32.mrf.mxu0
        %v6552 = vadd.f32 %v6479, %v6551
        %v6553 = vpop.f32.mrf.mxu0
        %6554 = vdwg.mxu0
        %v6555 = vadd.f32 %v6552, %v588
        %v6556 = vmax.f32 %v6555, 0.0
        %v6558 = vcombine.high %v6556, %v6556
        %v6560 = vunpack.c.l.s4 1966171168
        %v6561 = vunpack.c.0.s8 %v6560
        %v6562 = vlaneseq
        %v6563 = vshrl.u32 %v6562, 7
        %v6564 = vsub.s32 %v6561, %v6563
        %v6565 = vrot.slane %v6556, %v6564
        %v6567 = vunpack.c.l.s4 1966171168
        %v6568 = vunpack.c.0.s8 %v6567
        %v6569 = vlaneseq
        %v6570 = vshrl.u32 %v6569, 7
        %v6571 = vsub.s32 %v6568, %v6570
        %v6572 = vrot.slane %v6558, %v6571
        %v6573 = vcombine.high %v6565, %v6565
        %v6574 = vcombine.high %v6572, %v6572
        %v6576 = vunpack.c.l.s4 1966171168
        %v6577 = vunpack.c.0.s8 %v6576
        %v6578 = vlaneseq
        %v6579 = vshrl.u32 %v6578, 7
        %v6580 = vsub.s32 %v6577, %v6579
        %v6581 = vrot.slane %v6565, %v6580
        %v6583 = vunpack.c.l.s4 1966171168
        %v6584 = vunpack.c.0.s8 %v6583
        %v6585 = vlaneseq
        %v6586 = vshrl.u32 %v6585, 7
        %v6587 = vsub.s32 %v6584, %v6586
        %v6588 = vrot.slane %v6572, %v6587
        %v6590 = vunpack.c.l.s4 1966171168
        %v6591 = vunpack.c.0.s8 %v6590
        %v6592 = vlaneseq
        %v6593 = vshrl.u32 %v6592, 7
        %v6594 = vsub.s32 %v6591, %v6593
        %v6595 = vrot.slane %v6573, %v6594
        %v6597 = vunpack.c.l.s4 1966171168
        %v6598 = vunpack.c.0.s8 %v6597
        %v6599 = vlaneseq
        %v6600 = vshrl.u32 %v6599, 7
        %v6601 = vsub.s32 %v6598, %v6600
        %v6602 = vrot.slane %v6574, %v6601
        %v6603 = vcombine.high %v6581, %v6581
        %v6604 = vcombine.high %v6588, %v6588
        %v6605 = vcombine.high %v6595, %v6595
        %v6606 = vcombine.high %v6602, %v6602
        %6615 = vst.msk [vmem:[%s260 + $0x15] sm:$0x1] %vm650, %v6581
        %6616 = vst.msk [vmem:[%s260 + $0x35] sm:$0x1] %vm650, %v6595
        %6617 = vst.msk [vmem:[%s260 + $0x55] sm:$0x1] %vm650, %v6603
        %6618 = vst.msk [vmem:[%s260 + $0x75] sm:$0x1] %vm650, %v6605
        %6619 = vst.msk [vmem:[%s260 + $0x95] sm:$0x1] %vm650, %v6588
        %6620 = vst.msk [vmem:[%s260 + $0xb5] sm:$0x1] %vm650, %v6602
        %6621 = vst.msk [vmem:[%s260 + $0xd5] sm:$0x1] %vm650, %v6604
        %6622 = vst.msk [vmem:[%s260 + $0xf5] sm:$0x1] %vm650, %v6606
        %v6623 = vld [vmem:[%s234 + $0xb] sm:$0x1]
        %v6624 = vld [vmem:[%s234 + $0x1b] sm:$0x1]
        %v6625 = vld [vmem:[%s234 + $0x2b] sm:$0x1]
        %v6626 = vld [vmem:[%s234 + $0x3b] sm:$0x1]
        %v6627 = vld [vmem:[%s234 + $0x4b] sm:$0x1]
        %v6628 = vld [vmem:[%s234 + $0x5b] sm:$0x1]
        %v6629 = vld [vmem:[%s234 + $0x6b] sm:$0x1]
        %v6630 = vld [vmem:[%s234 + $0x7b] sm:$0x1]
        %v6631 = vld [vmem:[%s234 + $0x8b] sm:$0x1]
        %v6632 = vld [vmem:[%s234 + $0x9b] sm:$0x1]
        %v6633 = vld [vmem:[%s234 + $0xab] sm:$0x1]
        %v6634 = vld [vmem:[%s234 + $0xbb] sm:$0x1]
        %v6635 = vld [vmem:[%s234 + $0xcb] sm:$0x1]
        %v6636 = vld [vmem:[%s234 + $0xdb] sm:$0x1]
        %v6637 = vld [vmem:[%s234 + $0xeb] sm:$0x1]
        %v6638 = vld [vmem:[%s234 + $0xfb] sm:$0x1]
        %v6655 = vrot.slane %v6624, 7
        %v6656 = vsel %vm305, %v6655, %v6623
        %v6657 = vrot.slane %v6625, 6
        %v6658 = vsel %vm308, %v6657, %v6656
        %v6659 = vrot.slane %v6626, 5
        %v6660 = vsel %vm311, %v6659, %v6658
        %v6661 = vrot.slane %v6627, 4
        %v6662 = vsel %vm314, %v6661, %v6660
        %v6663 = vrot.slane %v6628, 3
        %v6664 = vsel %vm317, %v6663, %v6662
        %v6665 = vrot.slane %v6629, 2
        %v6666 = vsel %vm320, %v6665, %v6664
        %v6667 = vrot.slane %v6630, 1
        %v6668 = vsel %vm323, %v6667, %v6666
        %v6669 = vrot.slane %v6632, 7
        %v6670 = vsel %vm305, %v6669, %v6631
        %v6671 = vrot.slane %v6633, 6
        %v6672 = vsel %vm308, %v6671, %v6670
        %v6673 = vrot.slane %v6634, 5
        %v6674 = vsel %vm311, %v6673, %v6672
        %v6675 = vrot.slane %v6635, 4
        %v6676 = vsel %vm314, %v6675, %v6674
        %v6677 = vrot.slane %v6636, 3
        %v6678 = vsel %vm317, %v6677, %v6676
        %v6679 = vrot.slane %v6637, 2
        %v6680 = vsel %vm320, %v6679, %v6678
        %v6681 = vrot.slane %v6638, 1
        %v6682 = vsel %vm323, %v6681, %v6680
        %6685 = vmatprep.subr.mxu0 0.0
        %6686 = vmatpush1.msra.mxu0 0.0
        %6687 = vmatprep.subr.mxu0 0.0
        %6688 = vmatpush1.msra.mxu0 0.0
        %6689 = vmatprep.subr.mxu0 0.0
        %6690 = vmatpush1.msra.mxu0 0.0
        %6691 = vmatprep.subr.mxu0 0.0
        %6692 = vmatpush1.msra.mxu0 0.0
        %6693 = vmatprep.subr.mxu0 0.0
        %6694 = vmatpush1.msra.mxu0 0.0
        %6695 = vmatprep.subr.mxu0 0.0
        %6696 = vmatpush1.msra.mxu0 0.0
        %6697 = vmatprep.subr.mxu0 0.0
        %6698 = vmatpush1.msra.mxu0 0.0
        %6699 = vmatprep.subr.mxu0 0.0
        %6700 = vmatpush1.msra.mxu0 0.0
        %6701 = vmatprep.subr.mxu0 0.0
        %6702 = vmatpush1.msra.mxu0 0.0
        %6703 = vmatprep.subr.mxu0 0.0
        %6704 = vmatpush1.msra.mxu0 0.0
        %6705 = vmatprep.subr.mxu0 0.0
        %6706 = vmatpush1.msra.mxu0 0.0
        %6707 = vmatprep.subr.mxu0 0.0
        %6708 = vmatpush1.msra.mxu0 0.0
        %6709 = vmatprep.subr.mxu0 0.0
        %6710 = vmatpush1.msra.mxu0 0.0
        %6711 = vmatprep.subr.mxu0 0.0
        %6712 = vmatpush1.msra.mxu0 0.0
        %6713 = vmatprep.subr.mxu0 0.0
        %6714 = vmatpush1.msra.mxu0 %v6682
        %6715 = vmatprep.subr.mxu0 0.0
        %6716 = vmatpush1.msra.mxu0 %v6668
        %6717 = vmatprep.subr.mxu0 0.0
        %6718 = vmatpush2.msra.mxu0 0.0
        %6719 = vmatprep.subr.mxu0 0.0
        %6720 = vmatpush2.msra.mxu0 0.0
        %6721 = vmatprep.subr.mxu0 0.0
        %6722 = vmatpush2.msra.mxu0 0.0
        %6723 = vmatprep.subr.mxu0 0.0
        %6724 = vmatpush2.msra.mxu0 0.0
        %6725 = vmatprep.subr.mxu0 0.0
        %6726 = vmatpush2.msra.mxu0 0.0
        %6727 = vmatprep.subr.mxu0 0.0
        %6728 = vmatpush2.msra.mxu0 0.0
        %6729 = vmatprep.subr.mxu0 0.0
        %6730 = vmatpush2.msra.mxu0 0.0
        %6731 = vmatprep.subr.mxu0 0.0
        %6732 = vmatpush2.msra.mxu0 0.0
        %6733 = vmatprep.subr.mxu0 0.0
        %6734 = vmatpush2.msra.mxu0 0.0
        %6735 = vmatprep.subr.mxu0 0.0
        %6736 = vmatpush2.msra.mxu0 0.0
        %6737 = vmatprep.subr.mxu0 0.0
        %6738 = vmatpush2.msra.mxu0 0.0
        %6739 = vmatprep.subr.mxu0 0.0
        %6740 = vmatpush2.msra.mxu0 0.0
        %6741 = vmatprep.subr.mxu0 0.0
        %6742 = vmatpush2.msra.mxu0 0.0
        %6743 = vmatprep.subr.mxu0 0.0
        %6744 = vmatpush2.msra.mxu0 0.0
        %6745 = vmatprep.subr.mxu0 0.0
        %6746 = vmatpush2.msra.mxu0 0.0
        %6747 = vmatprep.subr.mxu0 0.0
        %6748 = vmatpush2.msra.mxu0 0.0
        %6749 = vmatprep.mubr.f32.mxu0 0.0
        %6750 = vmatmul.mubr.f32.gmra.mxu0 %v343
        %v6751 = vpop.f32.mrf.mxu0
        %v6752 = vadd.f32 0.0, %v6751
        %v6753 = vpop.f32.mrf.mxu0
        %6754 = vmatprep.mubr.f32.mxu0 0.0
        %6755 = vmatmul.mubr.f32.gmra.mxu0 %v346
        %v6756 = vpop.f32.mrf.mxu0
        %v6757 = vadd.f32 0.0, %v6756
        %v6758 = vpop.f32.mrf.mxu0
        %6759 = vmatprep.mubr.f32.mxu0 0.0
        %6760 = vmatmul.mubr.f32.gmra.mxu0 %v349
        %v6761 = vpop.f32.mrf.mxu0
        %v6762 = vadd.f32 0.0, %v6761
        %v6763 = vpop.f32.mrf.mxu0
        %6764 = vmatprep.mubr.f32.mxu0 0.0
        %6765 = vmatmul.mubr.f32.gmra.mxu0 %v352
        %v6766 = vpop.f32.mrf.mxu0
        %v6767 = vadd.f32 0.0, %v6766
        %v6768 = vpop.f32.mrf.mxu0
        %6769 = vdwg.mxu0
        %v6771 = vsel %vm341, %v6757, 0
        %6773 = vmatprep.subr.mxu0 0.0
        %6774 = vmatpush1.msra.mxu0 0.0
        %6775 = vmatprep.subr.mxu0 0.0
        %6776 = vmatpush1.msra.mxu0 0.0
        %6777 = vmatprep.subr.mxu0 0.0
        %6778 = vmatpush1.msra.mxu0 0.0
        %6779 = vmatprep.subr.mxu0 0.0
        %6780 = vmatpush1.msra.mxu0 0.0
        %6781 = vmatprep.subr.mxu0 0.0
        %6782 = vmatpush1.msra.mxu0 0.0
        %6783 = vmatprep.subr.mxu0 0.0
        %6784 = vmatpush1.msra.mxu0 0.0
        %6785 = vmatprep.subr.mxu0 0.0
        %6786 = vmatpush1.msra.mxu0 0.0
        %6787 = vmatprep.subr.mxu0 0.0
        %6788 = vmatpush1.msra.mxu0 0.0
        %6789 = vmatprep.subr.mxu0 0.0
        %6790 = vmatpush1.msra.mxu0 0.0
        %6791 = vmatprep.subr.mxu0 0.0
        %6792 = vmatpush1.msra.mxu0 0.0
        %6793 = vmatprep.subr.mxu0 0.0
        %6794 = vmatpush1.msra.mxu0 0.0
        %6795 = vmatprep.subr.mxu0 0.0
        %6796 = vmatpush1.msra.mxu0 0.0
        %6797 = vmatprep.subr.mxu0 0.0
        %6798 = vmatpush1.msra.mxu0 0.0
        %6799 = vmatprep.subr.mxu0 0.0
        %6800 = vmatpush1.msra.mxu0 0.0
        %6801 = vmatprep.subr.mxu0 0.0
        %6802 = vmatpush1.msra.mxu0 %v270
        %6803 = vmatprep.subr.mxu0 0.0
        %6804 = vmatpush1.msra.mxu0 %v269
        %6805 = vmatprep.subr.mxu0 0.0
        %6806 = vmatpush2.msra.mxu0 0.0
        %6807 = vmatprep.subr.mxu0 0.0
        %6808 = vmatpush2.msra.mxu0 0.0
        %6809 = vmatprep.subr.mxu0 0.0
        %6810 = vmatpush2.msra.mxu0 0.0
        %6811 = vmatprep.subr.mxu0 0.0
        %6812 = vmatpush2.msra.mxu0 0.0
        %6813 = vmatprep.subr.mxu0 0.0
        %6814 = vmatpush2.msra.mxu0 0.0
        %6815 = vmatprep.subr.mxu0 0.0
        %6816 = vmatpush2.msra.mxu0 0.0
        %6817 = vmatprep.subr.mxu0 0.0
        %6818 = vmatpush2.msra.mxu0 0.0
        %6819 = vmatprep.subr.mxu0 0.0
        %6820 = vmatpush2.msra.mxu0 0.0
        %6821 = vmatprep.subr.mxu0 0.0
        %6822 = vmatpush2.msra.mxu0 0.0
        %6823 = vmatprep.subr.mxu0 0.0
        %6824 = vmatpush2.msra.mxu0 0.0
        %6825 = vmatprep.subr.mxu0 0.0
        %6826 = vmatpush2.msra.mxu0 0.0
        %6827 = vmatprep.subr.mxu0 0.0
        %6828 = vmatpush2.msra.mxu0 0.0
        %6829 = vmatprep.subr.mxu0 0.0
        %6830 = vmatpush2.msra.mxu0 0.0
        %6831 = vmatprep.subr.mxu0 0.0
        %6832 = vmatpush2.msra.mxu0 0.0
        %6833 = vmatprep.subr.mxu0 0.0
        %6834 = vmatpush2.msra.mxu0 0.0
        %6835 = vmatprep.subr.mxu0 0.0
        %6836 = vmatpush2.msra.mxu0 0.0
        %6837 = vmatprep.mubr.f32.mxu0 0.0
        %6838 = vmatmul.mubr.f32.gmra.mxu0 %v6771
        %v6839 = vpop.f32.mrf.mxu0
        %v6840 = vadd.f32 0.0, %v6839
        %v6841 = vpop.f32.mrf.mxu0
        %6842 = vdwg.mxu0
        %v6844 = vsel %vm341, %v6752, 0
        %6846 = vmatprep.subr.mxu0 0.0
        %6847 = vmatpush1.msra.mxu0 0.0
        %6848 = vmatprep.subr.mxu0 0.0
        %6849 = vmatpush1.msra.mxu0 0.0
        %6850 = vmatprep.subr.mxu0 0.0
        %6851 = vmatpush1.msra.mxu0 0.0
        %6852 = vmatprep.subr.mxu0 0.0
        %6853 = vmatpush1.msra.mxu0 0.0
        %6854 = vmatprep.subr.mxu0 0.0
        %6855 = vmatpush1.msra.mxu0 0.0
        %6856 = vmatprep.subr.mxu0 0.0
        %6857 = vmatpush1.msra.mxu0 0.0
        %6858 = vmatprep.subr.mxu0 0.0
        %6859 = vmatpush1.msra.mxu0 0.0
        %6860 = vmatprep.subr.mxu0 0.0
        %6861 = vmatpush1.msra.mxu0 0.0
        %6862 = vmatprep.subr.mxu0 0.0
        %6863 = vmatpush1.msra.mxu0 0.0
        %6864 = vmatprep.subr.mxu0 0.0
        %6865 = vmatpush1.msra.mxu0 0.0
        %6866 = vmatprep.subr.mxu0 0.0
        %6867 = vmatpush1.msra.mxu0 0.0
        %6868 = vmatprep.subr.mxu0 0.0
        %6869 = vmatpush1.msra.mxu0 0.0
        %6870 = vmatprep.subr.mxu0 0.0
        %6871 = vmatpush1.msra.mxu0 0.0
        %6872 = vmatprep.subr.mxu0 0.0
        %6873 = vmatpush1.msra.mxu0 0.0
        %6874 = vmatprep.subr.mxu0 0.0
        %6875 = vmatpush1.msra.mxu0 %v268
        %6876 = vmatprep.subr.mxu0 0.0
        %6877 = vmatpush1.msra.mxu0 %v267
        %6878 = vmatprep.subr.mxu0 0.0
        %6879 = vmatpush2.msra.mxu0 0.0
        %6880 = vmatprep.subr.mxu0 0.0
        %6881 = vmatpush2.msra.mxu0 0.0
        %6882 = vmatprep.subr.mxu0 0.0
        %6883 = vmatpush2.msra.mxu0 0.0
        %6884 = vmatprep.subr.mxu0 0.0
        %6885 = vmatpush2.msra.mxu0 0.0
        %6886 = vmatprep.subr.mxu0 0.0
        %6887 = vmatpush2.msra.mxu0 0.0
        %6888 = vmatprep.subr.mxu0 0.0
        %6889 = vmatpush2.msra.mxu0 0.0
        %6890 = vmatprep.subr.mxu0 0.0
        %6891 = vmatpush2.msra.mxu0 0.0
        %6892 = vmatprep.subr.mxu0 0.0
        %6893 = vmatpush2.msra.mxu0 0.0
        %6894 = vmatprep.subr.mxu0 0.0
        %6895 = vmatpush2.msra.mxu0 0.0
        %6896 = vmatprep.subr.mxu0 0.0
        %6897 = vmatpush2.msra.mxu0 0.0
        %6898 = vmatprep.subr.mxu0 0.0
        %6899 = vmatpush2.msra.mxu0 0.0
        %6900 = vmatprep.subr.mxu0 0.0
        %6901 = vmatpush2.msra.mxu0 0.0
        %6902 = vmatprep.subr.mxu0 0.0
        %6903 = vmatpush2.msra.mxu0 0.0
        %6904 = vmatprep.subr.mxu0 0.0
        %6905 = vmatpush2.msra.mxu0 0.0
        %6906 = vmatprep.subr.mxu0 0.0
        %6907 = vmatpush2.msra.mxu0 0.0
        %6908 = vmatprep.subr.mxu0 0.0
        %6909 = vmatpush2.msra.mxu0 0.0
        %6910 = vmatprep.mubr.f32.mxu0 0.0
        %6911 = vmatmul.mubr.f32.gmra.mxu0 %v6844
        %v6912 = vpop.f32.mrf.mxu0
        %v6913 = vadd.f32 %v6840, %v6912
        %v6914 = vpop.f32.mrf.mxu0
        %6915 = vdwg.mxu0
        %v6916 = vadd.f32 %v6913, %v588
        %v6917 = vmax.f32 %v6916, 0.0
        %v6919 = vcombine.high %v6917, %v6917
        %v6921 = vunpack.c.l.s4 1966171168
        %v6922 = vunpack.c.0.s8 %v6921
        %v6923 = vlaneseq
        %v6924 = vshrl.u32 %v6923, 7
        %v6925 = vsub.s32 %v6922, %v6924
        %v6926 = vrot.slane %v6917, %v6925
        %v6928 = vunpack.c.l.s4 1966171168
        %v6929 = vunpack.c.0.s8 %v6928
        %v6930 = vlaneseq
        %v6931 = vshrl.u32 %v6930, 7
        %v6932 = vsub.s32 %v6929, %v6931
        %v6933 = vrot.slane %v6919, %v6932
        %v6934 = vcombine.high %v6926, %v6926
        %v6935 = vcombine.high %v6933, %v6933
        %v6937 = vunpack.c.l.s4 1966171168
        %v6938 = vunpack.c.0.s8 %v6937
        %v6939 = vlaneseq
        %v6940 = vshrl.u32 %v6939, 7
        %v6941 = vsub.s32 %v6938, %v6940
        %v6942 = vrot.slane %v6926, %v6941
        %v6944 = vunpack.c.l.s4 1966171168
        %v6945 = vunpack.c.0.s8 %v6944
        %v6946 = vlaneseq
        %v6947 = vshrl.u32 %v6946, 7
        %v6948 = vsub.s32 %v6945, %v6947
        %v6949 = vrot.slane %v6933, %v6948
        %v6951 = vunpack.c.l.s4 1966171168
        %v6952 = vunpack.c.0.s8 %v6951
        %v6953 = vlaneseq
        %v6954 = vshrl.u32 %v6953, 7
        %v6955 = vsub.s32 %v6952, %v6954
        %v6956 = vrot.slane %v6934, %v6955
        %v6958 = vunpack.c.l.s4 1966171168
        %v6959 = vunpack.c.0.s8 %v6958
        %v6960 = vlaneseq
        %v6961 = vshrl.u32 %v6960, 7
        %v6962 = vsub.s32 %v6959, %v6961
        %v6963 = vrot.slane %v6935, %v6962
        %v6964 = vcombine.high %v6942, %v6942
        %v6965 = vcombine.high %v6949, %v6949
        %v6966 = vcombine.high %v6956, %v6956
        %v6967 = vcombine.high %v6963, %v6963
        %6976 = vst.msk [vmem:[%s260 + $0x16] sm:$0x1] %vm650, %v6942
        %6977 = vst.msk [vmem:[%s260 + $0x36] sm:$0x1] %vm650, %v6956
        %6978 = vst.msk [vmem:[%s260 + $0x56] sm:$0x1] %vm650, %v6964
        %6979 = vst.msk [vmem:[%s260 + $0x76] sm:$0x1] %vm650, %v6966
        %6980 = vst.msk [vmem:[%s260 + $0x96] sm:$0x1] %vm650, %v6949
        %6981 = vst.msk [vmem:[%s260 + $0xb6] sm:$0x1] %vm650, %v6963
        %6982 = vst.msk [vmem:[%s260 + $0xd6] sm:$0x1] %vm650, %v6965
        %6983 = vst.msk [vmem:[%s260 + $0xf6] sm:$0x1] %vm650, %v6967
        %v6985 = vsel %vm341, %v6767, 0
        %6987 = vmatprep.subr.mxu0 0.0
        %6988 = vmatpush1.msra.mxu0 0.0
        %6989 = vmatprep.subr.mxu0 0.0
        %6990 = vmatpush1.msra.mxu0 0.0
        %6991 = vmatprep.subr.mxu0 0.0
        %6992 = vmatpush1.msra.mxu0 0.0
        %6993 = vmatprep.subr.mxu0 0.0
        %6994 = vmatpush1.msra.mxu0 0.0
        %6995 = vmatprep.subr.mxu0 0.0
        %6996 = vmatpush1.msra.mxu0 0.0
        %6997 = vmatprep.subr.mxu0 0.0
        %6998 = vmatpush1.msra.mxu0 0.0
        %6999 = vmatprep.subr.mxu0 0.0
        %7000 = vmatpush1.msra.mxu0 0.0
        %7001 = vmatprep.subr.mxu0 0.0
        %7002 = vmatpush1.msra.mxu0 0.0
        %7003 = vmatprep.subr.mxu0 0.0
        %7004 = vmatpush1.msra.mxu0 0.0
        %7005 = vmatprep.subr.mxu0 0.0
        %7006 = vmatpush1.msra.mxu0 0.0
        %7007 = vmatprep.subr.mxu0 0.0
        %7008 = vmatpush1.msra.mxu0 0.0
        %7009 = vmatprep.subr.mxu0 0.0
        %7010 = vmatpush1.msra.mxu0 0.0
        %7011 = vmatprep.subr.mxu0 0.0
        %7012 = vmatpush1.msra.mxu0 0.0
        %7013 = vmatprep.subr.mxu0 0.0
        %7014 = vmatpush1.msra.mxu0 0.0
        %7015 = vmatprep.subr.mxu0 0.0
        %7016 = vmatpush1.msra.mxu0 %v270
        %7017 = vmatprep.subr.mxu0 0.0
        %7018 = vmatpush1.msra.mxu0 %v269
        %7019 = vmatprep.subr.mxu0 0.0
        %7020 = vmatpush2.msra.mxu0 0.0
        %7021 = vmatprep.subr.mxu0 0.0
        %7022 = vmatpush2.msra.mxu0 0.0
        %7023 = vmatprep.subr.mxu0 0.0
        %7024 = vmatpush2.msra.mxu0 0.0
        %7025 = vmatprep.subr.mxu0 0.0
        %7026 = vmatpush2.msra.mxu0 0.0
        %7027 = vmatprep.subr.mxu0 0.0
        %7028 = vmatpush2.msra.mxu0 0.0
        %7029 = vmatprep.subr.mxu0 0.0
        %7030 = vmatpush2.msra.mxu0 0.0
        %7031 = vmatprep.subr.mxu0 0.0
        %7032 = vmatpush2.msra.mxu0 0.0
        %7033 = vmatprep.subr.mxu0 0.0
        %7034 = vmatpush2.msra.mxu0 0.0
        %7035 = vmatprep.subr.mxu0 0.0
        %7036 = vmatpush2.msra.mxu0 0.0
        %7037 = vmatprep.subr.mxu0 0.0
        %7038 = vmatpush2.msra.mxu0 0.0
        %7039 = vmatprep.subr.mxu0 0.0
        %7040 = vmatpush2.msra.mxu0 0.0
        %7041 = vmatprep.subr.mxu0 0.0
        %7042 = vmatpush2.msra.mxu0 0.0
        %7043 = vmatprep.subr.mxu0 0.0
        %7044 = vmatpush2.msra.mxu0 0.0
        %7045 = vmatprep.subr.mxu0 0.0
        %7046 = vmatpush2.msra.mxu0 0.0
        %7047 = vmatprep.subr.mxu0 0.0
        %7048 = vmatpush2.msra.mxu0 0.0
        %7049 = vmatprep.subr.mxu0 0.0
        %7050 = vmatpush2.msra.mxu0 0.0
        %7051 = vmatprep.mubr.f32.mxu0 0.0
        %7052 = vmatmul.mubr.f32.gmra.mxu0 %v6985
        %v7053 = vpop.f32.mrf.mxu0
        %v7054 = vadd.f32 0.0, %v7053
        %v7055 = vpop.f32.mrf.mxu0
        %7056 = vdwg.mxu0
        %v7058 = vsel %vm341, %v6762, 0
        %7060 = vmatprep.subr.mxu0 0.0
        %7061 = vmatpush1.msra.mxu0 0.0
        %7062 = vmatprep.subr.mxu0 0.0
        %7063 = vmatpush1.msra.mxu0 0.0
        %7064 = vmatprep.subr.mxu0 0.0
        %7065 = vmatpush1.msra.mxu0 0.0
        %7066 = vmatprep.subr.mxu0 0.0
        %7067 = vmatpush1.msra.mxu0 0.0
        %7068 = vmatprep.subr.mxu0 0.0
        %7069 = vmatpush1.msra.mxu0 0.0
        %7070 = vmatprep.subr.mxu0 0.0
        %7071 = vmatpush1.msra.mxu0 0.0
        %7072 = vmatprep.subr.mxu0 0.0
        %7073 = vmatpush1.msra.mxu0 0.0
        %7074 = vmatprep.subr.mxu0 0.0
        %7075 = vmatpush1.msra.mxu0 0.0
        %7076 = vmatprep.subr.mxu0 0.0
        %7077 = vmatpush1.msra.mxu0 0.0
        %7078 = vmatprep.subr.mxu0 0.0
        %7079 = vmatpush1.msra.mxu0 0.0
        %7080 = vmatprep.subr.mxu0 0.0
        %7081 = vmatpush1.msra.mxu0 0.0
        %7082 = vmatprep.subr.mxu0 0.0
        %7083 = vmatpush1.msra.mxu0 0.0
        %7084 = vmatprep.subr.mxu0 0.0
        %7085 = vmatpush1.msra.mxu0 0.0
        %7086 = vmatprep.subr.mxu0 0.0
        %7087 = vmatpush1.msra.mxu0 0.0
        %7088 = vmatprep.subr.mxu0 0.0
        %7089 = vmatpush1.msra.mxu0 %v268
        %7090 = vmatprep.subr.mxu0 0.0
        %7091 = vmatpush1.msra.mxu0 %v267
        %7092 = vmatprep.subr.mxu0 0.0
        %7093 = vmatpush2.msra.mxu0 0.0
        %7094 = vmatprep.subr.mxu0 0.0
        %7095 = vmatpush2.msra.mxu0 0.0
        %7096 = vmatprep.subr.mxu0 0.0
        %7097 = vmatpush2.msra.mxu0 0.0
        %7098 = vmatprep.subr.mxu0 0.0
        %7099 = vmatpush2.msra.mxu0 0.0
        %7100 = vmatprep.subr.mxu0 0.0
        %7101 = vmatpush2.msra.mxu0 0.0
        %7102 = vmatprep.subr.mxu0 0.0
        %7103 = vmatpush2.msra.mxu0 0.0
        %7104 = vmatprep.subr.mxu0 0.0
        %7105 = vmatpush2.msra.mxu0 0.0
        %7106 = vmatprep.subr.mxu0 0.0
        %7107 = vmatpush2.msra.mxu0 0.0
        %7108 = vmatprep.subr.mxu0 0.0
        %7109 = vmatpush2.msra.mxu0 0.0
        %7110 = vmatprep.subr.mxu0 0.0
        %7111 = vmatpush2.msra.mxu0 0.0
        %7112 = vmatprep.subr.mxu0 0.0
        %7113 = vmatpush2.msra.mxu0 0.0
        %7114 = vmatprep.subr.mxu0 0.0
        %7115 = vmatpush2.msra.mxu0 0.0
        %7116 = vmatprep.subr.mxu0 0.0
        %7117 = vmatpush2.msra.mxu0 0.0
        %7118 = vmatprep.subr.mxu0 0.0
        %7119 = vmatpush2.msra.mxu0 0.0
        %7120 = vmatprep.subr.mxu0 0.0
        %7121 = vmatpush2.msra.mxu0 0.0
        %7122 = vmatprep.subr.mxu0 0.0
        %7123 = vmatpush2.msra.mxu0 0.0
        %7124 = vmatprep.mubr.f32.mxu0 0.0
        %7125 = vmatmul.mubr.f32.gmra.mxu0 %v7058
        %v7126 = vpop.f32.mrf.mxu0
        %v7127 = vadd.f32 %v7054, %v7126
        %v7128 = vpop.f32.mrf.mxu0
        %7129 = vdwg.mxu0
        %v7130 = vadd.f32 %v7127, %v588
        %v7131 = vmax.f32 %v7130, 0.0
        %v7133 = vcombine.high %v7131, %v7131
        %v7135 = vunpack.c.l.s4 1966171168
        %v7136 = vunpack.c.0.s8 %v7135
        %v7137 = vlaneseq
        %v7138 = vshrl.u32 %v7137, 7
        %v7139 = vsub.s32 %v7136, %v7138
        %v7140 = vrot.slane %v7131, %v7139
        %v7142 = vunpack.c.l.s4 1966171168
        %v7143 = vunpack.c.0.s8 %v7142
        %v7144 = vlaneseq
        %v7145 = vshrl.u32 %v7144, 7
        %v7146 = vsub.s32 %v7143, %v7145
        %v7147 = vrot.slane %v7133, %v7146
        %v7148 = vcombine.high %v7140, %v7140
        %v7149 = vcombine.high %v7147, %v7147
        %v7151 = vunpack.c.l.s4 1966171168
        %v7152 = vunpack.c.0.s8 %v7151
        %v7153 = vlaneseq
        %v7154 = vshrl.u32 %v7153, 7
        %v7155 = vsub.s32 %v7152, %v7154
        %v7156 = vrot.slane %v7140, %v7155
        %v7158 = vunpack.c.l.s4 1966171168
        %v7159 = vunpack.c.0.s8 %v7158
        %v7160 = vlaneseq
        %v7161 = vshrl.u32 %v7160, 7
        %v7162 = vsub.s32 %v7159, %v7161
        %v7163 = vrot.slane %v7147, %v7162
        %v7165 = vunpack.c.l.s4 1966171168
        %v7166 = vunpack.c.0.s8 %v7165
        %v7167 = vlaneseq
        %v7168 = vshrl.u32 %v7167, 7
        %v7169 = vsub.s32 %v7166, %v7168
        %v7170 = vrot.slane %v7148, %v7169
        %v7172 = vunpack.c.l.s4 1966171168
        %v7173 = vunpack.c.0.s8 %v7172
        %v7174 = vlaneseq
        %v7175 = vshrl.u32 %v7174, 7
        %v7176 = vsub.s32 %v7173, %v7175
        %v7177 = vrot.slane %v7149, %v7176
        %v7178 = vcombine.high %v7156, %v7156
        %v7179 = vcombine.high %v7163, %v7163
        %v7180 = vcombine.high %v7170, %v7170
        %v7181 = vcombine.high %v7177, %v7177
        %7190 = vst.msk [vmem:[%s260 + $0x17] sm:$0x1] %vm650, %v7156
        %7191 = vst.msk [vmem:[%s260 + $0x37] sm:$0x1] %vm650, %v7170
        %7192 = vst.msk [vmem:[%s260 + $0x57] sm:$0x1] %vm650, %v7178
        %7193 = vst.msk [vmem:[%s260 + $0x77] sm:$0x1] %vm650, %v7180
        %7194 = vst.msk [vmem:[%s260 + $0x97] sm:$0x1] %vm650, %v7163
        %7195 = vst.msk [vmem:[%s260 + $0xb7] sm:$0x1] %vm650, %v7177
        %7196 = vst.msk [vmem:[%s260 + $0xd7] sm:$0x1] %vm650, %v7179
        %7197 = vst.msk [vmem:[%s260 + $0xf7] sm:$0x1] %vm650, %v7181
        %v7198 = vld [vmem:[%s234 + $0xc] sm:$0x1]
        %v7199 = vld [vmem:[%s234 + $0x1c] sm:$0x1]
        %v7200 = vld [vmem:[%s234 + $0x2c] sm:$0x1]
        %v7201 = vld [vmem:[%s234 + $0x3c] sm:$0x1]
        %v7202 = vld [vmem:[%s234 + $0x4c] sm:$0x1]
        %v7203 = vld [vmem:[%s234 + $0x5c] sm:$0x1]
        %v7204 = vld [vmem:[%s234 + $0x6c] sm:$0x1]
        %v7205 = vld [vmem:[%s234 + $0x7c] sm:$0x1]
        %v7206 = vld [vmem:[%s234 + $0x8c] sm:$0x1]
        %v7207 = vld [vmem:[%s234 + $0x9c] sm:$0x1]
        %v7208 = vld [vmem:[%s234 + $0xac] sm:$0x1]
        %v7209 = vld [vmem:[%s234 + $0xbc] sm:$0x1]
        %v7210 = vld [vmem:[%s234 + $0xcc] sm:$0x1]
        %v7211 = vld [vmem:[%s234 + $0xdc] sm:$0x1]
        %v7212 = vld [vmem:[%s234 + $0xec] sm:$0x1]
        %v7213 = vld [vmem:[%s234 + $0xfc] sm:$0x1]
        %v7230 = vrot.slane %v7199, 7
        %v7231 = vsel %vm305, %v7230, %v7198
        %v7232 = vrot.slane %v7200, 6
        %v7233 = vsel %vm308, %v7232, %v7231
        %v7234 = vrot.slane %v7201, 5
        %v7235 = vsel %vm311, %v7234, %v7233
        %v7236 = vrot.slane %v7202, 4
        %v7237 = vsel %vm314, %v7236, %v7235
        %v7238 = vrot.slane %v7203, 3
        %v7239 = vsel %vm317, %v7238, %v7237
        %v7240 = vrot.slane %v7204, 2
        %v7241 = vsel %vm320, %v7240, %v7239
        %v7242 = vrot.slane %v7205, 1
        %v7243 = vsel %vm323, %v7242, %v7241
        %v7244 = vrot.slane %v7207, 7
        %v7245 = vsel %vm305, %v7244, %v7206
        %v7246 = vrot.slane %v7208, 6
        %v7247 = vsel %vm308, %v7246, %v7245
        %v7248 = vrot.slane %v7209, 5
        %v7249 = vsel %vm311, %v7248, %v7247
        %v7250 = vrot.slane %v7210, 4
        %v7251 = vsel %vm314, %v7250, %v7249
        %v7252 = vrot.slane %v7211, 3
        %v7253 = vsel %vm317, %v7252, %v7251
        %v7254 = vrot.slane %v7212, 2
        %v7255 = vsel %vm320, %v7254, %v7253
        %v7256 = vrot.slane %v7213, 1
        %v7257 = vsel %vm323, %v7256, %v7255
        %7260 = vmatprep.subr.mxu0 0.0
        %7261 = vmatpush1.msra.mxu0 0.0
        %7262 = vmatprep.subr.mxu0 0.0
        %7263 = vmatpush1.msra.mxu0 0.0
        %7264 = vmatprep.subr.mxu0 0.0
        %7265 = vmatpush1.msra.mxu0 0.0
        %7266 = vmatprep.subr.mxu0 0.0
        %7267 = vmatpush1.msra.mxu0 0.0
        %7268 = vmatprep.subr.mxu0 0.0
        %7269 = vmatpush1.msra.mxu0 0.0
        %7270 = vmatprep.subr.mxu0 0.0
        %7271 = vmatpush1.msra.mxu0 0.0
        %7272 = vmatprep.subr.mxu0 0.0
        %7273 = vmatpush1.msra.mxu0 0.0
        %7274 = vmatprep.subr.mxu0 0.0
        %7275 = vmatpush1.msra.mxu0 0.0
        %7276 = vmatprep.subr.mxu0 0.0
        %7277 = vmatpush1.msra.mxu0 0.0
        %7278 = vmatprep.subr.mxu0 0.0
        %7279 = vmatpush1.msra.mxu0 0.0
        %7280 = vmatprep.subr.mxu0 0.0
        %7281 = vmatpush1.msra.mxu0 0.0
        %7282 = vmatprep.subr.mxu0 0.0
        %7283 = vmatpush1.msra.mxu0 0.0
        %7284 = vmatprep.subr.mxu0 0.0
        %7285 = vmatpush1.msra.mxu0 0.0
        %7286 = vmatprep.subr.mxu0 0.0
        %7287 = vmatpush1.msra.mxu0 0.0
        %7288 = vmatprep.subr.mxu0 0.0
        %7289 = vmatpush1.msra.mxu0 %v7257
        %7290 = vmatprep.subr.mxu0 0.0
        %7291 = vmatpush1.msra.mxu0 %v7243
        %7292 = vmatprep.subr.mxu0 0.0
        %7293 = vmatpush2.msra.mxu0 0.0
        %7294 = vmatprep.subr.mxu0 0.0
        %7295 = vmatpush2.msra.mxu0 0.0
        %7296 = vmatprep.subr.mxu0 0.0
        %7297 = vmatpush2.msra.mxu0 0.0
        %7298 = vmatprep.subr.mxu0 0.0
        %7299 = vmatpush2.msra.mxu0 0.0
        %7300 = vmatprep.subr.mxu0 0.0
        %7301 = vmatpush2.msra.mxu0 0.0
        %7302 = vmatprep.subr.mxu0 0.0
        %7303 = vmatpush2.msra.mxu0 0.0
        %7304 = vmatprep.subr.mxu0 0.0
        %7305 = vmatpush2.msra.mxu0 0.0
        %7306 = vmatprep.subr.mxu0 0.0
        %7307 = vmatpush2.msra.mxu0 0.0
        %7308 = vmatprep.subr.mxu0 0.0
        %7309 = vmatpush2.msra.mxu0 0.0
        %7310 = vmatprep.subr.mxu0 0.0
        %7311 = vmatpush2.msra.mxu0 0.0
        %7312 = vmatprep.subr.mxu0 0.0
        %7313 = vmatpush2.msra.mxu0 0.0
        %7314 = vmatprep.subr.mxu0 0.0
        %7315 = vmatpush2.msra.mxu0 0.0
        %7316 = vmatprep.subr.mxu0 0.0
        %7317 = vmatpush2.msra.mxu0 0.0
        %7318 = vmatprep.subr.mxu0 0.0
        %7319 = vmatpush2.msra.mxu0 0.0
        %7320 = vmatprep.subr.mxu0 0.0
        %7321 = vmatpush2.msra.mxu0 0.0
        %7322 = vmatprep.subr.mxu0 0.0
        %7323 = vmatpush2.msra.mxu0 0.0
        %7324 = vmatprep.mubr.f32.mxu0 0.0
        %7325 = vmatmul.mubr.f32.gmra.mxu0 %v343
        %v7326 = vpop.f32.mrf.mxu0
        %v7327 = vadd.f32 0.0, %v7326
        %v7328 = vpop.f32.mrf.mxu0
        %7329 = vmatprep.mubr.f32.mxu0 0.0
        %7330 = vmatmul.mubr.f32.gmra.mxu0 %v346
        %v7331 = vpop.f32.mrf.mxu0
        %v7332 = vadd.f32 0.0, %v7331
        %v7333 = vpop.f32.mrf.mxu0
        %7334 = vmatprep.mubr.f32.mxu0 0.0
        %7335 = vmatmul.mubr.f32.gmra.mxu0 %v349
        %v7336 = vpop.f32.mrf.mxu0
        %v7337 = vadd.f32 0.0, %v7336
        %v7338 = vpop.f32.mrf.mxu0
        %7339 = vmatprep.mubr.f32.mxu0 0.0
        %7340 = vmatmul.mubr.f32.gmra.mxu0 %v352
        %v7341 = vpop.f32.mrf.mxu0
        %v7342 = vadd.f32 0.0, %v7341
        %v7343 = vpop.f32.mrf.mxu0
        %7344 = vdwg.mxu0
        %v7346 = vsel %vm341, %v7332, 0
        %7348 = vmatprep.subr.mxu0 0.0
        %7349 = vmatpush1.msra.mxu0 0.0
        %7350 = vmatprep.subr.mxu0 0.0
        %7351 = vmatpush1.msra.mxu0 0.0
        %7352 = vmatprep.subr.mxu0 0.0
        %7353 = vmatpush1.msra.mxu0 0.0
        %7354 = vmatprep.subr.mxu0 0.0
        %7355 = vmatpush1.msra.mxu0 0.0
        %7356 = vmatprep.subr.mxu0 0.0
        %7357 = vmatpush1.msra.mxu0 0.0
        %7358 = vmatprep.subr.mxu0 0.0
        %7359 = vmatpush1.msra.mxu0 0.0
        %7360 = vmatprep.subr.mxu0 0.0
        %7361 = vmatpush1.msra.mxu0 0.0
        %7362 = vmatprep.subr.mxu0 0.0
        %7363 = vmatpush1.msra.mxu0 0.0
        %7364 = vmatprep.subr.mxu0 0.0
        %7365 = vmatpush1.msra.mxu0 0.0
        %7366 = vmatprep.subr.mxu0 0.0
        %7367 = vmatpush1.msra.mxu0 0.0
        %7368 = vmatprep.subr.mxu0 0.0
        %7369 = vmatpush1.msra.mxu0 0.0
        %7370 = vmatprep.subr.mxu0 0.0
        %7371 = vmatpush1.msra.mxu0 0.0
        %7372 = vmatprep.subr.mxu0 0.0
        %7373 = vmatpush1.msra.mxu0 0.0
        %7374 = vmatprep.subr.mxu0 0.0
        %7375 = vmatpush1.msra.mxu0 0.0
        %7376 = vmatprep.subr.mxu0 0.0
        %7377 = vmatpush1.msra.mxu0 %v270
        %7378 = vmatprep.subr.mxu0 0.0
        %7379 = vmatpush1.msra.mxu0 %v269
        %7380 = vmatprep.subr.mxu0 0.0
        %7381 = vmatpush2.msra.mxu0 0.0
        %7382 = vmatprep.subr.mxu0 0.0
        %7383 = vmatpush2.msra.mxu0 0.0
        %7384 = vmatprep.subr.mxu0 0.0
        %7385 = vmatpush2.msra.mxu0 0.0
        %7386 = vmatprep.subr.mxu0 0.0
        %7387 = vmatpush2.msra.mxu0 0.0
        %7388 = vmatprep.subr.mxu0 0.0
        %7389 = vmatpush2.msra.mxu0 0.0
        %7390 = vmatprep.subr.mxu0 0.0
        %7391 = vmatpush2.msra.mxu0 0.0
        %7392 = vmatprep.subr.mxu0 0.0
        %7393 = vmatpush2.msra.mxu0 0.0
        %7394 = vmatprep.subr.mxu0 0.0
        %7395 = vmatpush2.msra.mxu0 0.0
        %7396 = vmatprep.subr.mxu0 0.0
        %7397 = vmatpush2.msra.mxu0 0.0
        %7398 = vmatprep.subr.mxu0 0.0
        %7399 = vmatpush2.msra.mxu0 0.0
        %7400 = vmatprep.subr.mxu0 0.0
        %7401 = vmatpush2.msra.mxu0 0.0
        %7402 = vmatprep.subr.mxu0 0.0
        %7403 = vmatpush2.msra.mxu0 0.0
        %7404 = vmatprep.subr.mxu0 0.0
        %7405 = vmatpush2.msra.mxu0 0.0
        %7406 = vmatprep.subr.mxu0 0.0
        %7407 = vmatpush2.msra.mxu0 0.0
        %7408 = vmatprep.subr.mxu0 0.0
        %7409 = vmatpush2.msra.mxu0 0.0
        %7410 = vmatprep.subr.mxu0 0.0
        %7411 = vmatpush2.msra.mxu0 0.0
        %7412 = vmatprep.mubr.f32.mxu0 0.0
        %7413 = vmatmul.mubr.f32.gmra.mxu0 %v7346
        %v7414 = vpop.f32.mrf.mxu0
        %v7415 = vadd.f32 0.0, %v7414
        %v7416 = vpop.f32.mrf.mxu0
        %7417 = vdwg.mxu0
        %v7419 = vsel %vm341, %v7327, 0
        %7421 = vmatprep.subr.mxu0 0.0
        %7422 = vmatpush1.msra.mxu0 0.0
        %7423 = vmatprep.subr.mxu0 0.0
        %7424 = vmatpush1.msra.mxu0 0.0
        %7425 = vmatprep.subr.mxu0 0.0
        %7426 = vmatpush1.msra.mxu0 0.0
        %7427 = vmatprep.subr.mxu0 0.0
        %7428 = vmatpush1.msra.mxu0 0.0
        %7429 = vmatprep.subr.mxu0 0.0
        %7430 = vmatpush1.msra.mxu0 0.0
        %7431 = vmatprep.subr.mxu0 0.0
        %7432 = vmatpush1.msra.mxu0 0.0
        %7433 = vmatprep.subr.mxu0 0.0
        %7434 = vmatpush1.msra.mxu0 0.0
        %7435 = vmatprep.subr.mxu0 0.0
        %7436 = vmatpush1.msra.mxu0 0.0
        %7437 = vmatprep.subr.mxu0 0.0
        %7438 = vmatpush1.msra.mxu0 0.0
        %7439 = vmatprep.subr.mxu0 0.0
        %7440 = vmatpush1.msra.mxu0 0.0
        %7441 = vmatprep.subr.mxu0 0.0
        %7442 = vmatpush1.msra.mxu0 0.0
        %7443 = vmatprep.subr.mxu0 0.0
        %7444 = vmatpush1.msra.mxu0 0.0
        %7445 = vmatprep.subr.mxu0 0.0
        %7446 = vmatpush1.msra.mxu0 0.0
        %7447 = vmatprep.subr.mxu0 0.0
        %7448 = vmatpush1.msra.mxu0 0.0
        %7449 = vmatprep.subr.mxu0 0.0
        %7450 = vmatpush1.msra.mxu0 %v268
        %7451 = vmatprep.subr.mxu0 0.0
        %7452 = vmatpush1.msra.mxu0 %v267
        %7453 = vmatprep.subr.mxu0 0.0
        %7454 = vmatpush2.msra.mxu0 0.0
        %7455 = vmatprep.subr.mxu0 0.0
        %7456 = vmatpush2.msra.mxu0 0.0
        %7457 = vmatprep.subr.mxu0 0.0
        %7458 = vmatpush2.msra.mxu0 0.0
        %7459 = vmatprep.subr.mxu0 0.0
        %7460 = vmatpush2.msra.mxu0 0.0
        %7461 = vmatprep.subr.mxu0 0.0
        %7462 = vmatpush2.msra.mxu0 0.0
        %7463 = vmatprep.subr.mxu0 0.0
        %7464 = vmatpush2.msra.mxu0 0.0
        %7465 = vmatprep.subr.mxu0 0.0
        %7466 = vmatpush2.msra.mxu0 0.0
        %7467 = vmatprep.subr.mxu0 0.0
        %7468 = vmatpush2.msra.mxu0 0.0
        %7469 = vmatprep.subr.mxu0 0.0
        %7470 = vmatpush2.msra.mxu0 0.0
        %7471 = vmatprep.subr.mxu0 0.0
        %7472 = vmatpush2.msra.mxu0 0.0
        %7473 = vmatprep.subr.mxu0 0.0
        %7474 = vmatpush2.msra.mxu0 0.0
        %7475 = vmatprep.subr.mxu0 0.0
        %7476 = vmatpush2.msra.mxu0 0.0
        %7477 = vmatprep.subr.mxu0 0.0
        %7478 = vmatpush2.msra.mxu0 0.0
        %7479 = vmatprep.subr.mxu0 0.0
        %7480 = vmatpush2.msra.mxu0 0.0
        %7481 = vmatprep.subr.mxu0 0.0
        %7482 = vmatpush2.msra.mxu0 0.0
        %7483 = vmatprep.subr.mxu0 0.0
        %7484 = vmatpush2.msra.mxu0 0.0
        %7485 = vmatprep.mubr.f32.mxu0 0.0
        %7486 = vmatmul.mubr.f32.gmra.mxu0 %v7419
        %v7487 = vpop.f32.mrf.mxu0
        %v7488 = vadd.f32 %v7415, %v7487
        %v7489 = vpop.f32.mrf.mxu0
        %7490 = vdwg.mxu0
        %v7491 = vadd.f32 %v7488, %v588
        %v7492 = vmax.f32 %v7491, 0.0
        %v7494 = vcombine.high %v7492, %v7492
        %v7496 = vunpack.c.l.s4 1966171168
        %v7497 = vunpack.c.0.s8 %v7496
        %v7498 = vlaneseq
        %v7499 = vshrl.u32 %v7498, 7
        %v7500 = vsub.s32 %v7497, %v7499
        %v7501 = vrot.slane %v7492, %v7500
        %v7503 = vunpack.c.l.s4 1966171168
        %v7504 = vunpack.c.0.s8 %v7503
        %v7505 = vlaneseq
        %v7506 = vshrl.u32 %v7505, 7
        %v7507 = vsub.s32 %v7504, %v7506
        %v7508 = vrot.slane %v7494, %v7507
        %v7509 = vcombine.high %v7501, %v7501
        %v7510 = vcombine.high %v7508, %v7508
        %v7512 = vunpack.c.l.s4 1966171168
        %v7513 = vunpack.c.0.s8 %v7512
        %v7514 = vlaneseq
        %v7515 = vshrl.u32 %v7514, 7
        %v7516 = vsub.s32 %v7513, %v7515
        %v7517 = vrot.slane %v7501, %v7516
        %v7519 = vunpack.c.l.s4 1966171168
        %v7520 = vunpack.c.0.s8 %v7519
        %v7521 = vlaneseq
        %v7522 = vshrl.u32 %v7521, 7
        %v7523 = vsub.s32 %v7520, %v7522
        %v7524 = vrot.slane %v7508, %v7523
        %v7526 = vunpack.c.l.s4 1966171168
        %v7527 = vunpack.c.0.s8 %v7526
        %v7528 = vlaneseq
        %v7529 = vshrl.u32 %v7528, 7
        %v7530 = vsub.s32 %v7527, %v7529
        %v7531 = vrot.slane %v7509, %v7530
        %v7533 = vunpack.c.l.s4 1966171168
        %v7534 = vunpack.c.0.s8 %v7533
        %v7535 = vlaneseq
        %v7536 = vshrl.u32 %v7535, 7
        %v7537 = vsub.s32 %v7534, %v7536
        %v7538 = vrot.slane %v7510, %v7537
        %v7539 = vcombine.high %v7517, %v7517
        %v7540 = vcombine.high %v7524, %v7524
        %v7541 = vcombine.high %v7531, %v7531
        %v7542 = vcombine.high %v7538, %v7538
        %7551 = vst.msk [vmem:[%s260 + $0x18] sm:$0x1] %vm650, %v7517
        %7552 = vst.msk [vmem:[%s260 + $0x38] sm:$0x1] %vm650, %v7531
        %7553 = vst.msk [vmem:[%s260 + $0x58] sm:$0x1] %vm650, %v7539
        %7554 = vst.msk [vmem:[%s260 + $0x78] sm:$0x1] %vm650, %v7541
        %7555 = vst.msk [vmem:[%s260 + $0x98] sm:$0x1] %vm650, %v7524
        %7556 = vst.msk [vmem:[%s260 + $0xb8] sm:$0x1] %vm650, %v7538
        %7557 = vst.msk [vmem:[%s260 + $0xd8] sm:$0x1] %vm650, %v7540
        %7558 = vst.msk [vmem:[%s260 + $0xf8] sm:$0x1] %vm650, %v7542
        %v7560 = vsel %vm341, %v7342, 0
        %7562 = vmatprep.subr.mxu0 0.0
        %7563 = vmatpush1.msra.mxu0 0.0
        %7564 = vmatprep.subr.mxu0 0.0
        %7565 = vmatpush1.msra.mxu0 0.0
        %7566 = vmatprep.subr.mxu0 0.0
        %7567 = vmatpush1.msra.mxu0 0.0
        %7568 = vmatprep.subr.mxu0 0.0
        %7569 = vmatpush1.msra.mxu0 0.0
        %7570 = vmatprep.subr.mxu0 0.0
        %7571 = vmatpush1.msra.mxu0 0.0
        %7572 = vmatprep.subr.mxu0 0.0
        %7573 = vmatpush1.msra.mxu0 0.0
        %7574 = vmatprep.subr.mxu0 0.0
        %7575 = vmatpush1.msra.mxu0 0.0
        %7576 = vmatprep.subr.mxu0 0.0
        %7577 = vmatpush1.msra.mxu0 0.0
        %7578 = vmatprep.subr.mxu0 0.0
        %7579 = vmatpush1.msra.mxu0 0.0
        %7580 = vmatprep.subr.mxu0 0.0
        %7581 = vmatpush1.msra.mxu0 0.0
        %7582 = vmatprep.subr.mxu0 0.0
        %7583 = vmatpush1.msra.mxu0 0.0
        %7584 = vmatprep.subr.mxu0 0.0
        %7585 = vmatpush1.msra.mxu0 0.0
        %7586 = vmatprep.subr.mxu0 0.0
        %7587 = vmatpush1.msra.mxu0 0.0
        %7588 = vmatprep.subr.mxu0 0.0
        %7589 = vmatpush1.msra.mxu0 0.0
        %7590 = vmatprep.subr.mxu0 0.0
        %7591 = vmatpush1.msra.mxu0 %v270
        %7592 = vmatprep.subr.mxu0 0.0
        %7593 = vmatpush1.msra.mxu0 %v269
        %7594 = vmatprep.subr.mxu0 0.0
        %7595 = vmatpush2.msra.mxu0 0.0
        %7596 = vmatprep.subr.mxu0 0.0
        %7597 = vmatpush2.msra.mxu0 0.0
        %7598 = vmatprep.subr.mxu0 0.0
        %7599 = vmatpush2.msra.mxu0 0.0
        %7600 = vmatprep.subr.mxu0 0.0
        %7601 = vmatpush2.msra.mxu0 0.0
        %7602 = vmatprep.subr.mxu0 0.0
        %7603 = vmatpush2.msra.mxu0 0.0
        %7604 = vmatprep.subr.mxu0 0.0
        %7605 = vmatpush2.msra.mxu0 0.0
        %7606 = vmatprep.subr.mxu0 0.0
        %7607 = vmatpush2.msra.mxu0 0.0
        %7608 = vmatprep.subr.mxu0 0.0
        %7609 = vmatpush2.msra.mxu0 0.0
        %7610 = vmatprep.subr.mxu0 0.0
        %7611 = vmatpush2.msra.mxu0 0.0
        %7612 = vmatprep.subr.mxu0 0.0
        %7613 = vmatpush2.msra.mxu0 0.0
        %7614 = vmatprep.subr.mxu0 0.0
        %7615 = vmatpush2.msra.mxu0 0.0
        %7616 = vmatprep.subr.mxu0 0.0
        %7617 = vmatpush2.msra.mxu0 0.0
        %7618 = vmatprep.subr.mxu0 0.0
        %7619 = vmatpush2.msra.mxu0 0.0
        %7620 = vmatprep.subr.mxu0 0.0
        %7621 = vmatpush2.msra.mxu0 0.0
        %7622 = vmatprep.subr.mxu0 0.0
        %7623 = vmatpush2.msra.mxu0 0.0
        %7624 = vmatprep.subr.mxu0 0.0
        %7625 = vmatpush2.msra.mxu0 0.0
        %7626 = vmatprep.mubr.f32.mxu0 0.0
        %7627 = vmatmul.mubr.f32.gmra.mxu0 %v7560
        %v7628 = vpop.f32.mrf.mxu0
        %v7629 = vadd.f32 0.0, %v7628
        %v7630 = vpop.f32.mrf.mxu0
        %7631 = vdwg.mxu0
        %v7633 = vsel %vm341, %v7337, 0
        %7635 = vmatprep.subr.mxu0 0.0
        %7636 = vmatpush1.msra.mxu0 0.0
        %7637 = vmatprep.subr.mxu0 0.0
        %7638 = vmatpush1.msra.mxu0 0.0
        %7639 = vmatprep.subr.mxu0 0.0
        %7640 = vmatpush1.msra.mxu0 0.0
        %7641 = vmatprep.subr.mxu0 0.0
        %7642 = vmatpush1.msra.mxu0 0.0
        %7643 = vmatprep.subr.mxu0 0.0
        %7644 = vmatpush1.msra.mxu0 0.0
        %7645 = vmatprep.subr.mxu0 0.0
        %7646 = vmatpush1.msra.mxu0 0.0
        %7647 = vmatprep.subr.mxu0 0.0
        %7648 = vmatpush1.msra.mxu0 0.0
        %7649 = vmatprep.subr.mxu0 0.0
        %7650 = vmatpush1.msra.mxu0 0.0
        %7651 = vmatprep.subr.mxu0 0.0
        %7652 = vmatpush1.msra.mxu0 0.0
        %7653 = vmatprep.subr.mxu0 0.0
        %7654 = vmatpush1.msra.mxu0 0.0
        %7655 = vmatprep.subr.mxu0 0.0
        %7656 = vmatpush1.msra.mxu0 0.0
        %7657 = vmatprep.subr.mxu0 0.0
        %7658 = vmatpush1.msra.mxu0 0.0
        %7659 = vmatprep.subr.mxu0 0.0
        %7660 = vmatpush1.msra.mxu0 0.0
        %7661 = vmatprep.subr.mxu0 0.0
        %7662 = vmatpush1.msra.mxu0 0.0
        %7663 = vmatprep.subr.mxu0 0.0
        %7664 = vmatpush1.msra.mxu0 %v268
        %7665 = vmatprep.subr.mxu0 0.0
        %7666 = vmatpush1.msra.mxu0 %v267
        %7667 = vmatprep.subr.mxu0 0.0
        %7668 = vmatpush2.msra.mxu0 0.0
        %7669 = vmatprep.subr.mxu0 0.0
        %7670 = vmatpush2.msra.mxu0 0.0
        %7671 = vmatprep.subr.mxu0 0.0
        %7672 = vmatpush2.msra.mxu0 0.0
        %7673 = vmatprep.subr.mxu0 0.0
        %7674 = vmatpush2.msra.mxu0 0.0
        %7675 = vmatprep.subr.mxu0 0.0
        %7676 = vmatpush2.msra.mxu0 0.0
        %7677 = vmatprep.subr.mxu0 0.0
        %7678 = vmatpush2.msra.mxu0 0.0
        %7679 = vmatprep.subr.mxu0 0.0
        %7680 = vmatpush2.msra.mxu0 0.0
        %7681 = vmatprep.subr.mxu0 0.0
        %7682 = vmatpush2.msra.mxu0 0.0
        %7683 = vmatprep.subr.mxu0 0.0
        %7684 = vmatpush2.msra.mxu0 0.0
        %7685 = vmatprep.subr.mxu0 0.0
        %7686 = vmatpush2.msra.mxu0 0.0
        %7687 = vmatprep.subr.mxu0 0.0
        %7688 = vmatpush2.msra.mxu0 0.0
        %7689 = vmatprep.subr.mxu0 0.0
        %7690 = vmatpush2.msra.mxu0 0.0
        %7691 = vmatprep.subr.mxu0 0.0
        %7692 = vmatpush2.msra.mxu0 0.0
        %7693 = vmatprep.subr.mxu0 0.0
        %7694 = vmatpush2.msra.mxu0 0.0
        %7695 = vmatprep.subr.mxu0 0.0
        %7696 = vmatpush2.msra.mxu0 0.0
        %7697 = vmatprep.subr.mxu0 0.0
        %7698 = vmatpush2.msra.mxu0 0.0
        %7699 = vmatprep.mubr.f32.mxu0 0.0
        %7700 = vmatmul.mubr.f32.gmra.mxu0 %v7633
        %v7701 = vpop.f32.mrf.mxu0
        %v7702 = vadd.f32 %v7629, %v7701
        %v7703 = vpop.f32.mrf.mxu0
        %7704 = vdwg.mxu0
        %v7705 = vadd.f32 %v7702, %v588
        %v7706 = vmax.f32 %v7705, 0.0
        %v7708 = vcombine.high %v7706, %v7706
        %v7710 = vunpack.c.l.s4 1966171168
        %v7711 = vunpack.c.0.s8 %v7710
        %v7712 = vlaneseq
        %v7713 = vshrl.u32 %v7712, 7
        %v7714 = vsub.s32 %v7711, %v7713
        %v7715 = vrot.slane %v7706, %v7714
        %v7717 = vunpack.c.l.s4 1966171168
        %v7718 = vunpack.c.0.s8 %v7717
        %v7719 = vlaneseq
        %v7720 = vshrl.u32 %v7719, 7
        %v7721 = vsub.s32 %v7718, %v7720
        %v7722 = vrot.slane %v7708, %v7721
        %v7723 = vcombine.high %v7715, %v7715
        %v7724 = vcombine.high %v7722, %v7722
        %v7726 = vunpack.c.l.s4 1966171168
        %v7727 = vunpack.c.0.s8 %v7726
        %v7728 = vlaneseq
        %v7729 = vshrl.u32 %v7728, 7
        %v7730 = vsub.s32 %v7727, %v7729
        %v7731 = vrot.slane %v7715, %v7730
        %v7733 = vunpack.c.l.s4 1966171168
        %v7734 = vunpack.c.0.s8 %v7733
        %v7735 = vlaneseq
        %v7736 = vshrl.u32 %v7735, 7
        %v7737 = vsub.s32 %v7734, %v7736
        %v7738 = vrot.slane %v7722, %v7737
        %v7740 = vunpack.c.l.s4 1966171168
        %v7741 = vunpack.c.0.s8 %v7740
        %v7742 = vlaneseq
        %v7743 = vshrl.u32 %v7742, 7
        %v7744 = vsub.s32 %v7741, %v7743
        %v7745 = vrot.slane %v7723, %v7744
        %v7747 = vunpack.c.l.s4 1966171168
        %v7748 = vunpack.c.0.s8 %v7747
        %v7749 = vlaneseq
        %v7750 = vshrl.u32 %v7749, 7
        %v7751 = vsub.s32 %v7748, %v7750
        %v7752 = vrot.slane %v7724, %v7751
        %v7753 = vcombine.high %v7731, %v7731
        %v7754 = vcombine.high %v7738, %v7738
        %v7755 = vcombine.high %v7745, %v7745
        %v7756 = vcombine.high %v7752, %v7752
        %7765 = vst.msk [vmem:[%s260 + $0x19] sm:$0x1] %vm650, %v7731
        %7766 = vst.msk [vmem:[%s260 + $0x39] sm:$0x1] %vm650, %v7745
        %7767 = vst.msk [vmem:[%s260 + $0x59] sm:$0x1] %vm650, %v7753
        %7768 = vst.msk [vmem:[%s260 + $0x79] sm:$0x1] %vm650, %v7755
        %7769 = vst.msk [vmem:[%s260 + $0x99] sm:$0x1] %vm650, %v7738
        %7770 = vst.msk [vmem:[%s260 + $0xb9] sm:$0x1] %vm650, %v7752
        %7771 = vst.msk [vmem:[%s260 + $0xd9] sm:$0x1] %vm650, %v7754
        %7772 = vst.msk [vmem:[%s260 + $0xf9] sm:$0x1] %vm650, %v7756
        %v7773 = vld [vmem:[%s234 + $0xd] sm:$0x1]
        %v7774 = vld [vmem:[%s234 + $0x1d] sm:$0x1]
        %v7775 = vld [vmem:[%s234 + $0x2d] sm:$0x1]
        %v7776 = vld [vmem:[%s234 + $0x3d] sm:$0x1]
        %v7777 = vld [vmem:[%s234 + $0x4d] sm:$0x1]
        %v7778 = vld [vmem:[%s234 + $0x5d] sm:$0x1]
        %v7779 = vld [vmem:[%s234 + $0x6d] sm:$0x1]
        %v7780 = vld [vmem:[%s234 + $0x7d] sm:$0x1]
        %v7781 = vld [vmem:[%s234 + $0x8d] sm:$0x1]
        %v7782 = vld [vmem:[%s234 + $0x9d] sm:$0x1]
        %v7783 = vld [vmem:[%s234 + $0xad] sm:$0x1]
        %v7784 = vld [vmem:[%s234 + $0xbd] sm:$0x1]
        %v7785 = vld [vmem:[%s234 + $0xcd] sm:$0x1]
        %v7786 = vld [vmem:[%s234 + $0xdd] sm:$0x1]
        %v7787 = vld [vmem:[%s234 + $0xed] sm:$0x1]
        %v7788 = vld [vmem:[%s234 + $0xfd] sm:$0x1]
        %v7805 = vrot.slane %v7774, 7
        %v7806 = vsel %vm305, %v7805, %v7773
        %v7807 = vrot.slane %v7775, 6
        %v7808 = vsel %vm308, %v7807, %v7806
        %v7809 = vrot.slane %v7776, 5
        %v7810 = vsel %vm311, %v7809, %v7808
        %v7811 = vrot.slane %v7777, 4
        %v7812 = vsel %vm314, %v7811, %v7810
        %v7813 = vrot.slane %v7778, 3
        %v7814 = vsel %vm317, %v7813, %v7812
        %v7815 = vrot.slane %v7779, 2
        %v7816 = vsel %vm320, %v7815, %v7814
        %v7817 = vrot.slane %v7780, 1
        %v7818 = vsel %vm323, %v7817, %v7816
        %v7819 = vrot.slane %v7782, 7
        %v7820 = vsel %vm305, %v7819, %v7781
        %v7821 = vrot.slane %v7783, 6
        %v7822 = vsel %vm308, %v7821, %v7820
        %v7823 = vrot.slane %v7784, 5
        %v7824 = vsel %vm311, %v7823, %v7822
        %v7825 = vrot.slane %v7785, 4
        %v7826 = vsel %vm314, %v7825, %v7824
        %v7827 = vrot.slane %v7786, 3
        %v7828 = vsel %vm317, %v7827, %v7826
        %v7829 = vrot.slane %v7787, 2
        %v7830 = vsel %vm320, %v7829, %v7828
        %v7831 = vrot.slane %v7788, 1
        %v7832 = vsel %vm323, %v7831, %v7830
        %7835 = vmatprep.subr.mxu0 0.0
        %7836 = vmatpush1.msra.mxu0 0.0
        %7837 = vmatprep.subr.mxu0 0.0
        %7838 = vmatpush1.msra.mxu0 0.0
        %7839 = vmatprep.subr.mxu0 0.0
        %7840 = vmatpush1.msra.mxu0 0.0
        %7841 = vmatprep.subr.mxu0 0.0
        %7842 = vmatpush1.msra.mxu0 0.0
        %7843 = vmatprep.subr.mxu0 0.0
        %7844 = vmatpush1.msra.mxu0 0.0
        %7845 = vmatprep.subr.mxu0 0.0
        %7846 = vmatpush1.msra.mxu0 0.0
        %7847 = vmatprep.subr.mxu0 0.0
        %7848 = vmatpush1.msra.mxu0 0.0
        %7849 = vmatprep.subr.mxu0 0.0
        %7850 = vmatpush1.msra.mxu0 0.0
        %7851 = vmatprep.subr.mxu0 0.0
        %7852 = vmatpush1.msra.mxu0 0.0
        %7853 = vmatprep.subr.mxu0 0.0
        %7854 = vmatpush1.msra.mxu0 0.0
        %7855 = vmatprep.subr.mxu0 0.0
        %7856 = vmatpush1.msra.mxu0 0.0
        %7857 = vmatprep.subr.mxu0 0.0
        %7858 = vmatpush1.msra.mxu0 0.0
        %7859 = vmatprep.subr.mxu0 0.0
        %7860 = vmatpush1.msra.mxu0 0.0
        %7861 = vmatprep.subr.mxu0 0.0
        %7862 = vmatpush1.msra.mxu0 0.0
        %7863 = vmatprep.subr.mxu0 0.0
        %7864 = vmatpush1.msra.mxu0 %v7832
        %7865 = vmatprep.subr.mxu0 0.0
        %7866 = vmatpush1.msra.mxu0 %v7818
        %7867 = vmatprep.subr.mxu0 0.0
        %7868 = vmatpush2.msra.mxu0 0.0
        %7869 = vmatprep.subr.mxu0 0.0
        %7870 = vmatpush2.msra.mxu0 0.0
        %7871 = vmatprep.subr.mxu0 0.0
        %7872 = vmatpush2.msra.mxu0 0.0
        %7873 = vmatprep.subr.mxu0 0.0
        %7874 = vmatpush2.msra.mxu0 0.0
        %7875 = vmatprep.subr.mxu0 0.0
        %7876 = vmatpush2.msra.mxu0 0.0
        %7877 = vmatprep.subr.mxu0 0.0
        %7878 = vmatpush2.msra.mxu0 0.0
        %7879 = vmatprep.subr.mxu0 0.0
        %7880 = vmatpush2.msra.mxu0 0.0
        %7881 = vmatprep.subr.mxu0 0.0
        %7882 = vmatpush2.msra.mxu0 0.0
        %7883 = vmatprep.subr.mxu0 0.0
        %7884 = vmatpush2.msra.mxu0 0.0
        %7885 = vmatprep.subr.mxu0 0.0
        %7886 = vmatpush2.msra.mxu0 0.0
        %7887 = vmatprep.subr.mxu0 0.0
        %7888 = vmatpush2.msra.mxu0 0.0
        %7889 = vmatprep.subr.mxu0 0.0
        %7890 = vmatpush2.msra.mxu0 0.0
        %7891 = vmatprep.subr.mxu0 0.0
        %7892 = vmatpush2.msra.mxu0 0.0
        %7893 = vmatprep.subr.mxu0 0.0
        %7894 = vmatpush2.msra.mxu0 0.0
        %7895 = vmatprep.subr.mxu0 0.0
        %7896 = vmatpush2.msra.mxu0 0.0
        %7897 = vmatprep.subr.mxu0 0.0
        %7898 = vmatpush2.msra.mxu0 0.0
        %7899 = vmatprep.mubr.f32.mxu0 0.0
        %7900 = vmatmul.mubr.f32.gmra.mxu0 %v343
        %v7901 = vpop.f32.mrf.mxu0
        %v7902 = vadd.f32 0.0, %v7901
        %v7903 = vpop.f32.mrf.mxu0
        %7904 = vmatprep.mubr.f32.mxu0 0.0
        %7905 = vmatmul.mubr.f32.gmra.mxu0 %v346
        %v7906 = vpop.f32.mrf.mxu0
        %v7907 = vadd.f32 0.0, %v7906
        %v7908 = vpop.f32.mrf.mxu0
        %7909 = vmatprep.mubr.f32.mxu0 0.0
        %7910 = vmatmul.mubr.f32.gmra.mxu0 %v349
        %v7911 = vpop.f32.mrf.mxu0
        %v7912 = vadd.f32 0.0, %v7911
        %v7913 = vpop.f32.mrf.mxu0
        %7914 = vmatprep.mubr.f32.mxu0 0.0
        %7915 = vmatmul.mubr.f32.gmra.mxu0 %v352
        %v7916 = vpop.f32.mrf.mxu0
        %v7917 = vadd.f32 0.0, %v7916
        %v7918 = vpop.f32.mrf.mxu0
        %7919 = vdwg.mxu0
        %v7921 = vsel %vm341, %v7907, 0
        %7923 = vmatprep.subr.mxu0 0.0
        %7924 = vmatpush1.msra.mxu0 0.0
        %7925 = vmatprep.subr.mxu0 0.0
        %7926 = vmatpush1.msra.mxu0 0.0
        %7927 = vmatprep.subr.mxu0 0.0
        %7928 = vmatpush1.msra.mxu0 0.0
        %7929 = vmatprep.subr.mxu0 0.0
        %7930 = vmatpush1.msra.mxu0 0.0
        %7931 = vmatprep.subr.mxu0 0.0
        %7932 = vmatpush1.msra.mxu0 0.0
        %7933 = vmatprep.subr.mxu0 0.0
        %7934 = vmatpush1.msra.mxu0 0.0
        %7935 = vmatprep.subr.mxu0 0.0
        %7936 = vmatpush1.msra.mxu0 0.0
        %7937 = vmatprep.subr.mxu0 0.0
        %7938 = vmatpush1.msra.mxu0 0.0
        %7939 = vmatprep.subr.mxu0 0.0
        %7940 = vmatpush1.msra.mxu0 0.0
        %7941 = vmatprep.subr.mxu0 0.0
        %7942 = vmatpush1.msra.mxu0 0.0
        %7943 = vmatprep.subr.mxu0 0.0
        %7944 = vmatpush1.msra.mxu0 0.0
        %7945 = vmatprep.subr.mxu0 0.0
        %7946 = vmatpush1.msra.mxu0 0.0
        %7947 = vmatprep.subr.mxu0 0.0
        %7948 = vmatpush1.msra.mxu0 0.0
        %7949 = vmatprep.subr.mxu0 0.0
        %7950 = vmatpush1.msra.mxu0 0.0
        %7951 = vmatprep.subr.mxu0 0.0
        %7952 = vmatpush1.msra.mxu0 %v270
        %7953 = vmatprep.subr.mxu0 0.0
        %7954 = vmatpush1.msra.mxu0 %v269
        %7955 = vmatprep.subr.mxu0 0.0
        %7956 = vmatpush2.msra.mxu0 0.0
        %7957 = vmatprep.subr.mxu0 0.0
        %7958 = vmatpush2.msra.mxu0 0.0
        %7959 = vmatprep.subr.mxu0 0.0
        %7960 = vmatpush2.msra.mxu0 0.0
        %7961 = vmatprep.subr.mxu0 0.0
        %7962 = vmatpush2.msra.mxu0 0.0
        %7963 = vmatprep.subr.mxu0 0.0
        %7964 = vmatpush2.msra.mxu0 0.0
        %7965 = vmatprep.subr.mxu0 0.0
        %7966 = vmatpush2.msra.mxu0 0.0
        %7967 = vmatprep.subr.mxu0 0.0
        %7968 = vmatpush2.msra.mxu0 0.0
        %7969 = vmatprep.subr.mxu0 0.0
        %7970 = vmatpush2.msra.mxu0 0.0
        %7971 = vmatprep.subr.mxu0 0.0
        %7972 = vmatpush2.msra.mxu0 0.0
        %7973 = vmatprep.subr.mxu0 0.0
        %7974 = vmatpush2.msra.mxu0 0.0
        %7975 = vmatprep.subr.mxu0 0.0
        %7976 = vmatpush2.msra.mxu0 0.0
        %7977 = vmatprep.subr.mxu0 0.0
        %7978 = vmatpush2.msra.mxu0 0.0
        %7979 = vmatprep.subr.mxu0 0.0
        %7980 = vmatpush2.msra.mxu0 0.0
        %7981 = vmatprep.subr.mxu0 0.0
        %7982 = vmatpush2.msra.mxu0 0.0
        %7983 = vmatprep.subr.mxu0 0.0
        %7984 = vmatpush2.msra.mxu0 0.0
        %7985 = vmatprep.subr.mxu0 0.0
        %7986 = vmatpush2.msra.mxu0 0.0
        %7987 = vmatprep.mubr.f32.mxu0 0.0
        %7988 = vmatmul.mubr.f32.gmra.mxu0 %v7921
        %v7989 = vpop.f32.mrf.mxu0
        %v7990 = vadd.f32 0.0, %v7989
        %v7991 = vpop.f32.mrf.mxu0
        %7992 = vdwg.mxu0
        %v7994 = vsel %vm341, %v7902, 0
        %7996 = vmatprep.subr.mxu0 0.0
        %7997 = vmatpush1.msra.mxu0 0.0
        %7998 = vmatprep.subr.mxu0 0.0
        %7999 = vmatpush1.msra.mxu0 0.0
        %8000 = vmatprep.subr.mxu0 0.0
        %8001 = vmatpush1.msra.mxu0 0.0
        %8002 = vmatprep.subr.mxu0 0.0
        %8003 = vmatpush1.msra.mxu0 0.0
        %8004 = vmatprep.subr.mxu0 0.0
        %8005 = vmatpush1.msra.mxu0 0.0
        %8006 = vmatprep.subr.mxu0 0.0
        %8007 = vmatpush1.msra.mxu0 0.0
        %8008 = vmatprep.subr.mxu0 0.0
        %8009 = vmatpush1.msra.mxu0 0.0
        %8010 = vmatprep.subr.mxu0 0.0
        %8011 = vmatpush1.msra.mxu0 0.0
        %8012 = vmatprep.subr.mxu0 0.0
        %8013 = vmatpush1.msra.mxu0 0.0
        %8014 = vmatprep.subr.mxu0 0.0
        %8015 = vmatpush1.msra.mxu0 0.0
        %8016 = vmatprep.subr.mxu0 0.0
        %8017 = vmatpush1.msra.mxu0 0.0
        %8018 = vmatprep.subr.mxu0 0.0
        %8019 = vmatpush1.msra.mxu0 0.0
        %8020 = vmatprep.subr.mxu0 0.0
        %8021 = vmatpush1.msra.mxu0 0.0
        %8022 = vmatprep.subr.mxu0 0.0
        %8023 = vmatpush1.msra.mxu0 0.0
        %8024 = vmatprep.subr.mxu0 0.0
        %8025 = vmatpush1.msra.mxu0 %v268
        %8026 = vmatprep.subr.mxu0 0.0
        %8027 = vmatpush1.msra.mxu0 %v267
        %8028 = vmatprep.subr.mxu0 0.0
        %8029 = vmatpush2.msra.mxu0 0.0
        %8030 = vmatprep.subr.mxu0 0.0
        %8031 = vmatpush2.msra.mxu0 0.0
        %8032 = vmatprep.subr.mxu0 0.0
        %8033 = vmatpush2.msra.mxu0 0.0
        %8034 = vmatprep.subr.mxu0 0.0
        %8035 = vmatpush2.msra.mxu0 0.0
        %8036 = vmatprep.subr.mxu0 0.0
        %8037 = vmatpush2.msra.mxu0 0.0
        %8038 = vmatprep.subr.mxu0 0.0
        %8039 = vmatpush2.msra.mxu0 0.0
        %8040 = vmatprep.subr.mxu0 0.0
        %8041 = vmatpush2.msra.mxu0 0.0
        %8042 = vmatprep.subr.mxu0 0.0
        %8043 = vmatpush2.msra.mxu0 0.0
        %8044 = vmatprep.subr.mxu0 0.0
        %8045 = vmatpush2.msra.mxu0 0.0
        %8046 = vmatprep.subr.mxu0 0.0
        %8047 = vmatpush2.msra.mxu0 0.0
        %8048 = vmatprep.subr.mxu0 0.0
        %8049 = vmatpush2.msra.mxu0 0.0
        %8050 = vmatprep.subr.mxu0 0.0
        %8051 = vmatpush2.msra.mxu0 0.0
        %8052 = vmatprep.subr.mxu0 0.0
        %8053 = vmatpush2.msra.mxu0 0.0
        %8054 = vmatprep.subr.mxu0 0.0
        %8055 = vmatpush2.msra.mxu0 0.0
        %8056 = vmatprep.subr.mxu0 0.0
        %8057 = vmatpush2.msra.mxu0 0.0
        %8058 = vmatprep.subr.mxu0 0.0
        %8059 = vmatpush2.msra.mxu0 0.0
        %8060 = vmatprep.mubr.f32.mxu0 0.0
        %8061 = vmatmul.mubr.f32.gmra.mxu0 %v7994
        %v8062 = vpop.f32.mrf.mxu0
        %v8063 = vadd.f32 %v7990, %v8062
        %v8064 = vpop.f32.mrf.mxu0
        %8065 = vdwg.mxu0
        %v8066 = vadd.f32 %v8063, %v588
        %v8067 = vmax.f32 %v8066, 0.0
        %v8069 = vcombine.high %v8067, %v8067
        %v8071 = vunpack.c.l.s4 1966171168
        %v8072 = vunpack.c.0.s8 %v8071
        %v8073 = vlaneseq
        %v8074 = vshrl.u32 %v8073, 7
        %v8075 = vsub.s32 %v8072, %v8074
        %v8076 = vrot.slane %v8067, %v8075
        %v8078 = vunpack.c.l.s4 1966171168
        %v8079 = vunpack.c.0.s8 %v8078
        %v8080 = vlaneseq
        %v8081 = vshrl.u32 %v8080, 7
        %v8082 = vsub.s32 %v8079, %v8081
        %v8083 = vrot.slane %v8069, %v8082
        %v8084 = vcombine.high %v8076, %v8076
        %v8085 = vcombine.high %v8083, %v8083
        %v8087 = vunpack.c.l.s4 1966171168
        %v8088 = vunpack.c.0.s8 %v8087
        %v8089 = vlaneseq
        %v8090 = vshrl.u32 %v8089, 7
        %v8091 = vsub.s32 %v8088, %v8090
        %v8092 = vrot.slane %v8076, %v8091
        %v8094 = vunpack.c.l.s4 1966171168
        %v8095 = vunpack.c.0.s8 %v8094
        %v8096 = vlaneseq
        %v8097 = vshrl.u32 %v8096, 7
        %v8098 = vsub.s32 %v8095, %v8097
        %v8099 = vrot.slane %v8083, %v8098
        %v8101 = vunpack.c.l.s4 1966171168
        %v8102 = vunpack.c.0.s8 %v8101
        %v8103 = vlaneseq
        %v8104 = vshrl.u32 %v8103, 7
        %v8105 = vsub.s32 %v8102, %v8104
        %v8106 = vrot.slane %v8084, %v8105
        %v8108 = vunpack.c.l.s4 1966171168
        %v8109 = vunpack.c.0.s8 %v8108
        %v8110 = vlaneseq
        %v8111 = vshrl.u32 %v8110, 7
        %v8112 = vsub.s32 %v8109, %v8111
        %v8113 = vrot.slane %v8085, %v8112
        %v8114 = vcombine.high %v8092, %v8092
        %v8115 = vcombine.high %v8099, %v8099
        %v8116 = vcombine.high %v8106, %v8106
        %v8117 = vcombine.high %v8113, %v8113
        %8126 = vst.msk [vmem:[%s260 + $0x1a] sm:$0x1] %vm650, %v8092
        %8127 = vst.msk [vmem:[%s260 + $0x3a] sm:$0x1] %vm650, %v8106
        %8128 = vst.msk [vmem:[%s260 + $0x5a] sm:$0x1] %vm650, %v8114
        %8129 = vst.msk [vmem:[%s260 + $0x7a] sm:$0x1] %vm650, %v8116
        %8130 = vst.msk [vmem:[%s260 + $0x9a] sm:$0x1] %vm650, %v8099
        %8131 = vst.msk [vmem:[%s260 + $0xba] sm:$0x1] %vm650, %v8113
        %8132 = vst.msk [vmem:[%s260 + $0xda] sm:$0x1] %vm650, %v8115
        %8133 = vst.msk [vmem:[%s260 + $0xfa] sm:$0x1] %vm650, %v8117
        %v8135 = vsel %vm341, %v7917, 0
        %8137 = vmatprep.subr.mxu0 0.0
        %8138 = vmatpush1.msra.mxu0 0.0
        %8139 = vmatprep.subr.mxu0 0.0
        %8140 = vmatpush1.msra.mxu0 0.0
        %8141 = vmatprep.subr.mxu0 0.0
        %8142 = vmatpush1.msra.mxu0 0.0
        %8143 = vmatprep.subr.mxu0 0.0
        %8144 = vmatpush1.msra.mxu0 0.0
        %8145 = vmatprep.subr.mxu0 0.0
        %8146 = vmatpush1.msra.mxu0 0.0
        %8147 = vmatprep.subr.mxu0 0.0
        %8148 = vmatpush1.msra.mxu0 0.0
        %8149 = vmatprep.subr.mxu0 0.0
        %8150 = vmatpush1.msra.mxu0 0.0
        %8151 = vmatprep.subr.mxu0 0.0
        %8152 = vmatpush1.msra.mxu0 0.0
        %8153 = vmatprep.subr.mxu0 0.0
        %8154 = vmatpush1.msra.mxu0 0.0
        %8155 = vmatprep.subr.mxu0 0.0
        %8156 = vmatpush1.msra.mxu0 0.0
        %8157 = vmatprep.subr.mxu0 0.0
        %8158 = vmatpush1.msra.mxu0 0.0
        %8159 = vmatprep.subr.mxu0 0.0
        %8160 = vmatpush1.msra.mxu0 0.0
        %8161 = vmatprep.subr.mxu0 0.0
        %8162 = vmatpush1.msra.mxu0 0.0
        %8163 = vmatprep.subr.mxu0 0.0
        %8164 = vmatpush1.msra.mxu0 0.0
        %8165 = vmatprep.subr.mxu0 0.0
        %8166 = vmatpush1.msra.mxu0 %v270
        %8167 = vmatprep.subr.mxu0 0.0
        %8168 = vmatpush1.msra.mxu0 %v269
        %8169 = vmatprep.subr.mxu0 0.0
        %8170 = vmatpush2.msra.mxu0 0.0
        %8171 = vmatprep.subr.mxu0 0.0
        %8172 = vmatpush2.msra.mxu0 0.0
        %8173 = vmatprep.subr.mxu0 0.0
        %8174 = vmatpush2.msra.mxu0 0.0
        %8175 = vmatprep.subr.mxu0 0.0
        %8176 = vmatpush2.msra.mxu0 0.0
        %8177 = vmatprep.subr.mxu0 0.0
        %8178 = vmatpush2.msra.mxu0 0.0
        %8179 = vmatprep.subr.mxu0 0.0
        %8180 = vmatpush2.msra.mxu0 0.0
        %8181 = vmatprep.subr.mxu0 0.0
        %8182 = vmatpush2.msra.mxu0 0.0
        %8183 = vmatprep.subr.mxu0 0.0
        %8184 = vmatpush2.msra.mxu0 0.0
        %8185 = vmatprep.subr.mxu0 0.0
        %8186 = vmatpush2.msra.mxu0 0.0
        %8187 = vmatprep.subr.mxu0 0.0
        %8188 = vmatpush2.msra.mxu0 0.0
        %8189 = vmatprep.subr.mxu0 0.0
        %8190 = vmatpush2.msra.mxu0 0.0
        %8191 = vmatprep.subr.mxu0 0.0
        %8192 = vmatpush2.msra.mxu0 0.0
        %8193 = vmatprep.subr.mxu0 0.0
        %8194 = vmatpush2.msra.mxu0 0.0
        %8195 = vmatprep.subr.mxu0 0.0
        %8196 = vmatpush2.msra.mxu0 0.0
        %8197 = vmatprep.subr.mxu0 0.0
        %8198 = vmatpush2.msra.mxu0 0.0
        %8199 = vmatprep.subr.mxu0 0.0
        %8200 = vmatpush2.msra.mxu0 0.0
        %8201 = vmatprep.mubr.f32.mxu0 0.0
        %8202 = vmatmul.mubr.f32.gmra.mxu0 %v8135
        %v8203 = vpop.f32.mrf.mxu0
        %v8204 = vadd.f32 0.0, %v8203
        %v8205 = vpop.f32.mrf.mxu0
        %8206 = vdwg.mxu0
        %v8208 = vsel %vm341, %v7912, 0
        %8210 = vmatprep.subr.mxu0 0.0
        %8211 = vmatpush1.msra.mxu0 0.0
        %8212 = vmatprep.subr.mxu0 0.0
        %8213 = vmatpush1.msra.mxu0 0.0
        %8214 = vmatprep.subr.mxu0 0.0
        %8215 = vmatpush1.msra.mxu0 0.0
        %8216 = vmatprep.subr.mxu0 0.0
        %8217 = vmatpush1.msra.mxu0 0.0
        %8218 = vmatprep.subr.mxu0 0.0
        %8219 = vmatpush1.msra.mxu0 0.0
        %8220 = vmatprep.subr.mxu0 0.0
        %8221 = vmatpush1.msra.mxu0 0.0
        %8222 = vmatprep.subr.mxu0 0.0
        %8223 = vmatpush1.msra.mxu0 0.0
        %8224 = vmatprep.subr.mxu0 0.0
        %8225 = vmatpush1.msra.mxu0 0.0
        %8226 = vmatprep.subr.mxu0 0.0
        %8227 = vmatpush1.msra.mxu0 0.0
        %8228 = vmatprep.subr.mxu0 0.0
        %8229 = vmatpush1.msra.mxu0 0.0
        %8230 = vmatprep.subr.mxu0 0.0
        %8231 = vmatpush1.msra.mxu0 0.0
        %8232 = vmatprep.subr.mxu0 0.0
        %8233 = vmatpush1.msra.mxu0 0.0
        %8234 = vmatprep.subr.mxu0 0.0
        %8235 = vmatpush1.msra.mxu0 0.0
        %8236 = vmatprep.subr.mxu0 0.0
        %8237 = vmatpush1.msra.mxu0 0.0
        %8238 = vmatprep.subr.mxu0 0.0
        %8239 = vmatpush1.msra.mxu0 %v268
        %8240 = vmatprep.subr.mxu0 0.0
        %8241 = vmatpush1.msra.mxu0 %v267
        %8242 = vmatprep.subr.mxu0 0.0
        %8243 = vmatpush2.msra.mxu0 0.0
        %8244 = vmatprep.subr.mxu0 0.0
        %8245 = vmatpush2.msra.mxu0 0.0
        %8246 = vmatprep.subr.mxu0 0.0
        %8247 = vmatpush2.msra.mxu0 0.0
        %8248 = vmatprep.subr.mxu0 0.0
        %8249 = vmatpush2.msra.mxu0 0.0
        %8250 = vmatprep.subr.mxu0 0.0
        %8251 = vmatpush2.msra.mxu0 0.0
        %8252 = vmatprep.subr.mxu0 0.0
        %8253 = vmatpush2.msra.mxu0 0.0
        %8254 = vmatprep.subr.mxu0 0.0
        %8255 = vmatpush2.msra.mxu0 0.0
        %8256 = vmatprep.subr.mxu0 0.0
        %8257 = vmatpush2.msra.mxu0 0.0
        %8258 = vmatprep.subr.mxu0 0.0
        %8259 = vmatpush2.msra.mxu0 0.0
        %8260 = vmatprep.subr.mxu0 0.0
        %8261 = vmatpush2.msra.mxu0 0.0
        %8262 = vmatprep.subr.mxu0 0.0
        %8263 = vmatpush2.msra.mxu0 0.0
        %8264 = vmatprep.subr.mxu0 0.0
        %8265 = vmatpush2.msra.mxu0 0.0
        %8266 = vmatprep.subr.mxu0 0.0
        %8267 = vmatpush2.msra.mxu0 0.0
        %8268 = vmatprep.subr.mxu0 0.0
        %8269 = vmatpush2.msra.mxu0 0.0
        %8270 = vmatprep.subr.mxu0 0.0
        %8271 = vmatpush2.msra.mxu0 0.0
        %8272 = vmatprep.subr.mxu0 0.0
        %8273 = vmatpush2.msra.mxu0 0.0
        %8274 = vmatprep.mubr.f32.mxu0 0.0
        %8275 = vmatmul.mubr.f32.gmra.mxu0 %v8208
        %v8276 = vpop.f32.mrf.mxu0
        %v8277 = vadd.f32 %v8204, %v8276
        %v8278 = vpop.f32.mrf.mxu0
        %8279 = vdwg.mxu0
        %v8280 = vadd.f32 %v8277, %v588
        %v8281 = vmax.f32 %v8280, 0.0
        %v8283 = vcombine.high %v8281, %v8281
        %v8285 = vunpack.c.l.s4 1966171168
        %v8286 = vunpack.c.0.s8 %v8285
        %v8287 = vlaneseq
        %v8288 = vshrl.u32 %v8287, 7
        %v8289 = vsub.s32 %v8286, %v8288
        %v8290 = vrot.slane %v8281, %v8289
        %v8292 = vunpack.c.l.s4 1966171168
        %v8293 = vunpack.c.0.s8 %v8292
        %v8294 = vlaneseq
        %v8295 = vshrl.u32 %v8294, 7
        %v8296 = vsub.s32 %v8293, %v8295
        %v8297 = vrot.slane %v8283, %v8296
        %v8298 = vcombine.high %v8290, %v8290
        %v8299 = vcombine.high %v8297, %v8297
        %v8301 = vunpack.c.l.s4 1966171168
        %v8302 = vunpack.c.0.s8 %v8301
        %v8303 = vlaneseq
        %v8304 = vshrl.u32 %v8303, 7
        %v8305 = vsub.s32 %v8302, %v8304
        %v8306 = vrot.slane %v8290, %v8305
        %v8308 = vunpack.c.l.s4 1966171168
        %v8309 = vunpack.c.0.s8 %v8308
        %v8310 = vlaneseq
        %v8311 = vshrl.u32 %v8310, 7
        %v8312 = vsub.s32 %v8309, %v8311
        %v8313 = vrot.slane %v8297, %v8312
        %v8315 = vunpack.c.l.s4 1966171168
        %v8316 = vunpack.c.0.s8 %v8315
        %v8317 = vlaneseq
        %v8318 = vshrl.u32 %v8317, 7
        %v8319 = vsub.s32 %v8316, %v8318
        %v8320 = vrot.slane %v8298, %v8319
        %v8322 = vunpack.c.l.s4 1966171168
        %v8323 = vunpack.c.0.s8 %v8322
        %v8324 = vlaneseq
        %v8325 = vshrl.u32 %v8324, 7
        %v8326 = vsub.s32 %v8323, %v8325
        %v8327 = vrot.slane %v8299, %v8326
        %v8328 = vcombine.high %v8306, %v8306
        %v8329 = vcombine.high %v8313, %v8313
        %v8330 = vcombine.high %v8320, %v8320
        %v8331 = vcombine.high %v8327, %v8327
        %8340 = vst.msk [vmem:[%s260 + $0x1b] sm:$0x1] %vm650, %v8306
        %8341 = vst.msk [vmem:[%s260 + $0x3b] sm:$0x1] %vm650, %v8320
        %8342 = vst.msk [vmem:[%s260 + $0x5b] sm:$0x1] %vm650, %v8328
        %8343 = vst.msk [vmem:[%s260 + $0x7b] sm:$0x1] %vm650, %v8330
        %8344 = vst.msk [vmem:[%s260 + $0x9b] sm:$0x1] %vm650, %v8313
        %8345 = vst.msk [vmem:[%s260 + $0xbb] sm:$0x1] %vm650, %v8327
        %8346 = vst.msk [vmem:[%s260 + $0xdb] sm:$0x1] %vm650, %v8329
        %8347 = vst.msk [vmem:[%s260 + $0xfb] sm:$0x1] %vm650, %v8331
        %v8348 = vld [vmem:[%s234 + $0xe] sm:$0x1]
        %v8349 = vld [vmem:[%s234 + $0x1e] sm:$0x1]
        %v8350 = vld [vmem:[%s234 + $0x2e] sm:$0x1]
        %v8351 = vld [vmem:[%s234 + $0x3e] sm:$0x1]
        %v8352 = vld [vmem:[%s234 + $0x4e] sm:$0x1]
        %v8353 = vld [vmem:[%s234 + $0x5e] sm:$0x1]
        %v8354 = vld [vmem:[%s234 + $0x6e] sm:$0x1]
        %v8355 = vld [vmem:[%s234 + $0x7e] sm:$0x1]
        %v8356 = vld [vmem:[%s234 + $0x8e] sm:$0x1]
        %v8357 = vld [vmem:[%s234 + $0x9e] sm:$0x1]
        %v8358 = vld [vmem:[%s234 + $0xae] sm:$0x1]
        %v8359 = vld [vmem:[%s234 + $0xbe] sm:$0x1]
        %v8360 = vld [vmem:[%s234 + $0xce] sm:$0x1]
        %v8361 = vld [vmem:[%s234 + $0xde] sm:$0x1]
        %v8362 = vld [vmem:[%s234 + $0xee] sm:$0x1]
        %v8363 = vld [vmem:[%s234 + $0xfe] sm:$0x1]
        %v8380 = vrot.slane %v8349, 7
        %v8381 = vsel %vm305, %v8380, %v8348
        %v8382 = vrot.slane %v8350, 6
        %v8383 = vsel %vm308, %v8382, %v8381
        %v8384 = vrot.slane %v8351, 5
        %v8385 = vsel %vm311, %v8384, %v8383
        %v8386 = vrot.slane %v8352, 4
        %v8387 = vsel %vm314, %v8386, %v8385
        %v8388 = vrot.slane %v8353, 3
        %v8389 = vsel %vm317, %v8388, %v8387
        %v8390 = vrot.slane %v8354, 2
        %v8391 = vsel %vm320, %v8390, %v8389
        %v8392 = vrot.slane %v8355, 1
        %v8393 = vsel %vm323, %v8392, %v8391
        %v8394 = vrot.slane %v8357, 7
        %v8395 = vsel %vm305, %v8394, %v8356
        %v8396 = vrot.slane %v8358, 6
        %v8397 = vsel %vm308, %v8396, %v8395
        %v8398 = vrot.slane %v8359, 5
        %v8399 = vsel %vm311, %v8398, %v8397
        %v8400 = vrot.slane %v8360, 4
        %v8401 = vsel %vm314, %v8400, %v8399
        %v8402 = vrot.slane %v8361, 3
        %v8403 = vsel %vm317, %v8402, %v8401
        %v8404 = vrot.slane %v8362, 2
        %v8405 = vsel %vm320, %v8404, %v8403
        %v8406 = vrot.slane %v8363, 1
        %v8407 = vsel %vm323, %v8406, %v8405
        %8410 = vmatprep.subr.mxu0 0.0
        %8411 = vmatpush1.msra.mxu0 0.0
        %8412 = vmatprep.subr.mxu0 0.0
        %8413 = vmatpush1.msra.mxu0 0.0
        %8414 = vmatprep.subr.mxu0 0.0
        %8415 = vmatpush1.msra.mxu0 0.0
        %8416 = vmatprep.subr.mxu0 0.0
        %8417 = vmatpush1.msra.mxu0 0.0
        %8418 = vmatprep.subr.mxu0 0.0
        %8419 = vmatpush1.msra.mxu0 0.0
        %8420 = vmatprep.subr.mxu0 0.0
        %8421 = vmatpush1.msra.mxu0 0.0
        %8422 = vmatprep.subr.mxu0 0.0
        %8423 = vmatpush1.msra.mxu0 0.0
        %8424 = vmatprep.subr.mxu0 0.0
        %8425 = vmatpush1.msra.mxu0 0.0
        %8426 = vmatprep.subr.mxu0 0.0
        %8427 = vmatpush1.msra.mxu0 0.0
        %8428 = vmatprep.subr.mxu0 0.0
        %8429 = vmatpush1.msra.mxu0 0.0
        %8430 = vmatprep.subr.mxu0 0.0
        %8431 = vmatpush1.msra.mxu0 0.0
        %8432 = vmatprep.subr.mxu0 0.0
        %8433 = vmatpush1.msra.mxu0 0.0
        %8434 = vmatprep.subr.mxu0 0.0
        %8435 = vmatpush1.msra.mxu0 0.0
        %8436 = vmatprep.subr.mxu0 0.0
        %8437 = vmatpush1.msra.mxu0 0.0
        %8438 = vmatprep.subr.mxu0 0.0
        %8439 = vmatpush1.msra.mxu0 %v8407
        %8440 = vmatprep.subr.mxu0 0.0
        %8441 = vmatpush1.msra.mxu0 %v8393
        %8442 = vmatprep.subr.mxu0 0.0
        %8443 = vmatpush2.msra.mxu0 0.0
        %8444 = vmatprep.subr.mxu0 0.0
        %8445 = vmatpush2.msra.mxu0 0.0
        %8446 = vmatprep.subr.mxu0 0.0
        %8447 = vmatpush2.msra.mxu0 0.0
        %8448 = vmatprep.subr.mxu0 0.0
        %8449 = vmatpush2.msra.mxu0 0.0
        %8450 = vmatprep.subr.mxu0 0.0
        %8451 = vmatpush2.msra.mxu0 0.0
        %8452 = vmatprep.subr.mxu0 0.0
        %8453 = vmatpush2.msra.mxu0 0.0
        %8454 = vmatprep.subr.mxu0 0.0
        %8455 = vmatpush2.msra.mxu0 0.0
        %8456 = vmatprep.subr.mxu0 0.0
        %8457 = vmatpush2.msra.mxu0 0.0
        %8458 = vmatprep.subr.mxu0 0.0
        %8459 = vmatpush2.msra.mxu0 0.0
        %8460 = vmatprep.subr.mxu0 0.0
        %8461 = vmatpush2.msra.mxu0 0.0
        %8462 = vmatprep.subr.mxu0 0.0
        %8463 = vmatpush2.msra.mxu0 0.0
        %8464 = vmatprep.subr.mxu0 0.0
        %8465 = vmatpush2.msra.mxu0 0.0
        %8466 = vmatprep.subr.mxu0 0.0
        %8467 = vmatpush2.msra.mxu0 0.0
        %8468 = vmatprep.subr.mxu0 0.0
        %8469 = vmatpush2.msra.mxu0 0.0
        %8470 = vmatprep.subr.mxu0 0.0
        %8471 = vmatpush2.msra.mxu0 0.0
        %8472 = vmatprep.subr.mxu0 0.0
        %8473 = vmatpush2.msra.mxu0 0.0
        %8474 = vmatprep.mubr.f32.mxu0 0.0
        %8475 = vmatmul.mubr.f32.gmra.mxu0 %v343
        %v8476 = vpop.f32.mrf.mxu0
        %v8477 = vadd.f32 0.0, %v8476
        %v8478 = vpop.f32.mrf.mxu0
        %8479 = vmatprep.mubr.f32.mxu0 0.0
        %8480 = vmatmul.mubr.f32.gmra.mxu0 %v346
        %v8481 = vpop.f32.mrf.mxu0
        %v8482 = vadd.f32 0.0, %v8481
        %v8483 = vpop.f32.mrf.mxu0
        %8484 = vmatprep.mubr.f32.mxu0 0.0
        %8485 = vmatmul.mubr.f32.gmra.mxu0 %v349
        %v8486 = vpop.f32.mrf.mxu0
        %v8487 = vadd.f32 0.0, %v8486
        %v8488 = vpop.f32.mrf.mxu0
        %8489 = vmatprep.mubr.f32.mxu0 0.0
        %8490 = vmatmul.mubr.f32.gmra.mxu0 %v352
        %v8491 = vpop.f32.mrf.mxu0
        %v8492 = vadd.f32 0.0, %v8491
        %v8493 = vpop.f32.mrf.mxu0
        %8494 = vdwg.mxu0
        %v8496 = vsel %vm341, %v8482, 0
        %8498 = vmatprep.subr.mxu0 0.0
        %8499 = vmatpush1.msra.mxu0 0.0
        %8500 = vmatprep.subr.mxu0 0.0
        %8501 = vmatpush1.msra.mxu0 0.0
        %8502 = vmatprep.subr.mxu0 0.0
        %8503 = vmatpush1.msra.mxu0 0.0
        %8504 = vmatprep.subr.mxu0 0.0
        %8505 = vmatpush1.msra.mxu0 0.0
        %8506 = vmatprep.subr.mxu0 0.0
        %8507 = vmatpush1.msra.mxu0 0.0
        %8508 = vmatprep.subr.mxu0 0.0
        %8509 = vmatpush1.msra.mxu0 0.0
        %8510 = vmatprep.subr.mxu0 0.0
        %8511 = vmatpush1.msra.mxu0 0.0
        %8512 = vmatprep.subr.mxu0 0.0
        %8513 = vmatpush1.msra.mxu0 0.0
        %8514 = vmatprep.subr.mxu0 0.0
        %8515 = vmatpush1.msra.mxu0 0.0
        %8516 = vmatprep.subr.mxu0 0.0
        %8517 = vmatpush1.msra.mxu0 0.0
        %8518 = vmatprep.subr.mxu0 0.0
        %8519 = vmatpush1.msra.mxu0 0.0
        %8520 = vmatprep.subr.mxu0 0.0
        %8521 = vmatpush1.msra.mxu0 0.0
        %8522 = vmatprep.subr.mxu0 0.0
        %8523 = vmatpush1.msra.mxu0 0.0
        %8524 = vmatprep.subr.mxu0 0.0
        %8525 = vmatpush1.msra.mxu0 0.0
        %8526 = vmatprep.subr.mxu0 0.0
        %8527 = vmatpush1.msra.mxu0 %v270
        %8528 = vmatprep.subr.mxu0 0.0
        %8529 = vmatpush1.msra.mxu0 %v269
        %8530 = vmatprep.subr.mxu0 0.0
        %8531 = vmatpush2.msra.mxu0 0.0
        %8532 = vmatprep.subr.mxu0 0.0
        %8533 = vmatpush2.msra.mxu0 0.0
        %8534 = vmatprep.subr.mxu0 0.0
        %8535 = vmatpush2.msra.mxu0 0.0
        %8536 = vmatprep.subr.mxu0 0.0
        %8537 = vmatpush2.msra.mxu0 0.0
        %8538 = vmatprep.subr.mxu0 0.0
        %8539 = vmatpush2.msra.mxu0 0.0
        %8540 = vmatprep.subr.mxu0 0.0
        %8541 = vmatpush2.msra.mxu0 0.0
        %8542 = vmatprep.subr.mxu0 0.0
        %8543 = vmatpush2.msra.mxu0 0.0
        %8544 = vmatprep.subr.mxu0 0.0
        %8545 = vmatpush2.msra.mxu0 0.0
        %8546 = vmatprep.subr.mxu0 0.0
        %8547 = vmatpush2.msra.mxu0 0.0
        %8548 = vmatprep.subr.mxu0 0.0
        %8549 = vmatpush2.msra.mxu0 0.0
        %8550 = vmatprep.subr.mxu0 0.0
        %8551 = vmatpush2.msra.mxu0 0.0
        %8552 = vmatprep.subr.mxu0 0.0
        %8553 = vmatpush2.msra.mxu0 0.0
        %8554 = vmatprep.subr.mxu0 0.0
        %8555 = vmatpush2.msra.mxu0 0.0
        %8556 = vmatprep.subr.mxu0 0.0
        %8557 = vmatpush2.msra.mxu0 0.0
        %8558 = vmatprep.subr.mxu0 0.0
        %8559 = vmatpush2.msra.mxu0 0.0
        %8560 = vmatprep.subr.mxu0 0.0
        %8561 = vmatpush2.msra.mxu0 0.0
        %8562 = vmatprep.mubr.f32.mxu0 0.0
        %8563 = vmatmul.mubr.f32.gmra.mxu0 %v8496
        %v8564 = vpop.f32.mrf.mxu0
        %v8565 = vadd.f32 0.0, %v8564
        %v8566 = vpop.f32.mrf.mxu0
        %8567 = vdwg.mxu0
        %v8569 = vsel %vm341, %v8477, 0
        %8571 = vmatprep.subr.mxu0 0.0
        %8572 = vmatpush1.msra.mxu0 0.0
        %8573 = vmatprep.subr.mxu0 0.0
        %8574 = vmatpush1.msra.mxu0 0.0
        %8575 = vmatprep.subr.mxu0 0.0
        %8576 = vmatpush1.msra.mxu0 0.0
        %8577 = vmatprep.subr.mxu0 0.0
        %8578 = vmatpush1.msra.mxu0 0.0
        %8579 = vmatprep.subr.mxu0 0.0
        %8580 = vmatpush1.msra.mxu0 0.0
        %8581 = vmatprep.subr.mxu0 0.0
        %8582 = vmatpush1.msra.mxu0 0.0
        %8583 = vmatprep.subr.mxu0 0.0
        %8584 = vmatpush1.msra.mxu0 0.0
        %8585 = vmatprep.subr.mxu0 0.0
        %8586 = vmatpush1.msra.mxu0 0.0
        %8587 = vmatprep.subr.mxu0 0.0
        %8588 = vmatpush1.msra.mxu0 0.0
        %8589 = vmatprep.subr.mxu0 0.0
        %8590 = vmatpush1.msra.mxu0 0.0
        %8591 = vmatprep.subr.mxu0 0.0
        %8592 = vmatpush1.msra.mxu0 0.0
        %8593 = vmatprep.subr.mxu0 0.0
        %8594 = vmatpush1.msra.mxu0 0.0
        %8595 = vmatprep.subr.mxu0 0.0
        %8596 = vmatpush1.msra.mxu0 0.0
        %8597 = vmatprep.subr.mxu0 0.0
        %8598 = vmatpush1.msra.mxu0 0.0
        %8599 = vmatprep.subr.mxu0 0.0
        %8600 = vmatpush1.msra.mxu0 %v268
        %8601 = vmatprep.subr.mxu0 0.0
        %8602 = vmatpush1.msra.mxu0 %v267
        %8603 = vmatprep.subr.mxu0 0.0
        %8604 = vmatpush2.msra.mxu0 0.0
        %8605 = vmatprep.subr.mxu0 0.0
        %8606 = vmatpush2.msra.mxu0 0.0
        %8607 = vmatprep.subr.mxu0 0.0
        %8608 = vmatpush2.msra.mxu0 0.0
        %8609 = vmatprep.subr.mxu0 0.0
        %8610 = vmatpush2.msra.mxu0 0.0
        %8611 = vmatprep.subr.mxu0 0.0
        %8612 = vmatpush2.msra.mxu0 0.0
        %8613 = vmatprep.subr.mxu0 0.0
        %8614 = vmatpush2.msra.mxu0 0.0
        %8615 = vmatprep.subr.mxu0 0.0
        %8616 = vmatpush2.msra.mxu0 0.0
        %8617 = vmatprep.subr.mxu0 0.0
        %8618 = vmatpush2.msra.mxu0 0.0
        %8619 = vmatprep.subr.mxu0 0.0
        %8620 = vmatpush2.msra.mxu0 0.0
        %8621 = vmatprep.subr.mxu0 0.0
        %8622 = vmatpush2.msra.mxu0 0.0
        %8623 = vmatprep.subr.mxu0 0.0
        %8624 = vmatpush2.msra.mxu0 0.0
        %8625 = vmatprep.subr.mxu0 0.0
        %8626 = vmatpush2.msra.mxu0 0.0
        %8627 = vmatprep.subr.mxu0 0.0
        %8628 = vmatpush2.msra.mxu0 0.0
        %8629 = vmatprep.subr.mxu0 0.0
        %8630 = vmatpush2.msra.mxu0 0.0
        %8631 = vmatprep.subr.mxu0 0.0
        %8632 = vmatpush2.msra.mxu0 0.0
        %8633 = vmatprep.subr.mxu0 0.0
        %8634 = vmatpush2.msra.mxu0 0.0
        %8635 = vmatprep.mubr.f32.mxu0 0.0
        %8636 = vmatmul.mubr.f32.gmra.mxu0 %v8569
        %v8637 = vpop.f32.mrf.mxu0
        %v8638 = vadd.f32 %v8565, %v8637
        %v8639 = vpop.f32.mrf.mxu0
        %8640 = vdwg.mxu0
        %v8641 = vadd.f32 %v8638, %v588
        %v8642 = vmax.f32 %v8641, 0.0
        %v8644 = vcombine.high %v8642, %v8642
        %v8646 = vunpack.c.l.s4 1966171168
        %v8647 = vunpack.c.0.s8 %v8646
        %v8648 = vlaneseq
        %v8649 = vshrl.u32 %v8648, 7
        %v8650 = vsub.s32 %v8647, %v8649
        %v8651 = vrot.slane %v8642, %v8650
        %v8653 = vunpack.c.l.s4 1966171168
        %v8654 = vunpack.c.0.s8 %v8653
        %v8655 = vlaneseq
        %v8656 = vshrl.u32 %v8655, 7
        %v8657 = vsub.s32 %v8654, %v8656
        %v8658 = vrot.slane %v8644, %v8657
        %v8659 = vcombine.high %v8651, %v8651
        %v8660 = vcombine.high %v8658, %v8658
        %v8662 = vunpack.c.l.s4 1966171168
        %v8663 = vunpack.c.0.s8 %v8662
        %v8664 = vlaneseq
        %v8665 = vshrl.u32 %v8664, 7
        %v8666 = vsub.s32 %v8663, %v8665
        %v8667 = vrot.slane %v8651, %v8666
        %v8669 = vunpack.c.l.s4 1966171168
        %v8670 = vunpack.c.0.s8 %v8669
        %v8671 = vlaneseq
        %v8672 = vshrl.u32 %v8671, 7
        %v8673 = vsub.s32 %v8670, %v8672
        %v8674 = vrot.slane %v8658, %v8673
        %v8676 = vunpack.c.l.s4 1966171168
        %v8677 = vunpack.c.0.s8 %v8676
        %v8678 = vlaneseq
        %v8679 = vshrl.u32 %v8678, 7
        %v8680 = vsub.s32 %v8677, %v8679
        %v8681 = vrot.slane %v8659, %v8680
        %v8683 = vunpack.c.l.s4 1966171168
        %v8684 = vunpack.c.0.s8 %v8683
        %v8685 = vlaneseq
        %v8686 = vshrl.u32 %v8685, 7
        %v8687 = vsub.s32 %v8684, %v8686
        %v8688 = vrot.slane %v8660, %v8687
        %v8689 = vcombine.high %v8667, %v8667
        %v8690 = vcombine.high %v8674, %v8674
        %v8691 = vcombine.high %v8681, %v8681
        %v8692 = vcombine.high %v8688, %v8688
        %8701 = vst.msk [vmem:[%s260 + $0x1c] sm:$0x1] %vm650, %v8667
        %8702 = vst.msk [vmem:[%s260 + $0x3c] sm:$0x1] %vm650, %v8681
        %8703 = vst.msk [vmem:[%s260 + $0x5c] sm:$0x1] %vm650, %v8689
        %8704 = vst.msk [vmem:[%s260 + $0x7c] sm:$0x1] %vm650, %v8691
        %8705 = vst.msk [vmem:[%s260 + $0x9c] sm:$0x1] %vm650, %v8674
        %8706 = vst.msk [vmem:[%s260 + $0xbc] sm:$0x1] %vm650, %v8688
        %8707 = vst.msk [vmem:[%s260 + $0xdc] sm:$0x1] %vm650, %v8690
        %8708 = vst.msk [vmem:[%s260 + $0xfc] sm:$0x1] %vm650, %v8692
        %v8710 = vsel %vm341, %v8492, 0
        %8712 = vmatprep.subr.mxu0 0.0
        %8713 = vmatpush1.msra.mxu0 0.0
        %8714 = vmatprep.subr.mxu0 0.0
        %8715 = vmatpush1.msra.mxu0 0.0
        %8716 = vmatprep.subr.mxu0 0.0
        %8717 = vmatpush1.msra.mxu0 0.0
        %8718 = vmatprep.subr.mxu0 0.0
        %8719 = vmatpush1.msra.mxu0 0.0
        %8720 = vmatprep.subr.mxu0 0.0
        %8721 = vmatpush1.msra.mxu0 0.0
        %8722 = vmatprep.subr.mxu0 0.0
        %8723 = vmatpush1.msra.mxu0 0.0
        %8724 = vmatprep.subr.mxu0 0.0
        %8725 = vmatpush1.msra.mxu0 0.0
        %8726 = vmatprep.subr.mxu0 0.0
        %8727 = vmatpush1.msra.mxu0 0.0
        %8728 = vmatprep.subr.mxu0 0.0
        %8729 = vmatpush1.msra.mxu0 0.0
        %8730 = vmatprep.subr.mxu0 0.0
        %8731 = vmatpush1.msra.mxu0 0.0
        %8732 = vmatprep.subr.mxu0 0.0
        %8733 = vmatpush1.msra.mxu0 0.0
        %8734 = vmatprep.subr.mxu0 0.0
        %8735 = vmatpush1.msra.mxu0 0.0
        %8736 = vmatprep.subr.mxu0 0.0
        %8737 = vmatpush1.msra.mxu0 0.0
        %8738 = vmatprep.subr.mxu0 0.0
        %8739 = vmatpush1.msra.mxu0 0.0
        %8740 = vmatprep.subr.mxu0 0.0
        %8741 = vmatpush1.msra.mxu0 %v270
        %8742 = vmatprep.subr.mxu0 0.0
        %8743 = vmatpush1.msra.mxu0 %v269
        %8744 = vmatprep.subr.mxu0 0.0
        %8745 = vmatpush2.msra.mxu0 0.0
        %8746 = vmatprep.subr.mxu0 0.0
        %8747 = vmatpush2.msra.mxu0 0.0
        %8748 = vmatprep.subr.mxu0 0.0
        %8749 = vmatpush2.msra.mxu0 0.0
        %8750 = vmatprep.subr.mxu0 0.0
        %8751 = vmatpush2.msra.mxu0 0.0
        %8752 = vmatprep.subr.mxu0 0.0
        %8753 = vmatpush2.msra.mxu0 0.0
        %8754 = vmatprep.subr.mxu0 0.0
        %8755 = vmatpush2.msra.mxu0 0.0
        %8756 = vmatprep.subr.mxu0 0.0
        %8757 = vmatpush2.msra.mxu0 0.0
        %8758 = vmatprep.subr.mxu0 0.0
        %8759 = vmatpush2.msra.mxu0 0.0
        %8760 = vmatprep.subr.mxu0 0.0
        %8761 = vmatpush2.msra.mxu0 0.0
        %8762 = vmatprep.subr.mxu0 0.0
        %8763 = vmatpush2.msra.mxu0 0.0
        %8764 = vmatprep.subr.mxu0 0.0
        %8765 = vmatpush2.msra.mxu0 0.0
        %8766 = vmatprep.subr.mxu0 0.0
        %8767 = vmatpush2.msra.mxu0 0.0
        %8768 = vmatprep.subr.mxu0 0.0
        %8769 = vmatpush2.msra.mxu0 0.0
        %8770 = vmatprep.subr.mxu0 0.0
        %8771 = vmatpush2.msra.mxu0 0.0
        %8772 = vmatprep.subr.mxu0 0.0
        %8773 = vmatpush2.msra.mxu0 0.0
        %8774 = vmatprep.subr.mxu0 0.0
        %8775 = vmatpush2.msra.mxu0 0.0
        %8776 = vmatprep.mubr.f32.mxu0 0.0
        %8777 = vmatmul.mubr.f32.gmra.mxu0 %v8710
        %v8778 = vpop.f32.mrf.mxu0
        %v8779 = vadd.f32 0.0, %v8778
        %v8780 = vpop.f32.mrf.mxu0
        %8781 = vdwg.mxu0
        %v8783 = vsel %vm341, %v8487, 0
        %8785 = vmatprep.subr.mxu0 0.0
        %8786 = vmatpush1.msra.mxu0 0.0
        %8787 = vmatprep.subr.mxu0 0.0
        %8788 = vmatpush1.msra.mxu0 0.0
        %8789 = vmatprep.subr.mxu0 0.0
        %8790 = vmatpush1.msra.mxu0 0.0
        %8791 = vmatprep.subr.mxu0 0.0
        %8792 = vmatpush1.msra.mxu0 0.0
        %8793 = vmatprep.subr.mxu0 0.0
        %8794 = vmatpush1.msra.mxu0 0.0
        %8795 = vmatprep.subr.mxu0 0.0
        %8796 = vmatpush1.msra.mxu0 0.0
        %8797 = vmatprep.subr.mxu0 0.0
        %8798 = vmatpush1.msra.mxu0 0.0
        %8799 = vmatprep.subr.mxu0 0.0
        %8800 = vmatpush1.msra.mxu0 0.0
        %8801 = vmatprep.subr.mxu0 0.0
        %8802 = vmatpush1.msra.mxu0 0.0
        %8803 = vmatprep.subr.mxu0 0.0
        %8804 = vmatpush1.msra.mxu0 0.0
        %8805 = vmatprep.subr.mxu0 0.0
        %8806 = vmatpush1.msra.mxu0 0.0
        %8807 = vmatprep.subr.mxu0 0.0
        %8808 = vmatpush1.msra.mxu0 0.0
        %8809 = vmatprep.subr.mxu0 0.0
        %8810 = vmatpush1.msra.mxu0 0.0
        %8811 = vmatprep.subr.mxu0 0.0
        %8812 = vmatpush1.msra.mxu0 0.0
        %8813 = vmatprep.subr.mxu0 0.0
        %8814 = vmatpush1.msra.mxu0 %v268
        %8815 = vmatprep.subr.mxu0 0.0
        %8816 = vmatpush1.msra.mxu0 %v267
        %8817 = vmatprep.subr.mxu0 0.0
        %8818 = vmatpush2.msra.mxu0 0.0
        %8819 = vmatprep.subr.mxu0 0.0
        %8820 = vmatpush2.msra.mxu0 0.0
        %8821 = vmatprep.subr.mxu0 0.0
        %8822 = vmatpush2.msra.mxu0 0.0
        %8823 = vmatprep.subr.mxu0 0.0
        %8824 = vmatpush2.msra.mxu0 0.0
        %8825 = vmatprep.subr.mxu0 0.0
        %8826 = vmatpush2.msra.mxu0 0.0
        %8827 = vmatprep.subr.mxu0 0.0
        %8828 = vmatpush2.msra.mxu0 0.0
        %8829 = vmatprep.subr.mxu0 0.0
        %8830 = vmatpush2.msra.mxu0 0.0
        %8831 = vmatprep.subr.mxu0 0.0
        %8832 = vmatpush2.msra.mxu0 0.0
        %8833 = vmatprep.subr.mxu0 0.0
        %8834 = vmatpush2.msra.mxu0 0.0
        %8835 = vmatprep.subr.mxu0 0.0
        %8836 = vmatpush2.msra.mxu0 0.0
        %8837 = vmatprep.subr.mxu0 0.0
        %8838 = vmatpush2.msra.mxu0 0.0
        %8839 = vmatprep.subr.mxu0 0.0
        %8840 = vmatpush2.msra.mxu0 0.0
        %8841 = vmatprep.subr.mxu0 0.0
        %8842 = vmatpush2.msra.mxu0 0.0
        %8843 = vmatprep.subr.mxu0 0.0
        %8844 = vmatpush2.msra.mxu0 0.0
        %8845 = vmatprep.subr.mxu0 0.0
        %8846 = vmatpush2.msra.mxu0 0.0
        %8847 = vmatprep.subr.mxu0 0.0
        %8848 = vmatpush2.msra.mxu0 0.0
        %8849 = vmatprep.mubr.f32.mxu0 0.0
        %8850 = vmatmul.mubr.f32.gmra.mxu0 %v8783
        %v8851 = vpop.f32.mrf.mxu0
        %v8852 = vadd.f32 %v8779, %v8851
        %v8853 = vpop.f32.mrf.mxu0
        %8854 = vdwg.mxu0
        %v8855 = vadd.f32 %v8852, %v588
        %v8856 = vmax.f32 %v8855, 0.0
        %v8858 = vcombine.high %v8856, %v8856
        %v8860 = vunpack.c.l.s4 1966171168
        %v8861 = vunpack.c.0.s8 %v8860
        %v8862 = vlaneseq
        %v8863 = vshrl.u32 %v8862, 7
        %v8864 = vsub.s32 %v8861, %v8863
        %v8865 = vrot.slane %v8856, %v8864
        %v8867 = vunpack.c.l.s4 1966171168
        %v8868 = vunpack.c.0.s8 %v8867
        %v8869 = vlaneseq
        %v8870 = vshrl.u32 %v8869, 7
        %v8871 = vsub.s32 %v8868, %v8870
        %v8872 = vrot.slane %v8858, %v8871
        %v8873 = vcombine.high %v8865, %v8865
        %v8874 = vcombine.high %v8872, %v8872
        %v8876 = vunpack.c.l.s4 1966171168
        %v8877 = vunpack.c.0.s8 %v8876
        %v8878 = vlaneseq
        %v8879 = vshrl.u32 %v8878, 7
        %v8880 = vsub.s32 %v8877, %v8879
        %v8881 = vrot.slane %v8865, %v8880
        %v8883 = vunpack.c.l.s4 1966171168
        %v8884 = vunpack.c.0.s8 %v8883
        %v8885 = vlaneseq
        %v8886 = vshrl.u32 %v8885, 7
        %v8887 = vsub.s32 %v8884, %v8886
        %v8888 = vrot.slane %v8872, %v8887
        %v8890 = vunpack.c.l.s4 1966171168
        %v8891 = vunpack.c.0.s8 %v8890
        %v8892 = vlaneseq
        %v8893 = vshrl.u32 %v8892, 7
        %v8894 = vsub.s32 %v8891, %v8893
        %v8895 = vrot.slane %v8873, %v8894
        %v8897 = vunpack.c.l.s4 1966171168
        %v8898 = vunpack.c.0.s8 %v8897
        %v8899 = vlaneseq
        %v8900 = vshrl.u32 %v8899, 7
        %v8901 = vsub.s32 %v8898, %v8900
        %v8902 = vrot.slane %v8874, %v8901
        %v8903 = vcombine.high %v8881, %v8881
        %v8904 = vcombine.high %v8888, %v8888
        %v8905 = vcombine.high %v8895, %v8895
        %v8906 = vcombine.high %v8902, %v8902
        %8915 = vst.msk [vmem:[%s260 + $0x1d] sm:$0x1] %vm650, %v8881
        %8916 = vst.msk [vmem:[%s260 + $0x3d] sm:$0x1] %vm650, %v8895
        %8917 = vst.msk [vmem:[%s260 + $0x5d] sm:$0x1] %vm650, %v8903
        %8918 = vst.msk [vmem:[%s260 + $0x7d] sm:$0x1] %vm650, %v8905
        %8919 = vst.msk [vmem:[%s260 + $0x9d] sm:$0x1] %vm650, %v8888
        %8920 = vst.msk [vmem:[%s260 + $0xbd] sm:$0x1] %vm650, %v8902
        %8921 = vst.msk [vmem:[%s260 + $0xdd] sm:$0x1] %vm650, %v8904
        %8922 = vst.msk [vmem:[%s260 + $0xfd] sm:$0x1] %vm650, %v8906
        %v8923 = vld [vmem:[%s234 + $0xf] sm:$0x1]
        %v8924 = vld [vmem:[%s234 + $0x1f] sm:$0x1]
        %v8925 = vld [vmem:[%s234 + $0x2f] sm:$0x1]
        %v8926 = vld [vmem:[%s234 + $0x3f] sm:$0x1]
        %v8927 = vld [vmem:[%s234 + $0x4f] sm:$0x1]
        %v8928 = vld [vmem:[%s234 + $0x5f] sm:$0x1]
        %v8929 = vld [vmem:[%s234 + $0x6f] sm:$0x1]
        %v8930 = vld [vmem:[%s234 + $0x7f] sm:$0x1]
        %v8931 = vld [vmem:[%s234 + $0x8f] sm:$0x1]
        %v8932 = vld [vmem:[%s234 + $0x9f] sm:$0x1]
        %v8933 = vld [vmem:[%s234 + $0xaf] sm:$0x1]
        %v8934 = vld [vmem:[%s234 + $0xbf] sm:$0x1]
        %v8935 = vld [vmem:[%s234 + $0xcf] sm:$0x1]
        %v8936 = vld [vmem:[%s234 + $0xdf] sm:$0x1]
        %v8937 = vld [vmem:[%s234 + $0xef] sm:$0x1]
        %v8938 = vld [vmem:[%s234 + $0xff] sm:$0x1]
        %v8955 = vrot.slane %v8924, 7
        %v8956 = vsel %vm305, %v8955, %v8923
        %v8957 = vrot.slane %v8925, 6
        %v8958 = vsel %vm308, %v8957, %v8956
        %v8959 = vrot.slane %v8926, 5
        %v8960 = vsel %vm311, %v8959, %v8958
        %v8961 = vrot.slane %v8927, 4
        %v8962 = vsel %vm314, %v8961, %v8960
        %v8963 = vrot.slane %v8928, 3
        %v8964 = vsel %vm317, %v8963, %v8962
        %v8965 = vrot.slane %v8929, 2
        %v8966 = vsel %vm320, %v8965, %v8964
        %v8967 = vrot.slane %v8930, 1
        %v8968 = vsel %vm323, %v8967, %v8966
        %v8969 = vrot.slane %v8932, 7
        %v8970 = vsel %vm305, %v8969, %v8931
        %v8971 = vrot.slane %v8933, 6
        %v8972 = vsel %vm308, %v8971, %v8970
        %v8973 = vrot.slane %v8934, 5
        %v8974 = vsel %vm311, %v8973, %v8972
        %v8975 = vrot.slane %v8935, 4
        %v8976 = vsel %vm314, %v8975, %v8974
        %v8977 = vrot.slane %v8936, 3
        %v8978 = vsel %vm317, %v8977, %v8976
        %v8979 = vrot.slane %v8937, 2
        %v8980 = vsel %vm320, %v8979, %v8978
        %v8981 = vrot.slane %v8938, 1
        %v8982 = vsel %vm323, %v8981, %v8980
        %8985 = vmatprep.subr.mxu0 0.0
        %8986 = vmatpush1.msra.mxu0 0.0
        %8987 = vmatprep.subr.mxu0 0.0
        %8988 = vmatpush1.msra.mxu0 0.0
        %8989 = vmatprep.subr.mxu0 0.0
        %8990 = vmatpush1.msra.mxu0 0.0
        %8991 = vmatprep.subr.mxu0 0.0
        %8992 = vmatpush1.msra.mxu0 0.0
        %8993 = vmatprep.subr.mxu0 0.0
        %8994 = vmatpush1.msra.mxu0 0.0
        %8995 = vmatprep.subr.mxu0 0.0
        %8996 = vmatpush1.msra.mxu0 0.0
        %8997 = vmatprep.subr.mxu0 0.0
        %8998 = vmatpush1.msra.mxu0 0.0
        %8999 = vmatprep.subr.mxu0 0.0
        %9000 = vmatpush1.msra.mxu0 0.0
        %9001 = vmatprep.subr.mxu0 0.0
        %9002 = vmatpush1.msra.mxu0 0.0
        %9003 = vmatprep.subr.mxu0 0.0
        %9004 = vmatpush1.msra.mxu0 0.0
        %9005 = vmatprep.subr.mxu0 0.0
        %9006 = vmatpush1.msra.mxu0 0.0
        %9007 = vmatprep.subr.mxu0 0.0
        %9008 = vmatpush1.msra.mxu0 0.0
        %9009 = vmatprep.subr.mxu0 0.0
        %9010 = vmatpush1.msra.mxu0 0.0
        %9011 = vmatprep.subr.mxu0 0.0
        %9012 = vmatpush1.msra.mxu0 0.0
        %9013 = vmatprep.subr.mxu0 0.0
        %9014 = vmatpush1.msra.mxu0 %v8982
        %9015 = vmatprep.subr.mxu0 0.0
        %9016 = vmatpush1.msra.mxu0 %v8968
        %9017 = vmatprep.subr.mxu0 0.0
        %9018 = vmatpush2.msra.mxu0 0.0
        %9019 = vmatprep.subr.mxu0 0.0
        %9020 = vmatpush2.msra.mxu0 0.0
        %9021 = vmatprep.subr.mxu0 0.0
        %9022 = vmatpush2.msra.mxu0 0.0
        %9023 = vmatprep.subr.mxu0 0.0
        %9024 = vmatpush2.msra.mxu0 0.0
        %9025 = vmatprep.subr.mxu0 0.0
        %9026 = vmatpush2.msra.mxu0 0.0
        %9027 = vmatprep.subr.mxu0 0.0
        %9028 = vmatpush2.msra.mxu0 0.0
        %9029 = vmatprep.subr.mxu0 0.0
        %9030 = vmatpush2.msra.mxu0 0.0
        %9031 = vmatprep.subr.mxu0 0.0
        %9032 = vmatpush2.msra.mxu0 0.0
        %9033 = vmatprep.subr.mxu0 0.0
        %9034 = vmatpush2.msra.mxu0 0.0
        %9035 = vmatprep.subr.mxu0 0.0
        %9036 = vmatpush2.msra.mxu0 0.0
        %9037 = vmatprep.subr.mxu0 0.0
        %9038 = vmatpush2.msra.mxu0 0.0
        %9039 = vmatprep.subr.mxu0 0.0
        %9040 = vmatpush2.msra.mxu0 0.0
        %9041 = vmatprep.subr.mxu0 0.0
        %9042 = vmatpush2.msra.mxu0 0.0
        %9043 = vmatprep.subr.mxu0 0.0
        %9044 = vmatpush2.msra.mxu0 0.0
        %9045 = vmatprep.subr.mxu0 0.0
        %9046 = vmatpush2.msra.mxu0 0.0
        %9047 = vmatprep.subr.mxu0 0.0
        %9048 = vmatpush2.msra.mxu0 0.0
        %9049 = vmatprep.mubr.f32.mxu0 0.0
        %9050 = vmatmul.mubr.f32.gmra.mxu0 %v343
        %v9051 = vpop.f32.mrf.mxu0
        %v9052 = vadd.f32 0.0, %v9051
        %v9053 = vpop.f32.mrf.mxu0
        %9054 = vmatprep.mubr.f32.mxu0 0.0
        %9055 = vmatmul.mubr.f32.gmra.mxu0 %v346
        %v9056 = vpop.f32.mrf.mxu0
        %v9057 = vadd.f32 0.0, %v9056
        %v9058 = vpop.f32.mrf.mxu0
        %9059 = vmatprep.mubr.f32.mxu0 0.0
        %9060 = vmatmul.mubr.f32.gmra.mxu0 %v349
        %v9061 = vpop.f32.mrf.mxu0
        %v9062 = vadd.f32 0.0, %v9061
        %v9063 = vpop.f32.mrf.mxu0
        %9064 = vmatprep.mubr.f32.mxu0 0.0
        %9065 = vmatmul.mubr.f32.gmra.mxu0 %v352
        %v9066 = vpop.f32.mrf.mxu0
        %v9067 = vadd.f32 0.0, %v9066
        %v9068 = vpop.f32.mrf.mxu0
        %9069 = vdwg.mxu0
        %v9071 = vsel %vm341, %v9057, 0
        %9073 = vmatprep.subr.mxu0 0.0
        %9074 = vmatpush1.msra.mxu0 0.0
        %9075 = vmatprep.subr.mxu0 0.0
        %9076 = vmatpush1.msra.mxu0 0.0
        %9077 = vmatprep.subr.mxu0 0.0
        %9078 = vmatpush1.msra.mxu0 0.0
        %9079 = vmatprep.subr.mxu0 0.0
        %9080 = vmatpush1.msra.mxu0 0.0
        %9081 = vmatprep.subr.mxu0 0.0
        %9082 = vmatpush1.msra.mxu0 0.0
        %9083 = vmatprep.subr.mxu0 0.0
        %9084 = vmatpush1.msra.mxu0 0.0
        %9085 = vmatprep.subr.mxu0 0.0
        %9086 = vmatpush1.msra.mxu0 0.0
        %9087 = vmatprep.subr.mxu0 0.0
        %9088 = vmatpush1.msra.mxu0 0.0
        %9089 = vmatprep.subr.mxu0 0.0
        %9090 = vmatpush1.msra.mxu0 0.0
        %9091 = vmatprep.subr.mxu0 0.0
        %9092 = vmatpush1.msra.mxu0 0.0
        %9093 = vmatprep.subr.mxu0 0.0
        %9094 = vmatpush1.msra.mxu0 0.0
        %9095 = vmatprep.subr.mxu0 0.0
        %9096 = vmatpush1.msra.mxu0 0.0
        %9097 = vmatprep.subr.mxu0 0.0
        %9098 = vmatpush1.msra.mxu0 0.0
        %9099 = vmatprep.subr.mxu0 0.0
        %9100 = vmatpush1.msra.mxu0 0.0
        %9101 = vmatprep.subr.mxu0 0.0
        %9102 = vmatpush1.msra.mxu0 %v270
        %9103 = vmatprep.subr.mxu0 0.0
        %9104 = vmatpush1.msra.mxu0 %v269
        %9105 = vmatprep.subr.mxu0 0.0
        %9106 = vmatpush2.msra.mxu0 0.0
        %9107 = vmatprep.subr.mxu0 0.0
        %9108 = vmatpush2.msra.mxu0 0.0
        %9109 = vmatprep.subr.mxu0 0.0
        %9110 = vmatpush2.msra.mxu0 0.0
        %9111 = vmatprep.subr.mxu0 0.0
        %9112 = vmatpush2.msra.mxu0 0.0
        %9113 = vmatprep.subr.mxu0 0.0
        %9114 = vmatpush2.msra.mxu0 0.0
        %9115 = vmatprep.subr.mxu0 0.0
        %9116 = vmatpush2.msra.mxu0 0.0
        %9117 = vmatprep.subr.mxu0 0.0
        %9118 = vmatpush2.msra.mxu0 0.0
        %9119 = vmatprep.subr.mxu0 0.0
        %9120 = vmatpush2.msra.mxu0 0.0
        %9121 = vmatprep.subr.mxu0 0.0
        %9122 = vmatpush2.msra.mxu0 0.0
        %9123 = vmatprep.subr.mxu0 0.0
        %9124 = vmatpush2.msra.mxu0 0.0
        %9125 = vmatprep.subr.mxu0 0.0
        %9126 = vmatpush2.msra.mxu0 0.0
        %9127 = vmatprep.subr.mxu0 0.0
        %9128 = vmatpush2.msra.mxu0 0.0
        %9129 = vmatprep.subr.mxu0 0.0
        %9130 = vmatpush2.msra.mxu0 0.0
        %9131 = vmatprep.subr.mxu0 0.0
        %9132 = vmatpush2.msra.mxu0 0.0
        %9133 = vmatprep.subr.mxu0 0.0
        %9134 = vmatpush2.msra.mxu0 0.0
        %9135 = vmatprep.subr.mxu0 0.0
        %9136 = vmatpush2.msra.mxu0 0.0
        %9137 = vmatprep.mubr.f32.mxu0 0.0
        %9138 = vmatmul.mubr.f32.gmra.mxu0 %v9071
        %v9139 = vpop.f32.mrf.mxu0
        %v9140 = vadd.f32 0.0, %v9139
        %v9141 = vpop.f32.mrf.mxu0
        %9142 = vdwg.mxu0
        %v9144 = vsel %vm341, %v9052, 0
        %9146 = vmatprep.subr.mxu0 0.0
        %9147 = vmatpush1.msra.mxu0 0.0
        %9148 = vmatprep.subr.mxu0 0.0
        %9149 = vmatpush1.msra.mxu0 0.0
        %9150 = vmatprep.subr.mxu0 0.0
        %9151 = vmatpush1.msra.mxu0 0.0
        %9152 = vmatprep.subr.mxu0 0.0
        %9153 = vmatpush1.msra.mxu0 0.0
        %9154 = vmatprep.subr.mxu0 0.0
        %9155 = vmatpush1.msra.mxu0 0.0
        %9156 = vmatprep.subr.mxu0 0.0
        %9157 = vmatpush1.msra.mxu0 0.0
        %9158 = vmatprep.subr.mxu0 0.0
        %9159 = vmatpush1.msra.mxu0 0.0
        %9160 = vmatprep.subr.mxu0 0.0
        %9161 = vmatpush1.msra.mxu0 0.0
        %9162 = vmatprep.subr.mxu0 0.0
        %9163 = vmatpush1.msra.mxu0 0.0
        %9164 = vmatprep.subr.mxu0 0.0
        %9165 = vmatpush1.msra.mxu0 0.0
        %9166 = vmatprep.subr.mxu0 0.0
        %9167 = vmatpush1.msra.mxu0 0.0
        %9168 = vmatprep.subr.mxu0 0.0
        %9169 = vmatpush1.msra.mxu0 0.0
        %9170 = vmatprep.subr.mxu0 0.0
        %9171 = vmatpush1.msra.mxu0 0.0
        %9172 = vmatprep.subr.mxu0 0.0
        %9173 = vmatpush1.msra.mxu0 0.0
        %9174 = vmatprep.subr.mxu0 0.0
        %9175 = vmatpush1.msra.mxu0 %v268
        %9176 = vmatprep.subr.mxu0 0.0
        %9177 = vmatpush1.msra.mxu0 %v267
        %9178 = vmatprep.subr.mxu0 0.0
        %9179 = vmatpush2.msra.mxu0 0.0
        %9180 = vmatprep.subr.mxu0 0.0
        %9181 = vmatpush2.msra.mxu0 0.0
        %9182 = vmatprep.subr.mxu0 0.0
        %9183 = vmatpush2.msra.mxu0 0.0
        %9184 = vmatprep.subr.mxu0 0.0
        %9185 = vmatpush2.msra.mxu0 0.0
        %9186 = vmatprep.subr.mxu0 0.0
        %9187 = vmatpush2.msra.mxu0 0.0
        %9188 = vmatprep.subr.mxu0 0.0
        %9189 = vmatpush2.msra.mxu0 0.0
        %9190 = vmatprep.subr.mxu0 0.0
        %9191 = vmatpush2.msra.mxu0 0.0
        %9192 = vmatprep.subr.mxu0 0.0
        %9193 = vmatpush2.msra.mxu0 0.0
        %9194 = vmatprep.subr.mxu0 0.0
        %9195 = vmatpush2.msra.mxu0 0.0
        %9196 = vmatprep.subr.mxu0 0.0
        %9197 = vmatpush2.msra.mxu0 0.0
        %9198 = vmatprep.subr.mxu0 0.0
        %9199 = vmatpush2.msra.mxu0 0.0
        %9200 = vmatprep.subr.mxu0 0.0
        %9201 = vmatpush2.msra.mxu0 0.0
        %9202 = vmatprep.subr.mxu0 0.0
        %9203 = vmatpush2.msra.mxu0 0.0
        %9204 = vmatprep.subr.mxu0 0.0
        %9205 = vmatpush2.msra.mxu0 0.0
        %9206 = vmatprep.subr.mxu0 0.0
        %9207 = vmatpush2.msra.mxu0 0.0
        %9208 = vmatprep.subr.mxu0 0.0
        %9209 = vmatpush2.msra.mxu0 0.0
        %9210 = vmatprep.mubr.f32.mxu0 0.0
        %9211 = vmatmul.mubr.f32.gmra.mxu0 %v9144
        %v9212 = vpop.f32.mrf.mxu0
        %v9213 = vadd.f32 %v9140, %v9212
        %v9214 = vpop.f32.mrf.mxu0
        %9215 = vdwg.mxu0
        %v9216 = vadd.f32 %v9213, %v588
        %v9217 = vmax.f32 %v9216, 0.0
        %v9219 = vcombine.high %v9217, %v9217
        %v9221 = vunpack.c.l.s4 1966171168
        %v9222 = vunpack.c.0.s8 %v9221
        %v9223 = vlaneseq
        %v9224 = vshrl.u32 %v9223, 7
        %v9225 = vsub.s32 %v9222, %v9224
        %v9226 = vrot.slane %v9217, %v9225
        %v9228 = vunpack.c.l.s4 1966171168
        %v9229 = vunpack.c.0.s8 %v9228
        %v9230 = vlaneseq
        %v9231 = vshrl.u32 %v9230, 7
        %v9232 = vsub.s32 %v9229, %v9231
        %v9233 = vrot.slane %v9219, %v9232
        %v9234 = vcombine.high %v9226, %v9226
        %v9235 = vcombine.high %v9233, %v9233
        %v9237 = vunpack.c.l.s4 1966171168
        %v9238 = vunpack.c.0.s8 %v9237
        %v9239 = vlaneseq
        %v9240 = vshrl.u32 %v9239, 7
        %v9241 = vsub.s32 %v9238, %v9240
        %v9242 = vrot.slane %v9226, %v9241
        %v9244 = vunpack.c.l.s4 1966171168
        %v9245 = vunpack.c.0.s8 %v9244
        %v9246 = vlaneseq
        %v9247 = vshrl.u32 %v9246, 7
        %v9248 = vsub.s32 %v9245, %v9247
        %v9249 = vrot.slane %v9233, %v9248
        %v9251 = vunpack.c.l.s4 1966171168
        %v9252 = vunpack.c.0.s8 %v9251
        %v9253 = vlaneseq
        %v9254 = vshrl.u32 %v9253, 7
        %v9255 = vsub.s32 %v9252, %v9254
        %v9256 = vrot.slane %v9234, %v9255
        %v9258 = vunpack.c.l.s4 1966171168
        %v9259 = vunpack.c.0.s8 %v9258
        %v9260 = vlaneseq
        %v9261 = vshrl.u32 %v9260, 7
        %v9262 = vsub.s32 %v9259, %v9261
        %v9263 = vrot.slane %v9235, %v9262
        %v9264 = vcombine.high %v9242, %v9242
        %v9265 = vcombine.high %v9249, %v9249
        %v9266 = vcombine.high %v9256, %v9256
        %v9267 = vcombine.high %v9263, %v9263
        %9276 = vst.msk [vmem:[%s260 + $0x1e] sm:$0x1] %vm650, %v9242
        %9277 = vst.msk [vmem:[%s260 + $0x3e] sm:$0x1] %vm650, %v9256
        %9278 = vst.msk [vmem:[%s260 + $0x5e] sm:$0x1] %vm650, %v9264
        %9279 = vst.msk [vmem:[%s260 + $0x7e] sm:$0x1] %vm650, %v9266
        %9280 = vst.msk [vmem:[%s260 + $0x9e] sm:$0x1] %vm650, %v9249
        %9281 = vst.msk [vmem:[%s260 + $0xbe] sm:$0x1] %vm650, %v9263
        %9282 = vst.msk [vmem:[%s260 + $0xde] sm:$0x1] %vm650, %v9265
        %9283 = vst.msk [vmem:[%s260 + $0xfe] sm:$0x1] %vm650, %v9267
        %v9285 = vsel %vm341, %v9067, 0
        %9287 = vmatprep.subr.mxu0 0.0
        %9288 = vmatpush1.msra.mxu0 0.0
        %9289 = vmatprep.subr.mxu0 0.0
        %9290 = vmatpush1.msra.mxu0 0.0
        %9291 = vmatprep.subr.mxu0 0.0
        %9292 = vmatpush1.msra.mxu0 0.0
        %9293 = vmatprep.subr.mxu0 0.0
        %9294 = vmatpush1.msra.mxu0 0.0
        %9295 = vmatprep.subr.mxu0 0.0
        %9296 = vmatpush1.msra.mxu0 0.0
        %9297 = vmatprep.subr.mxu0 0.0
        %9298 = vmatpush1.msra.mxu0 0.0
        %9299 = vmatprep.subr.mxu0 0.0
        %9300 = vmatpush1.msra.mxu0 0.0
        %9301 = vmatprep.subr.mxu0 0.0
        %9302 = vmatpush1.msra.mxu0 0.0
        %9303 = vmatprep.subr.mxu0 0.0
        %9304 = vmatpush1.msra.mxu0 0.0
        %9305 = vmatprep.subr.mxu0 0.0
        %9306 = vmatpush1.msra.mxu0 0.0
        %9307 = vmatprep.subr.mxu0 0.0
        %9308 = vmatpush1.msra.mxu0 0.0
        %9309 = vmatprep.subr.mxu0 0.0
        %9310 = vmatpush1.msra.mxu0 0.0
        %9311 = vmatprep.subr.mxu0 0.0
        %9312 = vmatpush1.msra.mxu0 0.0
        %9313 = vmatprep.subr.mxu0 0.0
        %9314 = vmatpush1.msra.mxu0 0.0
        %9315 = vmatprep.subr.mxu0 0.0
        %9316 = vmatpush1.msra.mxu0 %v270
        %9317 = vmatprep.subr.mxu0 0.0
        %9318 = vmatpush1.msra.mxu0 %v269
        %9319 = vmatprep.subr.mxu0 0.0
        %9320 = vmatpush2.msra.mxu0 0.0
        %9321 = vmatprep.subr.mxu0 0.0
        %9322 = vmatpush2.msra.mxu0 0.0
        %9323 = vmatprep.subr.mxu0 0.0
        %9324 = vmatpush2.msra.mxu0 0.0
        %9325 = vmatprep.subr.mxu0 0.0
        %9326 = vmatpush2.msra.mxu0 0.0
        %9327 = vmatprep.subr.mxu0 0.0
        %9328 = vmatpush2.msra.mxu0 0.0
        %9329 = vmatprep.subr.mxu0 0.0
        %9330 = vmatpush2.msra.mxu0 0.0
        %9331 = vmatprep.subr.mxu0 0.0
        %9332 = vmatpush2.msra.mxu0 0.0
        %9333 = vmatprep.subr.mxu0 0.0
        %9334 = vmatpush2.msra.mxu0 0.0
        %9335 = vmatprep.subr.mxu0 0.0
        %9336 = vmatpush2.msra.mxu0 0.0
        %9337 = vmatprep.subr.mxu0 0.0
        %9338 = vmatpush2.msra.mxu0 0.0
        %9339 = vmatprep.subr.mxu0 0.0
        %9340 = vmatpush2.msra.mxu0 0.0
        %9341 = vmatprep.subr.mxu0 0.0
        %9342 = vmatpush2.msra.mxu0 0.0
        %9343 = vmatprep.subr.mxu0 0.0
        %9344 = vmatpush2.msra.mxu0 0.0
        %9345 = vmatprep.subr.mxu0 0.0
        %9346 = vmatpush2.msra.mxu0 0.0
        %9347 = vmatprep.subr.mxu0 0.0
        %9348 = vmatpush2.msra.mxu0 0.0
        %9349 = vmatprep.subr.mxu0 0.0
        %9350 = vmatpush2.msra.mxu0 0.0
        %9351 = vmatprep.mubr.f32.mxu0 0.0
        %9352 = vmatmul.mubr.f32.gmra.mxu0 %v9285
        %v9353 = vpop.f32.mrf.mxu0
        %v9354 = vadd.f32 0.0, %v9353
        %v9355 = vpop.f32.mrf.mxu0
        %9356 = vdwg.mxu0
        %v9358 = vsel %vm341, %v9062, 0
        %9360 = vmatprep.subr.mxu0 0.0
        %9361 = vmatpush1.msra.mxu0 0.0
        %9362 = vmatprep.subr.mxu0 0.0
        %9363 = vmatpush1.msra.mxu0 0.0
        %9364 = vmatprep.subr.mxu0 0.0
        %9365 = vmatpush1.msra.mxu0 0.0
        %9366 = vmatprep.subr.mxu0 0.0
        %9367 = vmatpush1.msra.mxu0 0.0
        %9368 = vmatprep.subr.mxu0 0.0
        %9369 = vmatpush1.msra.mxu0 0.0
        %9370 = vmatprep.subr.mxu0 0.0
        %9371 = vmatpush1.msra.mxu0 0.0
        %9372 = vmatprep.subr.mxu0 0.0
        %9373 = vmatpush1.msra.mxu0 0.0
        %9374 = vmatprep.subr.mxu0 0.0
        %9375 = vmatpush1.msra.mxu0 0.0
        %9376 = vmatprep.subr.mxu0 0.0
        %9377 = vmatpush1.msra.mxu0 0.0
        %9378 = vmatprep.subr.mxu0 0.0
        %9379 = vmatpush1.msra.mxu0 0.0
        %9380 = vmatprep.subr.mxu0 0.0
        %9381 = vmatpush1.msra.mxu0 0.0
        %9382 = vmatprep.subr.mxu0 0.0
        %9383 = vmatpush1.msra.mxu0 0.0
        %9384 = vmatprep.subr.mxu0 0.0
        %9385 = vmatpush1.msra.mxu0 0.0
        %9386 = vmatprep.subr.mxu0 0.0
        %9387 = vmatpush1.msra.mxu0 0.0
        %9388 = vmatprep.subr.mxu0 0.0
        %9389 = vmatpush1.msra.mxu0 %v268
        %9390 = vmatprep.subr.mxu0 0.0
        %9391 = vmatpush1.msra.mxu0 %v267
        %9392 = vmatprep.subr.mxu0 0.0
        %9393 = vmatpush2.msra.mxu0 0.0
        %9394 = vmatprep.subr.mxu0 0.0
        %9395 = vmatpush2.msra.mxu0 0.0
        %9396 = vmatprep.subr.mxu0 0.0
        %9397 = vmatpush2.msra.mxu0 0.0
        %9398 = vmatprep.subr.mxu0 0.0
        %9399 = vmatpush2.msra.mxu0 0.0
        %9400 = vmatprep.subr.mxu0 0.0
        %9401 = vmatpush2.msra.mxu0 0.0
        %9402 = vmatprep.subr.mxu0 0.0
        %9403 = vmatpush2.msra.mxu0 0.0
        %9404 = vmatprep.subr.mxu0 0.0
        %9405 = vmatpush2.msra.mxu0 0.0
        %9406 = vmatprep.subr.mxu0 0.0
        %9407 = vmatpush2.msra.mxu0 0.0
        %9408 = vmatprep.subr.mxu0 0.0
        %9409 = vmatpush2.msra.mxu0 0.0
        %9410 = vmatprep.subr.mxu0 0.0
        %9411 = vmatpush2.msra.mxu0 0.0
        %9412 = vmatprep.subr.mxu0 0.0
        %9413 = vmatpush2.msra.mxu0 0.0
        %9414 = vmatprep.subr.mxu0 0.0
        %9415 = vmatpush2.msra.mxu0 0.0
        %9416 = vmatprep.subr.mxu0 0.0
        %9417 = vmatpush2.msra.mxu0 0.0
        %9418 = vmatprep.subr.mxu0 0.0
        %9419 = vmatpush2.msra.mxu0 0.0
        %9420 = vmatprep.subr.mxu0 0.0
        %9421 = vmatpush2.msra.mxu0 0.0
        %9422 = vmatprep.subr.mxu0 0.0
        %9423 = vmatpush2.msra.mxu0 0.0
        %9424 = vmatprep.mubr.f32.mxu0 0.0
        %9425 = vmatmul.mubr.f32.gmra.mxu0 %v9358
        %v9426 = vpop.f32.mrf.mxu0
        %v9427 = vadd.f32 %v9354, %v9426
        %v9428 = vpop.f32.mrf.mxu0
        %9429 = vdwg.mxu0
        %v9430 = vadd.f32 %v9427, %v588
        %v9431 = vmax.f32 %v9430, 0.0
        %v9433 = vcombine.high %v9431, %v9431
        %v9435 = vunpack.c.l.s4 1966171168
        %v9436 = vunpack.c.0.s8 %v9435
        %v9437 = vlaneseq
        %v9438 = vshrl.u32 %v9437, 7
        %v9439 = vsub.s32 %v9436, %v9438
        %v9440 = vrot.slane %v9431, %v9439
        %v9442 = vunpack.c.l.s4 1966171168
        %v9443 = vunpack.c.0.s8 %v9442
        %v9444 = vlaneseq
        %v9445 = vshrl.u32 %v9444, 7
        %v9446 = vsub.s32 %v9443, %v9445
        %v9447 = vrot.slane %v9433, %v9446
        %v9448 = vcombine.high %v9440, %v9440
        %v9449 = vcombine.high %v9447, %v9447
        %v9451 = vunpack.c.l.s4 1966171168
        %v9452 = vunpack.c.0.s8 %v9451
        %v9453 = vlaneseq
        %v9454 = vshrl.u32 %v9453, 7
        %v9455 = vsub.s32 %v9452, %v9454
        %v9456 = vrot.slane %v9440, %v9455
        %v9458 = vunpack.c.l.s4 1966171168
        %v9459 = vunpack.c.0.s8 %v9458
        %v9460 = vlaneseq
        %v9461 = vshrl.u32 %v9460, 7
        %v9462 = vsub.s32 %v9459, %v9461
        %v9463 = vrot.slane %v9447, %v9462
        %v9465 = vunpack.c.l.s4 1966171168
        %v9466 = vunpack.c.0.s8 %v9465
        %v9467 = vlaneseq
        %v9468 = vshrl.u32 %v9467, 7
        %v9469 = vsub.s32 %v9466, %v9468
        %v9470 = vrot.slane %v9448, %v9469
        %v9472 = vunpack.c.l.s4 1966171168
        %v9473 = vunpack.c.0.s8 %v9472
        %v9474 = vlaneseq
        %v9475 = vshrl.u32 %v9474, 7
        %v9476 = vsub.s32 %v9473, %v9475
        %v9477 = vrot.slane %v9449, %v9476
        %v9478 = vcombine.high %v9456, %v9456
        %v9479 = vcombine.high %v9463, %v9463
        %v9480 = vcombine.high %v9470, %v9470
        %v9481 = vcombine.high %v9477, %v9477
        %9490 = vst.msk [vmem:[%s260 + $0x1f] sm:$0x1] %vm650, %v9456
        %9491 = vst.msk [vmem:[%s260 + $0x3f] sm:$0x1] %vm650, %v9470
        %9492 = vst.msk [vmem:[%s260 + $0x5f] sm:$0x1] %vm650, %v9478
        %9493 = vst.msk [vmem:[%s260 + $0x7f] sm:$0x1] %vm650, %v9480
        %9494 = vst.msk [vmem:[%s260 + $0x9f] sm:$0x1] %vm650, %v9463
        %9495 = vst.msk [vmem:[%s260 + $0xbf] sm:$0x1] %vm650, %v9477
        %9496 = vst.msk [vmem:[%s260 + $0xdf] sm:$0x1] %vm650, %v9479
        %9497 = vst.msk [vmem:[%s260 + $0xff] sm:$0x1] %vm650, %v9481
        %s9498 = sand.u32 %s156, 1
        %s9499 = scalar_lea.sflag [#allocation4], %s9498
        %s9500 = sand.u32 %s156, 1
        %s9501 = smul.addr %s9500, 256
        %s9502 = scalar_lea.vmem [#allocation5], %s9501
        // Predicated region
        $region45: #{upsampler_forward.1} parent=39 // pred_check
          %p9503 = pneg %p166
        $region46: #{upsampler_forward.1} parent=39 // pred_check_branch
          %9505 = sbr.rel (%p9503) target = $region48
        $region47: #{upsampler_forward.1} parent=39 // pred_region
          %s9506 = smul.u32 4, %s27
          %s9508 = ssub.s32 4096, 4096
          %9509 = vsyncadd %s9499, %s9508
          %s9510 = smul.addr %s26, 32
          %s9511 = sadd.s32 %s9506, %s9510
          %s9512 = smul.addr %s9511, 128
          %s9513 = scalar_lea.hbm %s5, %s9512
          %s9514 = sshll.u32 %s9502, 4
          %s9515 = int_to_ptr.vmem [resolvable:$true] %s9514
          %9520 = dma.vmem_to_hbm [thread:$0]  %s9515, 4096, %s9513, %s9499, 128, 128, 8
        $region48: #{upsampler_forward.1} parent=39 // pred_fallthru
          _
      $region40: #{upsampler_forward.1} parent=5 // pred_fallthru
        _
      %p9521 = scmp.le.s32.totalorder 2, %s17
      // Predicated region
      $region49: #{upsampler_forward.1} parent=5 // pred_check
        %p9522 = pneg %p9521
      $region50: #{upsampler_forward.1} parent=5 // pred_check_branch
        %9524 = sbr.rel (%p9522) target = $region52
      $region51: #{upsampler_forward.1} parent=5 // pred_region
        %s9525 = ssub.s32 %s17, 2
        // Predicated region
        $region53: #{upsampler_forward.1} parent=51 // pred_check
          %p9526 = pneg %p172
        $region54: #{upsampler_forward.1} parent=51 // pred_check_branch
          %9528 = sbr.rel (%p9526) target = $region56
        $region55: #{upsampler_forward.1} parent=51 // pred_region
          %s9529 = sand.u32 %s157, 1
          %s9530 = scalar_lea.sflag [#allocation4], %s9529
          %s9531 = sand.u32 %s157, 1
          %s9532 = smul.addr %s9531, 256
          %s9533 = scalar_lea.vmem [#allocation5], %s9532
          %9534 = dma.done %s9530, 4096
        $region56: #{upsampler_forward.1} parent=51 // pred_fallthru
          _
      $region52: #{upsampler_forward.1} parent=5 // pred_fallthru
        _
    $region6: #{upsampler_forward.1} parent=1 // loop_footer
      %s21 = sadd.s32 1, %s17
    $region7: #{upsampler_forward.1} parent=1 // loop_footer_branch
      %16 = sbr.rel target = $region3
    $region8: #{upsampler_forward.1} parent=1 // loop_exit
      _
    %9535 = vsyncpa [#allocation3], 1
    %s9536 = scalar_lea.sflag [#allocation3], 1
    %9537 = vsyncpa %s9536, 1
    %9538 = vsyncpa [#allocation4], 1
    %s9539 = scalar_lea.sflag [#allocation4], 1
    %9540 = vsyncpa %s9539, 1

</llo_original>
